<compile_context>
chip_gen: v5e
topology: v5e:2x2
jax: 0.10.0
libtpu: 0.0.40
codegen_flags: <defaults>
</compile_context>

<pallas_src>
import functools

import jax
import jax.numpy as jnp
from jax import lax
from jax.experimental import pallas as pl
from jax.experimental.pallas import tpu as pltpu


INTER = (1024, 512, 256, 128)
Z_SCALE = (512 // 2) / 200.0            # constant from the reference code


# ----------------------------------------------------------------------------
# othogonal() from the reference (only used when `normal` is passed; plain JAX)
# ----------------------------------------------------------------------------
def othogonal(points, calibrations, transforms=None):
    rot = calibrations[:, :3, :3]                      # [B,3,3]
    trans = calibrations[:, :3, 3:4]                   # [B,3,1]
    pts = jnp.einsum("bij,bnj->bin", rot, points) + trans
    if transforms is not None:
        scale = transforms[:2, :2]
        shift = transforms[:2, 2:3]
        xy = jnp.einsum("ij,bjn->bin", scale, pts[:, :2, :]) + shift
        pts = pts.at[:, :2, :].set(xy)
    return jnp.transpose(pts, (0, 2, 1))


# ----------------------------------------------------------------------------
# Fused Pallas kernel: 4-tap gather + z-feature + 5-layer point MLP.
# ----------------------------------------------------------------------------
def _pifu_point_kernel(
    # scalar prefetch (SMEM)
    x0_ref, y0_ref,
    # VMEM inputs
    pts_ref, feat_ref,
    w0f_ref, w0z_ref, b0_ref,
    w1f_ref, w1z_ref, w1h_ref, b1_ref,
    w2f_ref, w2z_ref, w2h_ref, b2_ref,
    w3f_ref, w3z_ref, w3h_ref, b3_ref,
    w4_ref, b4_ref,
    # output
    out_ref,
    # scratch (VMEM)
    t00_ref, t01_ref, t10_ref, t11_ref,
    *, H, W, N_pad, TN,
):
    b = pl.program_id(0)
    n = pl.program_id(1)
    base = b * N_pad + n * TN

    # ---- bilinear neighbourhood: 4 dynamic row loads per point -------------
    def gather_body(i, carry):
        x0 = x0_ref[base + i]
        y0 = y0_ref[base + i]
        x1 = jnp.minimum(x0 + 1, W - 1)       # border clamp
        y1 = jnp.minimum(y0 + 1, H - 1)
        t00_ref[pl.ds(i, 1), :] = feat_ref[pl.ds(y0 * W + x0, 1), :]
        t01_ref[pl.ds(i, 1), :] = feat_ref[pl.ds(y0 * W + x1, 1), :]
        t10_ref[pl.ds(i, 1), :] = feat_ref[pl.ds(y1 * W + x0, 1), :]
        t11_ref[pl.ds(i, 1), :] = feat_ref[pl.ds(y1 * W + x1, 1), :]
        return carry

    lax.fori_loop(0, TN, gather_body, 0)

    # ---- vectorised fractional weights (VPU) --------------------------------
    pts = pts_ref[...]                        # (TN, 3) f32
    px = pts[:, 0:1]
    py = pts[:, 1:2]
    pz = pts[:, 2:3]
    wmax = jnp.float32(W - 1)
    hmax = jnp.float32(H - 1)
    ix = jnp.clip((px + 1.0) * 0.5 * wmax, 0.0, wmax)   # align_corners=True
    iy = jnp.clip((py + 1.0) * 0.5 * hmax, 0.0, hmax)   # padding_mode='border'
    fx = ix - jnp.floor(ix)
    fy = iy - jnp.floor(iy)

    sampled = ((1.0 - fx) * (1.0 - fy) * t00_ref[...]
               + fx * (1.0 - fy) * t01_ref[...]
               + (1.0 - fx) * fy * t10_ref[...]
               + fx * fy * t11_ref[...])                # (TN, C) f32
    x_bf = sampled.astype(jnp.bfloat16)
    z = pz * Z_SCALE                                    # (TN, 1) f32

    def dense(h_bf16, w_ref):
        return jnp.dot(h_bf16, w_ref[...], preferred_element_type=jnp.float32)

    def lrelu(v):
        return jnp.where(v >= 0, v, 0.2 * v)

    # conv0 .. conv3 : skip-concat expressed as split matmuls + rank-1 z term.
    h0 = lrelu(dense(x_bf, w0f_ref) + z * w0z_ref[...] + b0_ref[...])
    h0b = h0.astype(jnp.bfloat16)
    h1 = lrelu(dense(x_bf, w1f_ref) + dense(h0b, w1h_ref)
               + z * w1z_ref[...] + b1_ref[...])
    h1b = h1.astype(jnp.bfloat16)
    h2 = lrelu(dense(x_bf, w2f_ref) + dense(h1b, w2h_ref)
               + z * w2z_ref[...] + b2_ref[...])
    h2b = h2.astype(jnp.bfloat16)
    h3 = lrelu(dense(x_bf, w3f_ref) + dense(h2b, w3h_ref)
               + z * w3z_ref[...] + b3_ref[...])
    h3b = h3.astype(jnp.bfloat16)

    # conv4 + sigmoid: (1,128) x (TN,128)^T -> (1, TN), lane-dense store.
    logits = lax.dot_general(w4_ref[...], h3b, (((1,), (1,)), ((), ())),
                             preferred_element_type=jnp.float32)
    out_ref[...] = jax.nn.sigmoid(logits + b4_ref[...])


def _round_up(x, m):
    return (x + m - 1) // m * m


def mlp_grid_sample_points(feat_flat, pts, kp, H, W, *, tile_n=512):
    """feat_flat: [B, H*W, C] f32; pts: [B, N, 3] f32 -> [B, N] f32."""
    B, HW, C = feat_flat.shape
    N = pts.shape[1]

    n8 = _round_up(max(N, 1), 8)
    if n8 <= tile_n:
        TN = n8                               # single tile (block == full dim)
    else:
        TN = _round_up(tile_n, 128)           # keep output blocks lane-dense
    N_pad = _round_up(N, TN)
    NT = N_pad // TN

    if N_pad != N:                            # pad tail tile with safe points
        pad = jnp.zeros((B, N_pad - N, 3), pts.dtype)
        pts = jnp.concatenate([pts, pad], axis=1)

    # integer tap indices, scalar-prefetched into SMEM (flattened 1-D).
    ix = jnp.clip((pts[..., 0] + 1.0) * 0.5 * (W - 1), 0.0, W - 1)
    iy = jnp.clip((pts[..., 1] + 1.0) * 0.5 * (H - 1), 0.0, H - 1)
    x0 = jnp.floor(ix).astype(jnp.int32).reshape(B * N_pad)
    y0 = jnp.floor(iy).astype(jnp.int32).reshape(B * N_pad)

    weight_names = ("w0f", "w0z", "b0",
                    "w1f", "w1z", "w1h", "b1",
                    "w2f", "w2z", "w2h", "b2",
                    "w3f", "w3z", "w3h", "b3",
                    "w4", "b4")
    weights = [kp[k] for k in weight_names]

    def const_spec(arr):
        return pl.BlockSpec(arr.shape, lambda b, n, x0r, y0r: (0,) * arr.ndim)

    in_specs = (
        [pl.BlockSpec((None, TN, 3), lambda b, n, x0r, y0r: (b, n, 0)),
         pl.BlockSpec((None, HW, C), lambda b, n, x0r, y0r: (b, 0, 0))]
        + [const_spec(w) for w in weights]
    )
    out_specs = pl.BlockSpec((None, 1, TN), lambda b, n, x0r, y0r: (b, 0, n))

    # VMEM budget: double-buffered feat + weights + per-tile activations.
    # Capped at 48 MiB so the kernel also fits v7x's 64 MiB physical VMEM.
    weight_bytes = sum(w.size * w.dtype.itemsize for w in weights)
    act_bytes = TN * (C + sum(INTER)) * 4 * 2 + 4 * TN * C * 4
    vmem_bytes = 2 * HW * C * 4 + 2 * weight_bytes + 2 * TN * 3 * 4 + act_bytes
    vmem_limit = int(min(max(vmem_bytes + (2 << 20), 8 << 20), 48 << 20))

    out = pl.pallas_call(
        functools.partial(_pifu_point_kernel, H=H, W=W, N_pad=N_pad, TN=TN),
        out_shape=jax.ShapeDtypeStruct((B, 1, N_pad), jnp.float32),
        grid_spec=pltpu.PrefetchScalarGridSpec(
            num_scalar_prefetch=2,
            grid=(B, NT),
            in_specs=in_specs,
            out_specs=out_specs,
            scratch_shapes=[pltpu.VMEM((TN, C), jnp.float32)] * 4,
        ),
        compiler_params=pltpu.CompilerParams(
            dimension_semantics=("parallel", "parallel"),
            vmem_limit_bytes=vmem_limit,
        ),
    )(x0, y0, pts, feat_flat, *weights)
    return out[:, 0, :N]


# ----------------------------------------------------------------------------
# Parameter setup (mirrors MLP.__init__ shapes; xavier gain=0.02, zero biases).
# ----------------------------------------------------------------------------
def init_params(key, feat_dim, in_img_ch=3):
    cin = feat_dim + 1
    gain = 0.02

    def xavier(k, out_c, in_c):
        std = gain * jnp.sqrt(2.0 / (in_c + out_c))
        return std * jax.random.normal(k, (out_c, in_c), jnp.float32)

    k = jax.random.split(key, 6)
    return {
        # TODO(synk): HRNetV2_W18 backbone is not in the reference source;
        # stand-in is a deterministic 1x1 conv 3 -> feat_dim (plain-JAX glue).
        "hrnet_w": 0.1 * jax.random.normal(k[0], (in_img_ch, feat_dim), jnp.float32),
        "hrnet_b": jnp.zeros((feat_dim,), jnp.float32),
        "w0": xavier(k[1], INTER[0], cin),
        "b0": jnp.zeros((INTER[0],), jnp.float32),
        "w1": xavier(k[2], INTER[1], INTER[0] + cin),
        "b1": jnp.zeros((INTER[1],), jnp.float32),
        "w2": xavier(k[3], INTER[2], INTER[1] + cin),
        "b2": jnp.zeros((INTER[2],), jnp.float32),
        "w3": xavier(k[4], INTER[3], INTER[2] + cin),
        "b3": jnp.zeros((INTER[3],), jnp.float32),
        "w4": xavier(k[5], 1, INTER[3]),
        "b4": jnp.zeros((1,), jnp.float32),
    }


def kernel_params(p, feat_dim):
    """Transpose to [C_in, C_out], split skip-concat + z column, cast the
    matmul weights to bf16 (f32 accumulation in-kernel)."""
    C = feat_dim
    cin = C + 1
    kp = {
        "w0f": p["w0"][:, :C].T.astype(jnp.bfloat16),
        "w0z": p["w0"][:, C:cin].T.astype(jnp.float32),     # (1, 1024)
        "b0": p["b0"][None, :].astype(jnp.float32),
    }
    for i in (1, 2, 3):
        w = p[f"w{i}"]
        kp[f"w{i}f"] = w[:, :C].T.astype(jnp.bfloat16)      # feature part of x
        kp[f"w{i}z"] = w[:, C:cin].T.astype(jnp.float32)    # z column (rank-1)
        kp[f"w{i}h"] = w[:, cin:].T.astype(jnp.bfloat16)    # previous layer
        kp[f"b{i}"] = p[f"b{i}"][None, :].astype(jnp.float32)
    kp["w4"] = p["w4"].astype(jnp.bfloat16)                 # (1, 128)
    kp["b4"] = p["b4"][None, :].astype(jnp.float32)         # (1, 1)
    return kp


# ----------------------------------------------------------------------------
# PIFuNet.forward (training path).
# ----------------------------------------------------------------------------
def pifu_forward(params, img, pts, calibration=None, normal=None, *, tile_n=512):
    B, _, H, W = img.shape
    feat_dim = params["hrnet_w"].shape[1]

    if normal is not None:
        img = jnp.concatenate([img, normal], axis=1)
        pts = othogonal(pts, calibration)

    # TODO(synk): HRNet backbone not provided in the reference; deterministic
    # 1x1-conv stub producing a single feature map (plain-JAX glue).
    feat = (jnp.einsum("bchw,cf->bfhw", img[:, :3], params["hrnet_w"])
            + params["hrnet_b"][None, :, None, None])
    img_feats = [feat]

    kp = kernel_params(params, feat_dim)
    pt_sdf_list = []
    for f in img_feats:
        C = f.shape[1]
        feat_flat = jnp.transpose(f, (0, 2, 3, 1)).reshape(B, H * W, C)
        pt_sdf_list.append(
            mlp_grid_sample_points(feat_flat, pts, kp, H, W, tile_n=tile_n))
    return pt_sdf_list


# ----------------------------------------------------------------------------
# Pure-JAX reference (independent gather-based grid_sample + concat MLP, f32).
# ----------------------------------------------------------------------------
def _ref_grid_sample(feat, px, py):
    B, C, H, W = feat.shape
    ix = jnp.clip((px + 1.0) * 0.5 * (W - 1), 0.0, W - 1)
    iy = jnp.clip((py + 1.0) * 0.5 * (H - 1), 0.0, H - 1)
    x0 = jnp.floor(ix); x1 = jnp.minimum(x0 + 1.0, W - 1)
    y0 = jnp.floor(iy); y1 = jnp.minimum(y0 + 1.0, H - 1)
    fx, fy = ix - x0, iy - y0
    x0i, x1i = x0.astype(jnp.int32), x1.astype(jnp.int32)
    y0i, y1i = y0.astype(jnp.int32), y1.astype(jnp.int32)

    gather = jax.vmap(lambda f, yi, xi: f[:, yi, xi])
    nw, ne = gather(feat, y0i, x0i), gather(feat, y0i, x1i)
    sw, se = gather(feat, y1i, x0i), gather(feat, y1i, x1i)
    w_nw = ((1 - fx) * (1 - fy))[:, None, :]
    w_ne = (fx * (1 - fy))[:, None, :]
    w_sw = ((1 - fx) * fy)[:, None, :]
    w_se = (fx * fy)[:, None, :]
    return nw * w_nw + ne * w_ne + sw * w_sw + se * w_se          # (B, C, N)


def ref_pifu_forward(params, img, pts):
    feat = (jnp.einsum("bchw,cf->bfhw", img, params["hrnet_w"])
            + params["hrnet_b"][None, :, None, None])
    samp = _ref_grid_sample(feat, pts[..., 0], pts[..., 1])        # (B, C, N)
    z = (pts[..., 2] * Z_SCALE)[:, None, :]                        # (B, 1, N)
    x = jnp.concatenate([samp, z], axis=1)

    def conv(w, b, v):
        return jnp.einsum("oc,bcn->bon", w, v) + b[None, :, None]

    lrelu = lambda v: jnp.where(v >= 0, v, 0.2 * v)
    h0 = lrelu(conv(params["w0"], params["b0"], x))
    h1 = lrelu(conv(params["w1"], params["b1"], jnp.concatenate([x, h0], 1)))
    h2 = lrelu(conv(params["w2"], params["b2"], jnp.concatenate([x, h1], 1)))
    h3 = lrelu(conv(params["w3"], params["b3"], jnp.concatenate([x, h2], 1)))
    out = jax.nn.sigmoid(conv(params["w4"], params["b4"], h3))
    return out[:, 0, :]                                            # (B, N)


if __name__ == "__main__":
    B, C_IMG, H, W, N = 2, 3, 16, 16, 200
    FEAT_DIM = 32

    key = jax.random.PRNGKey(0)
    k_img, k_pts, k_par = jax.random.split(key, 3)
    img = jax.random.normal(k_img, (B, C_IMG, H, W), jnp.float32)
    pts = jax.random.uniform(k_pts, (B, N, 3), jnp.float32, minval=-1.1, maxval=1.1)
    calibration = jnp.tile(jnp.eye(4, dtype=jnp.float32)[None], (B, 1, 1))

    params = init_params(k_par, FEAT_DIM, in_img_ch=C_IMG)

    # tile_n=128 -> two point tiles of 128 with a padded tail (exercises the
    # point-axis grid, the lane-dense output blocks and the tail handling).
    sdf_list = pifu_forward(params, img, pts, calibration, tile_n=128)
    sdf = jax.block_until_ready(sdf_list[0])

    ref = ref_pifu_forward(params, img, pts)
    assert sdf.shape == (B, N), sdf.shape
    assert jnp.allclose(sdf, ref, atol=2e-3, rtol=0.0), \
        float(jnp.max(jnp.abs(sdf - ref)))
    print("KERNEL_OK")
</pallas_src>

<mosaic_0001>
module attributes {stable_mosaic.version = 11 : i64} {
  func.func @_pifu_point_kernel(%arg0: i32, %arg1: i32, %arg2: memref<512xi32, #tpu.memory_space<smem>>, %arg3: memref<512xi32, #tpu.memory_space<smem>>, %arg4: memref<1x128x3xf32, #tpu.memory_space<vmem>>, %arg5: memref<1x256x32xf32, #tpu.memory_space<vmem>>, %arg6: memref<32x1024xbf16, #tpu.memory_space<vmem>>, %arg7: memref<1x1024xf32, #tpu.memory_space<vmem>>, %arg8: memref<1x1024xf32, #tpu.memory_space<vmem>>, %arg9: memref<32x512xbf16, #tpu.memory_space<vmem>>, %arg10: memref<1x512xf32, #tpu.memory_space<vmem>>, %arg11: memref<1024x512xbf16, #tpu.memory_space<vmem>>, %arg12: memref<1x512xf32, #tpu.memory_space<vmem>>, %arg13: memref<32x256xbf16, #tpu.memory_space<vmem>>, %arg14: memref<1x256xf32, #tpu.memory_space<vmem>>, %arg15: memref<512x256xbf16, #tpu.memory_space<vmem>>, %arg16: memref<1x256xf32, #tpu.memory_space<vmem>>, %arg17: memref<32x128xbf16, #tpu.memory_space<vmem>>, %arg18: memref<1x128xf32, #tpu.memory_space<vmem>>, %arg19: memref<256x128xbf16, #tpu.memory_space<vmem>>, %arg20: memref<1x128xf32, #tpu.memory_space<vmem>>, %arg21: memref<1x128xbf16, #tpu.memory_space<vmem>>, %arg22: memref<1x1xf32, #tpu.memory_space<vmem>>, %arg23: memref<1x1x128xf32, #tpu.memory_space<vmem>>, %arg24: memref<128x32xf32, #tpu.memory_space<vmem>>, %arg25: memref<128x32xf32, #tpu.memory_space<vmem>>, %arg26: memref<128x32xf32, #tpu.memory_space<vmem>>, %arg27: memref<128x32xf32, #tpu.memory_space<vmem>>) attributes {dimension_semantics = [#tpu.dimension_semantics<parallel>, #tpu.dimension_semantics<parallel>], iteration_bounds = array<i64: 2, 2>, scalar_prefetch = 2 : i64, scratch_operands = 4 : i64, tpu.core_type = #tpu.core_type<tc>, window_params = [{transform_indices = @transform_0, window_bounds = array<i64: 1, 128, 3>}, {transform_indices = @transform_1, window_bounds = array<i64: 1, 256, 32>}, {pipeline_mode = #tpu.pipeline_mode<synchronous>, transform_indices = @transform_2, window_bounds = array<i64: 32, 1024>}, {pipeline_mode = #tpu.pipeline_mode<synchronous>, transform_indices = @transform_3, window_bounds = array<i64: 1, 1024>}, {pipeline_mode = #tpu.pipeline_mode<synchronous>, transform_indices = @transform_4, window_bounds = array<i64: 1, 1024>}, {pipeline_mode = #tpu.pipeline_mode<synchronous>, transform_indices = @transform_5, window_bounds = array<i64: 32, 512>}, {pipeline_mode = #tpu.pipeline_mode<synchronous>, transform_indices = @transform_6, window_bounds = array<i64: 1, 512>}, {pipeline_mode = #tpu.pipeline_mode<synchronous>, transform_indices = @transform_7, window_bounds = array<i64: 1024, 512>}, {pipeline_mode = #tpu.pipeline_mode<synchronous>, transform_indices = @transform_8, window_bounds = array<i64: 1, 512>}, {pipeline_mode = #tpu.pipeline_mode<synchronous>, transform_indices = @transform_9, window_bounds = array<i64: 32, 256>}, {pipeline_mode = #tpu.pipeline_mode<synchronous>, transform_indices = @transform_10, window_bounds = array<i64: 1, 256>}, {pipeline_mode = #tpu.pipeline_mode<synchronous>, transform_indices = @transform_11, window_bounds = array<i64: 512, 256>}, {pipeline_mode = #tpu.pipeline_mode<synchronous>, transform_indices = @transform_12, window_bounds = array<i64: 1, 256>}, {pipeline_mode = #tpu.pipeline_mode<synchronous>, transform_indices = @transform_13, window_bounds = array<i64: 32, 128>}, {pipeline_mode = #tpu.pipeline_mode<synchronous>, transform_indices = @transform_14, window_bounds = array<i64: 1, 128>}, {pipeline_mode = #tpu.pipeline_mode<synchronous>, transform_indices = @transform_15, window_bounds = array<i64: 256, 128>}, {pipeline_mode = #tpu.pipeline_mode<synchronous>, transform_indices = @transform_16, window_bounds = array<i64: 1, 128>}, {pipeline_mode = #tpu.pipeline_mode<synchronous>, transform_indices = @transform_17, window_bounds = array<i64: 1, 128>}, {pipeline_mode = #tpu.pipeline_mode<synchronous>, transform_indices = @transform_18, window_bounds = array<i64: 1, 1>}, {transform_indices = @transform_19, window_bounds = array<i64: 1, 1, 128>}]} {
    %c256_i32 = arith.constant 256 : i32
    %0 = arith.muli %arg0, %c256_i32 : i32
    %c128_i32 = arith.constant 128 : i32
    %1 = arith.muli %arg1, %c128_i32 : i32
    %2 = arith.addi %0, %1 : i32
    %c0_i32 = arith.constant 0 : i32
    %c128_i32_0 = arith.constant 128 : i32
    %3 = arith.addi %c0_i32, %c128_i32_0 : i32
    %c1_i32 = arith.constant 1 : i32
    scf.for %arg28 = %c0_i32 to %3 step %c1_i32  : i32 {
      %149 = arith.addi %2, %arg28 : i32
      %150 = arith.index_cast %149 : i32 to index
      %151 = memref.load %arg2[%150] : memref<512xi32, #tpu.memory_space<smem>>
      %152 = arith.addi %2, %arg28 : i32
      %153 = arith.index_cast %152 : i32 to index
      %154 = memref.load %arg3[%153] : memref<512xi32, #tpu.memory_space<smem>>
      %c1_i32_80 = arith.constant 1 : i32
      %155 = arith.addi %151, %c1_i32_80 : i32
      %c15_i32 = arith.constant 15 : i32
      %156 = arith.minsi %155, %c15_i32 : i32
      %c1_i32_81 = arith.constant 1 : i32
      %157 = arith.addi %154, %c1_i32_81 : i32
      %c15_i32_82 = arith.constant 15 : i32
      %158 = arith.minsi %157, %c15_i32_82 : i32
      %c16_i32 = arith.constant 16 : i32
      %159 = arith.muli %154, %c16_i32 : i32
      %160 = arith.addi %159, %151 : i32
      %c0_83 = arith.constant 0 : index
      %161 = arith.index_cast %160 : i32 to index
      %c0_84 = arith.constant 0 : index
      %162 = vector.load %arg5[%c0_83, %161, %c0_84] : memref<1x256x32xf32, #tpu.memory_space<vmem>>, vector<1x1x32xf32>
      %163 = vector.shape_cast %162 : vector<1x1x32xf32> to vector<1x32xf32>
      %164 = arith.index_cast %arg28 : i32 to index
      %c0_85 = arith.constant 0 : index
      %165 = vector.load %arg24[%164, %c0_85] : memref<128x32xf32, #tpu.memory_space<vmem>>, vector<1x32xf32>
      tpu.vector_store %arg24[%164, %c0_85], %163 {strides = array<i32>} : memref<128x32xf32, #tpu.memory_space<vmem>>, vector<1x32xf32>,
      %c16_i32_86 = arith.constant 16 : i32
      %166 = arith.muli %154, %c16_i32_86 : i32
      %167 = arith.addi %166, %156 : i32
      %c0_87 = arith.constant 0 : index
      %168 = arith.index_cast %167 : i32 to index
      %c0_88 = arith.constant 0 : index
      %169 = vector.load %arg5[%c0_87, %168, %c0_88] : memref<1x256x32xf32, #tpu.memory_space<vmem>>, vector<1x1x32xf32>
      %170 = vector.shape_cast %169 : vector<1x1x32xf32> to vector<1x32xf32>
      %171 = arith.index_cast %arg28 : i32 to index
      %c0_89 = arith.constant 0 : index
      %172 = vector.load %arg25[%171, %c0_89] : memref<128x32xf32, #tpu.memory_space<vmem>>, vector<1x32xf32>
      tpu.vector_store %arg25[%171, %c0_89], %170 {strides = array<i32>} : memref<128x32xf32, #tpu.memory_space<vmem>>, vector<1x32xf32>,
      %c16_i32_90 = arith.constant 16 : i32
      %173 = arith.muli %158, %c16_i32_90 : i32
      %174 = arith.addi %173, %151 : i32
      %c0_91 = arith.constant 0 : index
      %175 = arith.index_cast %174 : i32 to index
      %c0_92 = arith.constant 0 : index
      %176 = vector.load %arg5[%c0_91, %175, %c0_92] : memref<1x256x32xf32, #tpu.memory_space<vmem>>, vector<1x1x32xf32>
      %177 = vector.shape_cast %176 : vector<1x1x32xf32> to vector<1x32xf32>
      %178 = arith.index_cast %arg28 : i32 to index
      %c0_93 = arith.constant 0 : index
      %179 = vector.load %arg26[%178, %c0_93] : memref<128x32xf32, #tpu.memory_space<vmem>>, vector<1x32xf32>
      tpu.vector_store %arg26[%178, %c0_93], %177 {strides = array<i32>} : memref<128x32xf32, #tpu.memory_space<vmem>>, vector<1x32xf32>,
      %c16_i32_94 = arith.constant 16 : i32
      %180 = arith.muli %158, %c16_i32_94 : i32
      %181 = arith.addi %180, %156 : i32
      %c0_95 = arith.constant 0 : index
      %182 = arith.index_cast %181 : i32 to index
      %c0_96 = arith.constant 0 : index
      %183 = vector.load %arg5[%c0_95, %182, %c0_96] : memref<1x256x32xf32, #tpu.memory_space<vmem>>, vector<1x1x32xf32>
      %184 = vector.shape_cast %183 : vector<1x1x32xf32> to vector<1x32xf32>
      %185 = arith.index_cast %arg28 : i32 to index
      %c0_97 = arith.constant 0 : index
      %186 = vector.load %arg27[%185, %c0_97] : memref<128x32xf32, #tpu.memory_space<vmem>>, vector<1x32xf32>
      tpu.vector_store %arg27[%185, %c0_97], %184 {strides = array<i32>} : memref<128x32xf32, #tpu.memory_space<vmem>>, vector<1x32xf32>,
    }
    %c128_i32_1 = arith.constant 128 : i32
    %c0 = arith.constant 0 : index
    %c0_2 = arith.constant 0 : index
    %c0_3 = arith.constant 0 : index
    %4 = vector.load %arg4[%c0, %c0_2, %c0_3] : memref<1x128x3xf32, #tpu.memory_space<vmem>>, vector<1x128x3xf32>
    %5 = vector.shape_cast %4 : vector<1x128x3xf32> to vector<128x3xf32>
    %6 = vector.extract_strided_slice %5 {offsets = [0, 0], sizes = [128, 1], strides = [1, 1]} : vector<128x3xf32> to vector<128x1xf32>
    %7 = vector.extract_strided_slice %5 {offsets = [0, 1], sizes = [128, 1], strides = [1, 1]} : vector<128x3xf32> to vector<128x1xf32>
    %8 = vector.extract_strided_slice %5 {offsets = [0, 2], sizes = [128, 1], strides = [1, 1]} : vector<128x3xf32> to vector<128x1xf32>
    %cst = arith.constant 1.000000e+00 : f32
    %9 = vector.broadcast %cst : f32 to vector<128x1xf32>
    %10 = arith.addf %6, %9 : vector<128x1xf32>
    %cst_4 = arith.constant 5.000000e-01 : f32
    %11 = vector.broadcast %cst_4 : f32 to vector<128x1xf32>
    %12 = arith.mulf %10, %11 : vector<128x1xf32>
    %cst_5 = arith.constant 1.500000e+01 : f32
    %13 = vector.broadcast %cst_5 : f32 to vector<128x1xf32>
    %14 = arith.mulf %12, %13 : vector<128x1xf32>
    %cst_6 = arith.constant 0.000000e+00 : f32
    %cst_7 = arith.constant 1.500000e+01 : f32
    %15 = vector.broadcast %cst_6 : f32 to vector<128x1xf32>
    %16 = arith.maximumf %15, %14 : vector<128x1xf32>
    %17 = vector.broadcast %cst_7 : f32 to vector<128x1xf32>
    %18 = arith.minimumf %17, %16 : vector<128x1xf32>
    %cst_8 = arith.constant 1.000000e+00 : f32
    %19 = vector.broadcast %cst_8 : f32 to vector<128x1xf32>
    %20 = arith.addf %7, %19 : vector<128x1xf32>
    %cst_9 = arith.constant 5.000000e-01 : f32
    %21 = vector.broadcast %cst_9 : f32 to vector<128x1xf32>
    %22 = arith.mulf %20, %21 : vector<128x1xf32>
    %cst_10 = arith.constant 1.500000e+01 : f32
    %23 = vector.broadcast %cst_10 : f32 to vector<128x1xf32>
    %24 = arith.mulf %22, %23 : vector<128x1xf32>
    %cst_11 = arith.constant 0.000000e+00 : f32
    %cst_12 = arith.constant 1.500000e+01 : f32
    %25 = vector.broadcast %cst_11 : f32 to vector<128x1xf32>
    %26 = arith.maximumf %25, %24 : vector<128x1xf32>
    %27 = vector.broadcast %cst_12 : f32 to vector<128x1xf32>
    %28 = arith.minimumf %27, %26 : vector<128x1xf32>
    %29 = math.floor %18 : vector<128x1xf32>
    %30 = arith.subf %18, %29 : vector<128x1xf32>
    %31 = math.floor %28 : vector<128x1xf32>
    %32 = arith.subf %28, %31 : vector<128x1xf32>
    %cst_13 = arith.constant 1.000000e+00 : f32
    %33 = vector.broadcast %cst_13 : f32 to vector<128x1xf32>
    %34 = arith.subf %33, %30 : vector<128x1xf32>
    %cst_14 = arith.constant 1.000000e+00 : f32
    %35 = vector.broadcast %cst_14 : f32 to vector<128x1xf32>
    %36 = arith.subf %35, %32 : vector<128x1xf32>
    %37 = arith.mulf %34, %36 : vector<128x1xf32>
    %c0_15 = arith.constant 0 : index
    %c0_16 = arith.constant 0 : index
    %38 = vector.load %arg24[%c0_15, %c0_16] : memref<128x32xf32, #tpu.memory_space<vmem>>, vector<128x32xf32>
    %39 = vector.broadcast %37 : vector<128x1xf32> to vector<128x32xf32>
    %40 = arith.mulf %39, %38 : vector<128x32xf32>
    %cst_17 = arith.constant 1.000000e+00 : f32
    %41 = vector.broadcast %cst_17 : f32 to vector<128x1xf32>
    %42 = arith.subf %41, %32 : vector<128x1xf32>
    %43 = arith.mulf %30, %42 : vector<128x1xf32>
    %c0_18 = arith.constant 0 : index
    %c0_19 = arith.constant 0 : index
    %44 = vector.load %arg25[%c0_18, %c0_19] : memref<128x32xf32, #tpu.memory_space<vmem>>, vector<128x32xf32>
    %45 = vector.broadcast %43 : vector<128x1xf32> to vector<128x32xf32>
    %46 = arith.mulf %45, %44 : vector<128x32xf32>
    %47 = arith.addf %40, %46 : vector<128x32xf32>
    %cst_20 = arith.constant 1.000000e+00 : f32
    %48 = vector.broadcast %cst_20 : f32 to vector<128x1xf32>
    %49 = arith.subf %48, %30 : vector<128x1xf32>
    %50 = arith.mulf %49, %32 : vector<128x1xf32>
    %c0_21 = arith.constant 0 : index
    %c0_22 = arith.constant 0 : index
    %51 = vector.load %arg26[%c0_21, %c0_22] : memref<128x32xf32, #tpu.memory_space<vmem>>, vector<128x32xf32>
    %52 = vector.broadcast %50 : vector<128x1xf32> to vector<128x32xf32>
    %53 = arith.mulf %52, %51 : vector<128x32xf32>
    %54 = arith.addf %47, %53 : vector<128x32xf32>
    %55 = arith.mulf %30, %32 : vector<128x1xf32>
    %c0_23 = arith.constant 0 : index
    %c0_24 = arith.constant 0 : index
    %56 = vector.load %arg27[%c0_23, %c0_24] : memref<128x32xf32, #tpu.memory_space<vmem>>, vector<128x32xf32>
    %57 = vector.broadcast %55 : vector<128x1xf32> to vector<128x32xf32>
    %58 = arith.mulf %57, %56 : vector<128x32xf32>
    %59 = arith.addf %54, %58 : vector<128x32xf32>
    %60 = arith.truncf %59 : vector<128x32xf32> to vector<128x32xbf16>
    %cst_25 = arith.constant 1.280000e+00 : f32
    %61 = vector.broadcast %cst_25 : f32 to vector<128x1xf32>
    %62 = arith.mulf %8, %61 : vector<128x1xf32>
    %c0_26 = arith.constant 0 : index
    %c0_27 = arith.constant 0 : index
    %63 = vector.load %arg6[%c0_26, %c0_27] : memref<32x1024xbf16, #tpu.memory_space<vmem>>, vector<32x1024xbf16>
    %cst_28 = arith.constant dense<0.000000e+00> : vector<128x1024xf32>
    %64 = tpu.matmul %60, %63, %cst_28 {dimension_numbers = #tpu.dot_dimension_numbers<[1], [0], [0], [1], [0, 0, 1, 1], [], []>} : vector<128x32xbf16>, vector<32x1024xbf16>, vector<128x1024xf32> -> vector<128x1024xf32>
    %c0_29 = arith.constant 0 : index
    %c0_30 = arith.constant 0 : index
    %65 = vector.load %arg7[%c0_29, %c0_30] : memref<1x1024xf32, #tpu.memory_space<vmem>>, vector<1x1024xf32>
    %66 = vector.broadcast %62 : vector<128x1xf32> to vector<128x1024xf32>
    %67 = vector.broadcast %65 : vector<1x1024xf32> to vector<128x1024xf32>
    %68 = arith.mulf %66, %67 : vector<128x1024xf32>
    %69 = arith.addf %64, %68 : vector<128x1024xf32>
    %c0_31 = arith.constant 0 : index
    %c0_32 = arith.constant 0 : index
    %70 = vector.load %arg8[%c0_31, %c0_32] : memref<1x1024xf32, #tpu.memory_space<vmem>>, vector<1x1024xf32>
    %71 = vector.broadcast %70 : vector<1x1024xf32> to vector<128x1024xf32>
    %72 = arith.addf %69, %71 : vector<128x1024xf32>
    %cst_33 = arith.constant 0.000000e+00 : f32
    %73 = vector.broadcast %cst_33 : f32 to vector<128x1024xf32>
    %74 = arith.cmpf oge, %72, %73 : vector<128x1024xf32>
    %cst_34 = arith.constant 2.000000e-01 : f32
    %75 = vector.broadcast %cst_34 : f32 to vector<128x1024xf32>
    %76 = arith.mulf %75, %72 : vector<128x1024xf32>
    %77 = arith.select %74, %72, %76 : vector<128x1024xi1>, vector<128x1024xf32>
    %78 = arith.truncf %77 : vector<128x1024xf32> to vector<128x1024xbf16>
    %c0_35 = arith.constant 0 : index
    %c0_36 = arith.constant 0 : index
    %79 = vector.load %arg9[%c0_35, %c0_36] : memref<32x512xbf16, #tpu.memory_space<vmem>>, vector<32x512xbf16>
    %cst_37 = arith.constant dense<0.000000e+00> : vector<128x512xf32>
    %80 = tpu.matmul %60, %79, %cst_37 {dimension_numbers = #tpu.dot_dimension_numbers<[1], [0], [0], [1], [0, 0, 1, 1], [], []>} : vector<128x32xbf16>, vector<32x512xbf16>, vector<128x512xf32> -> vector<128x512xf32>
    %c0_38 = arith.constant 0 : index
    %c0_39 = arith.constant 0 : index
    %81 = vector.load %arg11[%c0_38, %c0_39] : memref<1024x512xbf16, #tpu.memory_space<vmem>>, vector<1024x512xbf16>
    %cst_40 = arith.constant dense<0.000000e+00> : vector<128x512xf32>
    %82 = tpu.matmul %78, %81, %cst_40 {dimension_numbers = #tpu.dot_dimension_numbers<[1], [0], [0], [1], [0, 0, 1, 1], [], []>} : vector<128x1024xbf16>, vector<1024x512xbf16>, vector<128x512xf32> -> vector<128x512xf32>
    %83 = arith.addf %80, %82 : vector<128x512xf32>
    %c0_41 = arith.constant 0 : index
    %c0_42 = arith.constant 0 : index
    %84 = vector.load %arg10[%c0_41, %c0_42] : memref<1x512xf32, #tpu.memory_space<vmem>>, vector<1x512xf32>
    %85 = vector.broadcast %62 : vector<128x1xf32> to vector<128x512xf32>
    %86 = vector.broadcast %84 : vector<1x512xf32> to vector<128x512xf32>
    %87 = arith.mulf %85, %86 : vector<128x512xf32>
    %88 = arith.addf %83, %87 : vector<128x512xf32>
    %c0_43 = arith.constant 0 : index
    %c0_44 = arith.constant 0 : index
    %89 = vector.load %arg12[%c0_43, %c0_44] : memref<1x512xf32, #tpu.memory_space<vmem>>, vector<1x512xf32>
    %90 = vector.broadcast %89 : vector<1x512xf32> to vector<128x512xf32>
    %91 = arith.addf %88, %90 : vector<128x512xf32>
    %cst_45 = arith.constant 0.000000e+00 : f32
    %92 = vector.broadcast %cst_45 : f32 to vector<128x512xf32>
    %93 = arith.cmpf oge, %91, %92 : vector<128x512xf32>
    %cst_46 = arith.constant 2.000000e-01 : f32
    %94 = vector.broadcast %cst_46 : f32 to vector<128x512xf32>
    %95 = arith.mulf %94, %91 : vector<128x512xf32>
    %96 = arith.select %93, %91, %95 : vector<128x512xi1>, vector<128x512xf32>
    %97 = arith.truncf %96 : vector<128x512xf32> to vector<128x512xbf16>
    %c0_47 = arith.constant 0 : index
    %c0_48 = arith.constant 0 : index
    %98 = vector.load %arg13[%c0_47, %c0_48] : memref<32x256xbf16, #tpu.memory_space<vmem>>, vector<32x256xbf16>
    %cst_49 = arith.constant dense<0.000000e+00> : vector<128x256xf32>
    %99 = tpu.matmul %60, %98, %cst_49 {dimension_numbers = #tpu.dot_dimension_numbers<[1], [0], [0], [1], [0, 0, 1, 1], [], []>} : vector<128x32xbf16>, vector<32x256xbf16>, vector<128x256xf32> -> vector<128x256xf32>
    %c0_50 = arith.constant 0 : index
    %c0_51 = arith.constant 0 : index
    %100 = vector.load %arg15[%c0_50, %c0_51] : memref<512x256xbf16, #tpu.memory_space<vmem>>, vector<512x256xbf16>
    %cst_52 = arith.constant dense<0.000000e+00> : vector<128x256xf32>
    %101 = tpu.matmul %97, %100, %cst_52 {dimension_numbers = #tpu.dot_dimension_numbers<[1], [0], [0], [1], [0, 0, 1, 1], [], []>} : vector<128x512xbf16>, vector<512x256xbf16>, vector<128x256xf32> -> vector<128x256xf32>
    %102 = arith.addf %99, %101 : vector<128x256xf32>
    %c0_53 = arith.constant 0 : index
    %c0_54 = arith.constant 0 : index
    %103 = vector.load %arg14[%c0_53, %c0_54] : memref<1x256xf32, #tpu.memory_space<vmem>>, vector<1x256xf32>
    %104 = vector.broadcast %62 : vector<128x1xf32> to vector<128x256xf32>
    %105 = vector.broadcast %103 : vector<1x256xf32> to vector<128x256xf32>
    %106 = arith.mulf %104, %105 : vector<128x256xf32>
    %107 = arith.addf %102, %106 : vector<128x256xf32>
    %c0_55 = arith.constant 0 : index
    %c0_56 = arith.constant 0 : index
    %108 = vector.load %arg16[%c0_55, %c0_56] : memref<1x256xf32, #tpu.memory_space<vmem>>, vector<1x256xf32>
    %109 = vector.broadcast %108 : vector<1x256xf32> to vector<128x256xf32>
    %110 = arith.addf %107, %109 : vector<128x256xf32>
    %cst_57 = arith.constant 0.000000e+00 : f32
    %111 = vector.broadcast %cst_57 : f32 to vector<128x256xf32>
    %112 = arith.cmpf oge, %110, %111 : vector<128x256xf32>
    %cst_58 = arith.constant 2.000000e-01 : f32
    %113 = vector.broadcast %cst_58 : f32 to vector<128x256xf32>
    %114 = arith.mulf %113, %110 : vector<128x256xf32>
    %115 = arith.select %112, %110, %114 : vector<128x256xi1>, vector<128x256xf32>
    %116 = arith.truncf %115 : vector<128x256xf32> to vector<128x256xbf16>
    %c0_59 = arith.constant 0 : index
    %c0_60 = arith.constant 0 : index
    %117 = vector.load %arg17[%c0_59, %c0_60] : memref<32x128xbf16, #tpu.memory_space<vmem>>, vector<32x128xbf16>
    %cst_61 = arith.constant dense<0.000000e+00> : vector<128x128xf32>
    %118 = tpu.matmul %60, %117, %cst_61 {dimension_numbers = #tpu.dot_dimension_numbers<[1], [0], [0], [1], [0, 0, 1, 1], [], []>} : vector<128x32xbf16>, vector<32x128xbf16>, vector<128x128xf32> -> vector<128x128xf32>
    %c0_62 = arith.constant 0 : index
    %c0_63 = arith.constant 0 : index
    %119 = vector.load %arg19[%c0_62, %c0_63] : memref<256x128xbf16, #tpu.memory_space<vmem>>, vector<256x128xbf16>
    %cst_64 = arith.constant dense<0.000000e+00> : vector<128x128xf32>
    %120 = tpu.matmul %116, %119, %cst_64 {dimension_numbers = #tpu.dot_dimension_numbers<[1], [0], [0], [1], [0, 0, 1, 1], [], []>} : vector<128x256xbf16>, vector<256x128xbf16>, vector<128x128xf32> -> vector<128x128xf32>
    %121 = arith.addf %118, %120 : vector<128x128xf32>
    %c0_65 = arith.constant 0 : index
    %c0_66 = arith.constant 0 : index
    %122 = vector.load %arg18[%c0_65, %c0_66] : memref<1x128xf32, #tpu.memory_space<vmem>>, vector<1x128xf32>
    %123 = vector.broadcast %62 : vector<128x1xf32> to vector<128x128xf32>
    %124 = vector.broadcast %122 : vector<1x128xf32> to vector<128x128xf32>
    %125 = arith.mulf %123, %124 : vector<128x128xf32>
    %126 = arith.addf %121, %125 : vector<128x128xf32>
    %c0_67 = arith.constant 0 : index
    %c0_68 = arith.constant 0 : index
    %127 = vector.load %arg20[%c0_67, %c0_68] : memref<1x128xf32, #tpu.memory_space<vmem>>, vector<1x128xf32>
    %128 = vector.broadcast %127 : vector<1x128xf32> to vector<128x128xf32>
    %129 = arith.addf %126, %128 : vector<128x128xf32>
    %cst_69 = arith.constant 0.000000e+00 : f32
    %130 = vector.broadcast %cst_69 : f32 to vector<128x128xf32>
    %131 = arith.cmpf oge, %129, %130 : vector<128x128xf32>
    %cst_70 = arith.constant 2.000000e-01 : f32
    %132 = vector.broadcast %cst_70 : f32 to vector<128x128xf32>
    %133 = arith.mulf %132, %129 : vector<128x128xf32>
    %134 = arith.select %131, %129, %133 : vector<128x128xi1>, vector<128x128xf32>
    %135 = arith.truncf %134 : vector<128x128xf32> to vector<128x128xbf16>
    %c0_71 = arith.constant 0 : index
    %c0_72 = arith.constant 0 : index
    %136 = vector.load %arg21[%c0_71, %c0_72] : memref<1x128xbf16, #tpu.memory_space<vmem>>, vector<1x128xbf16>
    %cst_73 = arith.constant dense<0.000000e+00> : vector<1x128xf32>
    %137 = tpu.matmul %136, %135, %cst_73 {dimension_numbers = #tpu.dot_dimension_numbers<[1], [1], [0], [0], [0, 0, 1, 0], [], []>} : vector<1x128xbf16>, vector<128x128xbf16>, vector<1x128xf32> -> vector<1x128xf32>
    %c0_74 = arith.constant 0 : index
    %c0_75 = arith.constant 0 : index
    %138 = vector.load %arg22[%c0_74, %c0_75] : memref<1x1xf32, #tpu.memory_space<vmem>>, vector<1x1xf32>
    %139 = vector.broadcast %138 : vector<1x1xf32> to vector<1x128xf32>
    %140 = arith.addf %137, %139 : vector<1x128xf32>
    %141 = arith.negf %140 : vector<1x128xf32>
    %142 = math.exp %141 : vector<1x128xf32>
    %cst_76 = arith.constant 1.000000e+00 : f32
    %143 = vector.broadcast %cst_76 : f32 to vector<1x128xf32>
    %144 = arith.addf %143, %142 : vector<1x128xf32>
    %145 = arith.divf %143, %144 : vector<1x128xf32>
    %c0_77 = arith.constant 0 : index
    %c0_78 = arith.constant 0 : index
    %c0_79 = arith.constant 0 : index
    %146 = vector.load %arg23[%c0_77, %c0_78, %c0_79] : memref<1x1x128xf32, #tpu.memory_space<vmem>>, vector<1x1x128xf32>
    %147 = vector.shape_cast %146 : vector<1x1x128xf32> to vector<1x128xf32>
    %148 = vector.shape_cast %145 : vector<1x128xf32> to vector<1x1x128xf32>
    tpu.vector_store %arg23[%c0_77, %c0_78, %c0_79], %148 {strides = array<i32>} : memref<1x1x128xf32, #tpu.memory_space<vmem>>, vector<1x1x128xf32>,
    return
  }
  func.func @transform_0(%arg0: i32, %arg1: i32, %arg2: memref<512xi32, #tpu.memory_space<smem>>, %arg3: memref<512xi32, #tpu.memory_space<smem>>) -> (i32, i32, i32) {
    %c0_i32 = arith.constant 0 : i32
    %c0_i32_0 = arith.constant 0 : i32
    return %arg0, %arg1, %c0_i32 : i32, i32, i32
  }
  func.func @transform_1(%arg0: i32, %arg1: i32, %arg2: memref<512xi32, #tpu.memory_space<smem>>, %arg3: memref<512xi32, #tpu.memory_space<smem>>) -> (i32, i32, i32) {
    %c0_i32 = arith.constant 0 : i32
    %c0_i32_0 = arith.constant 0 : i32
    %c0_i32_1 = arith.constant 0 : i32
    return %arg0, %c0_i32, %c0_i32_0 : i32, i32, i32
  }
  func.func @transform_2(%arg0: i32, %arg1: i32, %arg2: memref<512xi32, #tpu.memory_space<smem>>, %arg3: memref<512xi32, #tpu.memory_space<smem>>) -> (i32, i32) {
    %c0_i32 = arith.constant 0 : i32
    %c0_i32_0 = arith.constant 0 : i32
    %c0_i32_1 = arith.constant 0 : i32
    return %c0_i32, %c0_i32_0 : i32, i32
  }
  func.func @transform_3(%arg0: i32, %arg1: i32, %arg2: memref<512xi32, #tpu.memory_space<smem>>, %arg3: memref<512xi32, #tpu.memory_space<smem>>) -> (i32, i32) {
    %c0_i32 = arith.constant 0 : i32
    %c0_i32_0 = arith.constant 0 : i32
    %c0_i32_1 = arith.constant 0 : i32
    return %c0_i32, %c0_i32_0 : i32, i32
  }
  func.func @transform_4(%arg0: i32, %arg1: i32, %arg2: memref<512xi32, #tpu.memory_space<smem>>, %arg3: memref<512xi32, #tpu.memory_space<smem>>) -> (i32, i32) {
    %c0_i32 = arith.constant 0 : i32
    %c0_i32_0 = arith.constant 0 : i32
    %c0_i32_1 = arith.constant 0 : i32
    return %c0_i32, %c0_i32_0 : i32, i32
  }
  func.func @transform_5(%arg0: i32, %arg1: i32, %arg2: memref<512xi32, #tpu.memory_space<smem>>, %arg3: memref<512xi32, #tpu.memory_space<smem>>) -> (i32, i32) {
    %c0_i32 = arith.constant 0 : i32
    %c0_i32_0 = arith.constant 0 : i32
    %c0_i32_1 = arith.constant 0 : i32
    return %c0_i32, %c0_i32_0 : i32, i32
  }
  func.func @transform_6(%arg0: i32, %arg1: i32, %arg2: memref<512xi32, #tpu.memory_space<smem>>, %arg3: memref<512xi32, #tpu.memory_space<smem>>) -> (i32, i32) {
    %c0_i32 = arith.constant 0 : i32
    %c0_i32_0 = arith.constant 0 : i32
    %c0_i32_1 = arith.constant 0 : i32
    return %c0_i32, %c0_i32_0 : i32, i32
  }
  func.func @transform_7(%arg0: i32, %arg1: i32, %arg2: memref<512xi32, #tpu.memory_space<smem>>, %arg3: memref<512xi32, #tpu.memory_space<smem>>) -> (i32, i32) {
    %c0_i32 = arith.constant 0 : i32
    %c0_i32_0 = arith.constant 0 : i32
    %c0_i32_1 = arith.constant 0 : i32
    return %c0_i32, %c0_i32_0 : i32, i32
  }
  func.func @transform_8(%arg0: i32, %arg1: i32, %arg2: memref<512xi32, #tpu.memory_space<smem>>, %arg3: memref<512xi32, #tpu.memory_space<smem>>) -> (i32, i32) {
    %c0_i32 = arith.constant 0 : i32
    %c0_i32_0 = arith.constant 0 : i32
    %c0_i32_1 = arith.constant 0 : i32
    return %c0_i32, %c0_i32_0 : i32, i32
  }
  func.func @transform_9(%arg0: i32, %arg1: i32, %arg2: memref<512xi32, #tpu.memory_space<smem>>, %arg3: memref<512xi32, #tpu.memory_space<smem>>) -> (i32, i32) {
    %c0_i32 = arith.constant 0 : i32
    %c0_i32_0 = arith.constant 0 : i32
    %c0_i32_1 = arith.constant 0 : i32
    return %c0_i32, %c0_i32_0 : i32, i32
  }
  func.func @transform_10(%arg0: i32, %arg1: i32, %arg2: memref<512xi32, #tpu.memory_space<smem>>, %arg3: memref<512xi32, #tpu.memory_space<smem>>) -> (i32, i32) {
    %c0_i32 = arith.constant 0 : i32
    %c0_i32_0 = arith.constant 0 : i32
    %c0_i32_1 = arith.constant 0 : i32
    return %c0_i32, %c0_i32_0 : i32, i32
  }
  func.func @transform_11(%arg0: i32, %arg1: i32, %arg2: memref<512xi32, #tpu.memory_space<smem>>, %arg3: memref<512xi32, #tpu.memory_space<smem>>) -> (i32, i32) {
    %c0_i32 = arith.constant 0 : i32
    %c0_i32_0 = arith.constant 0 : i32
    %c0_i32_1 = arith.constant 0 : i32
    return %c0_i32, %c0_i32_0 : i32, i32
  }
  func.func @transform_12(%arg0: i32, %arg1: i32, %arg2: memref<512xi32, #tpu.memory_space<smem>>, %arg3: memref<512xi32, #tpu.memory_space<smem>>) -> (i32, i32) {
    %c0_i32 = arith.constant 0 : i32
    %c0_i32_0 = arith.constant 0 : i32
    %c0_i32_1 = arith.constant 0 : i32
    return %c0_i32, %c0_i32_0 : i32, i32
  }
  func.func @transform_13(%arg0: i32, %arg1: i32, %arg2: memref<512xi32, #tpu.memory_space<smem>>, %arg3: memref<512xi32, #tpu.memory_space<smem>>) -> (i32, i32) {
    %c0_i32 = arith.constant 0 : i32
    %c0_i32_0 = arith.constant 0 : i32
    %c0_i32_1 = arith.constant 0 : i32
    return %c0_i32, %c0_i32_0 : i32, i32
  }
  func.func @transform_14(%arg0: i32, %arg1: i32, %arg2: memref<512xi32, #tpu.memory_space<smem>>, %arg3: memref<512xi32, #tpu.memory_space<smem>>) -> (i32, i32) {
    %c0_i32 = arith.constant 0 : i32
    %c0_i32_0 = arith.constant 0 : i32
    %c0_i32_1 = arith.constant 0 : i32
    return %c0_i32, %c0_i32_0 : i32, i32
  }
  func.func @transform_15(%arg0: i32, %arg1: i32, %arg2: memref<512xi32, #tpu.memory_space<smem>>, %arg3: memref<512xi32, #tpu.memory_space<smem>>) -> (i32, i32) {
    %c0_i32 = arith.constant 0 : i32
    %c0_i32_0 = arith.constant 0 : i32
    %c0_i32_1 = arith.constant 0 : i32
    return %c0_i32, %c0_i32_0 : i32, i32
  }
  func.func @transform_16(%arg0: i32, %arg1: i32, %arg2: memref<512xi32, #tpu.memory_space<smem>>, %arg3: memref<512xi32, #tpu.memory_space<smem>>) -> (i32, i32) {
    %c0_i32 = arith.constant 0 : i32
    %c0_i32_0 = arith.constant 0 : i32
    %c0_i32_1 = arith.constant 0 : i32
    return %c0_i32, %c0_i32_0 : i32, i32
  }
  func.func @transform_17(%arg0: i32, %arg1: i32, %arg2: memref<512xi32, #tpu.memory_space<smem>>, %arg3: memref<512xi32, #tpu.memory_space<smem>>) -> (i32, i32) {
    %c0_i32 = arith.constant 0 : i32
    %c0_i32_0 = arith.constant 0 : i32
    %c0_i32_1 = arith.constant 0 : i32
    return %c0_i32, %c0_i32_0 : i32, i32
  }
  func.func @transform_18(%arg0: i32, %arg1: i32, %arg2: memref<512xi32, #tpu.memory_space<smem>>, %arg3: memref<512xi32, #tpu.memory_space<smem>>) -> (i32, i32) {
    %c0_i32 = arith.constant 0 : i32
    %c0_i32_0 = arith.constant 0 : i32
    %c0_i32_1 = arith.constant 0 : i32
    return %c0_i32, %c0_i32_0 : i32, i32
  }
  func.func @transform_19(%arg0: i32, %arg1: i32, %arg2: memref<512xi32, #tpu.memory_space<smem>>, %arg3: memref<512xi32, #tpu.memory_space<smem>>) -> (i32, i32, i32) {
    %c0_i32 = arith.constant 0 : i32
    %c0_i32_0 = arith.constant 0 : i32
    return %arg0, %c0_i32, %arg1 : i32, i32, i32
  }
}

</mosaic_0001>

<llo_original>
// kernel: tpu_custom_call.1
$region0: #{tpu_custom_call.1}
  #allocation0 [shape = 'u32[]', space=smem, size = 0x4, offset = 0x4, fixed_abs, tag = 'smem constant byte address 0x4 - core index']
  #allocation1 [shape = 'u32[72,128]{1,0:T(1,128)}', space=vmem, size = 0x9000, scoped, tag = 'internal scratch']
  #allocation2 [shape = 'f32[128,32]{1,0:T(8,128)}', space=vmem, size = 0x10000, scoped, tag = 'scratch operand']
  #allocation3 [shape = 'f32[128,32]{1,0:T(8,128)}', space=vmem, size = 0x10000, scoped, tag = 'scratch operand']
  #allocation4 [shape = 'f32[128,32]{1,0:T(8,128)}', space=vmem, size = 0x10000, scoped, tag = 'scratch operand']
  #allocation5 [shape = 'f32[128,32]{1,0:T(8,128)}', space=vmem, size = 0x10000, scoped, tag = 'scratch operand']
  #allocation6 [shape = 's32[1]{0}', space=sflag, size = 0x4, scoped, tag = 'scoped memory for tpu_custom_call.1']
  #allocation7 [shape = 'u8[2048]{0}', space=smem, size = 0x800, scoped, tag = 'prefetched SMEM operand 0']
  #allocation8 [shape = 'u8[2048]{0}', space=smem, size = 0x800, scoped, tag = 'prefetched SMEM operand 1']
  #allocation9 [shape = 'f32[1,1]{1,0:T(1,128)S(1)}', space=vmem, size = 0x200, scoped, tag = 'scoped memory for tpu_custom_call.1']
  %s0 = inlined_call_operand.vmem [shape: s32[512], index: 0, kind: input, shape index: {}]
  %s1 = inlined_call_operand.vmem [shape: s32[512], index: 1, kind: input, shape index: {}]
  %s2 = inlined_call_operand.vmem [shape: f32[2,256,3], index: 2, kind: input, shape index: {}]
  %s3 = inlined_call_operand.vmem [shape: f32[2,256,32], index: 3, kind: input, shape index: {}]
  %s4 = inlined_call_operand.vmem [shape: bf16[32,1024], index: 4, kind: input, shape index: {}]
  %s5 = inlined_call_operand.vmem [shape: f32[1,1024], index: 5, kind: input, shape index: {}]
  %s6 = inlined_call_operand.vmem [shape: f32[1,1024], index: 6, kind: input, shape index: {}]
  %s7 = inlined_call_operand.vmem [shape: bf16[32,512], index: 7, kind: input, shape index: {}]
  %s8 = inlined_call_operand.vmem [shape: f32[1,512], index: 8, kind: input, shape index: {}]
  %s9 = inlined_call_operand.hbm [shape: bf16[1024,512], index: 9, kind: input, shape index: {}]
  %s10 = inlined_call_operand.vmem [shape: f32[1,512], index: 10, kind: input, shape index: {}]
  %s11 = inlined_call_operand.vmem [shape: bf16[32,256], index: 11, kind: input, shape index: {}]
  %s12 = inlined_call_operand.vmem [shape: f32[1,256], index: 12, kind: input, shape index: {}]
  %s13 = inlined_call_operand.vmem [shape: bf16[512,256], index: 13, kind: input, shape index: {}]
  %s14 = inlined_call_operand.vmem [shape: f32[1,256], index: 14, kind: input, shape index: {}]
  %s15 = inlined_call_operand.vmem [shape: bf16[32,128], index: 15, kind: input, shape index: {}]
  %s16 = inlined_call_operand.vmem [shape: f32[1,128], index: 16, kind: input, shape index: {}]
  %s17 = inlined_call_operand.vmem [shape: bf16[256,128], index: 17, kind: input, shape index: {}]
  %s18 = inlined_call_operand.vmem [shape: f32[1,128], index: 18, kind: input, shape index: {}]
  %s19 = inlined_call_operand.vmem [shape: bf16[1,128], index: 19, kind: input, shape index: {}]
  %s20 = inlined_call_operand.<no memory space> [shape: f32[1,1], index: 20, kind: input, shape index: {}]
  %s21 = inlined_call_operand.hbm [shape: f32[2,1,256], index: 21, kind: output, shape index: {}]
  %s22 = sld [smem:[#allocation0]]
  $region120: #{tpu_custom_call.1} parent=0
    _
  %s24 = ssub.s32 1, %s22
  %s25 = scalar_select 0, %s24, %s22
  %s27 = sshll.u32 %s0, 4
  %s28 = int_to_ptr.vmem [resolvable:$true] %s27
  %30 = dma.vmem_to_smem %s28, 64, [#allocation7], [#allocation6]
  %s32 = sshll.u32 %s1, 4
  %s33 = int_to_ptr.vmem [resolvable:$true] %s32
  %35 = dma.vmem_to_smem %s33, 64, [#allocation8], [#allocation6]
  %v36 = vstv %s20
  %37 = vst [vmem:[#allocation9] sm:$0x1] %v36
  %39 = dma.done [#allocation6], 128
  %40 = sfence
  $region1: #{tpu_custom_call.1} parent=0
    #allocation10 [shape = 'u8[1048576]{0}', space=vmem, size = 0x100000, scoped, tag = 'input window, operand 9, single buffered']
    #allocation11 [shape = 's32[2]{0}', space=sflag, size = 0x8, scoped, tag = 'scoped memory for tpu_custom_call.1']
    #allocation12 [shape = 's32[2]{0}', space=sflag, size = 0x8, scoped, tag = 'scoped memory for tpu_custom_call.1']
    #allocation13 [shape = 'u8[1024]{0}', space=vmem, size = 0x400, scoped, tag = 'output window, operand 0']
    %41 = vsyncpa [#allocation11], 0
    %42 = vsyncpa [#allocation12], 0
    %s43 = scalar_lea.sflag [#allocation12], 1
    %44 = vsyncpa %s43, 0
    loop: start=0, step=1, limit=6
    $region2: #{tpu_custom_call.1} parent=1 // loop_pre_header
      _
    $region3: #{tpu_custom_call.1} parent=1 // loop_header
      %s46 = sphi 0, %s50
      %p47 = scmp.ge.s32.totalorder %s46, 6
      %s53 = sphi 0, %s65
      %s54 = sphi 0, %s61
      %s55 = sphi 0, %s53
      %s56 = sphi 0, %s54
      %s57 = sphi 0, %s55
      %s58 = sphi 0, %s56
      %s70 = sphi 0, %s72
      %s73 = sphi 0, %s70
      %s74 = sphi 0, %s73
      %s90 = sphi 0, %s74
      %s96 = sphi 0, %s98
      %s99 = sphi 0, %s96
      %s100 = sphi 0, %s99
      %s116 = sphi 0, %s100
      %s120 = sphi 0, %s120
      %s122 = sphi 0, %s120
      %s123 = sphi 0, %s122
      %s137 = sphi 0, %s123
      %s141 = sphi 0, %s141
      %s143 = sphi 0, %s141
      %s144 = sphi 0, %s143
      %s158 = sphi 0, %s144
      %s162 = sphi 0, %s162
      %s164 = sphi 0, %s162
      %s165 = sphi 0, %s164
      %s179 = sphi 0, %s165
      %s183 = sphi 0, %s183
      %s185 = sphi 0, %s183
      %s186 = sphi 0, %s185
      %s200 = sphi 0, %s186
      %s204 = sphi 0, %s204
      %s206 = sphi 0, %s204
      %s207 = sphi 0, %s206
      %s221 = sphi 0, %s207
      %s225 = sphi 0, %s225
      %s227 = sphi 0, %s225
      %s228 = sphi 0, %s227
      %s242 = sphi 0, %s228
      %s246 = sphi 0, %s246
      %s248 = sphi 0, %s246
      %s249 = sphi 0, %s248
      %s263 = sphi 0, %s249
      %s267 = sphi 0, %s267
      %s269 = sphi 0, %s267
      %s270 = sphi 0, %s269
      %s284 = sphi 0, %s270
      %s288 = sphi 0, %s288
      %s290 = sphi 0, %s288
      %s291 = sphi 0, %s290
      %s305 = sphi 0, %s291
      %s309 = sphi 0, %s309
      %s311 = sphi 0, %s309
      %s312 = sphi 0, %s311
      %s326 = sphi 0, %s312
      %s330 = sphi 0, %s330
      %s332 = sphi 0, %s330
      %s333 = sphi 0, %s332
      %s347 = sphi 0, %s333
      %s351 = sphi 0, %s351
      %s353 = sphi 0, %s351
      %s354 = sphi 0, %s353
      %s368 = sphi 0, %s354
      %s372 = sphi 0, %s372
      %s374 = sphi 0, %s372
      %s375 = sphi 0, %s374
      %s389 = sphi 0, %s375
      %s393 = sphi 0, %s393
      %s395 = sphi 0, %s393
      %s396 = sphi 0, %s395
      %s410 = sphi 0, %s396
      %s414 = sphi 0, %s414
      %s416 = sphi 0, %s414
      %s417 = sphi 0, %s416
      %s431 = sphi 0, %s417
      %s435 = sphi 0, %s435
      %s437 = sphi 0, %s435
      %s438 = sphi 0, %s437
      %s452 = sphi 0, %s438
      %s456 = sphi 0, %s456
      %s458 = sphi 0, %s456
      %s459 = sphi 0, %s458
      %s473 = sphi 0, %s459
      %s481 = sphi 0, %s483
      %s484 = sphi 0, %s481
      %s485 = sphi 0, %s484
      %s501 = sphi 0, %s485
    $region4: #{tpu_custom_call.1} parent=1 // loop_header_branch
      %49 = sbr.rel (%p47) target = $region8
    $region5: #{tpu_custom_call.1} parent=1 // loop_body
      %s51 = ssub.s32 %s46, 1
      %s52 = ssub.s32 %s46, 2
      %s59 = sadd.s32 1, %s54
      %p60 = scmp.ge.s32.totalorder %s59, 2
      %s61 = scalar_select %p60, 0, %s59
      %s62 = sadd.s32 1, %s53
      %s63 = scalar_select %p60, %s62, %s53
      %p64 = scmp.ge.s32.totalorder %s63, 2
      %s65 = scalar_select %p64, 0, %s63
      %s66 = ssub.s32 %s53, %s65
      %s67 = ssub.s32 %s54, %s61
      %s68 = sor.u32 %s66, %s67
      %p69 = scmp.eq.s32.totalorder %s68, 0
      %s71 = sadd.s32 %s70, 1
      %s72 = scalar_select %p69, %s70, %s71
      %p75 = pneg %p69
      %p76 = scmp.eq.s32.totalorder %s46, 3
      %p77 = por %p75, %p76
      %p78 = scmp.ne.s32.totalorder %s70, %s73
      %p79 = scmp.eq.s32.totalorder %s46, 0
      %p80 = por %p78, %p79
      %p81 = scmp.ne.s32.totalorder %s70, %s73
      %p82 = scmp.eq.s32.totalorder %s51, 3
      %p83 = por %p81, %p82
      %p84 = scmp.ne.s32.totalorder %s73, %s74
      %p85 = scmp.eq.s32.totalorder %s51, 0
      %p86 = por %p84, %p85
      %p87 = scmp.ne.s32.totalorder %s73, %s74
      %p88 = scmp.eq.s32.totalorder %s52, 3
      %p89 = por %p87, %p88
      %p91 = scmp.ne.s32.totalorder %s74, %s90
      %p92 = scmp.eq.s32.totalorder %s52, 0
      %p93 = por %p91, %p92
      %s94 = ssub.s32 %s53, %s65
      %p95 = scmp.eq.s32.totalorder %s94, 0
      %s97 = sadd.s32 %s96, 1
      %s98 = scalar_select %p95, %s96, %s97
      %p101 = pneg %p95
      %p102 = scmp.eq.s32.totalorder %s46, 3
      %p103 = por %p101, %p102
      %p104 = scmp.ne.s32.totalorder %s96, %s99
      %p105 = scmp.eq.s32.totalorder %s46, 0
      %p106 = por %p104, %p105
      %p107 = scmp.ne.s32.totalorder %s96, %s99
      %p108 = scmp.eq.s32.totalorder %s51, 3
      %p109 = por %p107, %p108
      %p110 = scmp.ne.s32.totalorder %s99, %s100
      %p111 = scmp.eq.s32.totalorder %s51, 0
      %p112 = por %p110, %p111
      %p113 = scmp.ne.s32.totalorder %s99, %s100
      %p114 = scmp.eq.s32.totalorder %s52, 3
      %p115 = por %p113, %p114
      %p117 = scmp.ne.s32.totalorder %s100, %s116
      %p118 = scmp.eq.s32.totalorder %s52, 0
      %p119 = por %p117, %p118
      %s121 = sadd.s32 %s120, 1
      %p124 = scmp.eq.s32.totalorder %s46, 3
      %p125 = scmp.ne.s32.totalorder %s120, %s122
      %p126 = scmp.eq.s32.totalorder %s46, 0
      %p127 = por %p125, %p126
      %p128 = scmp.ne.s32.totalorder %s120, %s122
      %p129 = scmp.eq.s32.totalorder %s51, 3
      %p130 = por %p128, %p129
      %p131 = scmp.ne.s32.totalorder %s122, %s123
      %p132 = scmp.eq.s32.totalorder %s51, 0
      %p133 = por %p131, %p132
      %p134 = scmp.ne.s32.totalorder %s122, %s123
      %p135 = scmp.eq.s32.totalorder %s52, 3
      %p136 = por %p134, %p135
      %p138 = scmp.ne.s32.totalorder %s123, %s137
      %p139 = scmp.eq.s32.totalorder %s52, 0
      %p140 = por %p138, %p139
      %s142 = sadd.s32 %s141, 1
      %p145 = scmp.eq.s32.totalorder %s46, 3
      %p146 = scmp.ne.s32.totalorder %s141, %s143
      %p147 = scmp.eq.s32.totalorder %s46, 0
      %p148 = por %p146, %p147
      %p149 = scmp.ne.s32.totalorder %s141, %s143
      %p150 = scmp.eq.s32.totalorder %s51, 3
      %p151 = por %p149, %p150
      %p152 = scmp.ne.s32.totalorder %s143, %s144
      %p153 = scmp.eq.s32.totalorder %s51, 0
      %p154 = por %p152, %p153
      %p155 = scmp.ne.s32.totalorder %s143, %s144
      %p156 = scmp.eq.s32.totalorder %s52, 3
      %p157 = por %p155, %p156
      %p159 = scmp.ne.s32.totalorder %s144, %s158
      %p160 = scmp.eq.s32.totalorder %s52, 0
      %p161 = por %p159, %p160
      %s163 = sadd.s32 %s162, 1
      %p166 = scmp.eq.s32.totalorder %s46, 3
      %p167 = scmp.ne.s32.totalorder %s162, %s164
      %p168 = scmp.eq.s32.totalorder %s46, 0
      %p169 = por %p167, %p168
      %p170 = scmp.ne.s32.totalorder %s162, %s164
      %p171 = scmp.eq.s32.totalorder %s51, 3
      %p172 = por %p170, %p171
      %p173 = scmp.ne.s32.totalorder %s164, %s165
      %p174 = scmp.eq.s32.totalorder %s51, 0
      %p175 = por %p173, %p174
      %p176 = scmp.ne.s32.totalorder %s164, %s165
      %p177 = scmp.eq.s32.totalorder %s52, 3
      %p178 = por %p176, %p177
      %p180 = scmp.ne.s32.totalorder %s165, %s179
      %p181 = scmp.eq.s32.totalorder %s52, 0
      %p182 = por %p180, %p181
      %s184 = sadd.s32 %s183, 1
      %p187 = scmp.eq.s32.totalorder %s46, 3
      %p188 = scmp.ne.s32.totalorder %s183, %s185
      %p189 = scmp.eq.s32.totalorder %s46, 0
      %p190 = por %p188, %p189
      %p191 = scmp.ne.s32.totalorder %s183, %s185
      %p192 = scmp.eq.s32.totalorder %s51, 3
      %p193 = por %p191, %p192
      %p194 = scmp.ne.s32.totalorder %s185, %s186
      %p195 = scmp.eq.s32.totalorder %s51, 0
      %p196 = por %p194, %p195
      %p197 = scmp.ne.s32.totalorder %s185, %s186
      %p198 = scmp.eq.s32.totalorder %s52, 3
      %p199 = por %p197, %p198
      %p201 = scmp.ne.s32.totalorder %s186, %s200
      %p202 = scmp.eq.s32.totalorder %s52, 0
      %p203 = por %p201, %p202
      %s205 = sadd.s32 %s204, 1
      %p208 = scmp.eq.s32.totalorder %s46, 3
      %p209 = scmp.ne.s32.totalorder %s204, %s206
      %p210 = scmp.eq.s32.totalorder %s46, 0
      %p211 = por %p209, %p210
      %p212 = scmp.ne.s32.totalorder %s204, %s206
      %p213 = scmp.eq.s32.totalorder %s51, 3
      %p214 = por %p212, %p213
      %p215 = scmp.ne.s32.totalorder %s206, %s207
      %p216 = scmp.eq.s32.totalorder %s51, 0
      %p217 = por %p215, %p216
      %p218 = scmp.ne.s32.totalorder %s206, %s207
      %p219 = scmp.eq.s32.totalorder %s52, 3
      %p220 = por %p218, %p219
      %p222 = scmp.ne.s32.totalorder %s207, %s221
      %p223 = scmp.eq.s32.totalorder %s52, 0
      %p224 = por %p222, %p223
      %s226 = sadd.s32 %s225, 1
      %p229 = scmp.eq.s32.totalorder %s46, 3
      %p230 = scmp.ne.s32.totalorder %s225, %s227
      %p231 = scmp.eq.s32.totalorder %s46, 0
      %p232 = por %p230, %p231
      %p233 = scmp.ne.s32.totalorder %s225, %s227
      %p234 = scmp.eq.s32.totalorder %s51, 3
      %p235 = por %p233, %p234
      %p236 = scmp.ne.s32.totalorder %s227, %s228
      %p237 = scmp.eq.s32.totalorder %s51, 0
      %p238 = por %p236, %p237
      %p239 = scmp.ne.s32.totalorder %s227, %s228
      %p240 = scmp.eq.s32.totalorder %s52, 3
      %p241 = por %p239, %p240
      %p243 = scmp.ne.s32.totalorder %s228, %s242
      %p244 = scmp.eq.s32.totalorder %s52, 0
      %p245 = por %p243, %p244
      %s247 = sadd.s32 %s246, 1
      %p250 = scmp.eq.s32.totalorder %s46, 3
      %p251 = scmp.ne.s32.totalorder %s246, %s248
      %p252 = scmp.eq.s32.totalorder %s46, 0
      %p253 = por %p251, %p252
      %p254 = scmp.ne.s32.totalorder %s246, %s248
      %p255 = scmp.eq.s32.totalorder %s51, 3
      %p256 = por %p254, %p255
      %p257 = scmp.ne.s32.totalorder %s248, %s249
      %p258 = scmp.eq.s32.totalorder %s51, 0
      %p259 = por %p257, %p258
      %p260 = scmp.ne.s32.totalorder %s248, %s249
      %p261 = scmp.eq.s32.totalorder %s52, 3
      %p262 = por %p260, %p261
      %p264 = scmp.ne.s32.totalorder %s249, %s263
      %p265 = scmp.eq.s32.totalorder %s52, 0
      %p266 = por %p264, %p265
      %s268 = sadd.s32 %s267, 1
      %p271 = scmp.eq.s32.totalorder %s46, 3
      %p272 = scmp.ne.s32.totalorder %s267, %s269
      %p273 = scmp.eq.s32.totalorder %s46, 0
      %p274 = por %p272, %p273
      %p275 = scmp.ne.s32.totalorder %s267, %s269
      %p276 = scmp.eq.s32.totalorder %s51, 3
      %p277 = por %p275, %p276
      %p278 = scmp.ne.s32.totalorder %s269, %s270
      %p279 = scmp.eq.s32.totalorder %s51, 0
      %p280 = por %p278, %p279
      %p281 = scmp.ne.s32.totalorder %s269, %s270
      %p282 = scmp.eq.s32.totalorder %s52, 3
      %p283 = por %p281, %p282
      %p285 = scmp.ne.s32.totalorder %s270, %s284
      %p286 = scmp.eq.s32.totalorder %s52, 0
      %p287 = por %p285, %p286
      %s289 = sadd.s32 %s288, 1
      %p292 = scmp.eq.s32.totalorder %s46, 3
      %p293 = scmp.ne.s32.totalorder %s288, %s290
      %p294 = scmp.eq.s32.totalorder %s46, 0
      %p295 = por %p293, %p294
      %p296 = scmp.ne.s32.totalorder %s288, %s290
      %p297 = scmp.eq.s32.totalorder %s51, 3
      %p298 = por %p296, %p297
      %p299 = scmp.ne.s32.totalorder %s290, %s291
      %p300 = scmp.eq.s32.totalorder %s51, 0
      %p301 = por %p299, %p300
      %p302 = scmp.ne.s32.totalorder %s290, %s291
      %p303 = scmp.eq.s32.totalorder %s52, 3
      %p304 = por %p302, %p303
      %p306 = scmp.ne.s32.totalorder %s291, %s305
      %p307 = scmp.eq.s32.totalorder %s52, 0
      %p308 = por %p306, %p307
      %s310 = sadd.s32 %s309, 1
      %p313 = scmp.eq.s32.totalorder %s46, 3
      %p314 = scmp.ne.s32.totalorder %s309, %s311
      %p315 = scmp.eq.s32.totalorder %s46, 0
      %p316 = por %p314, %p315
      %p317 = scmp.ne.s32.totalorder %s309, %s311
      %p318 = scmp.eq.s32.totalorder %s51, 3
      %p319 = por %p317, %p318
      %p320 = scmp.ne.s32.totalorder %s311, %s312
      %p321 = scmp.eq.s32.totalorder %s51, 0
      %p322 = por %p320, %p321
      %p323 = scmp.ne.s32.totalorder %s311, %s312
      %p324 = scmp.eq.s32.totalorder %s52, 3
      %p325 = por %p323, %p324
      %p327 = scmp.ne.s32.totalorder %s312, %s326
      %p328 = scmp.eq.s32.totalorder %s52, 0
      %p329 = por %p327, %p328
      %s331 = sadd.s32 %s330, 1
      %p334 = scmp.eq.s32.totalorder %s46, 3
      %p335 = scmp.ne.s32.totalorder %s330, %s332
      %p336 = scmp.eq.s32.totalorder %s46, 0
      %p337 = por %p335, %p336
      %p338 = scmp.ne.s32.totalorder %s330, %s332
      %p339 = scmp.eq.s32.totalorder %s51, 3
      %p340 = por %p338, %p339
      %p341 = scmp.ne.s32.totalorder %s332, %s333
      %p342 = scmp.eq.s32.totalorder %s51, 0
      %p343 = por %p341, %p342
      %p344 = scmp.ne.s32.totalorder %s332, %s333
      %p345 = scmp.eq.s32.totalorder %s52, 3
      %p346 = por %p344, %p345
      %p348 = scmp.ne.s32.totalorder %s333, %s347
      %p349 = scmp.eq.s32.totalorder %s52, 0
      %p350 = por %p348, %p349
      %s352 = sadd.s32 %s351, 1
      %p355 = scmp.eq.s32.totalorder %s46, 3
      %p356 = scmp.ne.s32.totalorder %s351, %s353
      %p357 = scmp.eq.s32.totalorder %s46, 0
      %p358 = por %p356, %p357
      %p359 = scmp.ne.s32.totalorder %s351, %s353
      %p360 = scmp.eq.s32.totalorder %s51, 3
      %p361 = por %p359, %p360
      %p362 = scmp.ne.s32.totalorder %s353, %s354
      %p363 = scmp.eq.s32.totalorder %s51, 0
      %p364 = por %p362, %p363
      %p365 = scmp.ne.s32.totalorder %s353, %s354
      %p366 = scmp.eq.s32.totalorder %s52, 3
      %p367 = por %p365, %p366
      %p369 = scmp.ne.s32.totalorder %s354, %s368
      %p370 = scmp.eq.s32.totalorder %s52, 0
      %p371 = por %p369, %p370
      %s373 = sadd.s32 %s372, 1
      %p376 = scmp.eq.s32.totalorder %s46, 3
      %p377 = scmp.ne.s32.totalorder %s372, %s374
      %p378 = scmp.eq.s32.totalorder %s46, 0
      %p379 = por %p377, %p378
      %p380 = scmp.ne.s32.totalorder %s372, %s374
      %p381 = scmp.eq.s32.totalorder %s51, 3
      %p382 = por %p380, %p381
      %p383 = scmp.ne.s32.totalorder %s374, %s375
      %p384 = scmp.eq.s32.totalorder %s51, 0
      %p385 = por %p383, %p384
      %p386 = scmp.ne.s32.totalorder %s374, %s375
      %p387 = scmp.eq.s32.totalorder %s52, 3
      %p388 = por %p386, %p387
      %p390 = scmp.ne.s32.totalorder %s375, %s389
      %p391 = scmp.eq.s32.totalorder %s52, 0
      %p392 = por %p390, %p391
      %s394 = sadd.s32 %s393, 1
      %p397 = scmp.eq.s32.totalorder %s46, 3
      %p398 = scmp.ne.s32.totalorder %s393, %s395
      %p399 = scmp.eq.s32.totalorder %s46, 0
      %p400 = por %p398, %p399
      %p401 = scmp.ne.s32.totalorder %s393, %s395
      %p402 = scmp.eq.s32.totalorder %s51, 3
      %p403 = por %p401, %p402
      %p404 = scmp.ne.s32.totalorder %s395, %s396
      %p405 = scmp.eq.s32.totalorder %s51, 0
      %p406 = por %p404, %p405
      %p407 = scmp.ne.s32.totalorder %s395, %s396
      %p408 = scmp.eq.s32.totalorder %s52, 3
      %p409 = por %p407, %p408
      %p411 = scmp.ne.s32.totalorder %s396, %s410
      %p412 = scmp.eq.s32.totalorder %s52, 0
      %p413 = por %p411, %p412
      %s415 = sadd.s32 %s414, 1
      %p418 = scmp.eq.s32.totalorder %s46, 3
      %p419 = scmp.ne.s32.totalorder %s414, %s416
      %p420 = scmp.eq.s32.totalorder %s46, 0
      %p421 = por %p419, %p420
      %p422 = scmp.ne.s32.totalorder %s414, %s416
      %p423 = scmp.eq.s32.totalorder %s51, 3
      %p424 = por %p422, %p423
      %p425 = scmp.ne.s32.totalorder %s416, %s417
      %p426 = scmp.eq.s32.totalorder %s51, 0
      %p427 = por %p425, %p426
      %p428 = scmp.ne.s32.totalorder %s416, %s417
      %p429 = scmp.eq.s32.totalorder %s52, 3
      %p430 = por %p428, %p429
      %p432 = scmp.ne.s32.totalorder %s417, %s431
      %p433 = scmp.eq.s32.totalorder %s52, 0
      %p434 = por %p432, %p433
      %s436 = sadd.s32 %s435, 1
      %p439 = scmp.eq.s32.totalorder %s46, 3
      %p440 = scmp.ne.s32.totalorder %s435, %s437
      %p441 = scmp.eq.s32.totalorder %s46, 0
      %p442 = por %p440, %p441
      %p443 = scmp.ne.s32.totalorder %s435, %s437
      %p444 = scmp.eq.s32.totalorder %s51, 3
      %p445 = por %p443, %p444
      %p446 = scmp.ne.s32.totalorder %s437, %s438
      %p447 = scmp.eq.s32.totalorder %s51, 0
      %p448 = por %p446, %p447
      %p449 = scmp.ne.s32.totalorder %s437, %s438
      %p450 = scmp.eq.s32.totalorder %s52, 3
      %p451 = por %p449, %p450
      %p453 = scmp.ne.s32.totalorder %s438, %s452
      %p454 = scmp.eq.s32.totalorder %s52, 0
      %p455 = por %p453, %p454
      %s457 = sadd.s32 %s456, 1
      %p460 = scmp.eq.s32.totalorder %s46, 3
      %p461 = scmp.ne.s32.totalorder %s456, %s458
      %p462 = scmp.eq.s32.totalorder %s46, 0
      %p463 = por %p461, %p462
      %p464 = scmp.ne.s32.totalorder %s456, %s458
      %p465 = scmp.eq.s32.totalorder %s51, 3
      %p466 = por %p464, %p465
      %p467 = scmp.ne.s32.totalorder %s458, %s459
      %p468 = scmp.eq.s32.totalorder %s51, 0
      %p469 = por %p467, %p468
      %p470 = scmp.ne.s32.totalorder %s458, %s459
      %p471 = scmp.eq.s32.totalorder %s52, 3
      %p472 = por %p470, %p471
      %p474 = scmp.ne.s32.totalorder %s459, %s473
      %p475 = scmp.eq.s32.totalorder %s52, 0
      %p476 = por %p474, %p475
      %s477 = ssub.s32 %s53, %s65
      %s478 = ssub.s32 %s54, %s61
      %s479 = sor.u32 %s477, %s478
      %p480 = scmp.eq.s32.totalorder %s479, 0
      %s482 = sadd.s32 %s481, 1
      %s483 = scalar_select %p480, %s481, %s482
      %p486 = pneg %p480
      %p487 = scmp.eq.s32.totalorder %s46, 3
      %p488 = por %p486, %p487
      %p489 = scmp.ne.s32.totalorder %s481, %s484
      %p490 = scmp.eq.s32.totalorder %s46, 0
      %p491 = por %p489, %p490
      %p492 = scmp.ne.s32.totalorder %s481, %s484
      %p493 = scmp.eq.s32.totalorder %s51, 3
      %p494 = por %p492, %p493
      %p495 = scmp.ne.s32.totalorder %s484, %s485
      %p496 = scmp.eq.s32.totalorder %s51, 0
      %p497 = por %p495, %p496
      %p498 = scmp.ne.s32.totalorder %s484, %s485
      %p499 = scmp.eq.s32.totalorder %s52, 3
      %p500 = por %p498, %p499
      %p502 = scmp.ne.s32.totalorder %s485, %s501
      %p503 = scmp.eq.s32.totalorder %s52, 0
      %p504 = por %p502, %p503
      %p505 = scmp.le.s32.totalorder 1, %s46
      %p506 = scmp.lt.s32.totalorder %s46, 5
      %p507 = pnand %p505, %p506
      %p508 = pneg %p507
      // Predicated region
      $region9: #{tpu_custom_call.1} parent=5 // pred_check
        _
      $region10: #{tpu_custom_call.1} parent=5 // pred_check_branch
        %510 = sbr.rel (%p507) target = $region12
      $region11: #{tpu_custom_call.1} parent=5 // pred_region
        %s511 = ssub.s32 %s46, 1
        // Predicated region
        $region13: #{tpu_custom_call.1} parent=11 // pred_check
          %p512 = pneg %p133
        $region14: #{tpu_custom_call.1} parent=11 // pred_check_branch
          %514 = sbr.rel (%p512) target = $region16
        $region15: #{tpu_custom_call.1} parent=11 // pred_region
          _
        $region16: #{tpu_custom_call.1} parent=11 // pred_fallthru
          _
        // Predicated region
        $region17: #{tpu_custom_call.1} parent=11 // pred_check
          %p515 = pneg %p154
        $region18: #{tpu_custom_call.1} parent=11 // pred_check_branch
          %517 = sbr.rel (%p515) target = $region20
        $region19: #{tpu_custom_call.1} parent=11 // pred_region
          _
        $region20: #{tpu_custom_call.1} parent=11 // pred_fallthru
          _
        // Predicated region
        $region21: #{tpu_custom_call.1} parent=11 // pred_check
          %p518 = pneg %p175
        $region22: #{tpu_custom_call.1} parent=11 // pred_check_branch
          %520 = sbr.rel (%p518) target = $region24
        $region23: #{tpu_custom_call.1} parent=11 // pred_region
          _
        $region24: #{tpu_custom_call.1} parent=11 // pred_fallthru
          _
        // Predicated region
        $region25: #{tpu_custom_call.1} parent=11 // pred_check
          %p521 = pneg %p196
        $region26: #{tpu_custom_call.1} parent=11 // pred_check_branch
          %523 = sbr.rel (%p521) target = $region28
        $region27: #{tpu_custom_call.1} parent=11 // pred_region
          _
        $region28: #{tpu_custom_call.1} parent=11 // pred_fallthru
          _
        // Predicated region
        $region29: #{tpu_custom_call.1} parent=11 // pred_check
          %p524 = pneg %p217
        $region30: #{tpu_custom_call.1} parent=11 // pred_check_branch
          %526 = sbr.rel (%p524) target = $region32
        $region31: #{tpu_custom_call.1} parent=11 // pred_region
          _
        $region32: #{tpu_custom_call.1} parent=11 // pred_fallthru
          _
        // Predicated region
        $region33: #{tpu_custom_call.1} parent=11 // pred_check
          %p527 = pneg %p238
        $region34: #{tpu_custom_call.1} parent=11 // pred_check_branch
          %529 = sbr.rel (%p527) target = $region36
        $region35: #{tpu_custom_call.1} parent=11 // pred_region
          %531 = vsyncadd [#allocation11], 0
          %s532 = sshll.u32 %s9, 4
          %s533 = int_to_ptr.hbm [resolvable:$true] %s532
          %s534 = sshll.u32 [#allocation10], 4
          %s535 = int_to_ptr.vmem [resolvable:$true] %s534
          %540 = dma.hbm_to_vmem [thread:$0]  %s533, 32768, %s535, [#allocation11], 256, 256, 16
        $region36: #{tpu_custom_call.1} parent=11 // pred_fallthru
          _
        // Predicated region
        $region37: #{tpu_custom_call.1} parent=11 // pred_check
          %p541 = pneg %p259
        $region38: #{tpu_custom_call.1} parent=11 // pred_check_branch
          %543 = sbr.rel (%p541) target = $region40
        $region39: #{tpu_custom_call.1} parent=11 // pred_region
          _
        $region40: #{tpu_custom_call.1} parent=11 // pred_fallthru
          _
        // Predicated region
        $region41: #{tpu_custom_call.1} parent=11 // pred_check
          %p544 = pneg %p280
        $region42: #{tpu_custom_call.1} parent=11 // pred_check_branch
          %546 = sbr.rel (%p544) target = $region44
        $region43: #{tpu_custom_call.1} parent=11 // pred_region
          _
        $region44: #{tpu_custom_call.1} parent=11 // pred_fallthru
          _
        // Predicated region
        $region45: #{tpu_custom_call.1} parent=11 // pred_check
          %p547 = pneg %p301
        $region46: #{tpu_custom_call.1} parent=11 // pred_check_branch
          %549 = sbr.rel (%p547) target = $region48
        $region47: #{tpu_custom_call.1} parent=11 // pred_region
          _
        $region48: #{tpu_custom_call.1} parent=11 // pred_fallthru
          _
        // Predicated region
        $region49: #{tpu_custom_call.1} parent=11 // pred_check
          %p550 = pneg %p322
        $region50: #{tpu_custom_call.1} parent=11 // pred_check_branch
          %552 = sbr.rel (%p550) target = $region52
        $region51: #{tpu_custom_call.1} parent=11 // pred_region
          _
        $region52: #{tpu_custom_call.1} parent=11 // pred_fallthru
          _
        // Predicated region
        $region53: #{tpu_custom_call.1} parent=11 // pred_check
          %p553 = pneg %p343
        $region54: #{tpu_custom_call.1} parent=11 // pred_check_branch
          %555 = sbr.rel (%p553) target = $region56
        $region55: #{tpu_custom_call.1} parent=11 // pred_region
          _
        $region56: #{tpu_custom_call.1} parent=11 // pred_fallthru
          _
        // Predicated region
        $region57: #{tpu_custom_call.1} parent=11 // pred_check
          %p556 = pneg %p364
        $region58: #{tpu_custom_call.1} parent=11 // pred_check_branch
          %558 = sbr.rel (%p556) target = $region60
        $region59: #{tpu_custom_call.1} parent=11 // pred_region
          _
        $region60: #{tpu_custom_call.1} parent=11 // pred_fallthru
          _
        // Predicated region
        $region61: #{tpu_custom_call.1} parent=11 // pred_check
          %p559 = pneg %p385
        $region62: #{tpu_custom_call.1} parent=11 // pred_check_branch
          %561 = sbr.rel (%p559) target = $region64
        $region63: #{tpu_custom_call.1} parent=11 // pred_region
          _
        $region64: #{tpu_custom_call.1} parent=11 // pred_fallthru
          _
        // Predicated region
        $region65: #{tpu_custom_call.1} parent=11 // pred_check
          %p562 = pneg %p406
        $region66: #{tpu_custom_call.1} parent=11 // pred_check_branch
          %564 = sbr.rel (%p562) target = $region68
        $region67: #{tpu_custom_call.1} parent=11 // pred_region
          _
        $region68: #{tpu_custom_call.1} parent=11 // pred_fallthru
          _
        // Predicated region
        $region69: #{tpu_custom_call.1} parent=11 // pred_check
          %p565 = pneg %p427
        $region70: #{tpu_custom_call.1} parent=11 // pred_check_branch
          %567 = sbr.rel (%p565) target = $region72
        $region71: #{tpu_custom_call.1} parent=11 // pred_region
          _
        $region72: #{tpu_custom_call.1} parent=11 // pred_fallthru
          _
        // Predicated region
        $region73: #{tpu_custom_call.1} parent=11 // pred_check
          %p568 = pneg %p448
        $region74: #{tpu_custom_call.1} parent=11 // pred_check_branch
          %570 = sbr.rel (%p568) target = $region76
        $region75: #{tpu_custom_call.1} parent=11 // pred_region
          _
        $region76: #{tpu_custom_call.1} parent=11 // pred_fallthru
          _
        // Predicated region
        $region77: #{tpu_custom_call.1} parent=11 // pred_check
          %p571 = pneg %p469
        $region78: #{tpu_custom_call.1} parent=11 // pred_check_branch
          %573 = sbr.rel (%p571) target = $region80
        $region79: #{tpu_custom_call.1} parent=11 // pred_region
          _
        $region80: #{tpu_custom_call.1} parent=11 // pred_fallthru
          _
      $region12: #{tpu_custom_call.1} parent=5 // pred_fallthru
        _
      %p574 = scmp.lt.s32.totalorder %s46, 4
      // Predicated region
      $region81: #{tpu_custom_call.1} parent=5 // pred_check
        %p575 = pneg %p574
      $region82: #{tpu_custom_call.1} parent=5 // pred_check_branch
        %577 = sbr.rel (%p575) target = $region84
      $region83: #{tpu_custom_call.1} parent=5 // pred_region
        // Predicated region
        $region85: #{tpu_custom_call.1} parent=83 // pred_check
          %p578 = pneg %p80
        $region86: #{tpu_custom_call.1} parent=83 // pred_check_branch
          %580 = sbr.rel (%p578) target = $region88
        $region87: #{tpu_custom_call.1} parent=83 // pred_region
          %s581 = smul.u32 16, %s54
          %p582 = scmp.lt.s32.totalorder %s53, 1
          %s583 = scalar_select %p582, %s53, 1
          %p584 = scmp.lt.s32.totalorder %s581, 31
          %s585 = scalar_select %p584, %s581, 31
          %s586 = smul.addr %s583, 32
          %s587 = sadd.s32 %s585, %s586
          %s588 = smul.addr %s587, 8
          %s589 = scalar_lea.vmem %s2, %s588
          %s590 = smul.u32 16, %s54
        $region88: #{tpu_custom_call.1} parent=83 // pred_fallthru
          _
        // Predicated region
        $region89: #{tpu_custom_call.1} parent=83 // pred_check
          %p591 = pneg %p106
        $region90: #{tpu_custom_call.1} parent=83 // pred_check_branch
          %593 = sbr.rel (%p591) target = $region92
        $region91: #{tpu_custom_call.1} parent=83 // pred_region
          %p594 = scmp.lt.s32.totalorder %s53, 1
          %s595 = scalar_select %p594, %s53, 1
          %s596 = smul.addr %s595, 32
          %s597 = smul.addr %s596, 8
          %s598 = scalar_lea.vmem %s3, %s597
        $region92: #{tpu_custom_call.1} parent=83 // pred_fallthru
          _
      $region84: #{tpu_custom_call.1} parent=5 // pred_fallthru
        _
      %p599 = scmp.le.s32.totalorder 1, %s46
      %p600 = scmp.lt.s32.totalorder %s46, 5
      %p601 = pnand %p599, %p600
      %p602 = pneg %p601
      // Predicated region
      $region93: #{tpu_custom_call.1} parent=5 // pred_check
        _
      $region94: #{tpu_custom_call.1} parent=5 // pred_check_branch
        %604 = sbr.rel (%p601) target = $region96
      $region95: #{tpu_custom_call.1} parent=5 // pred_region
        %s605 = ssub.s32 %s46, 1
        // Predicated region
        $region97: #{tpu_custom_call.1} parent=95 // pred_check
          %p606 = pneg %p238
        $region98: #{tpu_custom_call.1} parent=95 // pred_check_branch
          %608 = sbr.rel (%p606) target = $region100
        $region99: #{tpu_custom_call.1} parent=95 // pred_region
          %610 = dma.done [#allocation11], 32768
        $region100: #{tpu_custom_call.1} parent=95 // pred_fallthru
          _
        %s611 = smul.u32 16, %s56
        %p612 = scmp.lt.s32.totalorder %s55, 1
        %s613 = scalar_select %p612, %s55, 1
        %p614 = scmp.lt.s32.totalorder %s611, 31
        %s615 = scalar_select %p614, %s611, 31
        %s616 = smul.addr %s613, 32
        %s617 = sadd.s32 %s615, %s616
        %s618 = smul.addr %s617, 8
        %s619 = scalar_lea.vmem %s2, %s618
        %p620 = pneg %p86
        %p621 = pneg %p83
        %p622 = scmp.lt.s32.totalorder %s55, 1
        %s623 = scalar_select %p622, %s55, 1
        %s624 = smul.addr %s623, 32
        %s625 = smul.addr %s624, 8
        %s626 = scalar_lea.vmem %s3, %s625
        %p627 = pneg %p112
        %p628 = pneg %p109
        %p629 = pneg %p133
        %p630 = pneg %p130
        %p631 = pneg %p154
        %p632 = pneg %p151
        %p633 = pneg %p175
        %p634 = pneg %p172
        %p635 = pneg %p196
        %p636 = pneg %p193
        %p637 = pneg %p217
        %p638 = pneg %p214
        %p639 = pneg %p238
        %p640 = pneg %p235
        %p641 = pneg %p259
        %p642 = pneg %p256
        %p643 = pneg %p280
        %p644 = pneg %p277
        %p645 = pneg %p301
        %p646 = pneg %p298
        %p647 = pneg %p322
        %p648 = pneg %p319
        %p649 = pneg %p343
        %p650 = pneg %p340
        %p651 = pneg %p364
        %p652 = pneg %p361
        %p653 = pneg %p385
        %p654 = pneg %p382
        %p655 = pneg %p406
        %p656 = pneg %p403
        %p657 = pneg %p427
        %p658 = pneg %p424
        %p659 = pneg %p448
        %p660 = pneg %p445
        %p661 = pneg %p469
        %p662 = pneg %p466
        %p663 = pneg %p497
        %p664 = pneg %p494
        %s665 = sand.u32 %s484, 1
        %s666 = scalar_lea.sflag [#allocation12], %s665
        %s667 = sand.u32 %s484, 1
        %s668 = scalar_lea.vmem [#allocation13], %s667
        %s669 = smul.u32 16, %s56
        %p670 = scmp.lt.s32.totalorder %s55, 1
        %s671 = scalar_select %p670, %s55, 1
        %p672 = scmp.lt.s32.totalorder %s669, 31
        %s673 = scalar_select %p672, %s669, 31
        %s674 = smul.addr %s671, 32
        %s675 = sadd.s32 %s673, %s674
        %s676 = smul.addr %s675, 8
        %s677 = scalar_lea.vmem %s2, %s676
        %s678 = smul.u32 16, %s56
        %p679 = scmp.lt.s32.totalorder %s55, 1
        %s680 = scalar_select %p679, %s55, 1
        %s681 = smul.addr %s680, 32
        %s682 = smul.addr %s681, 8
        %s683 = scalar_lea.vmem %s3, %s682
        %s685 = smul.u32 %s55, 256
        %s686 = smul.u32 %s56, 128
        %s687 = sadd.s32 %s685, %s686
        loop: start=0, step=1, limit=128
        $region101: #{tpu_custom_call.1} parent=95 // loop_pre_header
          _
        $region102: #{tpu_custom_call.1} parent=95 // loop_header
          %s689 = sphi 0, %s693
          %p690 = scmp.ge.s32.totalorder %s689, 128
        $region103: #{tpu_custom_call.1} parent=95 // loop_header_branch
          %692 = sbr.rel (%p690) target = $region107
        $region104: #{tpu_custom_call.1} parent=95 // loop_body
          %s694 = sadd.s32 %s687, %s689
          %s695 = sld [smem:[#allocation7 + %s694]]
          %s696 = sld [smem:[#allocation8 + %s694]]
          %s697 = sadd.s32 %s695, 1
          %p698 = scmp.lt.s32.totalorder %s697, 15
          %s699 = scalar_select %p698, %s697, 15
          %s700 = sadd.s32 %s696, 1
          %p701 = scmp.lt.s32.totalorder %s700, 15
          %s702 = scalar_select %p701, %s700, 15
          %s703 = smul.u32 %s696, 16
          %s704 = sadd.s32 %s703, %s695
          %s705 = scalar_lea.vmem %s683, %s704
          %v706 = vld [vmem:[%s705] sm:$0x1]
          %s707 = scalar_lea.vmem [#allocation2], %s689
          %vm708 = vcmask 253952
          %709 = vst.msk [vmem:[%s707] sm:$0x1] %vm708, %v706
          %s710 = sadd.s32 %s703, %s699
          %s711 = scalar_lea.vmem %s683, %s710
          %v712 = vld [vmem:[%s711] sm:$0x1]
          %s713 = scalar_lea.vmem [#allocation3], %s689
          %714 = vst.msk [vmem:[%s713] sm:$0x1] %vm708, %v712
          %s715 = smul.u32 %s702, 16
          %s716 = sadd.s32 %s715, %s695
          %s717 = scalar_lea.vmem %s683, %s716
          %v718 = vld [vmem:[%s717] sm:$0x1]
          %s719 = scalar_lea.vmem [#allocation4], %s689
          %720 = vst.msk [vmem:[%s719] sm:$0x1] %vm708, %v718
          %s721 = sadd.s32 %s715, %s699
          %s722 = scalar_lea.vmem %s683, %s721
          %v723 = vld [vmem:[%s722] sm:$0x1]
          %s724 = scalar_lea.vmem [#allocation5], %s689
          %725 = vst.msk [vmem:[%s724] sm:$0x1] %vm708, %v723
        $region105: #{tpu_custom_call.1} parent=95 // loop_footer
          %s693 = sadd.s32 1, %s689
        $region106: #{tpu_custom_call.1} parent=95 // loop_footer_branch
          %688 = sbr.rel target = $region102
        $region107: #{tpu_custom_call.1} parent=95 // loop_exit
          _
        %v726 = vld [vmem:[%s677] sm:$0xff]
        %v727 = vld [vmem:[%s677 + $0x8] sm:$0xff]
        %v728 = vld [vmem:[%s677 + $0x10] sm:$0xff]
        %v729 = vld [vmem:[%s677 + $0x18] sm:$0xff]
        %v730 = vld [vmem:[%s677 + $0x20] sm:$0xff]
        %v731 = vld [vmem:[%s677 + $0x28] sm:$0xff]
        %v732 = vld [vmem:[%s677 + $0x30] sm:$0xff]
        %v733 = vld [vmem:[%s677 + $0x38] sm:$0xff]
        %v734 = vld [vmem:[%s677 + $0x40] sm:$0xff]
        %v735 = vld [vmem:[%s677 + $0x48] sm:$0xff]
        %v736 = vld [vmem:[%s677 + $0x50] sm:$0xff]
        %v737 = vld [vmem:[%s677 + $0x58] sm:$0xff]
        %v738 = vld [vmem:[%s677 + $0x60] sm:$0xff]
        %v739 = vld [vmem:[%s677 + $0x68] sm:$0xff]
        %v740 = vld [vmem:[%s677 + $0x70] sm:$0xff]
        %v741 = vld [vmem:[%s677 + $0x78] sm:$0xff]
        %v742 = vadd.f32 %v726, 1.0
        %v743 = vadd.f32 %v727, 1.0
        %v744 = vadd.f32 %v728, 1.0
        %v745 = vadd.f32 %v729, 1.0
        %v746 = vadd.f32 %v730, 1.0
        %v747 = vadd.f32 %v731, 1.0
        %v748 = vadd.f32 %v732, 1.0
        %v749 = vadd.f32 %v733, 1.0
        %v750 = vadd.f32 %v734, 1.0
        %v751 = vadd.f32 %v735, 1.0
        %v752 = vadd.f32 %v736, 1.0
        %v753 = vadd.f32 %v737, 1.0
        %v754 = vadd.f32 %v738, 1.0
        %v755 = vadd.f32 %v739, 1.0
        %v756 = vadd.f32 %v740, 1.0
        %v757 = vadd.f32 %v741, 1.0
        %v758 = vmul.f32 %v742, 0.5
        %v759 = vmul.f32 %v743, 0.5
        %v760 = vmul.f32 %v744, 0.5
        %v761 = vmul.f32 %v745, 0.5
        %v762 = vmul.f32 %v746, 0.5
        %v763 = vmul.f32 %v747, 0.5
        %v764 = vmul.f32 %v748, 0.5
        %v765 = vmul.f32 %v749, 0.5
        %v766 = vmul.f32 %v750, 0.5
        %v767 = vmul.f32 %v751, 0.5
        %v768 = vmul.f32 %v752, 0.5
        %v769 = vmul.f32 %v753, 0.5
        %v770 = vmul.f32 %v754, 0.5
        %v771 = vmul.f32 %v755, 0.5
        %v772 = vmul.f32 %v756, 0.5
        %v773 = vmul.f32 %v757, 0.5
        %v774 = vmul.f32 %v758, 15.0
        %v775 = vmul.f32 %v759, 15.0
        %v776 = vmul.f32 %v760, 15.0
        %v777 = vmul.f32 %v761, 15.0
        %v778 = vmul.f32 %v762, 15.0
        %v779 = vmul.f32 %v763, 15.0
        %v780 = vmul.f32 %v764, 15.0
        %v781 = vmul.f32 %v765, 15.0
        %v782 = vmul.f32 %v766, 15.0
        %v783 = vmul.f32 %v767, 15.0
        %v784 = vmul.f32 %v768, 15.0
        %v785 = vmul.f32 %v769, 15.0
        %v786 = vmul.f32 %v770, 15.0
        %v787 = vmul.f32 %v771, 15.0
        %v788 = vmul.f32 %v772, 15.0
        %v789 = vmul.f32 %v773, 15.0
        %v790 = vmax.f32 %v774, 0.0
        %v791 = vmax.f32 %v775, 0.0
        %v792 = vmax.f32 %v776, 0.0
        %v793 = vmax.f32 %v777, 0.0
        %v794 = vmax.f32 %v778, 0.0
        %v795 = vmax.f32 %v779, 0.0
        %v796 = vmax.f32 %v780, 0.0
        %v797 = vmax.f32 %v781, 0.0
        %v798 = vmax.f32 %v782, 0.0
        %v799 = vmax.f32 %v783, 0.0
        %v800 = vmax.f32 %v784, 0.0
        %v801 = vmax.f32 %v785, 0.0
        %v802 = vmax.f32 %v786, 0.0
        %v803 = vmax.f32 %v787, 0.0
        %v804 = vmax.f32 %v788, 0.0
        %v805 = vmax.f32 %v789, 0.0
        %v806 = vmin.f32 %v790, 15.0
        %v807 = vmin.f32 %v791, 15.0
        %v808 = vmin.f32 %v792, 15.0
        %v809 = vmin.f32 %v793, 15.0
        %v810 = vmin.f32 %v794, 15.0
        %v811 = vmin.f32 %v795, 15.0
        %v812 = vmin.f32 %v796, 15.0
        %v813 = vmin.f32 %v797, 15.0
        %v814 = vmin.f32 %v798, 15.0
        %v815 = vmin.f32 %v799, 15.0
        %v816 = vmin.f32 %v800, 15.0
        %v817 = vmin.f32 %v801, 15.0
        %v818 = vmin.f32 %v802, 15.0
        %v819 = vmin.f32 %v803, 15.0
        %v820 = vmin.f32 %v804, 15.0
        %v821 = vmin.f32 %v805, 15.0
        %v822 = vfloor.f32 %v806
        %v823 = vfloor.f32 %v807
        %v824 = vfloor.f32 %v808
        %v825 = vfloor.f32 %v809
        %v826 = vfloor.f32 %v810
        %v827 = vfloor.f32 %v811
        %v828 = vfloor.f32 %v812
        %v829 = vfloor.f32 %v813
        %v830 = vfloor.f32 %v814
        %v831 = vfloor.f32 %v815
        %v832 = vfloor.f32 %v816
        %v833 = vfloor.f32 %v817
        %v834 = vfloor.f32 %v818
        %v835 = vfloor.f32 %v819
        %v836 = vfloor.f32 %v820
        %v837 = vfloor.f32 %v821
        %v838 = vsub.f32 %v806, %v822
        %v839 = vsub.f32 %v807, %v823
        %v840 = vsub.f32 %v808, %v824
        %v841 = vsub.f32 %v809, %v825
        %v842 = vsub.f32 %v810, %v826
        %v843 = vsub.f32 %v811, %v827
        %v844 = vsub.f32 %v812, %v828
        %v845 = vsub.f32 %v813, %v829
        %v846 = vsub.f32 %v814, %v830
        %v847 = vsub.f32 %v815, %v831
        %v848 = vsub.f32 %v816, %v832
        %v849 = vsub.f32 %v817, %v833
        %v850 = vsub.f32 %v818, %v834
        %v851 = vsub.f32 %v819, %v835
        %v852 = vsub.f32 %v820, %v836
        %v853 = vsub.f32 %v821, %v837
        %v854 = vsub.f32 1.0, %v838
        %v855 = vsub.f32 1.0, %v839
        %v856 = vsub.f32 1.0, %v840
        %v857 = vsub.f32 1.0, %v841
        %v858 = vsub.f32 1.0, %v842
        %v859 = vsub.f32 1.0, %v843
        %v860 = vsub.f32 1.0, %v844
        %v861 = vsub.f32 1.0, %v845
        %v862 = vsub.f32 1.0, %v846
        %v863 = vsub.f32 1.0, %v847
        %v864 = vsub.f32 1.0, %v848
        %v865 = vsub.f32 1.0, %v849
        %v866 = vsub.f32 1.0, %v850
        %v867 = vsub.f32 1.0, %v851
        %v868 = vsub.f32 1.0, %v852
        %v869 = vsub.f32 1.0, %v853
        %886 = vrot.lane.b32.xlu0 %v854, 127
        %v887 = vpop.permute.xlu0 %886
        %888 = vrot.lane.b32.xlu0 %v855, 127
        %v889 = vpop.permute.xlu0 %888
        %890 = vrot.lane.b32.xlu0 %v856, 127
        %v891 = vpop.permute.xlu0 %890
        %892 = vrot.lane.b32.xlu0 %v857, 127
        %v893 = vpop.permute.xlu0 %892
        %894 = vrot.lane.b32.xlu0 %v858, 127
        %v895 = vpop.permute.xlu0 %894
        %896 = vrot.lane.b32.xlu0 %v859, 127
        %v897 = vpop.permute.xlu0 %896
        %898 = vrot.lane.b32.xlu0 %v860, 127
        %v899 = vpop.permute.xlu0 %898
        %900 = vrot.lane.b32.xlu0 %v861, 127
        %v901 = vpop.permute.xlu0 %900
        %902 = vrot.lane.b32.xlu0 %v862, 127
        %v903 = vpop.permute.xlu0 %902
        %904 = vrot.lane.b32.xlu0 %v863, 127
        %v905 = vpop.permute.xlu0 %904
        %906 = vrot.lane.b32.xlu0 %v864, 127
        %v907 = vpop.permute.xlu0 %906
        %908 = vrot.lane.b32.xlu0 %v865, 127
        %v909 = vpop.permute.xlu0 %908
        %910 = vrot.lane.b32.xlu0 %v866, 127
        %v911 = vpop.permute.xlu0 %910
        %912 = vrot.lane.b32.xlu0 %v867, 127
        %v913 = vpop.permute.xlu0 %912
        %914 = vrot.lane.b32.xlu0 %v868, 127
        %v915 = vpop.permute.xlu0 %914
        %916 = vrot.lane.b32.xlu0 %v869, 127
        %v917 = vpop.permute.xlu0 %916
        %v934 = vmul.f32 %v854, %v887
        %v935 = vmul.f32 %v855, %v889
        %v936 = vmul.f32 %v856, %v891
        %v937 = vmul.f32 %v857, %v893
        %v938 = vmul.f32 %v858, %v895
        %v939 = vmul.f32 %v859, %v897
        %v940 = vmul.f32 %v860, %v899
        %v941 = vmul.f32 %v861, %v901
        %v942 = vmul.f32 %v862, %v903
        %v943 = vmul.f32 %v863, %v905
        %v944 = vmul.f32 %v864, %v907
        %v945 = vmul.f32 %v865, %v909
        %v946 = vmul.f32 %v866, %v911
        %v947 = vmul.f32 %v867, %v913
        %v948 = vmul.f32 %v868, %v915
        %v949 = vmul.f32 %v869, %v917
        %v950 = vld [vmem:[#allocation2] sm:$0xff]
        %v951 = vld [vmem:[#allocation2 + $0x8] sm:$0xff]
        %v952 = vld [vmem:[#allocation2 + $0x10] sm:$0xff]
        %v953 = vld [vmem:[#allocation2 + $0x18] sm:$0xff]
        %v954 = vld [vmem:[#allocation2 + $0x20] sm:$0xff]
        %v955 = vld [vmem:[#allocation2 + $0x28] sm:$0xff]
        %v956 = vld [vmem:[#allocation2 + $0x30] sm:$0xff]
        %v957 = vld [vmem:[#allocation2 + $0x38] sm:$0xff]
        %v958 = vld [vmem:[#allocation2 + $0x40] sm:$0xff]
        %v959 = vld [vmem:[#allocation2 + $0x48] sm:$0xff]
        %v960 = vld [vmem:[#allocation2 + $0x50] sm:$0xff]
        %v961 = vld [vmem:[#allocation2 + $0x58] sm:$0xff]
        %v962 = vld [vmem:[#allocation2 + $0x60] sm:$0xff]
        %v963 = vld [vmem:[#allocation2 + $0x68] sm:$0xff]
        %v964 = vld [vmem:[#allocation2 + $0x70] sm:$0xff]
        %v965 = vld [vmem:[#allocation2 + $0x78] sm:$0xff]
        %967 = vset.pattern.permute.xlu0 0
        %968 = vperm.xlu0 %967, %v934
        %v969 = vpop.permute.xlu0 %968
        %972 = vset.pattern.permute.xlu0 0
        %973 = vperm.xlu0 %972, %v935
        %v974 = vpop.permute.xlu0 %973
        %977 = vset.pattern.permute.xlu0 0
        %978 = vperm.xlu0 %977, %v936
        %v979 = vpop.permute.xlu0 %978
        %982 = vset.pattern.permute.xlu0 0
        %983 = vperm.xlu0 %982, %v937
        %v984 = vpop.permute.xlu0 %983
        %987 = vset.pattern.permute.xlu0 0
        %988 = vperm.xlu0 %987, %v938
        %v989 = vpop.permute.xlu0 %988
        %992 = vset.pattern.permute.xlu0 0
        %993 = vperm.xlu0 %992, %v939
        %v994 = vpop.permute.xlu0 %993
        %997 = vset.pattern.permute.xlu0 0
        %998 = vperm.xlu0 %997, %v940
        %v999 = vpop.permute.xlu0 %998
        %1002 = vset.pattern.permute.xlu0 0
        %1003 = vperm.xlu0 %1002, %v941
        %v1004 = vpop.permute.xlu0 %1003
        %1007 = vset.pattern.permute.xlu0 0
        %1008 = vperm.xlu0 %1007, %v942
        %v1009 = vpop.permute.xlu0 %1008
        %1012 = vset.pattern.permute.xlu0 0
        %1013 = vperm.xlu0 %1012, %v943
        %v1014 = vpop.permute.xlu0 %1013
        %1017 = vset.pattern.permute.xlu0 0
        %1018 = vperm.xlu0 %1017, %v944
        %v1019 = vpop.permute.xlu0 %1018
        %1022 = vset.pattern.permute.xlu0 0
        %1023 = vperm.xlu0 %1022, %v945
        %v1024 = vpop.permute.xlu0 %1023
        %1027 = vset.pattern.permute.xlu0 0
        %1028 = vperm.xlu0 %1027, %v946
        %v1029 = vpop.permute.xlu0 %1028
        %1032 = vset.pattern.permute.xlu0 0
        %1033 = vperm.xlu0 %1032, %v947
        %v1034 = vpop.permute.xlu0 %1033
        %1037 = vset.pattern.permute.xlu0 0
        %1038 = vperm.xlu0 %1037, %v948
        %v1039 = vpop.permute.xlu0 %1038
        %1042 = vset.pattern.permute.xlu0 0
        %1043 = vperm.xlu0 %1042, %v949
        %v1044 = vpop.permute.xlu0 %1043
        %v1046 = vmul.f32 %v969, %v950
        %v1047 = vmul.f32 %v974, %v951
        %v1048 = vmul.f32 %v979, %v952
        %v1049 = vmul.f32 %v984, %v953
        %v1050 = vmul.f32 %v989, %v954
        %v1051 = vmul.f32 %v994, %v955
        %v1052 = vmul.f32 %v999, %v956
        %v1053 = vmul.f32 %v1004, %v957
        %v1054 = vmul.f32 %v1009, %v958
        %v1055 = vmul.f32 %v1014, %v959
        %v1056 = vmul.f32 %v1019, %v960
        %v1057 = vmul.f32 %v1024, %v961
        %v1058 = vmul.f32 %v1029, %v962
        %v1059 = vmul.f32 %v1034, %v963
        %v1060 = vmul.f32 %v1039, %v964
        %v1061 = vmul.f32 %v1044, %v965
        %v1062 = vmul.f32 %v838, %v887
        %v1063 = vmul.f32 %v839, %v889
        %v1064 = vmul.f32 %v840, %v891
        %v1065 = vmul.f32 %v841, %v893
        %v1066 = vmul.f32 %v842, %v895
        %v1067 = vmul.f32 %v843, %v897
        %v1068 = vmul.f32 %v844, %v899
        %v1069 = vmul.f32 %v845, %v901
        %v1070 = vmul.f32 %v846, %v903
        %v1071 = vmul.f32 %v847, %v905
        %v1072 = vmul.f32 %v848, %v907
        %v1073 = vmul.f32 %v849, %v909
        %v1074 = vmul.f32 %v850, %v911
        %v1075 = vmul.f32 %v851, %v913
        %v1076 = vmul.f32 %v852, %v915
        %v1077 = vmul.f32 %v853, %v917
        %v1078 = vld [vmem:[#allocation3] sm:$0xff]
        %v1079 = vld [vmem:[#allocation3 + $0x8] sm:$0xff]
        %v1080 = vld [vmem:[#allocation3 + $0x10] sm:$0xff]
        %v1081 = vld [vmem:[#allocation3 + $0x18] sm:$0xff]
        %v1082 = vld [vmem:[#allocation3 + $0x20] sm:$0xff]
        %v1083 = vld [vmem:[#allocation3 + $0x28] sm:$0xff]
        %v1084 = vld [vmem:[#allocation3 + $0x30] sm:$0xff]
        %v1085 = vld [vmem:[#allocation3 + $0x38] sm:$0xff]
        %v1086 = vld [vmem:[#allocation3 + $0x40] sm:$0xff]
        %v1087 = vld [vmem:[#allocation3 + $0x48] sm:$0xff]
        %v1088 = vld [vmem:[#allocation3 + $0x50] sm:$0xff]
        %v1089 = vld [vmem:[#allocation3 + $0x58] sm:$0xff]
        %v1090 = vld [vmem:[#allocation3 + $0x60] sm:$0xff]
        %v1091 = vld [vmem:[#allocation3 + $0x68] sm:$0xff]
        %v1092 = vld [vmem:[#allocation3 + $0x70] sm:$0xff]
        %v1093 = vld [vmem:[#allocation3 + $0x78] sm:$0xff]
        %1095 = vset.pattern.permute.xlu0 0
        %1096 = vperm.xlu0 %1095, %v1062
        %v1097 = vpop.permute.xlu0 %1096
        %1100 = vset.pattern.permute.xlu0 0
        %1101 = vperm.xlu0 %1100, %v1063
        %v1102 = vpop.permute.xlu0 %1101
        %1105 = vset.pattern.permute.xlu0 0
        %1106 = vperm.xlu0 %1105, %v1064
        %v1107 = vpop.permute.xlu0 %1106
        %1110 = vset.pattern.permute.xlu0 0
        %1111 = vperm.xlu0 %1110, %v1065
        %v1112 = vpop.permute.xlu0 %1111
        %1115 = vset.pattern.permute.xlu0 0
        %1116 = vperm.xlu0 %1115, %v1066
        %v1117 = vpop.permute.xlu0 %1116
        %1120 = vset.pattern.permute.xlu0 0
        %1121 = vperm.xlu0 %1120, %v1067
        %v1122 = vpop.permute.xlu0 %1121
        %1125 = vset.pattern.permute.xlu0 0
        %1126 = vperm.xlu0 %1125, %v1068
        %v1127 = vpop.permute.xlu0 %1126
        %1130 = vset.pattern.permute.xlu0 0
        %1131 = vperm.xlu0 %1130, %v1069
        %v1132 = vpop.permute.xlu0 %1131
        %1135 = vset.pattern.permute.xlu0 0
        %1136 = vperm.xlu0 %1135, %v1070
        %v1137 = vpop.permute.xlu0 %1136
        %1140 = vset.pattern.permute.xlu0 0
        %1141 = vperm.xlu0 %1140, %v1071
        %v1142 = vpop.permute.xlu0 %1141
        %1145 = vset.pattern.permute.xlu0 0
        %1146 = vperm.xlu0 %1145, %v1072
        %v1147 = vpop.permute.xlu0 %1146
        %1150 = vset.pattern.permute.xlu0 0
        %1151 = vperm.xlu0 %1150, %v1073
        %v1152 = vpop.permute.xlu0 %1151
        %1155 = vset.pattern.permute.xlu0 0
        %1156 = vperm.xlu0 %1155, %v1074
        %v1157 = vpop.permute.xlu0 %1156
        %1160 = vset.pattern.permute.xlu0 0
        %1161 = vperm.xlu0 %1160, %v1075
        %v1162 = vpop.permute.xlu0 %1161
        %1165 = vset.pattern.permute.xlu0 0
        %1166 = vperm.xlu0 %1165, %v1076
        %v1167 = vpop.permute.xlu0 %1166
        %1170 = vset.pattern.permute.xlu0 0
        %1171 = vperm.xlu0 %1170, %v1077
        %v1172 = vpop.permute.xlu0 %1171
        %v1174 = vmul.f32 %v1097, %v1078
        %v1175 = vmul.f32 %v1102, %v1079
        %v1176 = vmul.f32 %v1107, %v1080
        %v1177 = vmul.f32 %v1112, %v1081
        %v1178 = vmul.f32 %v1117, %v1082
        %v1179 = vmul.f32 %v1122, %v1083
        %v1180 = vmul.f32 %v1127, %v1084
        %v1181 = vmul.f32 %v1132, %v1085
        %v1182 = vmul.f32 %v1137, %v1086
        %v1183 = vmul.f32 %v1142, %v1087
        %v1184 = vmul.f32 %v1147, %v1088
        %v1185 = vmul.f32 %v1152, %v1089
        %v1186 = vmul.f32 %v1157, %v1090
        %v1187 = vmul.f32 %v1162, %v1091
        %v1188 = vmul.f32 %v1167, %v1092
        %v1189 = vmul.f32 %v1172, %v1093
        %v1190 = vadd.f32 %v1046, %v1174
        %v1191 = vadd.f32 %v1047, %v1175
        %v1192 = vadd.f32 %v1048, %v1176
        %v1193 = vadd.f32 %v1049, %v1177
        %v1194 = vadd.f32 %v1050, %v1178
        %v1195 = vadd.f32 %v1051, %v1179
        %v1196 = vadd.f32 %v1052, %v1180
        %v1197 = vadd.f32 %v1053, %v1181
        %v1198 = vadd.f32 %v1054, %v1182
        %v1199 = vadd.f32 %v1055, %v1183
        %v1200 = vadd.f32 %v1056, %v1184
        %v1201 = vadd.f32 %v1057, %v1185
        %v1202 = vadd.f32 %v1058, %v1186
        %v1203 = vadd.f32 %v1059, %v1187
        %v1204 = vadd.f32 %v1060, %v1188
        %v1205 = vadd.f32 %v1061, %v1189
        %1222 = vrot.lane.b32.xlu0 %v838, 127
        %v1223 = vpop.permute.xlu0 %1222
        %1224 = vrot.lane.b32.xlu0 %v839, 127
        %v1225 = vpop.permute.xlu0 %1224
        %1226 = vrot.lane.b32.xlu0 %v840, 127
        %v1227 = vpop.permute.xlu0 %1226
        %1228 = vrot.lane.b32.xlu0 %v841, 127
        %v1229 = vpop.permute.xlu0 %1228
        %1230 = vrot.lane.b32.xlu0 %v842, 127
        %v1231 = vpop.permute.xlu0 %1230
        %1232 = vrot.lane.b32.xlu0 %v843, 127
        %v1233 = vpop.permute.xlu0 %1232
        %1234 = vrot.lane.b32.xlu0 %v844, 127
        %v1235 = vpop.permute.xlu0 %1234
        %1236 = vrot.lane.b32.xlu0 %v845, 127
        %v1237 = vpop.permute.xlu0 %1236
        %1238 = vrot.lane.b32.xlu0 %v846, 127
        %v1239 = vpop.permute.xlu0 %1238
        %1240 = vrot.lane.b32.xlu0 %v847, 127
        %v1241 = vpop.permute.xlu0 %1240
        %1242 = vrot.lane.b32.xlu0 %v848, 127
        %v1243 = vpop.permute.xlu0 %1242
        %1244 = vrot.lane.b32.xlu0 %v849, 127
        %v1245 = vpop.permute.xlu0 %1244
        %1246 = vrot.lane.b32.xlu0 %v850, 127
        %v1247 = vpop.permute.xlu0 %1246
        %1248 = vrot.lane.b32.xlu0 %v851, 127
        %v1249 = vpop.permute.xlu0 %1248
        %1250 = vrot.lane.b32.xlu0 %v852, 127
        %v1251 = vpop.permute.xlu0 %1250
        %1252 = vrot.lane.b32.xlu0 %v853, 127
        %v1253 = vpop.permute.xlu0 %1252
        %v1270 = vmul.f32 %v854, %v1223
        %v1271 = vmul.f32 %v855, %v1225
        %v1272 = vmul.f32 %v856, %v1227
        %v1273 = vmul.f32 %v857, %v1229
        %v1274 = vmul.f32 %v858, %v1231
        %v1275 = vmul.f32 %v859, %v1233
        %v1276 = vmul.f32 %v860, %v1235
        %v1277 = vmul.f32 %v861, %v1237
        %v1278 = vmul.f32 %v862, %v1239
        %v1279 = vmul.f32 %v863, %v1241
        %v1280 = vmul.f32 %v864, %v1243
        %v1281 = vmul.f32 %v865, %v1245
        %v1282 = vmul.f32 %v866, %v1247
        %v1283 = vmul.f32 %v867, %v1249
        %v1284 = vmul.f32 %v868, %v1251
        %v1285 = vmul.f32 %v869, %v1253
        %v1286 = vld [vmem:[#allocation4] sm:$0xff]
        %v1287 = vld [vmem:[#allocation4 + $0x8] sm:$0xff]
        %v1288 = vld [vmem:[#allocation4 + $0x10] sm:$0xff]
        %v1289 = vld [vmem:[#allocation4 + $0x18] sm:$0xff]
        %v1290 = vld [vmem:[#allocation4 + $0x20] sm:$0xff]
        %v1291 = vld [vmem:[#allocation4 + $0x28] sm:$0xff]
        %v1292 = vld [vmem:[#allocation4 + $0x30] sm:$0xff]
        %v1293 = vld [vmem:[#allocation4 + $0x38] sm:$0xff]
        %v1294 = vld [vmem:[#allocation4 + $0x40] sm:$0xff]
        %v1295 = vld [vmem:[#allocation4 + $0x48] sm:$0xff]
        %v1296 = vld [vmem:[#allocation4 + $0x50] sm:$0xff]
        %v1297 = vld [vmem:[#allocation4 + $0x58] sm:$0xff]
        %v1298 = vld [vmem:[#allocation4 + $0x60] sm:$0xff]
        %v1299 = vld [vmem:[#allocation4 + $0x68] sm:$0xff]
        %v1300 = vld [vmem:[#allocation4 + $0x70] sm:$0xff]
        %v1301 = vld [vmem:[#allocation4 + $0x78] sm:$0xff]
        %1303 = vset.pattern.permute.xlu0 0
        %1304 = vperm.xlu0 %1303, %v1270
        %v1305 = vpop.permute.xlu0 %1304
        %1308 = vset.pattern.permute.xlu0 0
        %1309 = vperm.xlu0 %1308, %v1271
        %v1310 = vpop.permute.xlu0 %1309
        %1313 = vset.pattern.permute.xlu0 0
        %1314 = vperm.xlu0 %1313, %v1272
        %v1315 = vpop.permute.xlu0 %1314
        %1318 = vset.pattern.permute.xlu0 0
        %1319 = vperm.xlu0 %1318, %v1273
        %v1320 = vpop.permute.xlu0 %1319
        %1323 = vset.pattern.permute.xlu0 0
        %1324 = vperm.xlu0 %1323, %v1274
        %v1325 = vpop.permute.xlu0 %1324
        %1328 = vset.pattern.permute.xlu0 0
        %1329 = vperm.xlu0 %1328, %v1275
        %v1330 = vpop.permute.xlu0 %1329
        %1333 = vset.pattern.permute.xlu0 0
        %1334 = vperm.xlu0 %1333, %v1276
        %v1335 = vpop.permute.xlu0 %1334
        %1338 = vset.pattern.permute.xlu0 0
        %1339 = vperm.xlu0 %1338, %v1277
        %v1340 = vpop.permute.xlu0 %1339
        %1343 = vset.pattern.permute.xlu0 0
        %1344 = vperm.xlu0 %1343, %v1278
        %v1345 = vpop.permute.xlu0 %1344
        %1348 = vset.pattern.permute.xlu0 0
        %1349 = vperm.xlu0 %1348, %v1279
        %v1350 = vpop.permute.xlu0 %1349
        %1353 = vset.pattern.permute.xlu0 0
        %1354 = vperm.xlu0 %1353, %v1280
        %v1355 = vpop.permute.xlu0 %1354
        %1358 = vset.pattern.permute.xlu0 0
        %1359 = vperm.xlu0 %1358, %v1281
        %v1360 = vpop.permute.xlu0 %1359
        %1363 = vset.pattern.permute.xlu0 0
        %1364 = vperm.xlu0 %1363, %v1282
        %v1365 = vpop.permute.xlu0 %1364
        %1368 = vset.pattern.permute.xlu0 0
        %1369 = vperm.xlu0 %1368, %v1283
        %v1370 = vpop.permute.xlu0 %1369
        %1373 = vset.pattern.permute.xlu0 0
        %1374 = vperm.xlu0 %1373, %v1284
        %v1375 = vpop.permute.xlu0 %1374
        %1378 = vset.pattern.permute.xlu0 0
        %1379 = vperm.xlu0 %1378, %v1285
        %v1380 = vpop.permute.xlu0 %1379
        %v1382 = vmul.f32 %v1305, %v1286
        %v1383 = vmul.f32 %v1310, %v1287
        %v1384 = vmul.f32 %v1315, %v1288
        %v1385 = vmul.f32 %v1320, %v1289
        %v1386 = vmul.f32 %v1325, %v1290
        %v1387 = vmul.f32 %v1330, %v1291
        %v1388 = vmul.f32 %v1335, %v1292
        %v1389 = vmul.f32 %v1340, %v1293
        %v1390 = vmul.f32 %v1345, %v1294
        %v1391 = vmul.f32 %v1350, %v1295
        %v1392 = vmul.f32 %v1355, %v1296
        %v1393 = vmul.f32 %v1360, %v1297
        %v1394 = vmul.f32 %v1365, %v1298
        %v1395 = vmul.f32 %v1370, %v1299
        %v1396 = vmul.f32 %v1375, %v1300
        %v1397 = vmul.f32 %v1380, %v1301
        %v1398 = vadd.f32 %v1190, %v1382
        %v1399 = vadd.f32 %v1191, %v1383
        %v1400 = vadd.f32 %v1192, %v1384
        %v1401 = vadd.f32 %v1193, %v1385
        %v1402 = vadd.f32 %v1194, %v1386
        %v1403 = vadd.f32 %v1195, %v1387
        %v1404 = vadd.f32 %v1196, %v1388
        %v1405 = vadd.f32 %v1197, %v1389
        %v1406 = vadd.f32 %v1198, %v1390
        %v1407 = vadd.f32 %v1199, %v1391
        %v1408 = vadd.f32 %v1200, %v1392
        %v1409 = vadd.f32 %v1201, %v1393
        %v1410 = vadd.f32 %v1202, %v1394
        %v1411 = vadd.f32 %v1203, %v1395
        %v1412 = vadd.f32 %v1204, %v1396
        %v1413 = vadd.f32 %v1205, %v1397
        %v1414 = vmul.f32 %v838, %v1223
        %v1415 = vmul.f32 %v839, %v1225
        %v1416 = vmul.f32 %v840, %v1227
        %v1417 = vmul.f32 %v841, %v1229
        %v1418 = vmul.f32 %v842, %v1231
        %v1419 = vmul.f32 %v843, %v1233
        %v1420 = vmul.f32 %v844, %v1235
        %v1421 = vmul.f32 %v845, %v1237
        %v1422 = vmul.f32 %v846, %v1239
        %v1423 = vmul.f32 %v847, %v1241
        %v1424 = vmul.f32 %v848, %v1243
        %v1425 = vmul.f32 %v849, %v1245
        %v1426 = vmul.f32 %v850, %v1247
        %v1427 = vmul.f32 %v851, %v1249
        %v1428 = vmul.f32 %v852, %v1251
        %v1429 = vmul.f32 %v853, %v1253
        %v1430 = vld [vmem:[#allocation5] sm:$0xff]
        %v1431 = vld [vmem:[#allocation5 + $0x8] sm:$0xff]
        %v1432 = vld [vmem:[#allocation5 + $0x10] sm:$0xff]
        %v1433 = vld [vmem:[#allocation5 + $0x18] sm:$0xff]
        %v1434 = vld [vmem:[#allocation5 + $0x20] sm:$0xff]
        %v1435 = vld [vmem:[#allocation5 + $0x28] sm:$0xff]
        %v1436 = vld [vmem:[#allocation5 + $0x30] sm:$0xff]
        %v1437 = vld [vmem:[#allocation5 + $0x38] sm:$0xff]
        %v1438 = vld [vmem:[#allocation5 + $0x40] sm:$0xff]
        %v1439 = vld [vmem:[#allocation5 + $0x48] sm:$0xff]
        %v1440 = vld [vmem:[#allocation5 + $0x50] sm:$0xff]
        %v1441 = vld [vmem:[#allocation5 + $0x58] sm:$0xff]
        %v1442 = vld [vmem:[#allocation5 + $0x60] sm:$0xff]
        %v1443 = vld [vmem:[#allocation5 + $0x68] sm:$0xff]
        %v1444 = vld [vmem:[#allocation5 + $0x70] sm:$0xff]
        %v1445 = vld [vmem:[#allocation5 + $0x78] sm:$0xff]
        %1447 = vset.pattern.permute.xlu0 0
        %1448 = vperm.xlu0 %1447, %v1414
        %v1449 = vpop.permute.xlu0 %1448
        %1452 = vset.pattern.permute.xlu0 0
        %1453 = vperm.xlu0 %1452, %v1415
        %v1454 = vpop.permute.xlu0 %1453
        %1457 = vset.pattern.permute.xlu0 0
        %1458 = vperm.xlu0 %1457, %v1416
        %v1459 = vpop.permute.xlu0 %1458
        %1462 = vset.pattern.permute.xlu0 0
        %1463 = vperm.xlu0 %1462, %v1417
        %v1464 = vpop.permute.xlu0 %1463
        %1467 = vset.pattern.permute.xlu0 0
        %1468 = vperm.xlu0 %1467, %v1418
        %v1469 = vpop.permute.xlu0 %1468
        %1472 = vset.pattern.permute.xlu0 0
        %1473 = vperm.xlu0 %1472, %v1419
        %v1474 = vpop.permute.xlu0 %1473
        %1477 = vset.pattern.permute.xlu0 0
        %1478 = vperm.xlu0 %1477, %v1420
        %v1479 = vpop.permute.xlu0 %1478
        %1482 = vset.pattern.permute.xlu0 0
        %1483 = vperm.xlu0 %1482, %v1421
        %v1484 = vpop.permute.xlu0 %1483
        %1487 = vset.pattern.permute.xlu0 0
        %1488 = vperm.xlu0 %1487, %v1422
        %v1489 = vpop.permute.xlu0 %1488
        %1492 = vset.pattern.permute.xlu0 0
        %1493 = vperm.xlu0 %1492, %v1423
        %v1494 = vpop.permute.xlu0 %1493
        %1497 = vset.pattern.permute.xlu0 0
        %1498 = vperm.xlu0 %1497, %v1424
        %v1499 = vpop.permute.xlu0 %1498
        %1502 = vset.pattern.permute.xlu0 0
        %1503 = vperm.xlu0 %1502, %v1425
        %v1504 = vpop.permute.xlu0 %1503
        %1507 = vset.pattern.permute.xlu0 0
        %1508 = vperm.xlu0 %1507, %v1426
        %v1509 = vpop.permute.xlu0 %1508
        %1512 = vset.pattern.permute.xlu0 0
        %1513 = vperm.xlu0 %1512, %v1427
        %v1514 = vpop.permute.xlu0 %1513
        %1517 = vset.pattern.permute.xlu0 0
        %1518 = vperm.xlu0 %1517, %v1428
        %v1519 = vpop.permute.xlu0 %1518
        %1522 = vset.pattern.permute.xlu0 0
        %1523 = vperm.xlu0 %1522, %v1429
        %v1524 = vpop.permute.xlu0 %1523
        %v1526 = vmul.f32 %v1449, %v1430
        %v1527 = vmul.f32 %v1454, %v1431
        %v1528 = vmul.f32 %v1459, %v1432
        %v1529 = vmul.f32 %v1464, %v1433
        %v1530 = vmul.f32 %v1469, %v1434
        %v1531 = vmul.f32 %v1474, %v1435
        %v1532 = vmul.f32 %v1479, %v1436
        %v1533 = vmul.f32 %v1484, %v1437
        %v1534 = vmul.f32 %v1489, %v1438
        %v1535 = vmul.f32 %v1494, %v1439
        %v1536 = vmul.f32 %v1499, %v1440
        %v1537 = vmul.f32 %v1504, %v1441
        %v1538 = vmul.f32 %v1509, %v1442
        %v1539 = vmul.f32 %v1514, %v1443
        %v1540 = vmul.f32 %v1519, %v1444
        %v1541 = vmul.f32 %v1524, %v1445
        %v1542 = vadd.f32 %v1398, %v1526
        %v1543 = vadd.f32 %v1399, %v1527
        %v1544 = vadd.f32 %v1400, %v1528
        %v1545 = vadd.f32 %v1401, %v1529
        %v1546 = vadd.f32 %v1402, %v1530
        %v1547 = vadd.f32 %v1403, %v1531
        %v1548 = vadd.f32 %v1404, %v1532
        %v1549 = vadd.f32 %v1405, %v1533
        %v1550 = vadd.f32 %v1406, %v1534
        %v1551 = vadd.f32 %v1407, %v1535
        %v1552 = vadd.f32 %v1408, %v1536
        %v1553 = vadd.f32 %v1409, %v1537
        %v1554 = vadd.f32 %v1410, %v1538
        %v1555 = vadd.f32 %v1411, %v1539
        %v1556 = vadd.f32 %v1412, %v1540
        %v1557 = vadd.f32 %v1413, %v1541
        %v1558 = vpack.c.bf16 %v1543, %v1542
        %v1559 = vpack.c.bf16 %v1545, %v1544
        %v1560 = vpack.c.bf16 %v1547, %v1546
        %v1561 = vpack.c.bf16 %v1549, %v1548
        %v1562 = vpack.c.bf16 %v1551, %v1550
        %v1563 = vpack.c.bf16 %v1553, %v1552
        %v1564 = vpack.c.bf16 %v1555, %v1554
        %v1565 = vpack.c.bf16 %v1557, %v1556
        %v1566 = vmul.f32 %v726, 1.28
        %v1567 = vmul.f32 %v727, 1.28
        %v1568 = vmul.f32 %v728, 1.28
        %v1569 = vmul.f32 %v729, 1.28
        %v1570 = vmul.f32 %v730, 1.28
        %v1571 = vmul.f32 %v731, 1.28
        %v1572 = vmul.f32 %v732, 1.28
        %v1573 = vmul.f32 %v733, 1.28
        %v1574 = vmul.f32 %v734, 1.28
        %v1575 = vmul.f32 %v735, 1.28
        %v1576 = vmul.f32 %v736, 1.28
        %v1577 = vmul.f32 %v737, 1.28
        %v1578 = vmul.f32 %v738, 1.28
        %v1579 = vmul.f32 %v739, 1.28
        %v1580 = vmul.f32 %v740, 1.28
        %v1581 = vmul.f32 %v741, 1.28
        %v1582 = vld [vmem:[%s4] sm:$0xff]
        %v1583 = vld [vmem:[%s4 + $0x8] sm:$0xff]
        %v1584 = vld [vmem:[%s4 + $0x10] sm:$0xff]
        %v1585 = vld [vmem:[%s4 + $0x18] sm:$0xff]
        %v1586 = vld [vmem:[%s4 + $0x20] sm:$0xff]
        %v1587 = vld [vmem:[%s4 + $0x28] sm:$0xff]
        %v1588 = vld [vmem:[%s4 + $0x30] sm:$0xff]
        %v1589 = vld [vmem:[%s4 + $0x38] sm:$0xff]
        %v1590 = vld [vmem:[%s4 + $0x40] sm:$0xff]
        %v1591 = vld [vmem:[%s4 + $0x48] sm:$0xff]
        %v1592 = vld [vmem:[%s4 + $0x50] sm:$0xff]
        %v1593 = vld [vmem:[%s4 + $0x58] sm:$0xff]
        %v1594 = vld [vmem:[%s4 + $0x60] sm:$0xff]
        %v1595 = vld [vmem:[%s4 + $0x68] sm:$0xff]
        %v1596 = vld [vmem:[%s4 + $0x70] sm:$0xff]
        %v1597 = vld [vmem:[%s4 + $0x78] sm:$0xff]
        %v1598 = vld [vmem:[%s5] sm:$0xff]
        %1600 = vset.pattern.permute.xlu0 2
        %1601 = vperm.xlu0 %1600, %v1566
        %v1602 = vpop.permute.xlu0 %1601
        %1605 = vset.pattern.permute.xlu0 2
        %1606 = vperm.xlu0 %1605, %v1567
        %v1607 = vpop.permute.xlu0 %1606
        %1610 = vset.pattern.permute.xlu0 2
        %1611 = vperm.xlu0 %1610, %v1568
        %v1612 = vpop.permute.xlu0 %1611
        %1615 = vset.pattern.permute.xlu0 2
        %1616 = vperm.xlu0 %1615, %v1569
        %v1617 = vpop.permute.xlu0 %1616
        %1620 = vset.pattern.permute.xlu0 2
        %1621 = vperm.xlu0 %1620, %v1570
        %v1622 = vpop.permute.xlu0 %1621
        %1625 = vset.pattern.permute.xlu0 2
        %1626 = vperm.xlu0 %1625, %v1571
        %v1627 = vpop.permute.xlu0 %1626
        %1630 = vset.pattern.permute.xlu0 2
        %1631 = vperm.xlu0 %1630, %v1572
        %v1632 = vpop.permute.xlu0 %1631
        %1635 = vset.pattern.permute.xlu0 2
        %1636 = vperm.xlu0 %1635, %v1573
        %v1637 = vpop.permute.xlu0 %1636
        %1640 = vset.pattern.permute.xlu0 2
        %1641 = vperm.xlu0 %1640, %v1574
        %v1642 = vpop.permute.xlu0 %1641
        %1645 = vset.pattern.permute.xlu0 2
        %1646 = vperm.xlu0 %1645, %v1575
        %v1647 = vpop.permute.xlu0 %1646
        %1650 = vset.pattern.permute.xlu0 2
        %1651 = vperm.xlu0 %1650, %v1576
        %v1652 = vpop.permute.xlu0 %1651
        %1655 = vset.pattern.permute.xlu0 2
        %1656 = vperm.xlu0 %1655, %v1577
        %v1657 = vpop.permute.xlu0 %1656
        %1660 = vset.pattern.permute.xlu0 2
        %1661 = vperm.xlu0 %1660, %v1578
        %v1662 = vpop.permute.xlu0 %1661
        %1665 = vset.pattern.permute.xlu0 2
        %1666 = vperm.xlu0 %1665, %v1579
        %v1667 = vpop.permute.xlu0 %1666
        %1670 = vset.pattern.permute.xlu0 2
        %1671 = vperm.xlu0 %1670, %v1580
        %v1672 = vpop.permute.xlu0 %1671
        %1675 = vset.pattern.permute.xlu0 2
        %1676 = vperm.xlu0 %1675, %v1581
        %v1677 = vpop.permute.xlu0 %1676
        %v1680 = vperm.slane %v1598, 0
        %v1681 = vperm.slane %v1598, 1
        %v1682 = vperm.slane %v1598, 2
        %v1683 = vperm.slane %v1598, 3
        %v1684 = vperm.slane %v1598, 4
        %v1685 = vperm.slane %v1598, 5
        %v1686 = vperm.slane %v1598, 6
        %v1687 = vperm.slane %v1598, 7
        %v1696 = vmul.f32 %v1602, %v1680
        %v1697 = vmul.f32 %v1602, %v1681
        %v1698 = vmul.f32 %v1602, %v1682
        %v1699 = vmul.f32 %v1602, %v1683
        %v1700 = vmul.f32 %v1602, %v1684
        %v1701 = vmul.f32 %v1602, %v1685
        %v1702 = vmul.f32 %v1602, %v1686
        %v1703 = vmul.f32 %v1602, %v1687
        %v1704 = vmul.f32 %v1607, %v1680
        %v1705 = vmul.f32 %v1607, %v1681
        %v1706 = vmul.f32 %v1607, %v1682
        %v1707 = vmul.f32 %v1607, %v1683
        %v1708 = vmul.f32 %v1607, %v1684
        %v1709 = vmul.f32 %v1607, %v1685
        %v1710 = vmul.f32 %v1607, %v1686
        %v1711 = vmul.f32 %v1607, %v1687
        %v1712 = vmul.f32 %v1612, %v1680
        %v1713 = vmul.f32 %v1612, %v1681
        %v1714 = vmul.f32 %v1612, %v1682
        %v1715 = vmul.f32 %v1612, %v1683
        %v1716 = vmul.f32 %v1612, %v1684
        %v1717 = vmul.f32 %v1612, %v1685
        %v1718 = vmul.f32 %v1612, %v1686
        %v1719 = vmul.f32 %v1612, %v1687
        %v1720 = vmul.f32 %v1617, %v1680
        %v1721 = vmul.f32 %v1617, %v1681
        %v1722 = vmul.f32 %v1617, %v1682
        %v1723 = vmul.f32 %v1617, %v1683
        %v1724 = vmul.f32 %v1617, %v1684
        %v1725 = vmul.f32 %v1617, %v1685
        %v1726 = vmul.f32 %v1617, %v1686
        %v1727 = vmul.f32 %v1617, %v1687
        %v1728 = vmul.f32 %v1622, %v1680
        %v1729 = vmul.f32 %v1622, %v1681
        %v1730 = vmul.f32 %v1622, %v1682
        %v1731 = vmul.f32 %v1622, %v1683
        %v1732 = vmul.f32 %v1622, %v1684
        %v1733 = vmul.f32 %v1622, %v1685
        %v1734 = vmul.f32 %v1622, %v1686
        %v1735 = vmul.f32 %v1622, %v1687
        %v1736 = vmul.f32 %v1627, %v1680
        %v1737 = vmul.f32 %v1627, %v1681
        %v1738 = vmul.f32 %v1627, %v1682
        %v1739 = vmul.f32 %v1627, %v1683
        %v1740 = vmul.f32 %v1627, %v1684
        %v1741 = vmul.f32 %v1627, %v1685
        %v1742 = vmul.f32 %v1627, %v1686
        %v1743 = vmul.f32 %v1627, %v1687
        %v1744 = vmul.f32 %v1632, %v1680
        %v1745 = vmul.f32 %v1632, %v1681
        %v1746 = vmul.f32 %v1632, %v1682
        %v1747 = vmul.f32 %v1632, %v1683
        %v1748 = vmul.f32 %v1632, %v1684
        %v1749 = vmul.f32 %v1632, %v1685
        %v1750 = vmul.f32 %v1632, %v1686
        %v1751 = vmul.f32 %v1632, %v1687
        %v1752 = vmul.f32 %v1637, %v1680
        %v1753 = vmul.f32 %v1637, %v1681
        %v1754 = vmul.f32 %v1637, %v1682
        %v1755 = vmul.f32 %v1637, %v1683
        %v1756 = vmul.f32 %v1637, %v1684
        %v1757 = vmul.f32 %v1637, %v1685
        %v1758 = vmul.f32 %v1637, %v1686
        %v1759 = vmul.f32 %v1637, %v1687
        %v1760 = vmul.f32 %v1642, %v1680
        %v1761 = vmul.f32 %v1642, %v1681
        %v1762 = vmul.f32 %v1642, %v1682
        %v1763 = vmul.f32 %v1642, %v1683
        %v1764 = vmul.f32 %v1642, %v1684
        %v1765 = vmul.f32 %v1642, %v1685
        %v1766 = vmul.f32 %v1642, %v1686
        %v1767 = vmul.f32 %v1642, %v1687
        %v1768 = vmul.f32 %v1647, %v1680
        %v1769 = vmul.f32 %v1647, %v1681
        %v1770 = vmul.f32 %v1647, %v1682
        %v1771 = vmul.f32 %v1647, %v1683
        %v1772 = vmul.f32 %v1647, %v1684
        %v1773 = vmul.f32 %v1647, %v1685
        %v1774 = vmul.f32 %v1647, %v1686
        %v1775 = vmul.f32 %v1647, %v1687
        %v1776 = vmul.f32 %v1652, %v1680
        %v1777 = vmul.f32 %v1652, %v1681
        %v1778 = vmul.f32 %v1652, %v1682
        %v1779 = vmul.f32 %v1652, %v1683
        %v1780 = vmul.f32 %v1652, %v1684
        %v1781 = vmul.f32 %v1652, %v1685
        %v1782 = vmul.f32 %v1652, %v1686
        %v1783 = vmul.f32 %v1652, %v1687
        %v1784 = vmul.f32 %v1657, %v1680
        %v1785 = vmul.f32 %v1657, %v1681
        %v1786 = vmul.f32 %v1657, %v1682
        %v1787 = vmul.f32 %v1657, %v1683
        %v1788 = vmul.f32 %v1657, %v1684
        %v1789 = vmul.f32 %v1657, %v1685
        %v1790 = vmul.f32 %v1657, %v1686
        %v1791 = vmul.f32 %v1657, %v1687
        %v1792 = vmul.f32 %v1662, %v1680
        %v1793 = vmul.f32 %v1662, %v1681
        %v1794 = vmul.f32 %v1662, %v1682
        %v1795 = vmul.f32 %v1662, %v1683
        %v1796 = vmul.f32 %v1662, %v1684
        %v1797 = vmul.f32 %v1662, %v1685
        %v1798 = vmul.f32 %v1662, %v1686
        %v1799 = vmul.f32 %v1662, %v1687
        %v1800 = vmul.f32 %v1667, %v1680
        %v1801 = vmul.f32 %v1667, %v1681
        %v1802 = vmul.f32 %v1667, %v1682
        %v1803 = vmul.f32 %v1667, %v1683
        %v1804 = vmul.f32 %v1667, %v1684
        %v1805 = vmul.f32 %v1667, %v1685
        %v1806 = vmul.f32 %v1667, %v1686
        %v1807 = vmul.f32 %v1667, %v1687
        %v1808 = vmul.f32 %v1672, %v1680
        %v1809 = vmul.f32 %v1672, %v1681
        %v1810 = vmul.f32 %v1672, %v1682
        %v1811 = vmul.f32 %v1672, %v1683
        %v1812 = vmul.f32 %v1672, %v1684
        %v1813 = vmul.f32 %v1672, %v1685
        %v1814 = vmul.f32 %v1672, %v1686
        %v1815 = vmul.f32 %v1672, %v1687
        %v1816 = vmul.f32 %v1677, %v1680
        %v1817 = vmul.f32 %v1677, %v1681
        %v1818 = vmul.f32 %v1677, %v1682
        %v1819 = vmul.f32 %v1677, %v1683
        %v1820 = vmul.f32 %v1677, %v1684
        %v1821 = vmul.f32 %v1677, %v1685
        %v1822 = vmul.f32 %v1677, %v1686
        %v1823 = vmul.f32 %v1677, %v1687
        %v1840 = vunpack.c.l.b16 %v1582
        %v1841 = vunpack.c.h.b16 %v1582
        %v1842 = vunpack.c.l.b16 %v1583
        %v1843 = vunpack.c.h.b16 %v1583
        %v1844 = vunpack.c.l.b16 %v1584
        %v1845 = vunpack.c.h.b16 %v1584
        %v1846 = vunpack.c.l.b16 %v1585
        %v1847 = vunpack.c.h.b16 %v1585
        %v1848 = vunpack.c.l.b16 %v1586
        %v1849 = vunpack.c.h.b16 %v1586
        %v1850 = vunpack.c.l.b16 %v1587
        %v1851 = vunpack.c.h.b16 %v1587
        %v1852 = vunpack.c.l.b16 %v1588
        %v1853 = vunpack.c.h.b16 %v1588
        %v1854 = vunpack.c.l.b16 %v1589
        %v1855 = vunpack.c.h.b16 %v1589
        %v1856 = vunpack.c.l.b16 %v1590
        %v1857 = vunpack.c.h.b16 %v1590
        %v1858 = vunpack.c.l.b16 %v1591
        %v1859 = vunpack.c.h.b16 %v1591
        %v1860 = vunpack.c.l.b16 %v1592
        %v1861 = vunpack.c.h.b16 %v1592
        %v1862 = vunpack.c.l.b16 %v1593
        %v1863 = vunpack.c.h.b16 %v1593
        %v1864 = vunpack.c.l.b16 %v1594
        %v1865 = vunpack.c.h.b16 %v1594
        %v1866 = vunpack.c.l.b16 %v1595
        %v1867 = vunpack.c.h.b16 %v1595
        %v1868 = vunpack.c.l.b16 %v1596
        %v1869 = vunpack.c.h.b16 %v1596
        %v1870 = vunpack.c.l.b16 %v1597
        %v1871 = vunpack.c.h.b16 %v1597
        %v1872 = vpack.c.b16 %v1848, %v1840
        %v1873 = vpack.c.b16 %v1849, %v1841
        %v1874 = vpack.c.b16 %v1850, %v1842
        %v1875 = vpack.c.b16 %v1851, %v1843
        %v1876 = vpack.c.b16 %v1852, %v1844
        %v1877 = vpack.c.b16 %v1853, %v1845
        %v1878 = vpack.c.b16 %v1854, %v1846
        %v1879 = vpack.c.b16 %v1855, %v1847
        %v1880 = vpack.c.b16 %v1864, %v1856
        %v1881 = vpack.c.b16 %v1865, %v1857
        %v1882 = vpack.c.b16 %v1866, %v1858
        %v1883 = vpack.c.b16 %v1867, %v1859
        %v1884 = vpack.c.b16 %v1868, %v1860
        %v1885 = vpack.c.b16 %v1869, %v1861
        %v1886 = vpack.c.b16 %v1870, %v1862
        %v1887 = vpack.c.b16 %v1871, %v1863
        %vm1904 = vcmask 261120
        %v1906 = vsel %vm1904, %v1558, 0
        %v1909 = vsel %vm1904, %v1559, 0
        %v1912 = vsel %vm1904, %v1560, 0
        %v1915 = vsel %vm1904, %v1561, 0
        %v1918 = vsel %vm1904, %v1562, 0
        %v1921 = vsel %vm1904, %v1563, 0
        %v1924 = vsel %vm1904, %v1564, 0
        %v1927 = vsel %vm1904, %v1565, 0
        %1929 = vmatpush.bf16.msra.mxu0 0
        %1930 = vmatpush.bf16.msra.mxu0 0
        %1931 = vmatpush.bf16.msra.mxu0 0
        %1932 = vmatpush.bf16.msra.mxu0 0
        %1933 = vmatpush.bf16.msra.mxu0 0
        %1934 = vmatpush.bf16.msra.mxu0 0
        %1935 = vmatpush.bf16.msra.mxu0 %v1880
        %1936 = vmatpush.bf16.msra.mxu0 %v1872
        %1937 = vmatmul.bf16.gmra.mxu0 %v1906
        %v1938 = vpop.f32.mrf.mxu0
        %v1939 = vadd.f32 %v1696, %v1938
        %v1940 = vpop.f32.mrf.mxu0
        %v1941 = vadd.f32 %v1704, %v1940
        %1942 = vmatmul.bf16.gmra.mxu0 %v1909
        %v1943 = vpop.f32.mrf.mxu0
        %v1944 = vadd.f32 %v1712, %v1943
        %v1945 = vpop.f32.mrf.mxu0
        %v1946 = vadd.f32 %v1720, %v1945
        %1947 = vmatmul.bf16.gmra.mxu0 %v1912
        %v1948 = vpop.f32.mrf.mxu0
        %v1949 = vadd.f32 %v1728, %v1948
        %v1950 = vpop.f32.mrf.mxu0
        %v1951 = vadd.f32 %v1736, %v1950
        %1952 = vmatmul.bf16.gmra.mxu0 %v1915
        %v1953 = vpop.f32.mrf.mxu0
        %v1954 = vadd.f32 %v1744, %v1953
        %v1955 = vpop.f32.mrf.mxu0
        %v1956 = vadd.f32 %v1752, %v1955
        %1957 = vmatmul.bf16.gmra.mxu0 %v1918
        %v1958 = vpop.f32.mrf.mxu0
        %v1959 = vadd.f32 %v1760, %v1958
        %v1960 = vpop.f32.mrf.mxu0
        %v1961 = vadd.f32 %v1768, %v1960
        %1962 = vmatmul.bf16.gmra.mxu0 %v1921
        %v1963 = vpop.f32.mrf.mxu0
        %v1964 = vadd.f32 %v1776, %v1963
        %v1965 = vpop.f32.mrf.mxu0
        %v1966 = vadd.f32 %v1784, %v1965
        %1967 = vmatmul.bf16.gmra.mxu0 %v1924
        %v1968 = vpop.f32.mrf.mxu0
        %v1969 = vadd.f32 %v1792, %v1968
        %v1970 = vpop.f32.mrf.mxu0
        %v1971 = vadd.f32 %v1800, %v1970
        %1972 = vmatmul.bf16.gmra.mxu0 %v1927
        %v1973 = vpop.f32.mrf.mxu0
        %v1974 = vadd.f32 %v1808, %v1973
        %v1975 = vpop.f32.mrf.mxu0
        %v1976 = vadd.f32 %v1816, %v1975
        %1977 = vdwg.mxu0
        %1978 = vmatpush.bf16.msra.mxu0 0
        %1979 = vmatpush.bf16.msra.mxu0 0
        %1980 = vmatpush.bf16.msra.mxu0 0
        %1981 = vmatpush.bf16.msra.mxu0 0
        %1982 = vmatpush.bf16.msra.mxu0 0
        %1983 = vmatpush.bf16.msra.mxu0 0
        %1984 = vmatpush.bf16.msra.mxu0 %v1881
        %1985 = vmatpush.bf16.msra.mxu0 %v1873
        %1986 = vmatmul.bf16.gmra.mxu0 %v1906
        %v1987 = vpop.f32.mrf.mxu0
        %v1988 = vadd.f32 %v1697, %v1987
        %v1989 = vpop.f32.mrf.mxu0
        %v1990 = vadd.f32 %v1705, %v1989
        %1991 = vmatmul.bf16.gmra.mxu0 %v1909
        %v1992 = vpop.f32.mrf.mxu0
        %v1993 = vadd.f32 %v1713, %v1992
        %v1994 = vpop.f32.mrf.mxu0
        %v1995 = vadd.f32 %v1721, %v1994
        %1996 = vmatmul.bf16.gmra.mxu0 %v1912
        %v1997 = vpop.f32.mrf.mxu0
        %v1998 = vadd.f32 %v1729, %v1997
        %v1999 = vpop.f32.mrf.mxu0
        %v2000 = vadd.f32 %v1737, %v1999
        %2001 = vmatmul.bf16.gmra.mxu0 %v1915
        %v2002 = vpop.f32.mrf.mxu0
        %v2003 = vadd.f32 %v1745, %v2002
        %v2004 = vpop.f32.mrf.mxu0
        %v2005 = vadd.f32 %v1753, %v2004
        %2006 = vmatmul.bf16.gmra.mxu0 %v1918
        %v2007 = vpop.f32.mrf.mxu0
        %v2008 = vadd.f32 %v1761, %v2007
        %v2009 = vpop.f32.mrf.mxu0
        %v2010 = vadd.f32 %v1769, %v2009
        %2011 = vmatmul.bf16.gmra.mxu0 %v1921
        %v2012 = vpop.f32.mrf.mxu0
        %v2013 = vadd.f32 %v1777, %v2012
        %v2014 = vpop.f32.mrf.mxu0
        %v2015 = vadd.f32 %v1785, %v2014
        %2016 = vmatmul.bf16.gmra.mxu0 %v1924
        %v2017 = vpop.f32.mrf.mxu0
        %v2018 = vadd.f32 %v1793, %v2017
        %v2019 = vpop.f32.mrf.mxu0
        %v2020 = vadd.f32 %v1801, %v2019
        %2021 = vmatmul.bf16.gmra.mxu0 %v1927
        %v2022 = vpop.f32.mrf.mxu0
        %v2023 = vadd.f32 %v1809, %v2022
        %v2024 = vpop.f32.mrf.mxu0
        %v2025 = vadd.f32 %v1817, %v2024
        %2026 = vdwg.mxu0
        %2027 = vmatpush.bf16.msra.mxu0 0
        %2028 = vmatpush.bf16.msra.mxu0 0
        %2029 = vmatpush.bf16.msra.mxu0 0
        %2030 = vmatpush.bf16.msra.mxu0 0
        %2031 = vmatpush.bf16.msra.mxu0 0
        %2032 = vmatpush.bf16.msra.mxu0 0
        %2033 = vmatpush.bf16.msra.mxu0 %v1882
        %2034 = vmatpush.bf16.msra.mxu0 %v1874
        %2035 = vmatmul.bf16.gmra.mxu0 %v1906
        %v2036 = vpop.f32.mrf.mxu0
        %v2037 = vadd.f32 %v1698, %v2036
        %v2038 = vpop.f32.mrf.mxu0
        %v2039 = vadd.f32 %v1706, %v2038
        %2040 = vmatmul.bf16.gmra.mxu0 %v1909
        %v2041 = vpop.f32.mrf.mxu0
        %v2042 = vadd.f32 %v1714, %v2041
        %v2043 = vpop.f32.mrf.mxu0
        %v2044 = vadd.f32 %v1722, %v2043
        %2045 = vmatmul.bf16.gmra.mxu0 %v1912
        %v2046 = vpop.f32.mrf.mxu0
        %v2047 = vadd.f32 %v1730, %v2046
        %v2048 = vpop.f32.mrf.mxu0
        %v2049 = vadd.f32 %v1738, %v2048
        %2050 = vmatmul.bf16.gmra.mxu0 %v1915
        %v2051 = vpop.f32.mrf.mxu0
        %v2052 = vadd.f32 %v1746, %v2051
        %v2053 = vpop.f32.mrf.mxu0
        %v2054 = vadd.f32 %v1754, %v2053
        %2055 = vmatmul.bf16.gmra.mxu0 %v1918
        %v2056 = vpop.f32.mrf.mxu0
        %v2057 = vadd.f32 %v1762, %v2056
        %v2058 = vpop.f32.mrf.mxu0
        %v2059 = vadd.f32 %v1770, %v2058
        %2060 = vmatmul.bf16.gmra.mxu0 %v1921
        %v2061 = vpop.f32.mrf.mxu0
        %v2062 = vadd.f32 %v1778, %v2061
        %v2063 = vpop.f32.mrf.mxu0
        %v2064 = vadd.f32 %v1786, %v2063
        %2065 = vmatmul.bf16.gmra.mxu0 %v1924
        %v2066 = vpop.f32.mrf.mxu0
        %v2067 = vadd.f32 %v1794, %v2066
        %v2068 = vpop.f32.mrf.mxu0
        %v2069 = vadd.f32 %v1802, %v2068
        %2070 = vmatmul.bf16.gmra.mxu0 %v1927
        %v2071 = vpop.f32.mrf.mxu0
        %v2072 = vadd.f32 %v1810, %v2071
        %v2073 = vpop.f32.mrf.mxu0
        %v2074 = vadd.f32 %v1818, %v2073
        %2075 = vdwg.mxu0
        %2076 = vmatpush.bf16.msra.mxu0 0
        %2077 = vmatpush.bf16.msra.mxu0 0
        %2078 = vmatpush.bf16.msra.mxu0 0
        %2079 = vmatpush.bf16.msra.mxu0 0
        %2080 = vmatpush.bf16.msra.mxu0 0
        %2081 = vmatpush.bf16.msra.mxu0 0
        %2082 = vmatpush.bf16.msra.mxu0 %v1883
        %2083 = vmatpush.bf16.msra.mxu0 %v1875
        %2084 = vmatmul.bf16.gmra.mxu0 %v1906
        %v2085 = vpop.f32.mrf.mxu0
        %v2086 = vadd.f32 %v1699, %v2085
        %v2087 = vpop.f32.mrf.mxu0
        %v2088 = vadd.f32 %v1707, %v2087
        %2089 = vmatmul.bf16.gmra.mxu0 %v1909
        %v2090 = vpop.f32.mrf.mxu0
        %v2091 = vadd.f32 %v1715, %v2090
        %v2092 = vpop.f32.mrf.mxu0
        %v2093 = vadd.f32 %v1723, %v2092
        %2094 = vmatmul.bf16.gmra.mxu0 %v1912
        %v2095 = vpop.f32.mrf.mxu0
        %v2096 = vadd.f32 %v1731, %v2095
        %v2097 = vpop.f32.mrf.mxu0
        %v2098 = vadd.f32 %v1739, %v2097
        %2099 = vmatmul.bf16.gmra.mxu0 %v1915
        %v2100 = vpop.f32.mrf.mxu0
        %v2101 = vadd.f32 %v1747, %v2100
        %v2102 = vpop.f32.mrf.mxu0
        %v2103 = vadd.f32 %v1755, %v2102
        %2104 = vmatmul.bf16.gmra.mxu0 %v1918
        %v2105 = vpop.f32.mrf.mxu0
        %v2106 = vadd.f32 %v1763, %v2105
        %v2107 = vpop.f32.mrf.mxu0
        %v2108 = vadd.f32 %v1771, %v2107
        %2109 = vmatmul.bf16.gmra.mxu0 %v1921
        %v2110 = vpop.f32.mrf.mxu0
        %v2111 = vadd.f32 %v1779, %v2110
        %v2112 = vpop.f32.mrf.mxu0
        %v2113 = vadd.f32 %v1787, %v2112
        %2114 = vmatmul.bf16.gmra.mxu0 %v1924
        %v2115 = vpop.f32.mrf.mxu0
        %v2116 = vadd.f32 %v1795, %v2115
        %v2117 = vpop.f32.mrf.mxu0
        %v2118 = vadd.f32 %v1803, %v2117
        %2119 = vmatmul.bf16.gmra.mxu0 %v1927
        %v2120 = vpop.f32.mrf.mxu0
        %v2121 = vadd.f32 %v1811, %v2120
        %v2122 = vpop.f32.mrf.mxu0
        %v2123 = vadd.f32 %v1819, %v2122
        %2124 = vdwg.mxu0
        %2125 = vmatpush.bf16.msra.mxu0 0
        %2126 = vmatpush.bf16.msra.mxu0 0
        %2127 = vmatpush.bf16.msra.mxu0 0
        %2128 = vmatpush.bf16.msra.mxu0 0
        %2129 = vmatpush.bf16.msra.mxu0 0
        %2130 = vmatpush.bf16.msra.mxu0 0
        %2131 = vmatpush.bf16.msra.mxu0 %v1884
        %2132 = vmatpush.bf16.msra.mxu0 %v1876
        %2133 = vmatmul.bf16.gmra.mxu0 %v1906
        %v2134 = vpop.f32.mrf.mxu0
        %v2135 = vadd.f32 %v1700, %v2134
        %v2136 = vpop.f32.mrf.mxu0
        %v2137 = vadd.f32 %v1708, %v2136
        %2138 = vmatmul.bf16.gmra.mxu0 %v1909
        %v2139 = vpop.f32.mrf.mxu0
        %v2140 = vadd.f32 %v1716, %v2139
        %v2141 = vpop.f32.mrf.mxu0
        %v2142 = vadd.f32 %v1724, %v2141
        %2143 = vmatmul.bf16.gmra.mxu0 %v1912
        %v2144 = vpop.f32.mrf.mxu0
        %v2145 = vadd.f32 %v1732, %v2144
        %v2146 = vpop.f32.mrf.mxu0
        %v2147 = vadd.f32 %v1740, %v2146
        %2148 = vmatmul.bf16.gmra.mxu0 %v1915
        %v2149 = vpop.f32.mrf.mxu0
        %v2150 = vadd.f32 %v1748, %v2149
        %v2151 = vpop.f32.mrf.mxu0
        %v2152 = vadd.f32 %v1756, %v2151
        %2153 = vmatmul.bf16.gmra.mxu0 %v1918
        %v2154 = vpop.f32.mrf.mxu0
        %v2155 = vadd.f32 %v1764, %v2154
        %v2156 = vpop.f32.mrf.mxu0
        %v2157 = vadd.f32 %v1772, %v2156
        %2158 = vmatmul.bf16.gmra.mxu0 %v1921
        %v2159 = vpop.f32.mrf.mxu0
        %v2160 = vadd.f32 %v1780, %v2159
        %v2161 = vpop.f32.mrf.mxu0
        %v2162 = vadd.f32 %v1788, %v2161
        %2163 = vmatmul.bf16.gmra.mxu0 %v1924
        %v2164 = vpop.f32.mrf.mxu0
        %v2165 = vadd.f32 %v1796, %v2164
        %v2166 = vpop.f32.mrf.mxu0
        %v2167 = vadd.f32 %v1804, %v2166
        %2168 = vmatmul.bf16.gmra.mxu0 %v1927
        %v2169 = vpop.f32.mrf.mxu0
        %v2170 = vadd.f32 %v1812, %v2169
        %v2171 = vpop.f32.mrf.mxu0
        %v2172 = vadd.f32 %v1820, %v2171
        %2173 = vdwg.mxu0
        %2174 = vmatpush.bf16.msra.mxu0 0
        %2175 = vmatpush.bf16.msra.mxu0 0
        %2176 = vmatpush.bf16.msra.mxu0 0
        %2177 = vmatpush.bf16.msra.mxu0 0
        %2178 = vmatpush.bf16.msra.mxu0 0
        %2179 = vmatpush.bf16.msra.mxu0 0
        %2180 = vmatpush.bf16.msra.mxu0 %v1885
        %2181 = vmatpush.bf16.msra.mxu0 %v1877
        %2182 = vmatmul.bf16.gmra.mxu0 %v1906
        %v2183 = vpop.f32.mrf.mxu0
        %v2184 = vadd.f32 %v1701, %v2183
        %v2185 = vpop.f32.mrf.mxu0
        %v2186 = vadd.f32 %v1709, %v2185
        %2187 = vmatmul.bf16.gmra.mxu0 %v1909
        %v2188 = vpop.f32.mrf.mxu0
        %v2189 = vadd.f32 %v1717, %v2188
        %v2190 = vpop.f32.mrf.mxu0
        %v2191 = vadd.f32 %v1725, %v2190
        %2192 = vmatmul.bf16.gmra.mxu0 %v1912
        %v2193 = vpop.f32.mrf.mxu0
        %v2194 = vadd.f32 %v1733, %v2193
        %v2195 = vpop.f32.mrf.mxu0
        %v2196 = vadd.f32 %v1741, %v2195
        %2197 = vmatmul.bf16.gmra.mxu0 %v1915
        %v2198 = vpop.f32.mrf.mxu0
        %v2199 = vadd.f32 %v1749, %v2198
        %v2200 = vpop.f32.mrf.mxu0
        %v2201 = vadd.f32 %v1757, %v2200
        %2202 = vmatmul.bf16.gmra.mxu0 %v1918
        %v2203 = vpop.f32.mrf.mxu0
        %v2204 = vadd.f32 %v1765, %v2203
        %v2205 = vpop.f32.mrf.mxu0
        %v2206 = vadd.f32 %v1773, %v2205
        %2207 = vmatmul.bf16.gmra.mxu0 %v1921
        %v2208 = vpop.f32.mrf.mxu0
        %v2209 = vadd.f32 %v1781, %v2208
        %v2210 = vpop.f32.mrf.mxu0
        %v2211 = vadd.f32 %v1789, %v2210
        %2212 = vmatmul.bf16.gmra.mxu0 %v1924
        %v2213 = vpop.f32.mrf.mxu0
        %v2214 = vadd.f32 %v1797, %v2213
        %v2215 = vpop.f32.mrf.mxu0
        %v2216 = vadd.f32 %v1805, %v2215
        %2217 = vmatmul.bf16.gmra.mxu0 %v1927
        %v2218 = vpop.f32.mrf.mxu0
        %v2219 = vadd.f32 %v1813, %v2218
        %v2220 = vpop.f32.mrf.mxu0
        %v2221 = vadd.f32 %v1821, %v2220
        %2222 = vdwg.mxu0
        %2223 = vmatpush.bf16.msra.mxu0 0
        %2224 = vmatpush.bf16.msra.mxu0 0
        %2225 = vmatpush.bf16.msra.mxu0 0
        %2226 = vmatpush.bf16.msra.mxu0 0
        %2227 = vmatpush.bf16.msra.mxu0 0
        %2228 = vmatpush.bf16.msra.mxu0 0
        %2229 = vmatpush.bf16.msra.mxu0 %v1886
        %2230 = vmatpush.bf16.msra.mxu0 %v1878
        %2231 = vmatmul.bf16.gmra.mxu0 %v1906
        %v2232 = vpop.f32.mrf.mxu0
        %v2233 = vadd.f32 %v1702, %v2232
        %v2234 = vpop.f32.mrf.mxu0
        %v2235 = vadd.f32 %v1710, %v2234
        %2236 = vmatmul.bf16.gmra.mxu0 %v1909
        %v2237 = vpop.f32.mrf.mxu0
        %v2238 = vadd.f32 %v1718, %v2237
        %v2239 = vpop.f32.mrf.mxu0
        %v2240 = vadd.f32 %v1726, %v2239
        %2241 = vmatmul.bf16.gmra.mxu0 %v1912
        %v2242 = vpop.f32.mrf.mxu0
        %v2243 = vadd.f32 %v1734, %v2242
        %v2244 = vpop.f32.mrf.mxu0
        %v2245 = vadd.f32 %v1742, %v2244
        %2246 = vmatmul.bf16.gmra.mxu0 %v1915
        %v2247 = vpop.f32.mrf.mxu0
        %v2248 = vadd.f32 %v1750, %v2247
        %v2249 = vpop.f32.mrf.mxu0
        %v2250 = vadd.f32 %v1758, %v2249
        %2251 = vmatmul.bf16.gmra.mxu0 %v1918
        %v2252 = vpop.f32.mrf.mxu0
        %v2253 = vadd.f32 %v1766, %v2252
        %v2254 = vpop.f32.mrf.mxu0
        %v2255 = vadd.f32 %v1774, %v2254
        %2256 = vmatmul.bf16.gmra.mxu0 %v1921
        %v2257 = vpop.f32.mrf.mxu0
        %v2258 = vadd.f32 %v1782, %v2257
        %v2259 = vpop.f32.mrf.mxu0
        %v2260 = vadd.f32 %v1790, %v2259
        %2261 = vmatmul.bf16.gmra.mxu0 %v1924
        %v2262 = vpop.f32.mrf.mxu0
        %v2263 = vadd.f32 %v1798, %v2262
        %v2264 = vpop.f32.mrf.mxu0
        %v2265 = vadd.f32 %v1806, %v2264
        %2266 = vmatmul.bf16.gmra.mxu0 %v1927
        %v2267 = vpop.f32.mrf.mxu0
        %v2268 = vadd.f32 %v1814, %v2267
        %v2269 = vpop.f32.mrf.mxu0
        %v2270 = vadd.f32 %v1822, %v2269
        %2271 = vdwg.mxu0
        %2272 = vmatpush.bf16.msra.mxu0 0
        %2273 = vmatpush.bf16.msra.mxu0 0
        %2274 = vmatpush.bf16.msra.mxu0 0
        %2275 = vmatpush.bf16.msra.mxu0 0
        %2276 = vmatpush.bf16.msra.mxu0 0
        %2277 = vmatpush.bf16.msra.mxu0 0
        %2278 = vmatpush.bf16.msra.mxu0 %v1887
        %2279 = vmatpush.bf16.msra.mxu0 %v1879
        %2280 = vmatmul.bf16.gmra.mxu0 %v1906
        %v2281 = vpop.f32.mrf.mxu0
        %v2282 = vadd.f32 %v1703, %v2281
        %v2283 = vpop.f32.mrf.mxu0
        %v2284 = vadd.f32 %v1711, %v2283
        %2285 = vmatmul.bf16.gmra.mxu0 %v1909
        %v2286 = vpop.f32.mrf.mxu0
        %v2287 = vadd.f32 %v1719, %v2286
        %v2288 = vpop.f32.mrf.mxu0
        %v2289 = vadd.f32 %v1727, %v2288
        %2290 = vmatmul.bf16.gmra.mxu0 %v1912
        %v2291 = vpop.f32.mrf.mxu0
        %v2292 = vadd.f32 %v1735, %v2291
        %v2293 = vpop.f32.mrf.mxu0
        %v2294 = vadd.f32 %v1743, %v2293
        %2295 = vmatmul.bf16.gmra.mxu0 %v1915
        %v2296 = vpop.f32.mrf.mxu0
        %v2297 = vadd.f32 %v1751, %v2296
        %v2298 = vpop.f32.mrf.mxu0
        %v2299 = vadd.f32 %v1759, %v2298
        %2300 = vmatmul.bf16.gmra.mxu0 %v1918
        %v2301 = vpop.f32.mrf.mxu0
        %v2302 = vadd.f32 %v1767, %v2301
        %v2303 = vpop.f32.mrf.mxu0
        %v2304 = vadd.f32 %v1775, %v2303
        %2305 = vmatmul.bf16.gmra.mxu0 %v1921
        %v2306 = vpop.f32.mrf.mxu0
        %v2307 = vadd.f32 %v1783, %v2306
        %v2308 = vpop.f32.mrf.mxu0
        %v2309 = vadd.f32 %v1791, %v2308
        %2310 = vmatmul.bf16.gmra.mxu0 %v1924
        %v2311 = vpop.f32.mrf.mxu0
        %v2312 = vadd.f32 %v1799, %v2311
        %v2313 = vpop.f32.mrf.mxu0
        %v2314 = vadd.f32 %v1807, %v2313
        %2315 = vmatmul.bf16.gmra.mxu0 %v1927
        %v2316 = vpop.f32.mrf.mxu0
        %v2317 = vadd.f32 %v1815, %v2316
        %v2318 = vpop.f32.mrf.mxu0
        %v2319 = vadd.f32 %v1823, %v2318
        %2320 = vdwg.mxu0
        %v2321 = vld [vmem:[%s6] sm:$0xff]
        %v2323 = vperm.slane %v2321, 0
        %v2324 = vperm.slane %v2321, 1
        %v2325 = vperm.slane %v2321, 2
        %v2326 = vperm.slane %v2321, 3
        %v2327 = vperm.slane %v2321, 4
        %v2328 = vperm.slane %v2321, 5
        %v2329 = vperm.slane %v2321, 6
        %v2330 = vperm.slane %v2321, 7
        %v2339 = vadd.f32 %v1939, %v2323
        %v2340 = vadd.f32 %v1988, %v2324
        %v2341 = vadd.f32 %v2037, %v2325
        %v2342 = vadd.f32 %v2086, %v2326
        %v2343 = vadd.f32 %v2135, %v2327
        %v2344 = vadd.f32 %v2184, %v2328
        %v2345 = vadd.f32 %v2233, %v2329
        %v2346 = vadd.f32 %v2282, %v2330
        %v2347 = vadd.f32 %v1941, %v2323
        %v2348 = vadd.f32 %v1990, %v2324
        %v2349 = vadd.f32 %v2039, %v2325
        %v2350 = vadd.f32 %v2088, %v2326
        %v2351 = vadd.f32 %v2137, %v2327
        %v2352 = vadd.f32 %v2186, %v2328
        %v2353 = vadd.f32 %v2235, %v2329
        %v2354 = vadd.f32 %v2284, %v2330
        %v2355 = vadd.f32 %v1944, %v2323
        %v2356 = vadd.f32 %v1993, %v2324
        %v2357 = vadd.f32 %v2042, %v2325
        %v2358 = vadd.f32 %v2091, %v2326
        %v2359 = vadd.f32 %v2140, %v2327
        %v2360 = vadd.f32 %v2189, %v2328
        %v2361 = vadd.f32 %v2238, %v2329
        %v2362 = vadd.f32 %v2287, %v2330
        %v2363 = vadd.f32 %v1946, %v2323
        %v2364 = vadd.f32 %v1995, %v2324
        %v2365 = vadd.f32 %v2044, %v2325
        %v2366 = vadd.f32 %v2093, %v2326
        %v2367 = vadd.f32 %v2142, %v2327
        %v2368 = vadd.f32 %v2191, %v2328
        %v2369 = vadd.f32 %v2240, %v2329
        %v2370 = vadd.f32 %v2289, %v2330
        %v2371 = vadd.f32 %v1949, %v2323
        %v2372 = vadd.f32 %v1998, %v2324
        %v2373 = vadd.f32 %v2047, %v2325
        %v2374 = vadd.f32 %v2096, %v2326
        %v2375 = vadd.f32 %v2145, %v2327
        %v2376 = vadd.f32 %v2194, %v2328
        %v2377 = vadd.f32 %v2243, %v2329
        %v2378 = vadd.f32 %v2292, %v2330
        %v2379 = vadd.f32 %v1951, %v2323
        %v2380 = vadd.f32 %v2000, %v2324
        %v2381 = vadd.f32 %v2049, %v2325
        %v2382 = vadd.f32 %v2098, %v2326
        %v2383 = vadd.f32 %v2147, %v2327
        %v2384 = vadd.f32 %v2196, %v2328
        %v2385 = vadd.f32 %v2245, %v2329
        %v2386 = vadd.f32 %v2294, %v2330
        %v2387 = vadd.f32 %v1954, %v2323
        %v2388 = vadd.f32 %v2003, %v2324
        %v2389 = vadd.f32 %v2052, %v2325
        %v2390 = vadd.f32 %v2101, %v2326
        %v2391 = vadd.f32 %v2150, %v2327
        %v2392 = vadd.f32 %v2199, %v2328
        %v2393 = vadd.f32 %v2248, %v2329
        %v2394 = vadd.f32 %v2297, %v2330
        %v2395 = vadd.f32 %v1956, %v2323
        %v2396 = vadd.f32 %v2005, %v2324
        %v2397 = vadd.f32 %v2054, %v2325
        %v2398 = vadd.f32 %v2103, %v2326
        %v2399 = vadd.f32 %v2152, %v2327
        %v2400 = vadd.f32 %v2201, %v2328
        %v2401 = vadd.f32 %v2250, %v2329
        %v2402 = vadd.f32 %v2299, %v2330
        %v2403 = vadd.f32 %v1959, %v2323
        %v2404 = vadd.f32 %v2008, %v2324
        %v2405 = vadd.f32 %v2057, %v2325
        %v2406 = vadd.f32 %v2106, %v2326
        %v2407 = vadd.f32 %v2155, %v2327
        %v2408 = vadd.f32 %v2204, %v2328
        %v2409 = vadd.f32 %v2253, %v2329
        %v2410 = vadd.f32 %v2302, %v2330
        %v2411 = vadd.f32 %v1961, %v2323
        %v2412 = vadd.f32 %v2010, %v2324
        %v2413 = vadd.f32 %v2059, %v2325
        %v2414 = vadd.f32 %v2108, %v2326
        %v2415 = vadd.f32 %v2157, %v2327
        %v2416 = vadd.f32 %v2206, %v2328
        %v2417 = vadd.f32 %v2255, %v2329
        %v2418 = vadd.f32 %v2304, %v2330
        %v2419 = vadd.f32 %v1964, %v2323
        %v2420 = vadd.f32 %v2013, %v2324
        %v2421 = vadd.f32 %v2062, %v2325
        %v2422 = vadd.f32 %v2111, %v2326
        %v2423 = vadd.f32 %v2160, %v2327
        %v2424 = vadd.f32 %v2209, %v2328
        %v2425 = vadd.f32 %v2258, %v2329
        %v2426 = vadd.f32 %v2307, %v2330
        %v2427 = vadd.f32 %v1966, %v2323
        %v2428 = vadd.f32 %v2015, %v2324
        %v2429 = vadd.f32 %v2064, %v2325
        %v2430 = vadd.f32 %v2113, %v2326
        %v2431 = vadd.f32 %v2162, %v2327
        %v2432 = vadd.f32 %v2211, %v2328
        %v2433 = vadd.f32 %v2260, %v2329
        %v2434 = vadd.f32 %v2309, %v2330
        %v2435 = vadd.f32 %v1969, %v2323
        %v2436 = vadd.f32 %v2018, %v2324
        %v2437 = vadd.f32 %v2067, %v2325
        %v2438 = vadd.f32 %v2116, %v2326
        %v2439 = vadd.f32 %v2165, %v2327
        %v2440 = vadd.f32 %v2214, %v2328
        %v2441 = vadd.f32 %v2263, %v2329
        %v2442 = vadd.f32 %v2312, %v2330
        %v2443 = vadd.f32 %v1971, %v2323
        %v2444 = vadd.f32 %v2020, %v2324
        %v2445 = vadd.f32 %v2069, %v2325
        %v2446 = vadd.f32 %v2118, %v2326
        %v2447 = vadd.f32 %v2167, %v2327
        %v2448 = vadd.f32 %v2216, %v2328
        %v2449 = vadd.f32 %v2265, %v2329
        %v2450 = vadd.f32 %v2314, %v2330
        %v2451 = vadd.f32 %v1974, %v2323
        %v2452 = vadd.f32 %v2023, %v2324
        %v2453 = vadd.f32 %v2072, %v2325
        %v2454 = vadd.f32 %v2121, %v2326
        %v2455 = vadd.f32 %v2170, %v2327
        %v2456 = vadd.f32 %v2219, %v2328
        %v2457 = vadd.f32 %v2268, %v2329
        %v2458 = vadd.f32 %v2317, %v2330
        %v2459 = vadd.f32 %v1976, %v2323
        %v2460 = vadd.f32 %v2025, %v2324
        %v2461 = vadd.f32 %v2074, %v2325
        %v2462 = vadd.f32 %v2123, %v2326
        %v2463 = vadd.f32 %v2172, %v2327
        %v2464 = vadd.f32 %v2221, %v2328
        %v2465 = vadd.f32 %v2270, %v2329
        %v2466 = vadd.f32 %v2319, %v2330
        %vm2467 = vcmp.ge.f32.partialorder %v2339, 0.0
        %vm2468 = vcmp.ge.f32.partialorder %v2340, 0.0
        %vm2469 = vcmp.ge.f32.partialorder %v2341, 0.0
        %vm2470 = vcmp.ge.f32.partialorder %v2342, 0.0
        %vm2471 = vcmp.ge.f32.partialorder %v2343, 0.0
        %vm2472 = vcmp.ge.f32.partialorder %v2344, 0.0
        %vm2473 = vcmp.ge.f32.partialorder %v2345, 0.0
        %vm2474 = vcmp.ge.f32.partialorder %v2346, 0.0
        %vm2475 = vcmp.ge.f32.partialorder %v2347, 0.0
        %vm2476 = vcmp.ge.f32.partialorder %v2348, 0.0
        %vm2477 = vcmp.ge.f32.partialorder %v2349, 0.0
        %vm2478 = vcmp.ge.f32.partialorder %v2350, 0.0
        %vm2479 = vcmp.ge.f32.partialorder %v2351, 0.0
        %vm2480 = vcmp.ge.f32.partialorder %v2352, 0.0
        %vm2481 = vcmp.ge.f32.partialorder %v2353, 0.0
        %vm2482 = vcmp.ge.f32.partialorder %v2354, 0.0
        %vm2483 = vcmp.ge.f32.partialorder %v2355, 0.0
        %vm2484 = vcmp.ge.f32.partialorder %v2356, 0.0
        %vm2485 = vcmp.ge.f32.partialorder %v2357, 0.0
        %vm2486 = vcmp.ge.f32.partialorder %v2358, 0.0
        %vm2487 = vcmp.ge.f32.partialorder %v2359, 0.0
        %vm2488 = vcmp.ge.f32.partialorder %v2360, 0.0
        %vm2489 = vcmp.ge.f32.partialorder %v2361, 0.0
        %vm2490 = vcmp.ge.f32.partialorder %v2362, 0.0
        %vm2491 = vcmp.ge.f32.partialorder %v2363, 0.0
        %vm2492 = vcmp.ge.f32.partialorder %v2364, 0.0
        %vm2493 = vcmp.ge.f32.partialorder %v2365, 0.0
        %vm2494 = vcmp.ge.f32.partialorder %v2366, 0.0
        %vm2495 = vcmp.ge.f32.partialorder %v2367, 0.0
        %vm2496 = vcmp.ge.f32.partialorder %v2368, 0.0
        %vm2497 = vcmp.ge.f32.partialorder %v2369, 0.0
        %vm2498 = vcmp.ge.f32.partialorder %v2370, 0.0
        %vm2499 = vcmp.ge.f32.partialorder %v2371, 0.0
        %vm2500 = vcmp.ge.f32.partialorder %v2372, 0.0
        %vm2501 = vcmp.ge.f32.partialorder %v2373, 0.0
        %vm2502 = vcmp.ge.f32.partialorder %v2374, 0.0
        %vm2503 = vcmp.ge.f32.partialorder %v2375, 0.0
        %vm2504 = vcmp.ge.f32.partialorder %v2376, 0.0
        %vm2505 = vcmp.ge.f32.partialorder %v2377, 0.0
        %vm2506 = vcmp.ge.f32.partialorder %v2378, 0.0
        %vm2507 = vcmp.ge.f32.partialorder %v2379, 0.0
        %vm2508 = vcmp.ge.f32.partialorder %v2380, 0.0
        %vm2509 = vcmp.ge.f32.partialorder %v2381, 0.0
        %vm2510 = vcmp.ge.f32.partialorder %v2382, 0.0
        %vm2511 = vcmp.ge.f32.partialorder %v2383, 0.0
        %vm2512 = vcmp.ge.f32.partialorder %v2384, 0.0
        %vm2513 = vcmp.ge.f32.partialorder %v2385, 0.0
        %vm2514 = vcmp.ge.f32.partialorder %v2386, 0.0
        %vm2515 = vcmp.ge.f32.partialorder %v2387, 0.0
        %vm2516 = vcmp.ge.f32.partialorder %v2388, 0.0
        %vm2517 = vcmp.ge.f32.partialorder %v2389, 0.0
        %vm2518 = vcmp.ge.f32.partialorder %v2390, 0.0
        %vm2519 = vcmp.ge.f32.partialorder %v2391, 0.0
        %vm2520 = vcmp.ge.f32.partialorder %v2392, 0.0
        %vm2521 = vcmp.ge.f32.partialorder %v2393, 0.0
        %vm2522 = vcmp.ge.f32.partialorder %v2394, 0.0
        %vm2523 = vcmp.ge.f32.partialorder %v2395, 0.0
        %vm2524 = vcmp.ge.f32.partialorder %v2396, 0.0
        %vm2525 = vcmp.ge.f32.partialorder %v2397, 0.0
        %vm2526 = vcmp.ge.f32.partialorder %v2398, 0.0
        %vm2527 = vcmp.ge.f32.partialorder %v2399, 0.0
        %vm2528 = vcmp.ge.f32.partialorder %v2400, 0.0
        %vm2529 = vcmp.ge.f32.partialorder %v2401, 0.0
        %vm2530 = vcmp.ge.f32.partialorder %v2402, 0.0
        %vm2531 = vcmp.ge.f32.partialorder %v2403, 0.0
        %vm2532 = vcmp.ge.f32.partialorder %v2404, 0.0
        %vm2533 = vcmp.ge.f32.partialorder %v2405, 0.0
        %vm2534 = vcmp.ge.f32.partialorder %v2406, 0.0
        %vm2535 = vcmp.ge.f32.partialorder %v2407, 0.0
        %vm2536 = vcmp.ge.f32.partialorder %v2408, 0.0
        %vm2537 = vcmp.ge.f32.partialorder %v2409, 0.0
        %vm2538 = vcmp.ge.f32.partialorder %v2410, 0.0
        %vm2539 = vcmp.ge.f32.partialorder %v2411, 0.0
        %vm2540 = vcmp.ge.f32.partialorder %v2412, 0.0
        %vm2541 = vcmp.ge.f32.partialorder %v2413, 0.0
        %vm2542 = vcmp.ge.f32.partialorder %v2414, 0.0
        %vm2543 = vcmp.ge.f32.partialorder %v2415, 0.0
        %vm2544 = vcmp.ge.f32.partialorder %v2416, 0.0
        %vm2545 = vcmp.ge.f32.partialorder %v2417, 0.0
        %vm2546 = vcmp.ge.f32.partialorder %v2418, 0.0
        %vm2547 = vcmp.ge.f32.partialorder %v2419, 0.0
        %vm2548 = vcmp.ge.f32.partialorder %v2420, 0.0
        %vm2549 = vcmp.ge.f32.partialorder %v2421, 0.0
        %vm2550 = vcmp.ge.f32.partialorder %v2422, 0.0
        %vm2551 = vcmp.ge.f32.partialorder %v2423, 0.0
        %vm2552 = vcmp.ge.f32.partialorder %v2424, 0.0
        %vm2553 = vcmp.ge.f32.partialorder %v2425, 0.0
        %vm2554 = vcmp.ge.f32.partialorder %v2426, 0.0
        %vm2555 = vcmp.ge.f32.partialorder %v2427, 0.0
        %vm2556 = vcmp.ge.f32.partialorder %v2428, 0.0
        %vm2557 = vcmp.ge.f32.partialorder %v2429, 0.0
        %vm2558 = vcmp.ge.f32.partialorder %v2430, 0.0
        %vm2559 = vcmp.ge.f32.partialorder %v2431, 0.0
        %vm2560 = vcmp.ge.f32.partialorder %v2432, 0.0
        %vm2561 = vcmp.ge.f32.partialorder %v2433, 0.0
        %vm2562 = vcmp.ge.f32.partialorder %v2434, 0.0
        %vm2563 = vcmp.ge.f32.partialorder %v2435, 0.0
        %vm2564 = vcmp.ge.f32.partialorder %v2436, 0.0
        %vm2565 = vcmp.ge.f32.partialorder %v2437, 0.0
        %vm2566 = vcmp.ge.f32.partialorder %v2438, 0.0
        %vm2567 = vcmp.ge.f32.partialorder %v2439, 0.0
        %vm2568 = vcmp.ge.f32.partialorder %v2440, 0.0
        %vm2569 = vcmp.ge.f32.partialorder %v2441, 0.0
        %vm2570 = vcmp.ge.f32.partialorder %v2442, 0.0
        %vm2571 = vcmp.ge.f32.partialorder %v2443, 0.0
        %vm2572 = vcmp.ge.f32.partialorder %v2444, 0.0
        %vm2573 = vcmp.ge.f32.partialorder %v2445, 0.0
        %vm2574 = vcmp.ge.f32.partialorder %v2446, 0.0
        %vm2575 = vcmp.ge.f32.partialorder %v2447, 0.0
        %vm2576 = vcmp.ge.f32.partialorder %v2448, 0.0
        %vm2577 = vcmp.ge.f32.partialorder %v2449, 0.0
        %vm2578 = vcmp.ge.f32.partialorder %v2450, 0.0
        %vm2579 = vcmp.ge.f32.partialorder %v2451, 0.0
        %vm2580 = vcmp.ge.f32.partialorder %v2452, 0.0
        %vm2581 = vcmp.ge.f32.partialorder %v2453, 0.0
        %vm2582 = vcmp.ge.f32.partialorder %v2454, 0.0
        %vm2583 = vcmp.ge.f32.partialorder %v2455, 0.0
        %vm2584 = vcmp.ge.f32.partialorder %v2456, 0.0
        %vm2585 = vcmp.ge.f32.partialorder %v2457, 0.0
        %vm2586 = vcmp.ge.f32.partialorder %v2458, 0.0
        %vm2587 = vcmp.ge.f32.partialorder %v2459, 0.0
        %vm2588 = vcmp.ge.f32.partialorder %v2460, 0.0
        %vm2589 = vcmp.ge.f32.partialorder %v2461, 0.0
        %vm2590 = vcmp.ge.f32.partialorder %v2462, 0.0
        %vm2591 = vcmp.ge.f32.partialorder %v2463, 0.0
        %vm2592 = vcmp.ge.f32.partialorder %v2464, 0.0
        %vm2593 = vcmp.ge.f32.partialorder %v2465, 0.0
        %vm2594 = vcmp.ge.f32.partialorder %v2466, 0.0
        %v2595 = vmul.f32 %v2339, 0.2
        %v2596 = vmul.f32 %v2340, 0.2
        %v2597 = vmul.f32 %v2341, 0.2
        %v2598 = vmul.f32 %v2342, 0.2
        %v2599 = vmul.f32 %v2343, 0.2
        %v2600 = vmul.f32 %v2344, 0.2
        %v2601 = vmul.f32 %v2345, 0.2
        %v2602 = vmul.f32 %v2346, 0.2
        %v2603 = vmul.f32 %v2347, 0.2
        %v2604 = vmul.f32 %v2348, 0.2
        %v2605 = vmul.f32 %v2349, 0.2
        %v2606 = vmul.f32 %v2350, 0.2
        %v2607 = vmul.f32 %v2351, 0.2
        %v2608 = vmul.f32 %v2352, 0.2
        %v2609 = vmul.f32 %v2353, 0.2
        %v2610 = vmul.f32 %v2354, 0.2
        %v2611 = vmul.f32 %v2355, 0.2
        %v2612 = vmul.f32 %v2356, 0.2
        %v2613 = vmul.f32 %v2357, 0.2
        %v2614 = vmul.f32 %v2358, 0.2
        %v2615 = vmul.f32 %v2359, 0.2
        %v2616 = vmul.f32 %v2360, 0.2
        %v2617 = vmul.f32 %v2361, 0.2
        %v2618 = vmul.f32 %v2362, 0.2
        %v2619 = vmul.f32 %v2363, 0.2
        %v2620 = vmul.f32 %v2364, 0.2
        %v2621 = vmul.f32 %v2365, 0.2
        %v2622 = vmul.f32 %v2366, 0.2
        %v2623 = vmul.f32 %v2367, 0.2
        %v2624 = vmul.f32 %v2368, 0.2
        %v2625 = vmul.f32 %v2369, 0.2
        %v2626 = vmul.f32 %v2370, 0.2
        %v2627 = vmul.f32 %v2371, 0.2
        %v2628 = vmul.f32 %v2372, 0.2
        %v2629 = vmul.f32 %v2373, 0.2
        %v2630 = vmul.f32 %v2374, 0.2
        %v2631 = vmul.f32 %v2375, 0.2
        %v2632 = vmul.f32 %v2376, 0.2
        %v2633 = vmul.f32 %v2377, 0.2
        %v2634 = vmul.f32 %v2378, 0.2
        %v2635 = vmul.f32 %v2379, 0.2
        %v2636 = vmul.f32 %v2380, 0.2
        %v2637 = vmul.f32 %v2381, 0.2
        %v2638 = vmul.f32 %v2382, 0.2
        %v2639 = vmul.f32 %v2383, 0.2
        %v2640 = vmul.f32 %v2384, 0.2
        %v2641 = vmul.f32 %v2385, 0.2
        %v2642 = vmul.f32 %v2386, 0.2
        %v2643 = vmul.f32 %v2387, 0.2
        %v2644 = vmul.f32 %v2388, 0.2
        %v2645 = vmul.f32 %v2389, 0.2
        %v2646 = vmul.f32 %v2390, 0.2
        %v2647 = vmul.f32 %v2391, 0.2
        %v2648 = vmul.f32 %v2392, 0.2
        %v2649 = vmul.f32 %v2393, 0.2
        %v2650 = vmul.f32 %v2394, 0.2
        %v2651 = vmul.f32 %v2395, 0.2
        %v2652 = vmul.f32 %v2396, 0.2
        %v2653 = vmul.f32 %v2397, 0.2
        %v2654 = vmul.f32 %v2398, 0.2
        %v2655 = vmul.f32 %v2399, 0.2
        %v2656 = vmul.f32 %v2400, 0.2
        %v2657 = vmul.f32 %v2401, 0.2
        %v2658 = vmul.f32 %v2402, 0.2
        %v2659 = vmul.f32 %v2403, 0.2
        %v2660 = vmul.f32 %v2404, 0.2
        %v2661 = vmul.f32 %v2405, 0.2
        %v2662 = vmul.f32 %v2406, 0.2
        %v2663 = vmul.f32 %v2407, 0.2
        %v2664 = vmul.f32 %v2408, 0.2
        %v2665 = vmul.f32 %v2409, 0.2
        %v2666 = vmul.f32 %v2410, 0.2
        %v2667 = vmul.f32 %v2411, 0.2
        %v2668 = vmul.f32 %v2412, 0.2
        %v2669 = vmul.f32 %v2413, 0.2
        %v2670 = vmul.f32 %v2414, 0.2
        %v2671 = vmul.f32 %v2415, 0.2
        %v2672 = vmul.f32 %v2416, 0.2
        %v2673 = vmul.f32 %v2417, 0.2
        %v2674 = vmul.f32 %v2418, 0.2
        %v2675 = vmul.f32 %v2419, 0.2
        %v2676 = vmul.f32 %v2420, 0.2
        %v2677 = vmul.f32 %v2421, 0.2
        %v2678 = vmul.f32 %v2422, 0.2
        %v2679 = vmul.f32 %v2423, 0.2
        %v2680 = vmul.f32 %v2424, 0.2
        %v2681 = vmul.f32 %v2425, 0.2
        %v2682 = vmul.f32 %v2426, 0.2
        %v2683 = vmul.f32 %v2427, 0.2
        %v2684 = vmul.f32 %v2428, 0.2
        %v2685 = vmul.f32 %v2429, 0.2
        %v2686 = vmul.f32 %v2430, 0.2
        %v2687 = vmul.f32 %v2431, 0.2
        %v2688 = vmul.f32 %v2432, 0.2
        %v2689 = vmul.f32 %v2433, 0.2
        %v2690 = vmul.f32 %v2434, 0.2
        %v2691 = vmul.f32 %v2435, 0.2
        %v2692 = vmul.f32 %v2436, 0.2
        %v2693 = vmul.f32 %v2437, 0.2
        %v2694 = vmul.f32 %v2438, 0.2
        %v2695 = vmul.f32 %v2439, 0.2
        %v2696 = vmul.f32 %v2440, 0.2
        %v2697 = vmul.f32 %v2441, 0.2
        %v2698 = vmul.f32 %v2442, 0.2
        %v2699 = vmul.f32 %v2443, 0.2
        %v2700 = vmul.f32 %v2444, 0.2
        %v2701 = vmul.f32 %v2445, 0.2
        %v2702 = vmul.f32 %v2446, 0.2
        %v2703 = vmul.f32 %v2447, 0.2
        %v2704 = vmul.f32 %v2448, 0.2
        %v2705 = vmul.f32 %v2449, 0.2
        %v2706 = vmul.f32 %v2450, 0.2
        %v2707 = vmul.f32 %v2451, 0.2
        %v2708 = vmul.f32 %v2452, 0.2
        %v2709 = vmul.f32 %v2453, 0.2
        %v2710 = vmul.f32 %v2454, 0.2
        %v2711 = vmul.f32 %v2455, 0.2
        %v2712 = vmul.f32 %v2456, 0.2
        %v2713 = vmul.f32 %v2457, 0.2
        %v2714 = vmul.f32 %v2458, 0.2
        %v2715 = vmul.f32 %v2459, 0.2
        %v2716 = vmul.f32 %v2460, 0.2
        %v2717 = vmul.f32 %v2461, 0.2
        %v2718 = vmul.f32 %v2462, 0.2
        %v2719 = vmul.f32 %v2463, 0.2
        %v2720 = vmul.f32 %v2464, 0.2
        %v2721 = vmul.f32 %v2465, 0.2
        %v2722 = vmul.f32 %v2466, 0.2
        %v2723 = vsel %vm2467, %v2339, %v2595
        %v2724 = vsel %vm2468, %v2340, %v2596
        %v2725 = vsel %vm2469, %v2341, %v2597
        %v2726 = vsel %vm2470, %v2342, %v2598
        %v2727 = vsel %vm2471, %v2343, %v2599
        %v2728 = vsel %vm2472, %v2344, %v2600
        %v2729 = vsel %vm2473, %v2345, %v2601
        %v2730 = vsel %vm2474, %v2346, %v2602
        %v2731 = vsel %vm2475, %v2347, %v2603
        %v2732 = vsel %vm2476, %v2348, %v2604
        %v2733 = vsel %vm2477, %v2349, %v2605
        %v2734 = vsel %vm2478, %v2350, %v2606
        %v2735 = vsel %vm2479, %v2351, %v2607
        %v2736 = vsel %vm2480, %v2352, %v2608
        %v2737 = vsel %vm2481, %v2353, %v2609
        %v2738 = vsel %vm2482, %v2354, %v2610
        %v2739 = vsel %vm2483, %v2355, %v2611
        %v2740 = vsel %vm2484, %v2356, %v2612
        %v2741 = vsel %vm2485, %v2357, %v2613
        %v2742 = vsel %vm2486, %v2358, %v2614
        %v2743 = vsel %vm2487, %v2359, %v2615
        %v2744 = vsel %vm2488, %v2360, %v2616
        %v2745 = vsel %vm2489, %v2361, %v2617
        %v2746 = vsel %vm2490, %v2362, %v2618
        %v2747 = vsel %vm2491, %v2363, %v2619
        %v2748 = vsel %vm2492, %v2364, %v2620
        %v2749 = vsel %vm2493, %v2365, %v2621
        %v2750 = vsel %vm2494, %v2366, %v2622
        %v2751 = vsel %vm2495, %v2367, %v2623
        %v2752 = vsel %vm2496, %v2368, %v2624
        %v2753 = vsel %vm2497, %v2369, %v2625
        %v2754 = vsel %vm2498, %v2370, %v2626
        %v2755 = vsel %vm2499, %v2371, %v2627
        %v2756 = vsel %vm2500, %v2372, %v2628
        %v2757 = vsel %vm2501, %v2373, %v2629
        %v2758 = vsel %vm2502, %v2374, %v2630
        %v2759 = vsel %vm2503, %v2375, %v2631
        %v2760 = vsel %vm2504, %v2376, %v2632
        %v2761 = vsel %vm2505, %v2377, %v2633
        %v2762 = vsel %vm2506, %v2378, %v2634
        %v2763 = vsel %vm2507, %v2379, %v2635
        %v2764 = vsel %vm2508, %v2380, %v2636
        %v2765 = vsel %vm2509, %v2381, %v2637
        %v2766 = vsel %vm2510, %v2382, %v2638
        %v2767 = vsel %vm2511, %v2383, %v2639
        %v2768 = vsel %vm2512, %v2384, %v2640
        %v2769 = vsel %vm2513, %v2385, %v2641
        %v2770 = vsel %vm2514, %v2386, %v2642
        %v2771 = vsel %vm2515, %v2387, %v2643
        %v2772 = vsel %vm2516, %v2388, %v2644
        %v2773 = vsel %vm2517, %v2389, %v2645
        %v2774 = vsel %vm2518, %v2390, %v2646
        %v2775 = vsel %vm2519, %v2391, %v2647
        %v2776 = vsel %vm2520, %v2392, %v2648
        %v2777 = vsel %vm2521, %v2393, %v2649
        %v2778 = vsel %vm2522, %v2394, %v2650
        %v2779 = vsel %vm2523, %v2395, %v2651
        %v2780 = vsel %vm2524, %v2396, %v2652
        %v2781 = vsel %vm2525, %v2397, %v2653
        %v2782 = vsel %vm2526, %v2398, %v2654
        %v2783 = vsel %vm2527, %v2399, %v2655
        %v2784 = vsel %vm2528, %v2400, %v2656
        %v2785 = vsel %vm2529, %v2401, %v2657
        %v2786 = vsel %vm2530, %v2402, %v2658
        %v2787 = vsel %vm2531, %v2403, %v2659
        %v2788 = vsel %vm2532, %v2404, %v2660
        %v2789 = vsel %vm2533, %v2405, %v2661
        %v2790 = vsel %vm2534, %v2406, %v2662
        %v2791 = vsel %vm2535, %v2407, %v2663
        %v2792 = vsel %vm2536, %v2408, %v2664
        %v2793 = vsel %vm2537, %v2409, %v2665
        %v2794 = vsel %vm2538, %v2410, %v2666
        %v2795 = vsel %vm2539, %v2411, %v2667
        %v2796 = vsel %vm2540, %v2412, %v2668
        %v2797 = vsel %vm2541, %v2413, %v2669
        %v2798 = vsel %vm2542, %v2414, %v2670
        %v2799 = vsel %vm2543, %v2415, %v2671
        %v2800 = vsel %vm2544, %v2416, %v2672
        %v2801 = vsel %vm2545, %v2417, %v2673
        %v2802 = vsel %vm2546, %v2418, %v2674
        %v2803 = vsel %vm2547, %v2419, %v2675
        %v2804 = vsel %vm2548, %v2420, %v2676
        %v2805 = vsel %vm2549, %v2421, %v2677
        %v2806 = vsel %vm2550, %v2422, %v2678
        %v2807 = vsel %vm2551, %v2423, %v2679
        %v2808 = vsel %vm2552, %v2424, %v2680
        %v2809 = vsel %vm2553, %v2425, %v2681
        %v2810 = vsel %vm2554, %v2426, %v2682
        %v2811 = vsel %vm2555, %v2427, %v2683
        %v2812 = vsel %vm2556, %v2428, %v2684
        %v2813 = vsel %vm2557, %v2429, %v2685
        %v2814 = vsel %vm2558, %v2430, %v2686
        %v2815 = vsel %vm2559, %v2431, %v2687
        %v2816 = vsel %vm2560, %v2432, %v2688
        %v2817 = vsel %vm2561, %v2433, %v2689
        %v2818 = vsel %vm2562, %v2434, %v2690
        %v2819 = vsel %vm2563, %v2435, %v2691
        %v2820 = vsel %vm2564, %v2436, %v2692
        %v2821 = vsel %vm2565, %v2437, %v2693
        %v2822 = vsel %vm2566, %v2438, %v2694
        %v2823 = vsel %vm2567, %v2439, %v2695
        %v2824 = vsel %vm2568, %v2440, %v2696
        %v2825 = vsel %vm2569, %v2441, %v2697
        %v2826 = vsel %vm2570, %v2442, %v2698
        %v2827 = vsel %vm2571, %v2443, %v2699
        %v2828 = vsel %vm2572, %v2444, %v2700
        %v2829 = vsel %vm2573, %v2445, %v2701
        %v2830 = vsel %vm2574, %v2446, %v2702
        %v2831 = vsel %vm2575, %v2447, %v2703
        %v2832 = vsel %vm2576, %v2448, %v2704
        %v2833 = vsel %vm2577, %v2449, %v2705
        %v2834 = vsel %vm2578, %v2450, %v2706
        %v2835 = vsel %vm2579, %v2451, %v2707
        %v2836 = vsel %vm2580, %v2452, %v2708
        %v2837 = vsel %vm2581, %v2453, %v2709
        %v2838 = vsel %vm2582, %v2454, %v2710
        %v2839 = vsel %vm2583, %v2455, %v2711
        %v2840 = vsel %vm2584, %v2456, %v2712
        %v2841 = vsel %vm2585, %v2457, %v2713
        %v2842 = vsel %vm2586, %v2458, %v2714
        %v2843 = vsel %vm2587, %v2459, %v2715
        %v2844 = vsel %vm2588, %v2460, %v2716
        %v2845 = vsel %vm2589, %v2461, %v2717
        %v2846 = vsel %vm2590, %v2462, %v2718
        %v2847 = vsel %vm2591, %v2463, %v2719
        %v2848 = vsel %vm2592, %v2464, %v2720
        %v2849 = vsel %vm2593, %v2465, %v2721
        %v2850 = vsel %vm2594, %v2466, %v2722
        %v2851 = vpack.c.bf16 %v2731, %v2723
        %v2852 = vpack.c.bf16 %v2732, %v2724
        %v2853 = vpack.c.bf16 %v2733, %v2725
        %v2854 = vpack.c.bf16 %v2734, %v2726
        %v2855 = vpack.c.bf16 %v2735, %v2727
        %v2856 = vpack.c.bf16 %v2736, %v2728
        %v2857 = vpack.c.bf16 %v2737, %v2729
        %v2858 = vpack.c.bf16 %v2738, %v2730
        %v2859 = vpack.c.bf16 %v2747, %v2739
        %v2860 = vpack.c.bf16 %v2748, %v2740
        %v2861 = vpack.c.bf16 %v2749, %v2741
        %v2862 = vpack.c.bf16 %v2750, %v2742
        %v2863 = vpack.c.bf16 %v2751, %v2743
        %v2864 = vpack.c.bf16 %v2752, %v2744
        %v2865 = vpack.c.bf16 %v2753, %v2745
        %v2866 = vpack.c.bf16 %v2754, %v2746
        %v2867 = vpack.c.bf16 %v2763, %v2755
        %v2868 = vpack.c.bf16 %v2764, %v2756
        %v2869 = vpack.c.bf16 %v2765, %v2757
        %v2870 = vpack.c.bf16 %v2766, %v2758
        %v2871 = vpack.c.bf16 %v2767, %v2759
        %v2872 = vpack.c.bf16 %v2768, %v2760
        %v2873 = vpack.c.bf16 %v2769, %v2761
        %v2874 = vpack.c.bf16 %v2770, %v2762
        %v2875 = vpack.c.bf16 %v2779, %v2771
        %v2876 = vpack.c.bf16 %v2780, %v2772
        %v2877 = vpack.c.bf16 %v2781, %v2773
        %v2878 = vpack.c.bf16 %v2782, %v2774
        %v2879 = vpack.c.bf16 %v2783, %v2775
        %v2880 = vpack.c.bf16 %v2784, %v2776
        %v2881 = vpack.c.bf16 %v2785, %v2777
        %v2882 = vpack.c.bf16 %v2786, %v2778
        %v2883 = vpack.c.bf16 %v2795, %v2787
        %v2884 = vpack.c.bf16 %v2796, %v2788
        %v2885 = vpack.c.bf16 %v2797, %v2789
        %v2886 = vpack.c.bf16 %v2798, %v2790
        %v2887 = vpack.c.bf16 %v2799, %v2791
        %v2888 = vpack.c.bf16 %v2800, %v2792
        %v2889 = vpack.c.bf16 %v2801, %v2793
        %v2890 = vpack.c.bf16 %v2802, %v2794
        %v2891 = vpack.c.bf16 %v2811, %v2803
        %v2892 = vpack.c.bf16 %v2812, %v2804
        %v2893 = vpack.c.bf16 %v2813, %v2805
        %v2894 = vpack.c.bf16 %v2814, %v2806
        %v2895 = vpack.c.bf16 %v2815, %v2807
        %v2896 = vpack.c.bf16 %v2816, %v2808
        %v2897 = vpack.c.bf16 %v2817, %v2809
        %v2898 = vpack.c.bf16 %v2818, %v2810
        %v2899 = vpack.c.bf16 %v2827, %v2819
        %v2900 = vpack.c.bf16 %v2828, %v2820
        %v2901 = vpack.c.bf16 %v2829, %v2821
        %v2902 = vpack.c.bf16 %v2830, %v2822
        %v2903 = vpack.c.bf16 %v2831, %v2823
        %v2904 = vpack.c.bf16 %v2832, %v2824
        %v2905 = vpack.c.bf16 %v2833, %v2825
        %v2906 = vpack.c.bf16 %v2834, %v2826
        %v2907 = vpack.c.bf16 %v2843, %v2835
        %v2908 = vpack.c.bf16 %v2844, %v2836
        %v2909 = vpack.c.bf16 %v2845, %v2837
        %v2910 = vpack.c.bf16 %v2846, %v2838
        %v2911 = vpack.c.bf16 %v2847, %v2839
        %v2912 = vpack.c.bf16 %v2848, %v2840
        %v2913 = vpack.c.bf16 %v2849, %v2841
        %v2914 = vpack.c.bf16 %v2850, %v2842
        %v2915 = vld [vmem:[%s7] sm:$0xff]
        %v2916 = vld [vmem:[%s7 + $0x8] sm:$0xff]
        %v2917 = vld [vmem:[%s7 + $0x10] sm:$0xff]
        %v2918 = vld [vmem:[%s7 + $0x18] sm:$0xff]
        %v2919 = vld [vmem:[%s7 + $0x20] sm:$0xff]
        %v2920 = vld [vmem:[%s7 + $0x28] sm:$0xff]
        %v2921 = vld [vmem:[%s7 + $0x30] sm:$0xff]
        %v2922 = vld [vmem:[%s7 + $0x38] sm:$0xff]
        %v2923 = vld [vmem:[#allocation10] sm:$0xff]
        %v2924 = vld [vmem:[#allocation10 + $0x8] sm:$0xff]
        %v2925 = vld [vmem:[#allocation10 + $0x10] sm:$0xff]
        %v2926 = vld [vmem:[#allocation10 + $0x18] sm:$0xff]
        %v2927 = vld [vmem:[#allocation10 + $0x20] sm:$0xff]
        %v2928 = vld [vmem:[#allocation10 + $0x28] sm:$0xff]
        %v2929 = vld [vmem:[#allocation10 + $0x30] sm:$0xff]
        %v2930 = vld [vmem:[#allocation10 + $0x38] sm:$0xff]
        %v2931 = vld [vmem:[#allocation10 + $0x40] sm:$0xff]
        %v2932 = vld [vmem:[#allocation10 + $0x48] sm:$0xff]
        %v2933 = vld [vmem:[#allocation10 + $0x50] sm:$0xff]
        %v2934 = vld [vmem:[#allocation10 + $0x58] sm:$0xff]
        %v2935 = vld [vmem:[#allocation10 + $0x60] sm:$0xff]
        %v2936 = vld [vmem:[#allocation10 + $0x68] sm:$0xff]
        %v2937 = vld [vmem:[#allocation10 + $0x70] sm:$0xff]
        %v2938 = vld [vmem:[#allocation10 + $0x78] sm:$0xff]
        %v2939 = vld [vmem:[#allocation10 + $0x80] sm:$0xff]
        %v2940 = vld [vmem:[#allocation10 + $0x88] sm:$0xff]
        %v2941 = vld [vmem:[#allocation10 + $0x90] sm:$0xff]
        %v2942 = vld [vmem:[#allocation10 + $0x98] sm:$0xff]
        %v2943 = vld [vmem:[#allocation10 + $0xa0] sm:$0xff]
        %v2944 = vld [vmem:[#allocation10 + $0xa8] sm:$0xff]
        %v2945 = vld [vmem:[#allocation10 + $0xb0] sm:$0xff]
        %v2946 = vld [vmem:[#allocation10 + $0xb8] sm:$0xff]
        %v2947 = vld [vmem:[#allocation10 + $0xc0] sm:$0xff]
        %v2948 = vld [vmem:[#allocation10 + $0xc8] sm:$0xff]
        %v2949 = vld [vmem:[#allocation10 + $0xd0] sm:$0xff]
        %v2950 = vld [vmem:[#allocation10 + $0xd8] sm:$0xff]
        %v2951 = vld [vmem:[#allocation10 + $0xe0] sm:$0xff]
        %v2952 = vld [vmem:[#allocation10 + $0xe8] sm:$0xff]
        %v2953 = vld [vmem:[#allocation10 + $0xf0] sm:$0xff]
        %v2954 = vld [vmem:[#allocation10 + $0xf8] sm:$0xff]
        %v2955 = vld [vmem:[#allocation10 + $0x100] sm:$0xff]
        %v2956 = vld [vmem:[#allocation10 + $0x108] sm:$0xff]
        %v2957 = vld [vmem:[#allocation10 + $0x110] sm:$0xff]
        %v2958 = vld [vmem:[#allocation10 + $0x118] sm:$0xff]
        %v2959 = vld [vmem:[#allocation10 + $0x120] sm:$0xff]
        %v2960 = vld [vmem:[#allocation10 + $0x128] sm:$0xff]
        %v2961 = vld [vmem:[#allocation10 + $0x130] sm:$0xff]
        %v2962 = vld [vmem:[#allocation10 + $0x138] sm:$0xff]
        %v2963 = vld [vmem:[#allocation10 + $0x140] sm:$0xff]
        %v2964 = vld [vmem:[#allocation10 + $0x148] sm:$0xff]
        %v2965 = vld [vmem:[#allocation10 + $0x150] sm:$0xff]
        %v2966 = vld [vmem:[#allocation10 + $0x158] sm:$0xff]
        %v2967 = vld [vmem:[#allocation10 + $0x160] sm:$0xff]
        %v2968 = vld [vmem:[#allocation10 + $0x168] sm:$0xff]
        %v2969 = vld [vmem:[#allocation10 + $0x170] sm:$0xff]
        %v2970 = vld [vmem:[#allocation10 + $0x178] sm:$0xff]
        %v2971 = vld [vmem:[#allocation10 + $0x180] sm:$0xff]
        %v2972 = vld [vmem:[#allocation10 + $0x188] sm:$0xff]
        %v2973 = vld [vmem:[#allocation10 + $0x190] sm:$0xff]
        %v2974 = vld [vmem:[#allocation10 + $0x198] sm:$0xff]
        %v2975 = vld [vmem:[#allocation10 + $0x1a0] sm:$0xff]
        %v2976 = vld [vmem:[#allocation10 + $0x1a8] sm:$0xff]
        %v2977 = vld [vmem:[#allocation10 + $0x1b0] sm:$0xff]
        %v2978 = vld [vmem:[#allocation10 + $0x1b8] sm:$0xff]
        %v2979 = vld [vmem:[#allocation10 + $0x1c0] sm:$0xff]
        %v2980 = vld [vmem:[#allocation10 + $0x1c8] sm:$0xff]
        %v2981 = vld [vmem:[#allocation10 + $0x1d0] sm:$0xff]
        %v2982 = vld [vmem:[#allocation10 + $0x1d8] sm:$0xff]
        %v2983 = vld [vmem:[#allocation10 + $0x1e0] sm:$0xff]
        %v2984 = vld [vmem:[#allocation10 + $0x1e8] sm:$0xff]
        %v2985 = vld [vmem:[#allocation10 + $0x1f0] sm:$0xff]
        %v2986 = vld [vmem:[#allocation10 + $0x1f8] sm:$0xff]
        %v2987 = vld [vmem:[#allocation10 + $0x200] sm:$0xff]
        %v2988 = vld [vmem:[#allocation10 + $0x208] sm:$0xff]
        %v2989 = vld [vmem:[#allocation10 + $0x210] sm:$0xff]
        %v2990 = vld [vmem:[#allocation10 + $0x218] sm:$0xff]
        %v2991 = vld [vmem:[#allocation10 + $0x220] sm:$0xff]
        %v2992 = vld [vmem:[#allocation10 + $0x228] sm:$0xff]
        %v2993 = vld [vmem:[#allocation10 + $0x230] sm:$0xff]
        %v2994 = vld [vmem:[#allocation10 + $0x238] sm:$0xff]
        %v2995 = vld [vmem:[#allocation10 + $0x240] sm:$0xff]
        %v2996 = vld [vmem:[#allocation10 + $0x248] sm:$0xff]
        %v2997 = vld [vmem:[#allocation10 + $0x250] sm:$0xff]
        %v2998 = vld [vmem:[#allocation10 + $0x258] sm:$0xff]
        %v2999 = vld [vmem:[#allocation10 + $0x260] sm:$0xff]
        %v3000 = vld [vmem:[#allocation10 + $0x268] sm:$0xff]
        %v3001 = vld [vmem:[#allocation10 + $0x270] sm:$0xff]
        %v3002 = vld [vmem:[#allocation10 + $0x278] sm:$0xff]
        %v3003 = vld [vmem:[#allocation10 + $0x280] sm:$0xff]
        %v3004 = vld [vmem:[#allocation10 + $0x288] sm:$0xff]
        %v3005 = vld [vmem:[#allocation10 + $0x290] sm:$0xff]
        %v3006 = vld [vmem:[#allocation10 + $0x298] sm:$0xff]
        %v3007 = vld [vmem:[#allocation10 + $0x2a0] sm:$0xff]
        %v3008 = vld [vmem:[#allocation10 + $0x2a8] sm:$0xff]
        %v3009 = vld [vmem:[#allocation10 + $0x2b0] sm:$0xff]
        %v3010 = vld [vmem:[#allocation10 + $0x2b8] sm:$0xff]
        %v3011 = vld [vmem:[#allocation10 + $0x2c0] sm:$0xff]
        %v3012 = vld [vmem:[#allocation10 + $0x2c8] sm:$0xff]
        %v3013 = vld [vmem:[#allocation10 + $0x2d0] sm:$0xff]
        %v3014 = vld [vmem:[#allocation10 + $0x2d8] sm:$0xff]
        %v3015 = vld [vmem:[#allocation10 + $0x2e0] sm:$0xff]
        %v3016 = vld [vmem:[#allocation10 + $0x2e8] sm:$0xff]
        %v3017 = vld [vmem:[#allocation10 + $0x2f0] sm:$0xff]
        %v3018 = vld [vmem:[#allocation10 + $0x2f8] sm:$0xff]
        %v3019 = vld [vmem:[#allocation10 + $0x300] sm:$0xff]
        %v3020 = vld [vmem:[#allocation10 + $0x308] sm:$0xff]
        %v3021 = vld [vmem:[#allocation10 + $0x310] sm:$0xff]
        %v3022 = vld [vmem:[#allocation10 + $0x318] sm:$0xff]
        %v3023 = vld [vmem:[#allocation10 + $0x320] sm:$0xff]
        %v3024 = vld [vmem:[#allocation10 + $0x328] sm:$0xff]
        %v3025 = vld [vmem:[#allocation10 + $0x330] sm:$0xff]
        %v3026 = vld [vmem:[#allocation10 + $0x338] sm:$0xff]
        %v3027 = vld [vmem:[#allocation10 + $0x340] sm:$0xff]
        %v3028 = vld [vmem:[#allocation10 + $0x348] sm:$0xff]
        %v3029 = vld [vmem:[#allocation10 + $0x350] sm:$0xff]
        %v3030 = vld [vmem:[#allocation10 + $0x358] sm:$0xff]
        %v3031 = vld [vmem:[#allocation10 + $0x360] sm:$0xff]
        %v3032 = vld [vmem:[#allocation10 + $0x368] sm:$0xff]
        %v3033 = vld [vmem:[#allocation10 + $0x370] sm:$0xff]
        %v3034 = vld [vmem:[#allocation10 + $0x378] sm:$0xff]
        %v3035 = vld [vmem:[#allocation10 + $0x380] sm:$0xff]
        %v3036 = vld [vmem:[#allocation10 + $0x388] sm:$0xff]
        %v3037 = vld [vmem:[#allocation10 + $0x390] sm:$0xff]
        %v3038 = vld [vmem:[#allocation10 + $0x398] sm:$0xff]
        %v3039 = vld [vmem:[#allocation10 + $0x3a0] sm:$0xff]
        %v3040 = vld [vmem:[#allocation10 + $0x3a8] sm:$0xff]
        %v3041 = vld [vmem:[#allocation10 + $0x3b0] sm:$0xff]
        %v3042 = vld [vmem:[#allocation10 + $0x3b8] sm:$0xff]
        %v3043 = vld [vmem:[#allocation10 + $0x3c0] sm:$0xff]
        %v3044 = vld [vmem:[#allocation10 + $0x3c8] sm:$0xff]
        %v3045 = vld [vmem:[#allocation10 + $0x3d0] sm:$0xff]
        %v3046 = vld [vmem:[#allocation10 + $0x3d8] sm:$0xff]
        %v3047 = vld [vmem:[#allocation10 + $0x3e0] sm:$0xff]
        %v3048 = vld [vmem:[#allocation10 + $0x3e8] sm:$0xff]
        %v3049 = vld [vmem:[#allocation10 + $0x3f0] sm:$0xff]
        %v3050 = vld [vmem:[#allocation10 + $0x3f8] sm:$0xff]
        %v3051 = vld [vmem:[#allocation10 + $0x400] sm:$0xff]
        %v3052 = vld [vmem:[#allocation10 + $0x408] sm:$0xff]
        %v3053 = vld [vmem:[#allocation10 + $0x410] sm:$0xff]
        %v3054 = vld [vmem:[#allocation10 + $0x418] sm:$0xff]
        %v3055 = vld [vmem:[#allocation10 + $0x420] sm:$0xff]
        %v3056 = vld [vmem:[#allocation10 + $0x428] sm:$0xff]
        %v3057 = vld [vmem:[#allocation10 + $0x430] sm:$0xff]
        %v3058 = vld [vmem:[#allocation10 + $0x438] sm:$0xff]
        %v3059 = vld [vmem:[#allocation10 + $0x440] sm:$0xff]
        %v3060 = vld [vmem:[#allocation10 + $0x448] sm:$0xff]
        %v3061 = vld [vmem:[#allocation10 + $0x450] sm:$0xff]
        %v3062 = vld [vmem:[#allocation10 + $0x458] sm:$0xff]
        %v3063 = vld [vmem:[#allocation10 + $0x460] sm:$0xff]
        %v3064 = vld [vmem:[#allocation10 + $0x468] sm:$0xff]
        %v3065 = vld [vmem:[#allocation10 + $0x470] sm:$0xff]
        %v3066 = vld [vmem:[#allocation10 + $0x478] sm:$0xff]
        %v3067 = vld [vmem:[#allocation10 + $0x480] sm:$0xff]
        %v3068 = vld [vmem:[#allocation10 + $0x488] sm:$0xff]
        %v3069 = vld [vmem:[#allocation10 + $0x490] sm:$0xff]
        %v3070 = vld [vmem:[#allocation10 + $0x498] sm:$0xff]
        %v3071 = vld [vmem:[#allocation10 + $0x4a0] sm:$0xff]
        %v3072 = vld [vmem:[#allocation10 + $0x4a8] sm:$0xff]
        %v3073 = vld [vmem:[#allocation10 + $0x4b0] sm:$0xff]
        %v3074 = vld [vmem:[#allocation10 + $0x4b8] sm:$0xff]
        %v3075 = vld [vmem:[#allocation10 + $0x4c0] sm:$0xff]
        %v3076 = vld [vmem:[#allocation10 + $0x4c8] sm:$0xff]
        %v3077 = vld [vmem:[#allocation10 + $0x4d0] sm:$0xff]
        %v3078 = vld [vmem:[#allocation10 + $0x4d8] sm:$0xff]
        %v3079 = vld [vmem:[#allocation10 + $0x4e0] sm:$0xff]
        %v3080 = vld [vmem:[#allocation10 + $0x4e8] sm:$0xff]
        %v3081 = vld [vmem:[#allocation10 + $0x4f0] sm:$0xff]
        %v3082 = vld [vmem:[#allocation10 + $0x4f8] sm:$0xff]
        %v3083 = vld [vmem:[#allocation10 + $0x500] sm:$0xff]
        %v3084 = vld [vmem:[#allocation10 + $0x508] sm:$0xff]
        %v3085 = vld [vmem:[#allocation10 + $0x510] sm:$0xff]
        %v3086 = vld [vmem:[#allocation10 + $0x518] sm:$0xff]
        %v3087 = vld [vmem:[#allocation10 + $0x520] sm:$0xff]
        %v3088 = vld [vmem:[#allocation10 + $0x528] sm:$0xff]
        %v3089 = vld [vmem:[#allocation10 + $0x530] sm:$0xff]
        %v3090 = vld [vmem:[#allocation10 + $0x538] sm:$0xff]
        %v3091 = vld [vmem:[#allocation10 + $0x540] sm:$0xff]
        %v3092 = vld [vmem:[#allocation10 + $0x548] sm:$0xff]
        %v3093 = vld [vmem:[#allocation10 + $0x550] sm:$0xff]
        %v3094 = vld [vmem:[#allocation10 + $0x558] sm:$0xff]
        %v3095 = vld [vmem:[#allocation10 + $0x560] sm:$0xff]
        %v3096 = vld [vmem:[#allocation10 + $0x568] sm:$0xff]
        %v3097 = vld [vmem:[#allocation10 + $0x570] sm:$0xff]
        %v3098 = vld [vmem:[#allocation10 + $0x578] sm:$0xff]
        %v3099 = vld [vmem:[#allocation10 + $0x580] sm:$0xff]
        %v3100 = vld [vmem:[#allocation10 + $0x588] sm:$0xff]
        %v3101 = vld [vmem:[#allocation10 + $0x590] sm:$0xff]
        %v3102 = vld [vmem:[#allocation10 + $0x598] sm:$0xff]
        %v3103 = vld [vmem:[#allocation10 + $0x5a0] sm:$0xff]
        %v3104 = vld [vmem:[#allocation10 + $0x5a8] sm:$0xff]
        %v3105 = vld [vmem:[#allocation10 + $0x5b0] sm:$0xff]
        %v3106 = vld [vmem:[#allocation10 + $0x5b8] sm:$0xff]
        %v3107 = vld [vmem:[#allocation10 + $0x5c0] sm:$0xff]
        %v3108 = vld [vmem:[#allocation10 + $0x5c8] sm:$0xff]
        %v3109 = vld [vmem:[#allocation10 + $0x5d0] sm:$0xff]
        %v3110 = vld [vmem:[#allocation10 + $0x5d8] sm:$0xff]
        %v3111 = vld [vmem:[#allocation10 + $0x5e0] sm:$0xff]
        %v3112 = vld [vmem:[#allocation10 + $0x5e8] sm:$0xff]
        %v3113 = vld [vmem:[#allocation10 + $0x5f0] sm:$0xff]
        %v3114 = vld [vmem:[#allocation10 + $0x5f8] sm:$0xff]
        %v3115 = vld [vmem:[#allocation10 + $0x600] sm:$0xff]
        %v3116 = vld [vmem:[#allocation10 + $0x608] sm:$0xff]
        %v3117 = vld [vmem:[#allocation10 + $0x610] sm:$0xff]
        %v3118 = vld [vmem:[#allocation10 + $0x618] sm:$0xff]
        %v3119 = vld [vmem:[#allocation10 + $0x620] sm:$0xff]
        %v3120 = vld [vmem:[#allocation10 + $0x628] sm:$0xff]
        %v3121 = vld [vmem:[#allocation10 + $0x630] sm:$0xff]
        %v3122 = vld [vmem:[#allocation10 + $0x638] sm:$0xff]
        %v3123 = vld [vmem:[#allocation10 + $0x640] sm:$0xff]
        %v3124 = vld [vmem:[#allocation10 + $0x648] sm:$0xff]
        %v3125 = vld [vmem:[#allocation10 + $0x650] sm:$0xff]
        %v3126 = vld [vmem:[#allocation10 + $0x658] sm:$0xff]
        %v3127 = vld [vmem:[#allocation10 + $0x660] sm:$0xff]
        %v3128 = vld [vmem:[#allocation10 + $0x668] sm:$0xff]
        %v3129 = vld [vmem:[#allocation10 + $0x670] sm:$0xff]
        %v3130 = vld [vmem:[#allocation10 + $0x678] sm:$0xff]
        %v3131 = vld [vmem:[#allocation10 + $0x680] sm:$0xff]
        %v3132 = vld [vmem:[#allocation10 + $0x688] sm:$0xff]
        %v3133 = vld [vmem:[#allocation10 + $0x690] sm:$0xff]
        %v3134 = vld [vmem:[#allocation10 + $0x698] sm:$0xff]
        %v3135 = vld [vmem:[#allocation10 + $0x6a0] sm:$0xff]
        %v3136 = vld [vmem:[#allocation10 + $0x6a8] sm:$0xff]
        %v3137 = vld [vmem:[#allocation10 + $0x6b0] sm:$0xff]
        %v3138 = vld [vmem:[#allocation10 + $0x6b8] sm:$0xff]
        %v3139 = vld [vmem:[#allocation10 + $0x6c0] sm:$0xff]
        %v3140 = vld [vmem:[#allocation10 + $0x6c8] sm:$0xff]
        %v3141 = vld [vmem:[#allocation10 + $0x6d0] sm:$0xff]
        %v3142 = vld [vmem:[#allocation10 + $0x6d8] sm:$0xff]
        %v3143 = vld [vmem:[#allocation10 + $0x6e0] sm:$0xff]
        %v3144 = vld [vmem:[#allocation10 + $0x6e8] sm:$0xff]
        %v3145 = vld [vmem:[#allocation10 + $0x6f0] sm:$0xff]
        %v3146 = vld [vmem:[#allocation10 + $0x6f8] sm:$0xff]
        %v3147 = vld [vmem:[#allocation10 + $0x700] sm:$0xff]
        %v3148 = vld [vmem:[#allocation10 + $0x708] sm:$0xff]
        %v3149 = vld [vmem:[#allocation10 + $0x710] sm:$0xff]
        %v3150 = vld [vmem:[#allocation10 + $0x718] sm:$0xff]
        %v3151 = vld [vmem:[#allocation10 + $0x720] sm:$0xff]
        %v3152 = vld [vmem:[#allocation10 + $0x728] sm:$0xff]
        %v3153 = vld [vmem:[#allocation10 + $0x730] sm:$0xff]
        %v3154 = vld [vmem:[#allocation10 + $0x738] sm:$0xff]
        %v3155 = vld [vmem:[#allocation10 + $0x740] sm:$0xff]
        %v3156 = vld [vmem:[#allocation10 + $0x748] sm:$0xff]
        %v3157 = vld [vmem:[#allocation10 + $0x750] sm:$0xff]
        %v3158 = vld [vmem:[#allocation10 + $0x758] sm:$0xff]
        %v3159 = vld [vmem:[#allocation10 + $0x760] sm:$0xff]
        %v3160 = vld [vmem:[#allocation10 + $0x768] sm:$0xff]
        %v3161 = vld [vmem:[#allocation10 + $0x770] sm:$0xff]
        %v3162 = vld [vmem:[#allocation10 + $0x778] sm:$0xff]
        %v3163 = vld [vmem:[#allocation10 + $0x780] sm:$0xff]
        %v3164 = vld [vmem:[#allocation10 + $0x788] sm:$0xff]
        %v3165 = vld [vmem:[#allocation10 + $0x790] sm:$0xff]
        %v3166 = vld [vmem:[#allocation10 + $0x798] sm:$0xff]
        %v3167 = vld [vmem:[#allocation10 + $0x7a0] sm:$0xff]
        %v3168 = vld [vmem:[#allocation10 + $0x7a8] sm:$0xff]
        %v3169 = vld [vmem:[#allocation10 + $0x7b0] sm:$0xff]
        %v3170 = vld [vmem:[#allocation10 + $0x7b8] sm:$0xff]
        %v3171 = vld [vmem:[#allocation10 + $0x7c0] sm:$0xff]
        %v3172 = vld [vmem:[#allocation10 + $0x7c8] sm:$0xff]
        %v3173 = vld [vmem:[#allocation10 + $0x7d0] sm:$0xff]
        %v3174 = vld [vmem:[#allocation10 + $0x7d8] sm:$0xff]
        %v3175 = vld [vmem:[#allocation10 + $0x7e0] sm:$0xff]
        %v3176 = vld [vmem:[#allocation10 + $0x7e8] sm:$0xff]
        %v3177 = vld [vmem:[#allocation10 + $0x7f0] sm:$0xff]
        %v3178 = vld [vmem:[#allocation10 + $0x7f8] sm:$0xff]
        %v3435 = vunpack.c.l.b16 %v2923
        %v3436 = vunpack.c.h.b16 %v2923
        %v3437 = vunpack.c.l.b16 %v2924
        %v3438 = vunpack.c.h.b16 %v2924
        %v3439 = vunpack.c.l.b16 %v2925
        %v3440 = vunpack.c.h.b16 %v2925
        %v3441 = vunpack.c.l.b16 %v2926
        %v3442 = vunpack.c.h.b16 %v2926
        %v3443 = vunpack.c.l.b16 %v2927
        %v3444 = vunpack.c.h.b16 %v2927
        %v3445 = vunpack.c.l.b16 %v2928
        %v3446 = vunpack.c.h.b16 %v2928
        %v3447 = vunpack.c.l.b16 %v2929
        %v3448 = vunpack.c.h.b16 %v2929
        %v3449 = vunpack.c.l.b16 %v2930
        %v3450 = vunpack.c.h.b16 %v2930
        %v3451 = vunpack.c.l.b16 %v2931
        %v3452 = vunpack.c.h.b16 %v2931
        %v3453 = vunpack.c.l.b16 %v2932
        %v3454 = vunpack.c.h.b16 %v2932
        %v3455 = vunpack.c.l.b16 %v2933
        %v3456 = vunpack.c.h.b16 %v2933
        %v3457 = vunpack.c.l.b16 %v2934
        %v3458 = vunpack.c.h.b16 %v2934
        %v3459 = vunpack.c.l.b16 %v2935
        %v3460 = vunpack.c.h.b16 %v2935
        %v3461 = vunpack.c.l.b16 %v2936
        %v3462 = vunpack.c.h.b16 %v2936
        %v3463 = vunpack.c.l.b16 %v2937
        %v3464 = vunpack.c.h.b16 %v2937
        %v3465 = vunpack.c.l.b16 %v2938
        %v3466 = vunpack.c.h.b16 %v2938
        %v3467 = vunpack.c.l.b16 %v2939
        %v3468 = vunpack.c.h.b16 %v2939
        %v3469 = vunpack.c.l.b16 %v2940
        %v3470 = vunpack.c.h.b16 %v2940
        %v3471 = vunpack.c.l.b16 %v2941
        %v3472 = vunpack.c.h.b16 %v2941
        %v3473 = vunpack.c.l.b16 %v2942
        %v3474 = vunpack.c.h.b16 %v2942
        %v3475 = vunpack.c.l.b16 %v2943
        %v3476 = vunpack.c.h.b16 %v2943
        %v3477 = vunpack.c.l.b16 %v2944
        %v3478 = vunpack.c.h.b16 %v2944
        %v3479 = vunpack.c.l.b16 %v2945
        %v3480 = vunpack.c.h.b16 %v2945
        %v3481 = vunpack.c.l.b16 %v2946
        %v3482 = vunpack.c.h.b16 %v2946
        %v3483 = vunpack.c.l.b16 %v2947
        %v3484 = vunpack.c.h.b16 %v2947
        %v3485 = vunpack.c.l.b16 %v2948
        %v3486 = vunpack.c.h.b16 %v2948
        %v3487 = vunpack.c.l.b16 %v2949
        %v3488 = vunpack.c.h.b16 %v2949
        %v3489 = vunpack.c.l.b16 %v2950
        %v3490 = vunpack.c.h.b16 %v2950
        %v3491 = vunpack.c.l.b16 %v2951
        %v3492 = vunpack.c.h.b16 %v2951
        %v3493 = vunpack.c.l.b16 %v2952
        %v3494 = vunpack.c.h.b16 %v2952
        %v3495 = vunpack.c.l.b16 %v2953
        %v3496 = vunpack.c.h.b16 %v2953
        %v3497 = vunpack.c.l.b16 %v2954
        %v3498 = vunpack.c.h.b16 %v2954
        %v3499 = vunpack.c.l.b16 %v2955
        %v3500 = vunpack.c.h.b16 %v2955
        %v3501 = vunpack.c.l.b16 %v2956
        %v3502 = vunpack.c.h.b16 %v2956
        %v3503 = vunpack.c.l.b16 %v2957
        %v3504 = vunpack.c.h.b16 %v2957
        %v3505 = vunpack.c.l.b16 %v2958
        %v3506 = vunpack.c.h.b16 %v2958
        %v3507 = vunpack.c.l.b16 %v2959
        %v3508 = vunpack.c.h.b16 %v2959
        %v3509 = vunpack.c.l.b16 %v2960
        %v3510 = vunpack.c.h.b16 %v2960
        %v3511 = vunpack.c.l.b16 %v2961
        %v3512 = vunpack.c.h.b16 %v2961
        %v3513 = vunpack.c.l.b16 %v2962
        %v3514 = vunpack.c.h.b16 %v2962
        %v3515 = vunpack.c.l.b16 %v2963
        %v3516 = vunpack.c.h.b16 %v2963
        %v3517 = vunpack.c.l.b16 %v2964
        %v3518 = vunpack.c.h.b16 %v2964
        %v3519 = vunpack.c.l.b16 %v2965
        %v3520 = vunpack.c.h.b16 %v2965
        %v3521 = vunpack.c.l.b16 %v2966
        %v3522 = vunpack.c.h.b16 %v2966
        %v3523 = vunpack.c.l.b16 %v2967
        %v3524 = vunpack.c.h.b16 %v2967
        %v3525 = vunpack.c.l.b16 %v2968
        %v3526 = vunpack.c.h.b16 %v2968
        %v3527 = vunpack.c.l.b16 %v2969
        %v3528 = vunpack.c.h.b16 %v2969
        %v3529 = vunpack.c.l.b16 %v2970
        %v3530 = vunpack.c.h.b16 %v2970
        %v3531 = vunpack.c.l.b16 %v2971
        %v3532 = vunpack.c.h.b16 %v2971
        %v3533 = vunpack.c.l.b16 %v2972
        %v3534 = vunpack.c.h.b16 %v2972
        %v3535 = vunpack.c.l.b16 %v2973
        %v3536 = vunpack.c.h.b16 %v2973
        %v3537 = vunpack.c.l.b16 %v2974
        %v3538 = vunpack.c.h.b16 %v2974
        %v3539 = vunpack.c.l.b16 %v2975
        %v3540 = vunpack.c.h.b16 %v2975
        %v3541 = vunpack.c.l.b16 %v2976
        %v3542 = vunpack.c.h.b16 %v2976
        %v3543 = vunpack.c.l.b16 %v2977
        %v3544 = vunpack.c.h.b16 %v2977
        %v3545 = vunpack.c.l.b16 %v2978
        %v3546 = vunpack.c.h.b16 %v2978
        %v3547 = vunpack.c.l.b16 %v2979
        %v3548 = vunpack.c.h.b16 %v2979
        %v3549 = vunpack.c.l.b16 %v2980
        %v3550 = vunpack.c.h.b16 %v2980
        %v3551 = vunpack.c.l.b16 %v2981
        %v3552 = vunpack.c.h.b16 %v2981
        %v3553 = vunpack.c.l.b16 %v2982
        %v3554 = vunpack.c.h.b16 %v2982
        %v3555 = vunpack.c.l.b16 %v2983
        %v3556 = vunpack.c.h.b16 %v2983
        %v3557 = vunpack.c.l.b16 %v2984
        %v3558 = vunpack.c.h.b16 %v2984
        %v3559 = vunpack.c.l.b16 %v2985
        %v3560 = vunpack.c.h.b16 %v2985
        %v3561 = vunpack.c.l.b16 %v2986
        %v3562 = vunpack.c.h.b16 %v2986
        %v3563 = vunpack.c.l.b16 %v2987
        %v3564 = vunpack.c.h.b16 %v2987
        %v3565 = vunpack.c.l.b16 %v2988
        %v3566 = vunpack.c.h.b16 %v2988
        %v3567 = vunpack.c.l.b16 %v2989
        %v3568 = vunpack.c.h.b16 %v2989
        %v3569 = vunpack.c.l.b16 %v2990
        %v3570 = vunpack.c.h.b16 %v2990
        %v3571 = vunpack.c.l.b16 %v2991
        %v3572 = vunpack.c.h.b16 %v2991
        %v3573 = vunpack.c.l.b16 %v2992
        %v3574 = vunpack.c.h.b16 %v2992
        %v3575 = vunpack.c.l.b16 %v2993
        %v3576 = vunpack.c.h.b16 %v2993
        %v3577 = vunpack.c.l.b16 %v2994
        %v3578 = vunpack.c.h.b16 %v2994
        %v3579 = vunpack.c.l.b16 %v2995
        %v3580 = vunpack.c.h.b16 %v2995
        %v3581 = vunpack.c.l.b16 %v2996
        %v3582 = vunpack.c.h.b16 %v2996
        %v3583 = vunpack.c.l.b16 %v2997
        %v3584 = vunpack.c.h.b16 %v2997
        %v3585 = vunpack.c.l.b16 %v2998
        %v3586 = vunpack.c.h.b16 %v2998
        %v3587 = vunpack.c.l.b16 %v2999
        %v3588 = vunpack.c.h.b16 %v2999
        %v3589 = vunpack.c.l.b16 %v3000
        %v3590 = vunpack.c.h.b16 %v3000
        %v3591 = vunpack.c.l.b16 %v3001
        %v3592 = vunpack.c.h.b16 %v3001
        %v3593 = vunpack.c.l.b16 %v3002
        %v3594 = vunpack.c.h.b16 %v3002
        %v3595 = vunpack.c.l.b16 %v3003
        %v3596 = vunpack.c.h.b16 %v3003
        %v3597 = vunpack.c.l.b16 %v3004
        %v3598 = vunpack.c.h.b16 %v3004
        %v3599 = vunpack.c.l.b16 %v3005
        %v3600 = vunpack.c.h.b16 %v3005
        %v3601 = vunpack.c.l.b16 %v3006
        %v3602 = vunpack.c.h.b16 %v3006
        %v3603 = vunpack.c.l.b16 %v3007
        %v3604 = vunpack.c.h.b16 %v3007
        %v3605 = vunpack.c.l.b16 %v3008
        %v3606 = vunpack.c.h.b16 %v3008
        %v3607 = vunpack.c.l.b16 %v3009
        %v3608 = vunpack.c.h.b16 %v3009
        %v3609 = vunpack.c.l.b16 %v3010
        %v3610 = vunpack.c.h.b16 %v3010
        %v3611 = vunpack.c.l.b16 %v3011
        %v3612 = vunpack.c.h.b16 %v3011
        %v3613 = vunpack.c.l.b16 %v3012
        %v3614 = vunpack.c.h.b16 %v3012
        %v3615 = vunpack.c.l.b16 %v3013
        %v3616 = vunpack.c.h.b16 %v3013
        %v3617 = vunpack.c.l.b16 %v3014
        %v3618 = vunpack.c.h.b16 %v3014
        %v3619 = vunpack.c.l.b16 %v3015
        %v3620 = vunpack.c.h.b16 %v3015
        %v3621 = vunpack.c.l.b16 %v3016
        %v3622 = vunpack.c.h.b16 %v3016
        %v3623 = vunpack.c.l.b16 %v3017
        %v3624 = vunpack.c.h.b16 %v3017
        %v3625 = vunpack.c.l.b16 %v3018
        %v3626 = vunpack.c.h.b16 %v3018
        %v3627 = vunpack.c.l.b16 %v3019
        %v3628 = vunpack.c.h.b16 %v3019
        %v3629 = vunpack.c.l.b16 %v3020
        %v3630 = vunpack.c.h.b16 %v3020
        %v3631 = vunpack.c.l.b16 %v3021
        %v3632 = vunpack.c.h.b16 %v3021
        %v3633 = vunpack.c.l.b16 %v3022
        %v3634 = vunpack.c.h.b16 %v3022
        %v3635 = vunpack.c.l.b16 %v3023
        %v3636 = vunpack.c.h.b16 %v3023
        %v3637 = vunpack.c.l.b16 %v3024
        %v3638 = vunpack.c.h.b16 %v3024
        %v3639 = vunpack.c.l.b16 %v3025
        %v3640 = vunpack.c.h.b16 %v3025
        %v3641 = vunpack.c.l.b16 %v3026
        %v3642 = vunpack.c.h.b16 %v3026
        %v3643 = vunpack.c.l.b16 %v3027
        %v3644 = vunpack.c.h.b16 %v3027
        %v3645 = vunpack.c.l.b16 %v3028
        %v3646 = vunpack.c.h.b16 %v3028
        %v3647 = vunpack.c.l.b16 %v3029
        %v3648 = vunpack.c.h.b16 %v3029
        %v3649 = vunpack.c.l.b16 %v3030
        %v3650 = vunpack.c.h.b16 %v3030
        %v3651 = vunpack.c.l.b16 %v3031
        %v3652 = vunpack.c.h.b16 %v3031
        %v3653 = vunpack.c.l.b16 %v3032
        %v3654 = vunpack.c.h.b16 %v3032
        %v3655 = vunpack.c.l.b16 %v3033
        %v3656 = vunpack.c.h.b16 %v3033
        %v3657 = vunpack.c.l.b16 %v3034
        %v3658 = vunpack.c.h.b16 %v3034
        %v3659 = vunpack.c.l.b16 %v3035
        %v3660 = vunpack.c.h.b16 %v3035
        %v3661 = vunpack.c.l.b16 %v3036
        %v3662 = vunpack.c.h.b16 %v3036
        %v3663 = vunpack.c.l.b16 %v3037
        %v3664 = vunpack.c.h.b16 %v3037
        %v3665 = vunpack.c.l.b16 %v3038
        %v3666 = vunpack.c.h.b16 %v3038
        %v3667 = vunpack.c.l.b16 %v3039
        %v3668 = vunpack.c.h.b16 %v3039
        %v3669 = vunpack.c.l.b16 %v3040
        %v3670 = vunpack.c.h.b16 %v3040
        %v3671 = vunpack.c.l.b16 %v3041
        %v3672 = vunpack.c.h.b16 %v3041
        %v3673 = vunpack.c.l.b16 %v3042
        %v3674 = vunpack.c.h.b16 %v3042
        %v3675 = vunpack.c.l.b16 %v3043
        %v3676 = vunpack.c.h.b16 %v3043
        %v3677 = vunpack.c.l.b16 %v3044
        %v3678 = vunpack.c.h.b16 %v3044
        %v3679 = vunpack.c.l.b16 %v3045
        %v3680 = vunpack.c.h.b16 %v3045
        %v3681 = vunpack.c.l.b16 %v3046
        %v3682 = vunpack.c.h.b16 %v3046
        %v3683 = vunpack.c.l.b16 %v3047
        %v3684 = vunpack.c.h.b16 %v3047
        %v3685 = vunpack.c.l.b16 %v3048
        %v3686 = vunpack.c.h.b16 %v3048
        %v3687 = vunpack.c.l.b16 %v3049
        %v3688 = vunpack.c.h.b16 %v3049
        %v3689 = vunpack.c.l.b16 %v3050
        %v3690 = vunpack.c.h.b16 %v3050
        %v3691 = vunpack.c.l.b16 %v3051
        %v3692 = vunpack.c.h.b16 %v3051
        %v3693 = vunpack.c.l.b16 %v3052
        %v3694 = vunpack.c.h.b16 %v3052
        %v3695 = vunpack.c.l.b16 %v3053
        %v3696 = vunpack.c.h.b16 %v3053
        %v3697 = vunpack.c.l.b16 %v3054
        %v3698 = vunpack.c.h.b16 %v3054
        %v3699 = vunpack.c.l.b16 %v3055
        %v3700 = vunpack.c.h.b16 %v3055
        %v3701 = vunpack.c.l.b16 %v3056
        %v3702 = vunpack.c.h.b16 %v3056
        %v3703 = vunpack.c.l.b16 %v3057
        %v3704 = vunpack.c.h.b16 %v3057
        %v3705 = vunpack.c.l.b16 %v3058
        %v3706 = vunpack.c.h.b16 %v3058
        %v3707 = vunpack.c.l.b16 %v3059
        %v3708 = vunpack.c.h.b16 %v3059
        %v3709 = vunpack.c.l.b16 %v3060
        %v3710 = vunpack.c.h.b16 %v3060
        %v3711 = vunpack.c.l.b16 %v3061
        %v3712 = vunpack.c.h.b16 %v3061
        %v3713 = vunpack.c.l.b16 %v3062
        %v3714 = vunpack.c.h.b16 %v3062
        %v3715 = vunpack.c.l.b16 %v3063
        %v3716 = vunpack.c.h.b16 %v3063
        %v3717 = vunpack.c.l.b16 %v3064
        %v3718 = vunpack.c.h.b16 %v3064
        %v3719 = vunpack.c.l.b16 %v3065
        %v3720 = vunpack.c.h.b16 %v3065
        %v3721 = vunpack.c.l.b16 %v3066
        %v3722 = vunpack.c.h.b16 %v3066
        %v3723 = vunpack.c.l.b16 %v3067
        %v3724 = vunpack.c.h.b16 %v3067
        %v3725 = vunpack.c.l.b16 %v3068
        %v3726 = vunpack.c.h.b16 %v3068
        %v3727 = vunpack.c.l.b16 %v3069
        %v3728 = vunpack.c.h.b16 %v3069
        %v3729 = vunpack.c.l.b16 %v3070
        %v3730 = vunpack.c.h.b16 %v3070
        %v3731 = vunpack.c.l.b16 %v3071
        %v3732 = vunpack.c.h.b16 %v3071
        %v3733 = vunpack.c.l.b16 %v3072
        %v3734 = vunpack.c.h.b16 %v3072
        %v3735 = vunpack.c.l.b16 %v3073
        %v3736 = vunpack.c.h.b16 %v3073
        %v3737 = vunpack.c.l.b16 %v3074
        %v3738 = vunpack.c.h.b16 %v3074
        %v3739 = vunpack.c.l.b16 %v3075
        %v3740 = vunpack.c.h.b16 %v3075
        %v3741 = vunpack.c.l.b16 %v3076
        %v3742 = vunpack.c.h.b16 %v3076
        %v3743 = vunpack.c.l.b16 %v3077
        %v3744 = vunpack.c.h.b16 %v3077
        %v3745 = vunpack.c.l.b16 %v3078
        %v3746 = vunpack.c.h.b16 %v3078
        %v3747 = vunpack.c.l.b16 %v3079
        %v3748 = vunpack.c.h.b16 %v3079
        %v3749 = vunpack.c.l.b16 %v3080
        %v3750 = vunpack.c.h.b16 %v3080
        %v3751 = vunpack.c.l.b16 %v3081
        %v3752 = vunpack.c.h.b16 %v3081
        %v3753 = vunpack.c.l.b16 %v3082
        %v3754 = vunpack.c.h.b16 %v3082
        %v3755 = vunpack.c.l.b16 %v3083
        %v3756 = vunpack.c.h.b16 %v3083
        %v3757 = vunpack.c.l.b16 %v3084
        %v3758 = vunpack.c.h.b16 %v3084
        %v3759 = vunpack.c.l.b16 %v3085
        %v3760 = vunpack.c.h.b16 %v3085
        %v3761 = vunpack.c.l.b16 %v3086
        %v3762 = vunpack.c.h.b16 %v3086
        %v3763 = vunpack.c.l.b16 %v3087
        %v3764 = vunpack.c.h.b16 %v3087
        %v3765 = vunpack.c.l.b16 %v3088
        %v3766 = vunpack.c.h.b16 %v3088
        %v3767 = vunpack.c.l.b16 %v3089
        %v3768 = vunpack.c.h.b16 %v3089
        %v3769 = vunpack.c.l.b16 %v3090
        %v3770 = vunpack.c.h.b16 %v3090
        %v3771 = vunpack.c.l.b16 %v3091
        %v3772 = vunpack.c.h.b16 %v3091
        %v3773 = vunpack.c.l.b16 %v3092
        %v3774 = vunpack.c.h.b16 %v3092
        %v3775 = vunpack.c.l.b16 %v3093
        %v3776 = vunpack.c.h.b16 %v3093
        %v3777 = vunpack.c.l.b16 %v3094
        %v3778 = vunpack.c.h.b16 %v3094
        %v3779 = vunpack.c.l.b16 %v3095
        %v3780 = vunpack.c.h.b16 %v3095
        %v3781 = vunpack.c.l.b16 %v3096
        %v3782 = vunpack.c.h.b16 %v3096
        %v3783 = vunpack.c.l.b16 %v3097
        %v3784 = vunpack.c.h.b16 %v3097
        %v3785 = vunpack.c.l.b16 %v3098
        %v3786 = vunpack.c.h.b16 %v3098
        %v3787 = vunpack.c.l.b16 %v3099
        %v3788 = vunpack.c.h.b16 %v3099
        %v3789 = vunpack.c.l.b16 %v3100
        %v3790 = vunpack.c.h.b16 %v3100
        %v3791 = vunpack.c.l.b16 %v3101
        %v3792 = vunpack.c.h.b16 %v3101
        %v3793 = vunpack.c.l.b16 %v3102
        %v3794 = vunpack.c.h.b16 %v3102
        %v3795 = vunpack.c.l.b16 %v3103
        %v3796 = vunpack.c.h.b16 %v3103
        %v3797 = vunpack.c.l.b16 %v3104
        %v3798 = vunpack.c.h.b16 %v3104
        %v3799 = vunpack.c.l.b16 %v3105
        %v3800 = vunpack.c.h.b16 %v3105
        %v3801 = vunpack.c.l.b16 %v3106
        %v3802 = vunpack.c.h.b16 %v3106
        %v3803 = vunpack.c.l.b16 %v3107
        %v3804 = vunpack.c.h.b16 %v3107
        %v3805 = vunpack.c.l.b16 %v3108
        %v3806 = vunpack.c.h.b16 %v3108
        %v3807 = vunpack.c.l.b16 %v3109
        %v3808 = vunpack.c.h.b16 %v3109
        %v3809 = vunpack.c.l.b16 %v3110
        %v3810 = vunpack.c.h.b16 %v3110
        %v3811 = vunpack.c.l.b16 %v3111
        %v3812 = vunpack.c.h.b16 %v3111
        %v3813 = vunpack.c.l.b16 %v3112
        %v3814 = vunpack.c.h.b16 %v3112
        %v3815 = vunpack.c.l.b16 %v3113
        %v3816 = vunpack.c.h.b16 %v3113
        %v3817 = vunpack.c.l.b16 %v3114
        %v3818 = vunpack.c.h.b16 %v3114
        %v3819 = vunpack.c.l.b16 %v3115
        %v3820 = vunpack.c.h.b16 %v3115
        %v3821 = vunpack.c.l.b16 %v3116
        %v3822 = vunpack.c.h.b16 %v3116
        %v3823 = vunpack.c.l.b16 %v3117
        %v3824 = vunpack.c.h.b16 %v3117
        %v3825 = vunpack.c.l.b16 %v3118
        %v3826 = vunpack.c.h.b16 %v3118
        %v3827 = vunpack.c.l.b16 %v3119
        %v3828 = vunpack.c.h.b16 %v3119
        %v3829 = vunpack.c.l.b16 %v3120
        %v3830 = vunpack.c.h.b16 %v3120
        %v3831 = vunpack.c.l.b16 %v3121
        %v3832 = vunpack.c.h.b16 %v3121
        %v3833 = vunpack.c.l.b16 %v3122
        %v3834 = vunpack.c.h.b16 %v3122
        %v3835 = vunpack.c.l.b16 %v3123
        %v3836 = vunpack.c.h.b16 %v3123
        %v3837 = vunpack.c.l.b16 %v3124
        %v3838 = vunpack.c.h.b16 %v3124
        %v3839 = vunpack.c.l.b16 %v3125
        %v3840 = vunpack.c.h.b16 %v3125
        %v3841 = vunpack.c.l.b16 %v3126
        %v3842 = vunpack.c.h.b16 %v3126
        %v3843 = vunpack.c.l.b16 %v3127
        %v3844 = vunpack.c.h.b16 %v3127
        %v3845 = vunpack.c.l.b16 %v3128
        %v3846 = vunpack.c.h.b16 %v3128
        %v3847 = vunpack.c.l.b16 %v3129
        %v3848 = vunpack.c.h.b16 %v3129
        %v3849 = vunpack.c.l.b16 %v3130
        %v3850 = vunpack.c.h.b16 %v3130
        %v3851 = vunpack.c.l.b16 %v3131
        %v3852 = vunpack.c.h.b16 %v3131
        %v3853 = vunpack.c.l.b16 %v3132
        %v3854 = vunpack.c.h.b16 %v3132
        %v3855 = vunpack.c.l.b16 %v3133
        %v3856 = vunpack.c.h.b16 %v3133
        %v3857 = vunpack.c.l.b16 %v3134
        %v3858 = vunpack.c.h.b16 %v3134
        %v3859 = vunpack.c.l.b16 %v3135
        %v3860 = vunpack.c.h.b16 %v3135
        %v3861 = vunpack.c.l.b16 %v3136
        %v3862 = vunpack.c.h.b16 %v3136
        %v3863 = vunpack.c.l.b16 %v3137
        %v3864 = vunpack.c.h.b16 %v3137
        %v3865 = vunpack.c.l.b16 %v3138
        %v3866 = vunpack.c.h.b16 %v3138
        %v3867 = vunpack.c.l.b16 %v3139
        %v3868 = vunpack.c.h.b16 %v3139
        %v3869 = vunpack.c.l.b16 %v3140
        %v3870 = vunpack.c.h.b16 %v3140
        %v3871 = vunpack.c.l.b16 %v3141
        %v3872 = vunpack.c.h.b16 %v3141
        %v3873 = vunpack.c.l.b16 %v3142
        %v3874 = vunpack.c.h.b16 %v3142
        %v3875 = vunpack.c.l.b16 %v3143
        %v3876 = vunpack.c.h.b16 %v3143
        %v3877 = vunpack.c.l.b16 %v3144
        %v3878 = vunpack.c.h.b16 %v3144
        %v3879 = vunpack.c.l.b16 %v3145
        %v3880 = vunpack.c.h.b16 %v3145
        %v3881 = vunpack.c.l.b16 %v3146
        %v3882 = vunpack.c.h.b16 %v3146
        %v3883 = vunpack.c.l.b16 %v3147
        %v3884 = vunpack.c.h.b16 %v3147
        %v3885 = vunpack.c.l.b16 %v3148
        %v3886 = vunpack.c.h.b16 %v3148
        %v3887 = vunpack.c.l.b16 %v3149
        %v3888 = vunpack.c.h.b16 %v3149
        %v3889 = vunpack.c.l.b16 %v3150
        %v3890 = vunpack.c.h.b16 %v3150
        %v3891 = vunpack.c.l.b16 %v3151
        %v3892 = vunpack.c.h.b16 %v3151
        %v3893 = vunpack.c.l.b16 %v3152
        %v3894 = vunpack.c.h.b16 %v3152
        %v3895 = vunpack.c.l.b16 %v3153
        %v3896 = vunpack.c.h.b16 %v3153
        %v3897 = vunpack.c.l.b16 %v3154
        %v3898 = vunpack.c.h.b16 %v3154
        %v3899 = vunpack.c.l.b16 %v3155
        %v3900 = vunpack.c.h.b16 %v3155
        %v3901 = vunpack.c.l.b16 %v3156
        %v3902 = vunpack.c.h.b16 %v3156
        %v3903 = vunpack.c.l.b16 %v3157
        %v3904 = vunpack.c.h.b16 %v3157
        %v3905 = vunpack.c.l.b16 %v3158
        %v3906 = vunpack.c.h.b16 %v3158
        %v3907 = vunpack.c.l.b16 %v3159
        %v3908 = vunpack.c.h.b16 %v3159
        %v3909 = vunpack.c.l.b16 %v3160
        %v3910 = vunpack.c.h.b16 %v3160
        %v3911 = vunpack.c.l.b16 %v3161
        %v3912 = vunpack.c.h.b16 %v3161
        %v3913 = vunpack.c.l.b16 %v3162
        %v3914 = vunpack.c.h.b16 %v3162
        %v3915 = vunpack.c.l.b16 %v3163
        %v3916 = vunpack.c.h.b16 %v3163
        %v3917 = vunpack.c.l.b16 %v3164
        %v3918 = vunpack.c.h.b16 %v3164
        %v3919 = vunpack.c.l.b16 %v3165
        %v3920 = vunpack.c.h.b16 %v3165
        %v3921 = vunpack.c.l.b16 %v3166
        %v3922 = vunpack.c.h.b16 %v3166
        %v3923 = vunpack.c.l.b16 %v3167
        %v3924 = vunpack.c.h.b16 %v3167
        %v3925 = vunpack.c.l.b16 %v3168
        %v3926 = vunpack.c.h.b16 %v3168
        %v3927 = vunpack.c.l.b16 %v3169
        %v3928 = vunpack.c.h.b16 %v3169
        %v3929 = vunpack.c.l.b16 %v3170
        %v3930 = vunpack.c.h.b16 %v3170
        %v3931 = vunpack.c.l.b16 %v3171
        %v3932 = vunpack.c.h.b16 %v3171
        %v3933 = vunpack.c.l.b16 %v3172
        %v3934 = vunpack.c.h.b16 %v3172
        %v3935 = vunpack.c.l.b16 %v3173
        %v3936 = vunpack.c.h.b16 %v3173
        %v3937 = vunpack.c.l.b16 %v3174
        %v3938 = vunpack.c.h.b16 %v3174
        %v3939 = vunpack.c.l.b16 %v3175
        %v3940 = vunpack.c.h.b16 %v3175
        %v3941 = vunpack.c.l.b16 %v3176
        %v3942 = vunpack.c.h.b16 %v3176
        %v3943 = vunpack.c.l.b16 %v3177
        %v3944 = vunpack.c.h.b16 %v3177
        %v3945 = vunpack.c.l.b16 %v3178
        %v3946 = vunpack.c.h.b16 %v3178
        %v3947 = vpack.c.b16 %v3439, %v3435
        %v3948 = vpack.c.b16 %v3440, %v3436
        %v3949 = vpack.c.b16 %v3441, %v3437
        %v3950 = vpack.c.b16 %v3442, %v3438
        %v3951 = vpack.c.b16 %v3447, %v3443
        %v3952 = vpack.c.b16 %v3448, %v3444
        %v3953 = vpack.c.b16 %v3449, %v3445
        %v3954 = vpack.c.b16 %v3450, %v3446
        %v3955 = vpack.c.b16 %v3455, %v3451
        %v3956 = vpack.c.b16 %v3456, %v3452
        %v3957 = vpack.c.b16 %v3457, %v3453
        %v3958 = vpack.c.b16 %v3458, %v3454
        %v3959 = vpack.c.b16 %v3463, %v3459
        %v3960 = vpack.c.b16 %v3464, %v3460
        %v3961 = vpack.c.b16 %v3465, %v3461
        %v3962 = vpack.c.b16 %v3466, %v3462
        %v3963 = vpack.c.b16 %v3471, %v3467
        %v3964 = vpack.c.b16 %v3472, %v3468
        %v3965 = vpack.c.b16 %v3473, %v3469
        %v3966 = vpack.c.b16 %v3474, %v3470
        %v3967 = vpack.c.b16 %v3479, %v3475
        %v3968 = vpack.c.b16 %v3480, %v3476
        %v3969 = vpack.c.b16 %v3481, %v3477
        %v3970 = vpack.c.b16 %v3482, %v3478
        %v3971 = vpack.c.b16 %v3487, %v3483
        %v3972 = vpack.c.b16 %v3488, %v3484
        %v3973 = vpack.c.b16 %v3489, %v3485
        %v3974 = vpack.c.b16 %v3490, %v3486
        %v3975 = vpack.c.b16 %v3495, %v3491
        %v3976 = vpack.c.b16 %v3496, %v3492
        %v3977 = vpack.c.b16 %v3497, %v3493
        %v3978 = vpack.c.b16 %v3498, %v3494
        %v3979 = vpack.c.b16 %v3503, %v3499
        %v3980 = vpack.c.b16 %v3504, %v3500
        %v3981 = vpack.c.b16 %v3505, %v3501
        %v3982 = vpack.c.b16 %v3506, %v3502
        %v3983 = vpack.c.b16 %v3511, %v3507
        %v3984 = vpack.c.b16 %v3512, %v3508
        %v3985 = vpack.c.b16 %v3513, %v3509
        %v3986 = vpack.c.b16 %v3514, %v3510
        %v3987 = vpack.c.b16 %v3519, %v3515
        %v3988 = vpack.c.b16 %v3520, %v3516
        %v3989 = vpack.c.b16 %v3521, %v3517
        %v3990 = vpack.c.b16 %v3522, %v3518
        %v3991 = vpack.c.b16 %v3527, %v3523
        %v3992 = vpack.c.b16 %v3528, %v3524
        %v3993 = vpack.c.b16 %v3529, %v3525
        %v3994 = vpack.c.b16 %v3530, %v3526
        %v3995 = vpack.c.b16 %v3535, %v3531
        %v3996 = vpack.c.b16 %v3536, %v3532
        %v3997 = vpack.c.b16 %v3537, %v3533
        %v3998 = vpack.c.b16 %v3538, %v3534
        %v3999 = vpack.c.b16 %v3543, %v3539
        %v4000 = vpack.c.b16 %v3544, %v3540
        %v4001 = vpack.c.b16 %v3545, %v3541
        %v4002 = vpack.c.b16 %v3546, %v3542
        %v4003 = vpack.c.b16 %v3551, %v3547
        %v4004 = vpack.c.b16 %v3552, %v3548
        %v4005 = vpack.c.b16 %v3553, %v3549
        %v4006 = vpack.c.b16 %v3554, %v3550
        %v4007 = vpack.c.b16 %v3559, %v3555
        %v4008 = vpack.c.b16 %v3560, %v3556
        %v4009 = vpack.c.b16 %v3561, %v3557
        %v4010 = vpack.c.b16 %v3562, %v3558
        %v4011 = vpack.c.b16 %v3567, %v3563
        %v4012 = vpack.c.b16 %v3568, %v3564
        %v4013 = vpack.c.b16 %v3569, %v3565
        %v4014 = vpack.c.b16 %v3570, %v3566
        %v4015 = vpack.c.b16 %v3575, %v3571
        %v4016 = vpack.c.b16 %v3576, %v3572
        %v4017 = vpack.c.b16 %v3577, %v3573
        %v4018 = vpack.c.b16 %v3578, %v3574
        %v4019 = vpack.c.b16 %v3583, %v3579
        %v4020 = vpack.c.b16 %v3584, %v3580
        %v4021 = vpack.c.b16 %v3585, %v3581
        %v4022 = vpack.c.b16 %v3586, %v3582
        %v4023 = vpack.c.b16 %v3591, %v3587
        %v4024 = vpack.c.b16 %v3592, %v3588
        %v4025 = vpack.c.b16 %v3593, %v3589
        %v4026 = vpack.c.b16 %v3594, %v3590
        %v4027 = vpack.c.b16 %v3599, %v3595
        %v4028 = vpack.c.b16 %v3600, %v3596
        %v4029 = vpack.c.b16 %v3601, %v3597
        %v4030 = vpack.c.b16 %v3602, %v3598
        %v4031 = vpack.c.b16 %v3607, %v3603
        %v4032 = vpack.c.b16 %v3608, %v3604
        %v4033 = vpack.c.b16 %v3609, %v3605
        %v4034 = vpack.c.b16 %v3610, %v3606
        %v4035 = vpack.c.b16 %v3615, %v3611
        %v4036 = vpack.c.b16 %v3616, %v3612
        %v4037 = vpack.c.b16 %v3617, %v3613
        %v4038 = vpack.c.b16 %v3618, %v3614
        %v4039 = vpack.c.b16 %v3623, %v3619
        %v4040 = vpack.c.b16 %v3624, %v3620
        %v4041 = vpack.c.b16 %v3625, %v3621
        %v4042 = vpack.c.b16 %v3626, %v3622
        %v4043 = vpack.c.b16 %v3631, %v3627
        %v4044 = vpack.c.b16 %v3632, %v3628
        %v4045 = vpack.c.b16 %v3633, %v3629
        %v4046 = vpack.c.b16 %v3634, %v3630
        %v4047 = vpack.c.b16 %v3639, %v3635
        %v4048 = vpack.c.b16 %v3640, %v3636
        %v4049 = vpack.c.b16 %v3641, %v3637
        %v4050 = vpack.c.b16 %v3642, %v3638
        %v4051 = vpack.c.b16 %v3647, %v3643
        %v4052 = vpack.c.b16 %v3648, %v3644
        %v4053 = vpack.c.b16 %v3649, %v3645
        %v4054 = vpack.c.b16 %v3650, %v3646
        %v4055 = vpack.c.b16 %v3655, %v3651
        %v4056 = vpack.c.b16 %v3656, %v3652
        %v4057 = vpack.c.b16 %v3657, %v3653
        %v4058 = vpack.c.b16 %v3658, %v3654
        %v4059 = vpack.c.b16 %v3663, %v3659
        %v4060 = vpack.c.b16 %v3664, %v3660
        %v4061 = vpack.c.b16 %v3665, %v3661
        %v4062 = vpack.c.b16 %v3666, %v3662
        %v4063 = vpack.c.b16 %v3671, %v3667
        %v4064 = vpack.c.b16 %v3672, %v3668
        %v4065 = vpack.c.b16 %v3673, %v3669
        %v4066 = vpack.c.b16 %v3674, %v3670
        %v4067 = vpack.c.b16 %v3679, %v3675
        %v4068 = vpack.c.b16 %v3680, %v3676
        %v4069 = vpack.c.b16 %v3681, %v3677
        %v4070 = vpack.c.b16 %v3682, %v3678
        %v4071 = vpack.c.b16 %v3687, %v3683
        %v4072 = vpack.c.b16 %v3688, %v3684
        %v4073 = vpack.c.b16 %v3689, %v3685
        %v4074 = vpack.c.b16 %v3690, %v3686
        %v4075 = vpack.c.b16 %v3695, %v3691
        %v4076 = vpack.c.b16 %v3696, %v3692
        %v4077 = vpack.c.b16 %v3697, %v3693
        %v4078 = vpack.c.b16 %v3698, %v3694
        %v4079 = vpack.c.b16 %v3703, %v3699
        %v4080 = vpack.c.b16 %v3704, %v3700
        %v4081 = vpack.c.b16 %v3705, %v3701
        %v4082 = vpack.c.b16 %v3706, %v3702
        %v4083 = vpack.c.b16 %v3711, %v3707
        %v4084 = vpack.c.b16 %v3712, %v3708
        %v4085 = vpack.c.b16 %v3713, %v3709
        %v4086 = vpack.c.b16 %v3714, %v3710
        %v4087 = vpack.c.b16 %v3719, %v3715
        %v4088 = vpack.c.b16 %v3720, %v3716
        %v4089 = vpack.c.b16 %v3721, %v3717
        %v4090 = vpack.c.b16 %v3722, %v3718
        %v4091 = vpack.c.b16 %v3727, %v3723
        %v4092 = vpack.c.b16 %v3728, %v3724
        %v4093 = vpack.c.b16 %v3729, %v3725
        %v4094 = vpack.c.b16 %v3730, %v3726
        %v4095 = vpack.c.b16 %v3735, %v3731
        %v4096 = vpack.c.b16 %v3736, %v3732
        %v4097 = vpack.c.b16 %v3737, %v3733
        %v4098 = vpack.c.b16 %v3738, %v3734
        %v4099 = vpack.c.b16 %v3743, %v3739
        %v4100 = vpack.c.b16 %v3744, %v3740
        %v4101 = vpack.c.b16 %v3745, %v3741
        %v4102 = vpack.c.b16 %v3746, %v3742
        %v4103 = vpack.c.b16 %v3751, %v3747
        %v4104 = vpack.c.b16 %v3752, %v3748
        %v4105 = vpack.c.b16 %v3753, %v3749
        %v4106 = vpack.c.b16 %v3754, %v3750
        %v4107 = vpack.c.b16 %v3759, %v3755
        %v4108 = vpack.c.b16 %v3760, %v3756
        %v4109 = vpack.c.b16 %v3761, %v3757
        %v4110 = vpack.c.b16 %v3762, %v3758
        %v4111 = vpack.c.b16 %v3767, %v3763
        %v4112 = vpack.c.b16 %v3768, %v3764
        %v4113 = vpack.c.b16 %v3769, %v3765
        %v4114 = vpack.c.b16 %v3770, %v3766
        %v4115 = vpack.c.b16 %v3775, %v3771
        %v4116 = vpack.c.b16 %v3776, %v3772
        %v4117 = vpack.c.b16 %v3777, %v3773
        %v4118 = vpack.c.b16 %v3778, %v3774
        %v4119 = vpack.c.b16 %v3783, %v3779
        %v4120 = vpack.c.b16 %v3784, %v3780
        %v4121 = vpack.c.b16 %v3785, %v3781
        %v4122 = vpack.c.b16 %v3786, %v3782
        %v4123 = vpack.c.b16 %v3791, %v3787
        %v4124 = vpack.c.b16 %v3792, %v3788
        %v4125 = vpack.c.b16 %v3793, %v3789
        %v4126 = vpack.c.b16 %v3794, %v3790
        %v4127 = vpack.c.b16 %v3799, %v3795
        %v4128 = vpack.c.b16 %v3800, %v3796
        %v4129 = vpack.c.b16 %v3801, %v3797
        %v4130 = vpack.c.b16 %v3802, %v3798
        %v4131 = vpack.c.b16 %v3807, %v3803
        %v4132 = vpack.c.b16 %v3808, %v3804
        %v4133 = vpack.c.b16 %v3809, %v3805
        %v4134 = vpack.c.b16 %v3810, %v3806
        %v4135 = vpack.c.b16 %v3815, %v3811
        %v4136 = vpack.c.b16 %v3816, %v3812
        %v4137 = vpack.c.b16 %v3817, %v3813
        %v4138 = vpack.c.b16 %v3818, %v3814
        %v4139 = vpack.c.b16 %v3823, %v3819
        %v4140 = vpack.c.b16 %v3824, %v3820
        %v4141 = vpack.c.b16 %v3825, %v3821
        %v4142 = vpack.c.b16 %v3826, %v3822
        %v4143 = vpack.c.b16 %v3831, %v3827
        %v4144 = vpack.c.b16 %v3832, %v3828
        %v4145 = vpack.c.b16 %v3833, %v3829
        %v4146 = vpack.c.b16 %v3834, %v3830
        %v4147 = vpack.c.b16 %v3839, %v3835
        %v4148 = vpack.c.b16 %v3840, %v3836
        %v4149 = vpack.c.b16 %v3841, %v3837
        %v4150 = vpack.c.b16 %v3842, %v3838
        %v4151 = vpack.c.b16 %v3847, %v3843
        %v4152 = vpack.c.b16 %v3848, %v3844
        %v4153 = vpack.c.b16 %v3849, %v3845
        %v4154 = vpack.c.b16 %v3850, %v3846
        %v4155 = vpack.c.b16 %v3855, %v3851
        %v4156 = vpack.c.b16 %v3856, %v3852
        %v4157 = vpack.c.b16 %v3857, %v3853
        %v4158 = vpack.c.b16 %v3858, %v3854
        %v4159 = vpack.c.b16 %v3863, %v3859
        %v4160 = vpack.c.b16 %v3864, %v3860
        %v4161 = vpack.c.b16 %v3865, %v3861
        %v4162 = vpack.c.b16 %v3866, %v3862
        %v4163 = vpack.c.b16 %v3871, %v3867
        %v4164 = vpack.c.b16 %v3872, %v3868
        %v4165 = vpack.c.b16 %v3873, %v3869
        %v4166 = vpack.c.b16 %v3874, %v3870
        %v4167 = vpack.c.b16 %v3879, %v3875
        %v4168 = vpack.c.b16 %v3880, %v3876
        %v4169 = vpack.c.b16 %v3881, %v3877
        %v4170 = vpack.c.b16 %v3882, %v3878
        %v4171 = vpack.c.b16 %v3887, %v3883
        %v4172 = vpack.c.b16 %v3888, %v3884
        %v4173 = vpack.c.b16 %v3889, %v3885
        %v4174 = vpack.c.b16 %v3890, %v3886
        %v4175 = vpack.c.b16 %v3895, %v3891
        %v4176 = vpack.c.b16 %v3896, %v3892
        %v4177 = vpack.c.b16 %v3897, %v3893
        %v4178 = vpack.c.b16 %v3898, %v3894
        %v4179 = vpack.c.b16 %v3903, %v3899
        %v4180 = vpack.c.b16 %v3904, %v3900
        %v4181 = vpack.c.b16 %v3905, %v3901
        %v4182 = vpack.c.b16 %v3906, %v3902
        %v4183 = vpack.c.b16 %v3911, %v3907
        %v4184 = vpack.c.b16 %v3912, %v3908
        %v4185 = vpack.c.b16 %v3913, %v3909
        %v4186 = vpack.c.b16 %v3914, %v3910
        %v4187 = vpack.c.b16 %v3919, %v3915
        %v4188 = vpack.c.b16 %v3920, %v3916
        %v4189 = vpack.c.b16 %v3921, %v3917
        %v4190 = vpack.c.b16 %v3922, %v3918
        %v4191 = vpack.c.b16 %v3927, %v3923
        %v4192 = vpack.c.b16 %v3928, %v3924
        %v4193 = vpack.c.b16 %v3929, %v3925
        %v4194 = vpack.c.b16 %v3930, %v3926
        %v4195 = vpack.c.b16 %v3935, %v3931
        %v4196 = vpack.c.b16 %v3936, %v3932
        %v4197 = vpack.c.b16 %v3937, %v3933
        %v4198 = vpack.c.b16 %v3938, %v3934
        %v4199 = vpack.c.b16 %v3943, %v3939
        %v4200 = vpack.c.b16 %v3944, %v3940
        %v4201 = vpack.c.b16 %v3945, %v3941
        %v4202 = vpack.c.b16 %v3946, %v3942
        %4459 = vmatpush.bf16.msra.mxu0 %v3975
        %4460 = vmatpush.bf16.msra.mxu0 %v3971
        %4461 = vmatpush.bf16.msra.mxu0 %v3967
        %4462 = vmatpush.bf16.msra.mxu0 %v3963
        %4463 = vmatpush.bf16.msra.mxu0 %v3959
        %4464 = vmatpush.bf16.msra.mxu0 %v3955
        %4465 = vmatpush.bf16.msra.mxu0 %v3951
        %4466 = vmatpush.bf16.msra.mxu0 %v3947
        %4467 = vmatmul.bf16.gmra.mxu0 %v2851
        %v4468 = vpop.f32.mrf.mxu0
        %v4469 = vadd.f32 0.0, %v4468
        %v4470 = vpop.f32.mrf.mxu0
        %v4471 = vadd.f32 0.0, %v4470
        %4472 = vmatmul.bf16.gmra.mxu0 %v2859
        %v4473 = vpop.f32.mrf.mxu0
        %v4474 = vadd.f32 0.0, %v4473
        %v4475 = vpop.f32.mrf.mxu0
        %v4476 = vadd.f32 0.0, %v4475
        %4477 = vmatmul.bf16.gmra.mxu0 %v2867
        %v4478 = vpop.f32.mrf.mxu0
        %v4479 = vadd.f32 0.0, %v4478
        %v4480 = vpop.f32.mrf.mxu0
        %v4481 = vadd.f32 0.0, %v4480
        %4482 = vmatmul.bf16.gmra.mxu0 %v2875
        %v4483 = vpop.f32.mrf.mxu0
        %v4484 = vadd.f32 0.0, %v4483
        %v4485 = vpop.f32.mrf.mxu0
        %v4486 = vadd.f32 0.0, %v4485
        %4487 = vmatmul.bf16.gmra.mxu0 %v2883
        %v4488 = vpop.f32.mrf.mxu0
        %v4489 = vadd.f32 0.0, %v4488
        %v4490 = vpop.f32.mrf.mxu0
        %v4491 = vadd.f32 0.0, %v4490
        %4492 = vmatmul.bf16.gmra.mxu0 %v2891
        %v4493 = vpop.f32.mrf.mxu0
        %v4494 = vadd.f32 0.0, %v4493
        %v4495 = vpop.f32.mrf.mxu0
        %v4496 = vadd.f32 0.0, %v4495
        %4497 = vmatmul.bf16.gmra.mxu0 %v2899
        %v4498 = vpop.f32.mrf.mxu0
        %v4499 = vadd.f32 0.0, %v4498
        %v4500 = vpop.f32.mrf.mxu0
        %v4501 = vadd.f32 0.0, %v4500
        %4502 = vmatmul.bf16.gmra.mxu0 %v2907
        %v4503 = vpop.f32.mrf.mxu0
        %v4504 = vadd.f32 0.0, %v4503
        %v4505 = vpop.f32.mrf.mxu0
        %v4506 = vadd.f32 0.0, %v4505
        %4507 = vdwg.mxu0
        %4508 = vmatpush.bf16.msra.mxu0 %v4007
        %4509 = vmatpush.bf16.msra.mxu0 %v4003
        %4510 = vmatpush.bf16.msra.mxu0 %v3999
        %4511 = vmatpush.bf16.msra.mxu0 %v3995
        %4512 = vmatpush.bf16.msra.mxu0 %v3991
        %4513 = vmatpush.bf16.msra.mxu0 %v3987
        %4514 = vmatpush.bf16.msra.mxu0 %v3983
        %4515 = vmatpush.bf16.msra.mxu0 %v3979
        %4516 = vmatmul.bf16.gmra.mxu0 %v2852
        %v4517 = vpop.f32.mrf.mxu0
        %v4518 = vadd.f32 %v4469, %v4517
        %v4519 = vpop.f32.mrf.mxu0
        %v4520 = vadd.f32 %v4471, %v4519
        %4521 = vmatmul.bf16.gmra.mxu0 %v2860
        %v4522 = vpop.f32.mrf.mxu0
        %v4523 = vadd.f32 %v4474, %v4522
        %v4524 = vpop.f32.mrf.mxu0
        %v4525 = vadd.f32 %v4476, %v4524
        %4526 = vmatmul.bf16.gmra.mxu0 %v2868
        %v4527 = vpop.f32.mrf.mxu0
        %v4528 = vadd.f32 %v4479, %v4527
        %v4529 = vpop.f32.mrf.mxu0
        %v4530 = vadd.f32 %v4481, %v4529
        %4531 = vmatmul.bf16.gmra.mxu0 %v2876
        %v4532 = vpop.f32.mrf.mxu0
        %v4533 = vadd.f32 %v4484, %v4532
        %v4534 = vpop.f32.mrf.mxu0
        %v4535 = vadd.f32 %v4486, %v4534
        %4536 = vmatmul.bf16.gmra.mxu0 %v2884
        %v4537 = vpop.f32.mrf.mxu0
        %v4538 = vadd.f32 %v4489, %v4537
        %v4539 = vpop.f32.mrf.mxu0
        %v4540 = vadd.f32 %v4491, %v4539
        %4541 = vmatmul.bf16.gmra.mxu0 %v2892
        %v4542 = vpop.f32.mrf.mxu0
        %v4543 = vadd.f32 %v4494, %v4542
        %v4544 = vpop.f32.mrf.mxu0
        %v4545 = vadd.f32 %v4496, %v4544
        %4546 = vmatmul.bf16.gmra.mxu0 %v2900
        %v4547 = vpop.f32.mrf.mxu0
        %v4548 = vadd.f32 %v4499, %v4547
        %v4549 = vpop.f32.mrf.mxu0
        %v4550 = vadd.f32 %v4501, %v4549
        %4551 = vmatmul.bf16.gmra.mxu0 %v2908
        %v4552 = vpop.f32.mrf.mxu0
        %v4553 = vadd.f32 %v4504, %v4552
        %v4554 = vpop.f32.mrf.mxu0
        %v4555 = vadd.f32 %v4506, %v4554
        %4556 = vdwg.mxu0
        %4557 = vmatpush.bf16.msra.mxu0 %v4039
        %4558 = vmatpush.bf16.msra.mxu0 %v4035
        %4559 = vmatpush.bf16.msra.mxu0 %v4031
        %4560 = vmatpush.bf16.msra.mxu0 %v4027
        %4561 = vmatpush.bf16.msra.mxu0 %v4023
        %4562 = vmatpush.bf16.msra.mxu0 %v4019
        %4563 = vmatpush.bf16.msra.mxu0 %v4015
        %4564 = vmatpush.bf16.msra.mxu0 %v4011
        %4565 = vmatmul.bf16.gmra.mxu0 %v2853
        %v4566 = vpop.f32.mrf.mxu0
        %v4567 = vadd.f32 %v4518, %v4566
        %v4568 = vpop.f32.mrf.mxu0
        %v4569 = vadd.f32 %v4520, %v4568
        %4570 = vmatmul.bf16.gmra.mxu0 %v2861
        %v4571 = vpop.f32.mrf.mxu0
        %v4572 = vadd.f32 %v4523, %v4571
        %v4573 = vpop.f32.mrf.mxu0
        %v4574 = vadd.f32 %v4525, %v4573
        %4575 = vmatmul.bf16.gmra.mxu0 %v2869
        %v4576 = vpop.f32.mrf.mxu0
        %v4577 = vadd.f32 %v4528, %v4576
        %v4578 = vpop.f32.mrf.mxu0
        %v4579 = vadd.f32 %v4530, %v4578
        %4580 = vmatmul.bf16.gmra.mxu0 %v2877
        %v4581 = vpop.f32.mrf.mxu0
        %v4582 = vadd.f32 %v4533, %v4581
        %v4583 = vpop.f32.mrf.mxu0
        %v4584 = vadd.f32 %v4535, %v4583
        %4585 = vmatmul.bf16.gmra.mxu0 %v2885
        %v4586 = vpop.f32.mrf.mxu0
        %v4587 = vadd.f32 %v4538, %v4586
        %v4588 = vpop.f32.mrf.mxu0
        %v4589 = vadd.f32 %v4540, %v4588
        %4590 = vmatmul.bf16.gmra.mxu0 %v2893
        %v4591 = vpop.f32.mrf.mxu0
        %v4592 = vadd.f32 %v4543, %v4591
        %v4593 = vpop.f32.mrf.mxu0
        %v4594 = vadd.f32 %v4545, %v4593
        %4595 = vmatmul.bf16.gmra.mxu0 %v2901
        %v4596 = vpop.f32.mrf.mxu0
        %v4597 = vadd.f32 %v4548, %v4596
        %v4598 = vpop.f32.mrf.mxu0
        %v4599 = vadd.f32 %v4550, %v4598
        %4600 = vmatmul.bf16.gmra.mxu0 %v2909
        %v4601 = vpop.f32.mrf.mxu0
        %v4602 = vadd.f32 %v4553, %v4601
        %v4603 = vpop.f32.mrf.mxu0
        %v4604 = vadd.f32 %v4555, %v4603
        %4605 = vdwg.mxu0
        %4606 = vmatpush.bf16.msra.mxu0 %v4071
        %4607 = vmatpush.bf16.msra.mxu0 %v4067
        %4608 = vmatpush.bf16.msra.mxu0 %v4063
        %4609 = vmatpush.bf16.msra.mxu0 %v4059
        %4610 = vmatpush.bf16.msra.mxu0 %v4055
        %4611 = vmatpush.bf16.msra.mxu0 %v4051
        %4612 = vmatpush.bf16.msra.mxu0 %v4047
        %4613 = vmatpush.bf16.msra.mxu0 %v4043
        %4614 = vmatmul.bf16.gmra.mxu0 %v2854
        %v4615 = vpop.f32.mrf.mxu0
        %v4616 = vadd.f32 %v4567, %v4615
        %v4617 = vpop.f32.mrf.mxu0
        %v4618 = vadd.f32 %v4569, %v4617
        %4619 = vmatmul.bf16.gmra.mxu0 %v2862
        %v4620 = vpop.f32.mrf.mxu0
        %v4621 = vadd.f32 %v4572, %v4620
        %v4622 = vpop.f32.mrf.mxu0
        %v4623 = vadd.f32 %v4574, %v4622
        %4624 = vmatmul.bf16.gmra.mxu0 %v2870
        %v4625 = vpop.f32.mrf.mxu0
        %v4626 = vadd.f32 %v4577, %v4625
        %v4627 = vpop.f32.mrf.mxu0
        %v4628 = vadd.f32 %v4579, %v4627
        %4629 = vmatmul.bf16.gmra.mxu0 %v2878
        %v4630 = vpop.f32.mrf.mxu0
        %v4631 = vadd.f32 %v4582, %v4630
        %v4632 = vpop.f32.mrf.mxu0
        %v4633 = vadd.f32 %v4584, %v4632
        %4634 = vmatmul.bf16.gmra.mxu0 %v2886
        %v4635 = vpop.f32.mrf.mxu0
        %v4636 = vadd.f32 %v4587, %v4635
        %v4637 = vpop.f32.mrf.mxu0
        %v4638 = vadd.f32 %v4589, %v4637
        %4639 = vmatmul.bf16.gmra.mxu0 %v2894
        %v4640 = vpop.f32.mrf.mxu0
        %v4641 = vadd.f32 %v4592, %v4640
        %v4642 = vpop.f32.mrf.mxu0
        %v4643 = vadd.f32 %v4594, %v4642
        %4644 = vmatmul.bf16.gmra.mxu0 %v2902
        %v4645 = vpop.f32.mrf.mxu0
        %v4646 = vadd.f32 %v4597, %v4645
        %v4647 = vpop.f32.mrf.mxu0
        %v4648 = vadd.f32 %v4599, %v4647
        %4649 = vmatmul.bf16.gmra.mxu0 %v2910
        %v4650 = vpop.f32.mrf.mxu0
        %v4651 = vadd.f32 %v4602, %v4650
        %v4652 = vpop.f32.mrf.mxu0
        %v4653 = vadd.f32 %v4604, %v4652
        %4654 = vdwg.mxu0
        %4655 = vmatpush.bf16.msra.mxu0 %v4103
        %4656 = vmatpush.bf16.msra.mxu0 %v4099
        %4657 = vmatpush.bf16.msra.mxu0 %v4095
        %4658 = vmatpush.bf16.msra.mxu0 %v4091
        %4659 = vmatpush.bf16.msra.mxu0 %v4087
        %4660 = vmatpush.bf16.msra.mxu0 %v4083
        %4661 = vmatpush.bf16.msra.mxu0 %v4079
        %4662 = vmatpush.bf16.msra.mxu0 %v4075
        %4663 = vmatmul.bf16.gmra.mxu0 %v2855
        %v4664 = vpop.f32.mrf.mxu0
        %v4665 = vadd.f32 %v4616, %v4664
        %v4666 = vpop.f32.mrf.mxu0
        %v4667 = vadd.f32 %v4618, %v4666
        %4668 = vmatmul.bf16.gmra.mxu0 %v2863
        %v4669 = vpop.f32.mrf.mxu0
        %v4670 = vadd.f32 %v4621, %v4669
        %v4671 = vpop.f32.mrf.mxu0
        %v4672 = vadd.f32 %v4623, %v4671
        %4673 = vmatmul.bf16.gmra.mxu0 %v2871
        %v4674 = vpop.f32.mrf.mxu0
        %v4675 = vadd.f32 %v4626, %v4674
        %v4676 = vpop.f32.mrf.mxu0
        %v4677 = vadd.f32 %v4628, %v4676
        %4678 = vmatmul.bf16.gmra.mxu0 %v2879
        %v4679 = vpop.f32.mrf.mxu0
        %v4680 = vadd.f32 %v4631, %v4679
        %v4681 = vpop.f32.mrf.mxu0
        %v4682 = vadd.f32 %v4633, %v4681
        %4683 = vmatmul.bf16.gmra.mxu0 %v2887
        %v4684 = vpop.f32.mrf.mxu0
        %v4685 = vadd.f32 %v4636, %v4684
        %v4686 = vpop.f32.mrf.mxu0
        %v4687 = vadd.f32 %v4638, %v4686
        %4688 = vmatmul.bf16.gmra.mxu0 %v2895
        %v4689 = vpop.f32.mrf.mxu0
        %v4690 = vadd.f32 %v4641, %v4689
        %v4691 = vpop.f32.mrf.mxu0
        %v4692 = vadd.f32 %v4643, %v4691
        %4693 = vmatmul.bf16.gmra.mxu0 %v2903
        %v4694 = vpop.f32.mrf.mxu0
        %v4695 = vadd.f32 %v4646, %v4694
        %v4696 = vpop.f32.mrf.mxu0
        %v4697 = vadd.f32 %v4648, %v4696
        %4698 = vmatmul.bf16.gmra.mxu0 %v2911
        %v4699 = vpop.f32.mrf.mxu0
        %v4700 = vadd.f32 %v4651, %v4699
        %v4701 = vpop.f32.mrf.mxu0
        %v4702 = vadd.f32 %v4653, %v4701
        %4703 = vdwg.mxu0
        %4704 = vmatpush.bf16.msra.mxu0 %v4135
        %4705 = vmatpush.bf16.msra.mxu0 %v4131
        %4706 = vmatpush.bf16.msra.mxu0 %v4127
        %4707 = vmatpush.bf16.msra.mxu0 %v4123
        %4708 = vmatpush.bf16.msra.mxu0 %v4119
        %4709 = vmatpush.bf16.msra.mxu0 %v4115
        %4710 = vmatpush.bf16.msra.mxu0 %v4111
        %4711 = vmatpush.bf16.msra.mxu0 %v4107
        %4712 = vmatmul.bf16.gmra.mxu0 %v2856
        %v4713 = vpop.f32.mrf.mxu0
        %v4714 = vadd.f32 %v4665, %v4713
        %v4715 = vpop.f32.mrf.mxu0
        %v4716 = vadd.f32 %v4667, %v4715
        %4717 = vmatmul.bf16.gmra.mxu0 %v2864
        %v4718 = vpop.f32.mrf.mxu0
        %v4719 = vadd.f32 %v4670, %v4718
        %v4720 = vpop.f32.mrf.mxu0
        %v4721 = vadd.f32 %v4672, %v4720
        %4722 = vmatmul.bf16.gmra.mxu0 %v2872
        %v4723 = vpop.f32.mrf.mxu0
        %v4724 = vadd.f32 %v4675, %v4723
        %v4725 = vpop.f32.mrf.mxu0
        %v4726 = vadd.f32 %v4677, %v4725
        %4727 = vmatmul.bf16.gmra.mxu0 %v2880
        %v4728 = vpop.f32.mrf.mxu0
        %v4729 = vadd.f32 %v4680, %v4728
        %v4730 = vpop.f32.mrf.mxu0
        %v4731 = vadd.f32 %v4682, %v4730
        %4732 = vmatmul.bf16.gmra.mxu0 %v2888
        %v4733 = vpop.f32.mrf.mxu0
        %v4734 = vadd.f32 %v4685, %v4733
        %v4735 = vpop.f32.mrf.mxu0
        %v4736 = vadd.f32 %v4687, %v4735
        %4737 = vmatmul.bf16.gmra.mxu0 %v2896
        %v4738 = vpop.f32.mrf.mxu0
        %v4739 = vadd.f32 %v4690, %v4738
        %v4740 = vpop.f32.mrf.mxu0
        %v4741 = vadd.f32 %v4692, %v4740
        %4742 = vmatmul.bf16.gmra.mxu0 %v2904
        %v4743 = vpop.f32.mrf.mxu0
        %v4744 = vadd.f32 %v4695, %v4743
        %v4745 = vpop.f32.mrf.mxu0
        %v4746 = vadd.f32 %v4697, %v4745
        %4747 = vmatmul.bf16.gmra.mxu0 %v2912
        %v4748 = vpop.f32.mrf.mxu0
        %v4749 = vadd.f32 %v4700, %v4748
        %v4750 = vpop.f32.mrf.mxu0
        %v4751 = vadd.f32 %v4702, %v4750
        %4752 = vdwg.mxu0
        %4753 = vmatpush.bf16.msra.mxu0 %v4167
        %4754 = vmatpush.bf16.msra.mxu0 %v4163
        %4755 = vmatpush.bf16.msra.mxu0 %v4159
        %4756 = vmatpush.bf16.msra.mxu0 %v4155
        %4757 = vmatpush.bf16.msra.mxu0 %v4151
        %4758 = vmatpush.bf16.msra.mxu0 %v4147
        %4759 = vmatpush.bf16.msra.mxu0 %v4143
        %4760 = vmatpush.bf16.msra.mxu0 %v4139
        %4761 = vmatmul.bf16.gmra.mxu0 %v2857
        %v4762 = vpop.f32.mrf.mxu0
        %v4763 = vadd.f32 %v4714, %v4762
        %v4764 = vpop.f32.mrf.mxu0
        %v4765 = vadd.f32 %v4716, %v4764
        %4766 = vmatmul.bf16.gmra.mxu0 %v2865
        %v4767 = vpop.f32.mrf.mxu0
        %v4768 = vadd.f32 %v4719, %v4767
        %v4769 = vpop.f32.mrf.mxu0
        %v4770 = vadd.f32 %v4721, %v4769
        %4771 = vmatmul.bf16.gmra.mxu0 %v2873
        %v4772 = vpop.f32.mrf.mxu0
        %v4773 = vadd.f32 %v4724, %v4772
        %v4774 = vpop.f32.mrf.mxu0
        %v4775 = vadd.f32 %v4726, %v4774
        %4776 = vmatmul.bf16.gmra.mxu0 %v2881
        %v4777 = vpop.f32.mrf.mxu0
        %v4778 = vadd.f32 %v4729, %v4777
        %v4779 = vpop.f32.mrf.mxu0
        %v4780 = vadd.f32 %v4731, %v4779
        %4781 = vmatmul.bf16.gmra.mxu0 %v2889
        %v4782 = vpop.f32.mrf.mxu0
        %v4783 = vadd.f32 %v4734, %v4782
        %v4784 = vpop.f32.mrf.mxu0
        %v4785 = vadd.f32 %v4736, %v4784
        %4786 = vmatmul.bf16.gmra.mxu0 %v2897
        %v4787 = vpop.f32.mrf.mxu0
        %v4788 = vadd.f32 %v4739, %v4787
        %v4789 = vpop.f32.mrf.mxu0
        %v4790 = vadd.f32 %v4741, %v4789
        %4791 = vmatmul.bf16.gmra.mxu0 %v2905
        %v4792 = vpop.f32.mrf.mxu0
        %v4793 = vadd.f32 %v4744, %v4792
        %v4794 = vpop.f32.mrf.mxu0
        %v4795 = vadd.f32 %v4746, %v4794
        %4796 = vmatmul.bf16.gmra.mxu0 %v2913
        %v4797 = vpop.f32.mrf.mxu0
        %v4798 = vadd.f32 %v4749, %v4797
        %v4799 = vpop.f32.mrf.mxu0
        %v4800 = vadd.f32 %v4751, %v4799
        %4801 = vdwg.mxu0
        %4802 = vmatpush.bf16.msra.mxu0 %v4199
        %4803 = vmatpush.bf16.msra.mxu0 %v4195
        %4804 = vmatpush.bf16.msra.mxu0 %v4191
        %4805 = vmatpush.bf16.msra.mxu0 %v4187
        %4806 = vmatpush.bf16.msra.mxu0 %v4183
        %4807 = vmatpush.bf16.msra.mxu0 %v4179
        %4808 = vmatpush.bf16.msra.mxu0 %v4175
        %4809 = vmatpush.bf16.msra.mxu0 %v4171
        %4810 = vmatmul.bf16.gmra.mxu0 %v2858
        %v4811 = vpop.f32.mrf.mxu0
        %v4812 = vadd.f32 %v4763, %v4811
        %v4813 = vpop.f32.mrf.mxu0
        %v4814 = vadd.f32 %v4765, %v4813
        %4815 = vmatmul.bf16.gmra.mxu0 %v2866
        %v4816 = vpop.f32.mrf.mxu0
        %v4817 = vadd.f32 %v4768, %v4816
        %v4818 = vpop.f32.mrf.mxu0
        %v4819 = vadd.f32 %v4770, %v4818
        %4820 = vmatmul.bf16.gmra.mxu0 %v2874
        %v4821 = vpop.f32.mrf.mxu0
        %v4822 = vadd.f32 %v4773, %v4821
        %v4823 = vpop.f32.mrf.mxu0
        %v4824 = vadd.f32 %v4775, %v4823
        %4825 = vmatmul.bf16.gmra.mxu0 %v2882
        %v4826 = vpop.f32.mrf.mxu0
        %v4827 = vadd.f32 %v4778, %v4826
        %v4828 = vpop.f32.mrf.mxu0
        %v4829 = vadd.f32 %v4780, %v4828
        %4830 = vmatmul.bf16.gmra.mxu0 %v2890
        %v4831 = vpop.f32.mrf.mxu0
        %v4832 = vadd.f32 %v4783, %v4831
        %v4833 = vpop.f32.mrf.mxu0
        %v4834 = vadd.f32 %v4785, %v4833
        %4835 = vmatmul.bf16.gmra.mxu0 %v2898
        %v4836 = vpop.f32.mrf.mxu0
        %v4837 = vadd.f32 %v4788, %v4836
        %v4838 = vpop.f32.mrf.mxu0
        %v4839 = vadd.f32 %v4790, %v4838
        %4840 = vmatmul.bf16.gmra.mxu0 %v2906
        %v4841 = vpop.f32.mrf.mxu0
        %v4842 = vadd.f32 %v4793, %v4841
        %v4843 = vpop.f32.mrf.mxu0
        %v4844 = vadd.f32 %v4795, %v4843
        %4845 = vmatmul.bf16.gmra.mxu0 %v2914
        %v4846 = vpop.f32.mrf.mxu0
        %v4847 = vadd.f32 %v4798, %v4846
        %v4848 = vpop.f32.mrf.mxu0
        %v4849 = vadd.f32 %v4800, %v4848
        %4850 = vdwg.mxu0
        %4851 = vmatpush.bf16.msra.mxu0 %v3976
        %4852 = vmatpush.bf16.msra.mxu0 %v3972
        %4853 = vmatpush.bf16.msra.mxu0 %v3968
        %4854 = vmatpush.bf16.msra.mxu0 %v3964
        %4855 = vmatpush.bf16.msra.mxu0 %v3960
        %4856 = vmatpush.bf16.msra.mxu0 %v3956
        %4857 = vmatpush.bf16.msra.mxu0 %v3952
        %4858 = vmatpush.bf16.msra.mxu0 %v3948
        %4859 = vmatmul.bf16.gmra.mxu0 %v2851
        %v4860 = vpop.f32.mrf.mxu0
        %v4861 = vadd.f32 0.0, %v4860
        %v4862 = vpop.f32.mrf.mxu0
        %v4863 = vadd.f32 0.0, %v4862
        %4864 = vmatmul.bf16.gmra.mxu0 %v2859
        %v4865 = vpop.f32.mrf.mxu0
        %v4866 = vadd.f32 0.0, %v4865
        %v4867 = vpop.f32.mrf.mxu0
        %v4868 = vadd.f32 0.0, %v4867
        %4869 = vmatmul.bf16.gmra.mxu0 %v2867
        %v4870 = vpop.f32.mrf.mxu0
        %v4871 = vadd.f32 0.0, %v4870
        %v4872 = vpop.f32.mrf.mxu0
        %v4873 = vadd.f32 0.0, %v4872
        %4874 = vmatmul.bf16.gmra.mxu0 %v2875
        %v4875 = vpop.f32.mrf.mxu0
        %v4876 = vadd.f32 0.0, %v4875
        %v4877 = vpop.f32.mrf.mxu0
        %v4878 = vadd.f32 0.0, %v4877
        %4879 = vmatmul.bf16.gmra.mxu0 %v2883
        %v4880 = vpop.f32.mrf.mxu0
        %v4881 = vadd.f32 0.0, %v4880
        %v4882 = vpop.f32.mrf.mxu0
        %v4883 = vadd.f32 0.0, %v4882
        %4884 = vmatmul.bf16.gmra.mxu0 %v2891
        %v4885 = vpop.f32.mrf.mxu0
        %v4886 = vadd.f32 0.0, %v4885
        %v4887 = vpop.f32.mrf.mxu0
        %v4888 = vadd.f32 0.0, %v4887
        %4889 = vmatmul.bf16.gmra.mxu0 %v2899
        %v4890 = vpop.f32.mrf.mxu0
        %v4891 = vadd.f32 0.0, %v4890
        %v4892 = vpop.f32.mrf.mxu0
        %v4893 = vadd.f32 0.0, %v4892
        %4894 = vmatmul.bf16.gmra.mxu0 %v2907
        %v4895 = vpop.f32.mrf.mxu0
        %v4896 = vadd.f32 0.0, %v4895
        %v4897 = vpop.f32.mrf.mxu0
        %v4898 = vadd.f32 0.0, %v4897
        %4899 = vdwg.mxu0
        %4900 = vmatpush.bf16.msra.mxu0 %v4008
        %4901 = vmatpush.bf16.msra.mxu0 %v4004
        %4902 = vmatpush.bf16.msra.mxu0 %v4000
        %4903 = vmatpush.bf16.msra.mxu0 %v3996
        %4904 = vmatpush.bf16.msra.mxu0 %v3992
        %4905 = vmatpush.bf16.msra.mxu0 %v3988
        %4906 = vmatpush.bf16.msra.mxu0 %v3984
        %4907 = vmatpush.bf16.msra.mxu0 %v3980
        %4908 = vmatmul.bf16.gmra.mxu0 %v2852
        %v4909 = vpop.f32.mrf.mxu0
        %v4910 = vadd.f32 %v4861, %v4909
        %v4911 = vpop.f32.mrf.mxu0
        %v4912 = vadd.f32 %v4863, %v4911
        %4913 = vmatmul.bf16.gmra.mxu0 %v2860
        %v4914 = vpop.f32.mrf.mxu0
        %v4915 = vadd.f32 %v4866, %v4914
        %v4916 = vpop.f32.mrf.mxu0
        %v4917 = vadd.f32 %v4868, %v4916
        %4918 = vmatmul.bf16.gmra.mxu0 %v2868
        %v4919 = vpop.f32.mrf.mxu0
        %v4920 = vadd.f32 %v4871, %v4919
        %v4921 = vpop.f32.mrf.mxu0
        %v4922 = vadd.f32 %v4873, %v4921
        %4923 = vmatmul.bf16.gmra.mxu0 %v2876
        %v4924 = vpop.f32.mrf.mxu0
        %v4925 = vadd.f32 %v4876, %v4924
        %v4926 = vpop.f32.mrf.mxu0
        %v4927 = vadd.f32 %v4878, %v4926
        %4928 = vmatmul.bf16.gmra.mxu0 %v2884
        %v4929 = vpop.f32.mrf.mxu0
        %v4930 = vadd.f32 %v4881, %v4929
        %v4931 = vpop.f32.mrf.mxu0
        %v4932 = vadd.f32 %v4883, %v4931
        %4933 = vmatmul.bf16.gmra.mxu0 %v2892
        %v4934 = vpop.f32.mrf.mxu0
        %v4935 = vadd.f32 %v4886, %v4934
        %v4936 = vpop.f32.mrf.mxu0
        %v4937 = vadd.f32 %v4888, %v4936
        %4938 = vmatmul.bf16.gmra.mxu0 %v2900
        %v4939 = vpop.f32.mrf.mxu0
        %v4940 = vadd.f32 %v4891, %v4939
        %v4941 = vpop.f32.mrf.mxu0
        %v4942 = vadd.f32 %v4893, %v4941
        %4943 = vmatmul.bf16.gmra.mxu0 %v2908
        %v4944 = vpop.f32.mrf.mxu0
        %v4945 = vadd.f32 %v4896, %v4944
        %v4946 = vpop.f32.mrf.mxu0
        %v4947 = vadd.f32 %v4898, %v4946
        %4948 = vdwg.mxu0
        %4949 = vmatpush.bf16.msra.mxu0 %v4040
        %4950 = vmatpush.bf16.msra.mxu0 %v4036
        %4951 = vmatpush.bf16.msra.mxu0 %v4032
        %4952 = vmatpush.bf16.msra.mxu0 %v4028
        %4953 = vmatpush.bf16.msra.mxu0 %v4024
        %4954 = vmatpush.bf16.msra.mxu0 %v4020
        %4955 = vmatpush.bf16.msra.mxu0 %v4016
        %4956 = vmatpush.bf16.msra.mxu0 %v4012
        %4957 = vmatmul.bf16.gmra.mxu0 %v2853
        %v4958 = vpop.f32.mrf.mxu0
        %v4959 = vadd.f32 %v4910, %v4958
        %v4960 = vpop.f32.mrf.mxu0
        %v4961 = vadd.f32 %v4912, %v4960
        %4962 = vmatmul.bf16.gmra.mxu0 %v2861
        %v4963 = vpop.f32.mrf.mxu0
        %v4964 = vadd.f32 %v4915, %v4963
        %v4965 = vpop.f32.mrf.mxu0
        %v4966 = vadd.f32 %v4917, %v4965
        %4967 = vmatmul.bf16.gmra.mxu0 %v2869
        %v4968 = vpop.f32.mrf.mxu0
        %v4969 = vadd.f32 %v4920, %v4968
        %v4970 = vpop.f32.mrf.mxu0
        %v4971 = vadd.f32 %v4922, %v4970
        %4972 = vmatmul.bf16.gmra.mxu0 %v2877
        %v4973 = vpop.f32.mrf.mxu0
        %v4974 = vadd.f32 %v4925, %v4973
        %v4975 = vpop.f32.mrf.mxu0
        %v4976 = vadd.f32 %v4927, %v4975
        %4977 = vmatmul.bf16.gmra.mxu0 %v2885
        %v4978 = vpop.f32.mrf.mxu0
        %v4979 = vadd.f32 %v4930, %v4978
        %v4980 = vpop.f32.mrf.mxu0
        %v4981 = vadd.f32 %v4932, %v4980
        %4982 = vmatmul.bf16.gmra.mxu0 %v2893
        %v4983 = vpop.f32.mrf.mxu0
        %v4984 = vadd.f32 %v4935, %v4983
        %v4985 = vpop.f32.mrf.mxu0
        %v4986 = vadd.f32 %v4937, %v4985
        %4987 = vmatmul.bf16.gmra.mxu0 %v2901
        %v4988 = vpop.f32.mrf.mxu0
        %v4989 = vadd.f32 %v4940, %v4988
        %v4990 = vpop.f32.mrf.mxu0
        %v4991 = vadd.f32 %v4942, %v4990
        %4992 = vmatmul.bf16.gmra.mxu0 %v2909
        %v4993 = vpop.f32.mrf.mxu0
        %v4994 = vadd.f32 %v4945, %v4993
        %v4995 = vpop.f32.mrf.mxu0
        %v4996 = vadd.f32 %v4947, %v4995
        %4997 = vdwg.mxu0
        %4998 = vmatpush.bf16.msra.mxu0 %v4072
        %4999 = vmatpush.bf16.msra.mxu0 %v4068
        %5000 = vmatpush.bf16.msra.mxu0 %v4064
        %5001 = vmatpush.bf16.msra.mxu0 %v4060
        %5002 = vmatpush.bf16.msra.mxu0 %v4056
        %5003 = vmatpush.bf16.msra.mxu0 %v4052
        %5004 = vmatpush.bf16.msra.mxu0 %v4048
        %5005 = vmatpush.bf16.msra.mxu0 %v4044
        %5006 = vmatmul.bf16.gmra.mxu0 %v2854
        %v5007 = vpop.f32.mrf.mxu0
        %v5008 = vadd.f32 %v4959, %v5007
        %v5009 = vpop.f32.mrf.mxu0
        %v5010 = vadd.f32 %v4961, %v5009
        %5011 = vmatmul.bf16.gmra.mxu0 %v2862
        %v5012 = vpop.f32.mrf.mxu0
        %v5013 = vadd.f32 %v4964, %v5012
        %v5014 = vpop.f32.mrf.mxu0
        %v5015 = vadd.f32 %v4966, %v5014
        %5016 = vmatmul.bf16.gmra.mxu0 %v2870
        %v5017 = vpop.f32.mrf.mxu0
        %v5018 = vadd.f32 %v4969, %v5017
        %v5019 = vpop.f32.mrf.mxu0
        %v5020 = vadd.f32 %v4971, %v5019
        %5021 = vmatmul.bf16.gmra.mxu0 %v2878
        %v5022 = vpop.f32.mrf.mxu0
        %v5023 = vadd.f32 %v4974, %v5022
        %v5024 = vpop.f32.mrf.mxu0
        %v5025 = vadd.f32 %v4976, %v5024
        %5026 = vmatmul.bf16.gmra.mxu0 %v2886
        %v5027 = vpop.f32.mrf.mxu0
        %v5028 = vadd.f32 %v4979, %v5027
        %v5029 = vpop.f32.mrf.mxu0
        %v5030 = vadd.f32 %v4981, %v5029
        %5031 = vmatmul.bf16.gmra.mxu0 %v2894
        %v5032 = vpop.f32.mrf.mxu0
        %v5033 = vadd.f32 %v4984, %v5032
        %v5034 = vpop.f32.mrf.mxu0
        %v5035 = vadd.f32 %v4986, %v5034
        %5036 = vmatmul.bf16.gmra.mxu0 %v2902
        %v5037 = vpop.f32.mrf.mxu0
        %v5038 = vadd.f32 %v4989, %v5037
        %v5039 = vpop.f32.mrf.mxu0
        %v5040 = vadd.f32 %v4991, %v5039
        %5041 = vmatmul.bf16.gmra.mxu0 %v2910
        %v5042 = vpop.f32.mrf.mxu0
        %v5043 = vadd.f32 %v4994, %v5042
        %v5044 = vpop.f32.mrf.mxu0
        %v5045 = vadd.f32 %v4996, %v5044
        %5046 = vdwg.mxu0
        %5047 = vmatpush.bf16.msra.mxu0 %v4104
        %5048 = vmatpush.bf16.msra.mxu0 %v4100
        %5049 = vmatpush.bf16.msra.mxu0 %v4096
        %5050 = vmatpush.bf16.msra.mxu0 %v4092
        %5051 = vmatpush.bf16.msra.mxu0 %v4088
        %5052 = vmatpush.bf16.msra.mxu0 %v4084
        %5053 = vmatpush.bf16.msra.mxu0 %v4080
        %5054 = vmatpush.bf16.msra.mxu0 %v4076
        %5055 = vmatmul.bf16.gmra.mxu0 %v2855
        %v5056 = vpop.f32.mrf.mxu0
        %v5057 = vadd.f32 %v5008, %v5056
        %v5058 = vpop.f32.mrf.mxu0
        %v5059 = vadd.f32 %v5010, %v5058
        %5060 = vmatmul.bf16.gmra.mxu0 %v2863
        %v5061 = vpop.f32.mrf.mxu0
        %v5062 = vadd.f32 %v5013, %v5061
        %v5063 = vpop.f32.mrf.mxu0
        %v5064 = vadd.f32 %v5015, %v5063
        %5065 = vmatmul.bf16.gmra.mxu0 %v2871
        %v5066 = vpop.f32.mrf.mxu0
        %v5067 = vadd.f32 %v5018, %v5066
        %v5068 = vpop.f32.mrf.mxu0
        %v5069 = vadd.f32 %v5020, %v5068
        %5070 = vmatmul.bf16.gmra.mxu0 %v2879
        %v5071 = vpop.f32.mrf.mxu0
        %v5072 = vadd.f32 %v5023, %v5071
        %v5073 = vpop.f32.mrf.mxu0
        %v5074 = vadd.f32 %v5025, %v5073
        %5075 = vmatmul.bf16.gmra.mxu0 %v2887
        %v5076 = vpop.f32.mrf.mxu0
        %v5077 = vadd.f32 %v5028, %v5076
        %v5078 = vpop.f32.mrf.mxu0
        %v5079 = vadd.f32 %v5030, %v5078
        %5080 = vmatmul.bf16.gmra.mxu0 %v2895
        %v5081 = vpop.f32.mrf.mxu0
        %v5082 = vadd.f32 %v5033, %v5081
        %v5083 = vpop.f32.mrf.mxu0
        %v5084 = vadd.f32 %v5035, %v5083
        %5085 = vmatmul.bf16.gmra.mxu0 %v2903
        %v5086 = vpop.f32.mrf.mxu0
        %v5087 = vadd.f32 %v5038, %v5086
        %v5088 = vpop.f32.mrf.mxu0
        %v5089 = vadd.f32 %v5040, %v5088
        %5090 = vmatmul.bf16.gmra.mxu0 %v2911
        %v5091 = vpop.f32.mrf.mxu0
        %v5092 = vadd.f32 %v5043, %v5091
        %v5093 = vpop.f32.mrf.mxu0
        %v5094 = vadd.f32 %v5045, %v5093
        %5095 = vdwg.mxu0
        %5096 = vmatpush.bf16.msra.mxu0 %v4136
        %5097 = vmatpush.bf16.msra.mxu0 %v4132
        %5098 = vmatpush.bf16.msra.mxu0 %v4128
        %5099 = vmatpush.bf16.msra.mxu0 %v4124
        %5100 = vmatpush.bf16.msra.mxu0 %v4120
        %5101 = vmatpush.bf16.msra.mxu0 %v4116
        %5102 = vmatpush.bf16.msra.mxu0 %v4112
        %5103 = vmatpush.bf16.msra.mxu0 %v4108
        %5104 = vmatmul.bf16.gmra.mxu0 %v2856
        %v5105 = vpop.f32.mrf.mxu0
        %v5106 = vadd.f32 %v5057, %v5105
        %v5107 = vpop.f32.mrf.mxu0
        %v5108 = vadd.f32 %v5059, %v5107
        %5109 = vmatmul.bf16.gmra.mxu0 %v2864
        %v5110 = vpop.f32.mrf.mxu0
        %v5111 = vadd.f32 %v5062, %v5110
        %v5112 = vpop.f32.mrf.mxu0
        %v5113 = vadd.f32 %v5064, %v5112
        %5114 = vmatmul.bf16.gmra.mxu0 %v2872
        %v5115 = vpop.f32.mrf.mxu0
        %v5116 = vadd.f32 %v5067, %v5115
        %v5117 = vpop.f32.mrf.mxu0
        %v5118 = vadd.f32 %v5069, %v5117
        %5119 = vmatmul.bf16.gmra.mxu0 %v2880
        %v5120 = vpop.f32.mrf.mxu0
        %v5121 = vadd.f32 %v5072, %v5120
        %v5122 = vpop.f32.mrf.mxu0
        %v5123 = vadd.f32 %v5074, %v5122
        %5124 = vmatmul.bf16.gmra.mxu0 %v2888
        %v5125 = vpop.f32.mrf.mxu0
        %v5126 = vadd.f32 %v5077, %v5125
        %v5127 = vpop.f32.mrf.mxu0
        %v5128 = vadd.f32 %v5079, %v5127
        %5129 = vmatmul.bf16.gmra.mxu0 %v2896
        %v5130 = vpop.f32.mrf.mxu0
        %v5131 = vadd.f32 %v5082, %v5130
        %v5132 = vpop.f32.mrf.mxu0
        %v5133 = vadd.f32 %v5084, %v5132
        %5134 = vmatmul.bf16.gmra.mxu0 %v2904
        %v5135 = vpop.f32.mrf.mxu0
        %v5136 = vadd.f32 %v5087, %v5135
        %v5137 = vpop.f32.mrf.mxu0
        %v5138 = vadd.f32 %v5089, %v5137
        %5139 = vmatmul.bf16.gmra.mxu0 %v2912
        %v5140 = vpop.f32.mrf.mxu0
        %v5141 = vadd.f32 %v5092, %v5140
        %v5142 = vpop.f32.mrf.mxu0
        %v5143 = vadd.f32 %v5094, %v5142
        %5144 = vdwg.mxu0
        %5145 = vmatpush.bf16.msra.mxu0 %v4168
        %5146 = vmatpush.bf16.msra.mxu0 %v4164
        %5147 = vmatpush.bf16.msra.mxu0 %v4160
        %5148 = vmatpush.bf16.msra.mxu0 %v4156
        %5149 = vmatpush.bf16.msra.mxu0 %v4152
        %5150 = vmatpush.bf16.msra.mxu0 %v4148
        %5151 = vmatpush.bf16.msra.mxu0 %v4144
        %5152 = vmatpush.bf16.msra.mxu0 %v4140
        %5153 = vmatmul.bf16.gmra.mxu0 %v2857
        %v5154 = vpop.f32.mrf.mxu0
        %v5155 = vadd.f32 %v5106, %v5154
        %v5156 = vpop.f32.mrf.mxu0
        %v5157 = vadd.f32 %v5108, %v5156
        %5158 = vmatmul.bf16.gmra.mxu0 %v2865
        %v5159 = vpop.f32.mrf.mxu0
        %v5160 = vadd.f32 %v5111, %v5159
        %v5161 = vpop.f32.mrf.mxu0
        %v5162 = vadd.f32 %v5113, %v5161
        %5163 = vmatmul.bf16.gmra.mxu0 %v2873
        %v5164 = vpop.f32.mrf.mxu0
        %v5165 = vadd.f32 %v5116, %v5164
        %v5166 = vpop.f32.mrf.mxu0
        %v5167 = vadd.f32 %v5118, %v5166
        %5168 = vmatmul.bf16.gmra.mxu0 %v2881
        %v5169 = vpop.f32.mrf.mxu0
        %v5170 = vadd.f32 %v5121, %v5169
        %v5171 = vpop.f32.mrf.mxu0
        %v5172 = vadd.f32 %v5123, %v5171
        %5173 = vmatmul.bf16.gmra.mxu0 %v2889
        %v5174 = vpop.f32.mrf.mxu0
        %v5175 = vadd.f32 %v5126, %v5174
        %v5176 = vpop.f32.mrf.mxu0
        %v5177 = vadd.f32 %v5128, %v5176
        %5178 = vmatmul.bf16.gmra.mxu0 %v2897
        %v5179 = vpop.f32.mrf.mxu0
        %v5180 = vadd.f32 %v5131, %v5179
        %v5181 = vpop.f32.mrf.mxu0
        %v5182 = vadd.f32 %v5133, %v5181
        %5183 = vmatmul.bf16.gmra.mxu0 %v2905
        %v5184 = vpop.f32.mrf.mxu0
        %v5185 = vadd.f32 %v5136, %v5184
        %v5186 = vpop.f32.mrf.mxu0
        %v5187 = vadd.f32 %v5138, %v5186
        %5188 = vmatmul.bf16.gmra.mxu0 %v2913
        %v5189 = vpop.f32.mrf.mxu0
        %v5190 = vadd.f32 %v5141, %v5189
        %v5191 = vpop.f32.mrf.mxu0
        %v5192 = vadd.f32 %v5143, %v5191
        %5193 = vdwg.mxu0
        %5194 = vmatpush.bf16.msra.mxu0 %v4200
        %5195 = vmatpush.bf16.msra.mxu0 %v4196
        %5196 = vmatpush.bf16.msra.mxu0 %v4192
        %5197 = vmatpush.bf16.msra.mxu0 %v4188
        %5198 = vmatpush.bf16.msra.mxu0 %v4184
        %5199 = vmatpush.bf16.msra.mxu0 %v4180
        %5200 = vmatpush.bf16.msra.mxu0 %v4176
        %5201 = vmatpush.bf16.msra.mxu0 %v4172
        %5202 = vmatmul.bf16.gmra.mxu0 %v2858
        %v5203 = vpop.f32.mrf.mxu0
        %v5204 = vadd.f32 %v5155, %v5203
        %v5205 = vpop.f32.mrf.mxu0
        %v5206 = vadd.f32 %v5157, %v5205
        %5207 = vmatmul.bf16.gmra.mxu0 %v2866
        %v5208 = vpop.f32.mrf.mxu0
        %v5209 = vadd.f32 %v5160, %v5208
        %v5210 = vpop.f32.mrf.mxu0
        %v5211 = vadd.f32 %v5162, %v5210
        %5212 = vmatmul.bf16.gmra.mxu0 %v2874
        %v5213 = vpop.f32.mrf.mxu0
        %v5214 = vadd.f32 %v5165, %v5213
        %v5215 = vpop.f32.mrf.mxu0
        %v5216 = vadd.f32 %v5167, %v5215
        %5217 = vmatmul.bf16.gmra.mxu0 %v2882
        %v5218 = vpop.f32.mrf.mxu0
        %v5219 = vadd.f32 %v5170, %v5218
        %v5220 = vpop.f32.mrf.mxu0
        %v5221 = vadd.f32 %v5172, %v5220
        %5222 = vmatmul.bf16.gmra.mxu0 %v2890
        %v5223 = vpop.f32.mrf.mxu0
        %v5224 = vadd.f32 %v5175, %v5223
        %v5225 = vpop.f32.mrf.mxu0
        %v5226 = vadd.f32 %v5177, %v5225
        %5227 = vmatmul.bf16.gmra.mxu0 %v2898
        %v5228 = vpop.f32.mrf.mxu0
        %v5229 = vadd.f32 %v5180, %v5228
        %v5230 = vpop.f32.mrf.mxu0
        %v5231 = vadd.f32 %v5182, %v5230
        %5232 = vmatmul.bf16.gmra.mxu0 %v2906
        %v5233 = vpop.f32.mrf.mxu0
        %v5234 = vadd.f32 %v5185, %v5233
        %v5235 = vpop.f32.mrf.mxu0
        %v5236 = vadd.f32 %v5187, %v5235
        %5237 = vmatmul.bf16.gmra.mxu0 %v2914
        %v5238 = vpop.f32.mrf.mxu0
        %v5239 = vadd.f32 %v5190, %v5238
        %v5240 = vpop.f32.mrf.mxu0
        %v5241 = vadd.f32 %v5192, %v5240
        %5242 = vdwg.mxu0
        %5243 = vmatpush.bf16.msra.mxu0 %v3977
        %5244 = vmatpush.bf16.msra.mxu0 %v3973
        %5245 = vmatpush.bf16.msra.mxu0 %v3969
        %5246 = vmatpush.bf16.msra.mxu0 %v3965
        %5247 = vmatpush.bf16.msra.mxu0 %v3961
        %5248 = vmatpush.bf16.msra.mxu0 %v3957
        %5249 = vmatpush.bf16.msra.mxu0 %v3953
        %5250 = vmatpush.bf16.msra.mxu0 %v3949
        %5251 = vmatmul.bf16.gmra.mxu0 %v2851
        %v5252 = vpop.f32.mrf.mxu0
        %v5253 = vadd.f32 0.0, %v5252
        %v5254 = vpop.f32.mrf.mxu0
        %v5255 = vadd.f32 0.0, %v5254
        %5256 = vmatmul.bf16.gmra.mxu0 %v2859
        %v5257 = vpop.f32.mrf.mxu0
        %v5258 = vadd.f32 0.0, %v5257
        %v5259 = vpop.f32.mrf.mxu0
        %v5260 = vadd.f32 0.0, %v5259
        %5261 = vmatmul.bf16.gmra.mxu0 %v2867
        %v5262 = vpop.f32.mrf.mxu0
        %v5263 = vadd.f32 0.0, %v5262
        %v5264 = vpop.f32.mrf.mxu0
        %v5265 = vadd.f32 0.0, %v5264
        %5266 = vmatmul.bf16.gmra.mxu0 %v2875
        %v5267 = vpop.f32.mrf.mxu0
        %v5268 = vadd.f32 0.0, %v5267
        %v5269 = vpop.f32.mrf.mxu0
        %v5270 = vadd.f32 0.0, %v5269
        %5271 = vmatmul.bf16.gmra.mxu0 %v2883
        %v5272 = vpop.f32.mrf.mxu0
        %v5273 = vadd.f32 0.0, %v5272
        %v5274 = vpop.f32.mrf.mxu0
        %v5275 = vadd.f32 0.0, %v5274
        %5276 = vmatmul.bf16.gmra.mxu0 %v2891
        %v5277 = vpop.f32.mrf.mxu0
        %v5278 = vadd.f32 0.0, %v5277
        %v5279 = vpop.f32.mrf.mxu0
        %v5280 = vadd.f32 0.0, %v5279
        %5281 = vmatmul.bf16.gmra.mxu0 %v2899
        %v5282 = vpop.f32.mrf.mxu0
        %v5283 = vadd.f32 0.0, %v5282
        %v5284 = vpop.f32.mrf.mxu0
        %v5285 = vadd.f32 0.0, %v5284
        %5286 = vmatmul.bf16.gmra.mxu0 %v2907
        %v5287 = vpop.f32.mrf.mxu0
        %v5288 = vadd.f32 0.0, %v5287
        %v5289 = vpop.f32.mrf.mxu0
        %v5290 = vadd.f32 0.0, %v5289
        %5291 = vdwg.mxu0
        %5292 = vmatpush.bf16.msra.mxu0 %v4009
        %5293 = vmatpush.bf16.msra.mxu0 %v4005
        %5294 = vmatpush.bf16.msra.mxu0 %v4001
        %5295 = vmatpush.bf16.msra.mxu0 %v3997
        %5296 = vmatpush.bf16.msra.mxu0 %v3993
        %5297 = vmatpush.bf16.msra.mxu0 %v3989
        %5298 = vmatpush.bf16.msra.mxu0 %v3985
        %5299 = vmatpush.bf16.msra.mxu0 %v3981
        %5300 = vmatmul.bf16.gmra.mxu0 %v2852
        %v5301 = vpop.f32.mrf.mxu0
        %v5302 = vadd.f32 %v5253, %v5301
        %v5303 = vpop.f32.mrf.mxu0
        %v5304 = vadd.f32 %v5255, %v5303
        %5305 = vmatmul.bf16.gmra.mxu0 %v2860
        %v5306 = vpop.f32.mrf.mxu0
        %v5307 = vadd.f32 %v5258, %v5306
        %v5308 = vpop.f32.mrf.mxu0
        %v5309 = vadd.f32 %v5260, %v5308
        %5310 = vmatmul.bf16.gmra.mxu0 %v2868
        %v5311 = vpop.f32.mrf.mxu0
        %v5312 = vadd.f32 %v5263, %v5311
        %v5313 = vpop.f32.mrf.mxu0
        %v5314 = vadd.f32 %v5265, %v5313
        %5315 = vmatmul.bf16.gmra.mxu0 %v2876
        %v5316 = vpop.f32.mrf.mxu0
        %v5317 = vadd.f32 %v5268, %v5316
        %v5318 = vpop.f32.mrf.mxu0
        %v5319 = vadd.f32 %v5270, %v5318
        %5320 = vmatmul.bf16.gmra.mxu0 %v2884
        %v5321 = vpop.f32.mrf.mxu0
        %v5322 = vadd.f32 %v5273, %v5321
        %v5323 = vpop.f32.mrf.mxu0
        %v5324 = vadd.f32 %v5275, %v5323
        %5325 = vmatmul.bf16.gmra.mxu0 %v2892
        %v5326 = vpop.f32.mrf.mxu0
        %v5327 = vadd.f32 %v5278, %v5326
        %v5328 = vpop.f32.mrf.mxu0
        %v5329 = vadd.f32 %v5280, %v5328
        %5330 = vmatmul.bf16.gmra.mxu0 %v2900
        %v5331 = vpop.f32.mrf.mxu0
        %v5332 = vadd.f32 %v5283, %v5331
        %v5333 = vpop.f32.mrf.mxu0
        %v5334 = vadd.f32 %v5285, %v5333
        %5335 = vmatmul.bf16.gmra.mxu0 %v2908
        %v5336 = vpop.f32.mrf.mxu0
        %v5337 = vadd.f32 %v5288, %v5336
        %v5338 = vpop.f32.mrf.mxu0
        %v5339 = vadd.f32 %v5290, %v5338
        %5340 = vdwg.mxu0
        %5341 = vmatpush.bf16.msra.mxu0 %v4041
        %5342 = vmatpush.bf16.msra.mxu0 %v4037
        %5343 = vmatpush.bf16.msra.mxu0 %v4033
        %5344 = vmatpush.bf16.msra.mxu0 %v4029
        %5345 = vmatpush.bf16.msra.mxu0 %v4025
        %5346 = vmatpush.bf16.msra.mxu0 %v4021
        %5347 = vmatpush.bf16.msra.mxu0 %v4017
        %5348 = vmatpush.bf16.msra.mxu0 %v4013
        %5349 = vmatmul.bf16.gmra.mxu0 %v2853
        %v5350 = vpop.f32.mrf.mxu0
        %v5351 = vadd.f32 %v5302, %v5350
        %v5352 = vpop.f32.mrf.mxu0
        %v5353 = vadd.f32 %v5304, %v5352
        %5354 = vmatmul.bf16.gmra.mxu0 %v2861
        %v5355 = vpop.f32.mrf.mxu0
        %v5356 = vadd.f32 %v5307, %v5355
        %v5357 = vpop.f32.mrf.mxu0
        %v5358 = vadd.f32 %v5309, %v5357
        %5359 = vmatmul.bf16.gmra.mxu0 %v2869
        %v5360 = vpop.f32.mrf.mxu0
        %v5361 = vadd.f32 %v5312, %v5360
        %v5362 = vpop.f32.mrf.mxu0
        %v5363 = vadd.f32 %v5314, %v5362
        %5364 = vmatmul.bf16.gmra.mxu0 %v2877
        %v5365 = vpop.f32.mrf.mxu0
        %v5366 = vadd.f32 %v5317, %v5365
        %v5367 = vpop.f32.mrf.mxu0
        %v5368 = vadd.f32 %v5319, %v5367
        %5369 = vmatmul.bf16.gmra.mxu0 %v2885
        %v5370 = vpop.f32.mrf.mxu0
        %v5371 = vadd.f32 %v5322, %v5370
        %v5372 = vpop.f32.mrf.mxu0
        %v5373 = vadd.f32 %v5324, %v5372
        %5374 = vmatmul.bf16.gmra.mxu0 %v2893
        %v5375 = vpop.f32.mrf.mxu0
        %v5376 = vadd.f32 %v5327, %v5375
        %v5377 = vpop.f32.mrf.mxu0
        %v5378 = vadd.f32 %v5329, %v5377
        %5379 = vmatmul.bf16.gmra.mxu0 %v2901
        %v5380 = vpop.f32.mrf.mxu0
        %v5381 = vadd.f32 %v5332, %v5380
        %v5382 = vpop.f32.mrf.mxu0
        %v5383 = vadd.f32 %v5334, %v5382
        %5384 = vmatmul.bf16.gmra.mxu0 %v2909
        %v5385 = vpop.f32.mrf.mxu0
        %v5386 = vadd.f32 %v5337, %v5385
        %v5387 = vpop.f32.mrf.mxu0
        %v5388 = vadd.f32 %v5339, %v5387
        %5389 = vdwg.mxu0
        %5390 = vmatpush.bf16.msra.mxu0 %v4073
        %5391 = vmatpush.bf16.msra.mxu0 %v4069
        %5392 = vmatpush.bf16.msra.mxu0 %v4065
        %5393 = vmatpush.bf16.msra.mxu0 %v4061
        %5394 = vmatpush.bf16.msra.mxu0 %v4057
        %5395 = vmatpush.bf16.msra.mxu0 %v4053
        %5396 = vmatpush.bf16.msra.mxu0 %v4049
        %5397 = vmatpush.bf16.msra.mxu0 %v4045
        %5398 = vmatmul.bf16.gmra.mxu0 %v2854
        %v5399 = vpop.f32.mrf.mxu0
        %v5400 = vadd.f32 %v5351, %v5399
        %v5401 = vpop.f32.mrf.mxu0
        %v5402 = vadd.f32 %v5353, %v5401
        %5403 = vmatmul.bf16.gmra.mxu0 %v2862
        %v5404 = vpop.f32.mrf.mxu0
        %v5405 = vadd.f32 %v5356, %v5404
        %v5406 = vpop.f32.mrf.mxu0
        %v5407 = vadd.f32 %v5358, %v5406
        %5408 = vmatmul.bf16.gmra.mxu0 %v2870
        %v5409 = vpop.f32.mrf.mxu0
        %v5410 = vadd.f32 %v5361, %v5409
        %v5411 = vpop.f32.mrf.mxu0
        %v5412 = vadd.f32 %v5363, %v5411
        %5413 = vmatmul.bf16.gmra.mxu0 %v2878
        %v5414 = vpop.f32.mrf.mxu0
        %v5415 = vadd.f32 %v5366, %v5414
        %v5416 = vpop.f32.mrf.mxu0
        %v5417 = vadd.f32 %v5368, %v5416
        %5418 = vmatmul.bf16.gmra.mxu0 %v2886
        %v5419 = vpop.f32.mrf.mxu0
        %v5420 = vadd.f32 %v5371, %v5419
        %v5421 = vpop.f32.mrf.mxu0
        %v5422 = vadd.f32 %v5373, %v5421
        %5423 = vmatmul.bf16.gmra.mxu0 %v2894
        %v5424 = vpop.f32.mrf.mxu0
        %v5425 = vadd.f32 %v5376, %v5424
        %v5426 = vpop.f32.mrf.mxu0
        %v5427 = vadd.f32 %v5378, %v5426
        %5428 = vmatmul.bf16.gmra.mxu0 %v2902
        %v5429 = vpop.f32.mrf.mxu0
        %v5430 = vadd.f32 %v5381, %v5429
        %v5431 = vpop.f32.mrf.mxu0
        %v5432 = vadd.f32 %v5383, %v5431
        %5433 = vmatmul.bf16.gmra.mxu0 %v2910
        %v5434 = vpop.f32.mrf.mxu0
        %v5435 = vadd.f32 %v5386, %v5434
        %v5436 = vpop.f32.mrf.mxu0
        %v5437 = vadd.f32 %v5388, %v5436
        %5438 = vdwg.mxu0
        %5439 = vmatpush.bf16.msra.mxu0 %v4105
        %5440 = vmatpush.bf16.msra.mxu0 %v4101
        %5441 = vmatpush.bf16.msra.mxu0 %v4097
        %5442 = vmatpush.bf16.msra.mxu0 %v4093
        %5443 = vmatpush.bf16.msra.mxu0 %v4089
        %5444 = vmatpush.bf16.msra.mxu0 %v4085
        %5445 = vmatpush.bf16.msra.mxu0 %v4081
        %5446 = vmatpush.bf16.msra.mxu0 %v4077
        %5447 = vmatmul.bf16.gmra.mxu0 %v2855
        %v5448 = vpop.f32.mrf.mxu0
        %v5449 = vadd.f32 %v5400, %v5448
        %v5450 = vpop.f32.mrf.mxu0
        %v5451 = vadd.f32 %v5402, %v5450
        %5452 = vmatmul.bf16.gmra.mxu0 %v2863
        %v5453 = vpop.f32.mrf.mxu0
        %v5454 = vadd.f32 %v5405, %v5453
        %v5455 = vpop.f32.mrf.mxu0
        %v5456 = vadd.f32 %v5407, %v5455
        %5457 = vmatmul.bf16.gmra.mxu0 %v2871
        %v5458 = vpop.f32.mrf.mxu0
        %v5459 = vadd.f32 %v5410, %v5458
        %v5460 = vpop.f32.mrf.mxu0
        %v5461 = vadd.f32 %v5412, %v5460
        %5462 = vmatmul.bf16.gmra.mxu0 %v2879
        %v5463 = vpop.f32.mrf.mxu0
        %v5464 = vadd.f32 %v5415, %v5463
        %v5465 = vpop.f32.mrf.mxu0
        %v5466 = vadd.f32 %v5417, %v5465
        %5467 = vmatmul.bf16.gmra.mxu0 %v2887
        %v5468 = vpop.f32.mrf.mxu0
        %v5469 = vadd.f32 %v5420, %v5468
        %v5470 = vpop.f32.mrf.mxu0
        %v5471 = vadd.f32 %v5422, %v5470
        %5472 = vmatmul.bf16.gmra.mxu0 %v2895
        %v5473 = vpop.f32.mrf.mxu0
        %v5474 = vadd.f32 %v5425, %v5473
        %v5475 = vpop.f32.mrf.mxu0
        %v5476 = vadd.f32 %v5427, %v5475
        %5477 = vmatmul.bf16.gmra.mxu0 %v2903
        %v5478 = vpop.f32.mrf.mxu0
        %v5479 = vadd.f32 %v5430, %v5478
        %v5480 = vpop.f32.mrf.mxu0
        %v5481 = vadd.f32 %v5432, %v5480
        %5482 = vmatmul.bf16.gmra.mxu0 %v2911
        %v5483 = vpop.f32.mrf.mxu0
        %v5484 = vadd.f32 %v5435, %v5483
        %v5485 = vpop.f32.mrf.mxu0
        %v5486 = vadd.f32 %v5437, %v5485
        %5487 = vdwg.mxu0
        %5488 = vmatpush.bf16.msra.mxu0 %v4137
        %5489 = vmatpush.bf16.msra.mxu0 %v4133
        %5490 = vmatpush.bf16.msra.mxu0 %v4129
        %5491 = vmatpush.bf16.msra.mxu0 %v4125
        %5492 = vmatpush.bf16.msra.mxu0 %v4121
        %5493 = vmatpush.bf16.msra.mxu0 %v4117
        %5494 = vmatpush.bf16.msra.mxu0 %v4113
        %5495 = vmatpush.bf16.msra.mxu0 %v4109
        %5496 = vmatmul.bf16.gmra.mxu0 %v2856
        %v5497 = vpop.f32.mrf.mxu0
        %v5498 = vadd.f32 %v5449, %v5497
        %v5499 = vpop.f32.mrf.mxu0
        %v5500 = vadd.f32 %v5451, %v5499
        %5501 = vmatmul.bf16.gmra.mxu0 %v2864
        %v5502 = vpop.f32.mrf.mxu0
        %v5503 = vadd.f32 %v5454, %v5502
        %v5504 = vpop.f32.mrf.mxu0
        %v5505 = vadd.f32 %v5456, %v5504
        %5506 = vmatmul.bf16.gmra.mxu0 %v2872
        %v5507 = vpop.f32.mrf.mxu0
        %v5508 = vadd.f32 %v5459, %v5507
        %v5509 = vpop.f32.mrf.mxu0
        %v5510 = vadd.f32 %v5461, %v5509
        %5511 = vmatmul.bf16.gmra.mxu0 %v2880
        %v5512 = vpop.f32.mrf.mxu0
        %v5513 = vadd.f32 %v5464, %v5512
        %v5514 = vpop.f32.mrf.mxu0
        %v5515 = vadd.f32 %v5466, %v5514
        %5516 = vmatmul.bf16.gmra.mxu0 %v2888
        %v5517 = vpop.f32.mrf.mxu0
        %v5518 = vadd.f32 %v5469, %v5517
        %v5519 = vpop.f32.mrf.mxu0
        %v5520 = vadd.f32 %v5471, %v5519
        %5521 = vmatmul.bf16.gmra.mxu0 %v2896
        %v5522 = vpop.f32.mrf.mxu0
        %v5523 = vadd.f32 %v5474, %v5522
        %v5524 = vpop.f32.mrf.mxu0
        %v5525 = vadd.f32 %v5476, %v5524
        %5526 = vmatmul.bf16.gmra.mxu0 %v2904
        %v5527 = vpop.f32.mrf.mxu0
        %v5528 = vadd.f32 %v5479, %v5527
        %v5529 = vpop.f32.mrf.mxu0
        %v5530 = vadd.f32 %v5481, %v5529
        %5531 = vmatmul.bf16.gmra.mxu0 %v2912
        %v5532 = vpop.f32.mrf.mxu0
        %v5533 = vadd.f32 %v5484, %v5532
        %v5534 = vpop.f32.mrf.mxu0
        %v5535 = vadd.f32 %v5486, %v5534
        %5536 = vdwg.mxu0
        %5537 = vmatpush.bf16.msra.mxu0 %v4169
        %5538 = vmatpush.bf16.msra.mxu0 %v4165
        %5539 = vmatpush.bf16.msra.mxu0 %v4161
        %5540 = vmatpush.bf16.msra.mxu0 %v4157
        %5541 = vmatpush.bf16.msra.mxu0 %v4153
        %5542 = vmatpush.bf16.msra.mxu0 %v4149
        %5543 = vmatpush.bf16.msra.mxu0 %v4145
        %5544 = vmatpush.bf16.msra.mxu0 %v4141
        %5545 = vmatmul.bf16.gmra.mxu0 %v2857
        %v5546 = vpop.f32.mrf.mxu0
        %v5547 = vadd.f32 %v5498, %v5546
        %v5548 = vpop.f32.mrf.mxu0
        %v5549 = vadd.f32 %v5500, %v5548
        %5550 = vmatmul.bf16.gmra.mxu0 %v2865
        %v5551 = vpop.f32.mrf.mxu0
        %v5552 = vadd.f32 %v5503, %v5551
        %v5553 = vpop.f32.mrf.mxu0
        %v5554 = vadd.f32 %v5505, %v5553
        %5555 = vmatmul.bf16.gmra.mxu0 %v2873
        %v5556 = vpop.f32.mrf.mxu0
        %v5557 = vadd.f32 %v5508, %v5556
        %v5558 = vpop.f32.mrf.mxu0
        %v5559 = vadd.f32 %v5510, %v5558
        %5560 = vmatmul.bf16.gmra.mxu0 %v2881
        %v5561 = vpop.f32.mrf.mxu0
        %v5562 = vadd.f32 %v5513, %v5561
        %v5563 = vpop.f32.mrf.mxu0
        %v5564 = vadd.f32 %v5515, %v5563
        %5565 = vmatmul.bf16.gmra.mxu0 %v2889
        %v5566 = vpop.f32.mrf.mxu0
        %v5567 = vadd.f32 %v5518, %v5566
        %v5568 = vpop.f32.mrf.mxu0
        %v5569 = vadd.f32 %v5520, %v5568
        %5570 = vmatmul.bf16.gmra.mxu0 %v2897
        %v5571 = vpop.f32.mrf.mxu0
        %v5572 = vadd.f32 %v5523, %v5571
        %v5573 = vpop.f32.mrf.mxu0
        %v5574 = vadd.f32 %v5525, %v5573
        %5575 = vmatmul.bf16.gmra.mxu0 %v2905
        %v5576 = vpop.f32.mrf.mxu0
        %v5577 = vadd.f32 %v5528, %v5576
        %v5578 = vpop.f32.mrf.mxu0
        %v5579 = vadd.f32 %v5530, %v5578
        %5580 = vmatmul.bf16.gmra.mxu0 %v2913
        %v5581 = vpop.f32.mrf.mxu0
        %v5582 = vadd.f32 %v5533, %v5581
        %v5583 = vpop.f32.mrf.mxu0
        %v5584 = vadd.f32 %v5535, %v5583
        %5585 = vdwg.mxu0
        %5586 = vmatpush.bf16.msra.mxu0 %v4201
        %5587 = vmatpush.bf16.msra.mxu0 %v4197
        %5588 = vmatpush.bf16.msra.mxu0 %v4193
        %5589 = vmatpush.bf16.msra.mxu0 %v4189
        %5590 = vmatpush.bf16.msra.mxu0 %v4185
        %5591 = vmatpush.bf16.msra.mxu0 %v4181
        %5592 = vmatpush.bf16.msra.mxu0 %v4177
        %5593 = vmatpush.bf16.msra.mxu0 %v4173
        %5594 = vmatmul.bf16.gmra.mxu0 %v2858
        %v5595 = vpop.f32.mrf.mxu0
        %v5596 = vadd.f32 %v5547, %v5595
        %v5597 = vpop.f32.mrf.mxu0
        %v5598 = vadd.f32 %v5549, %v5597
        %5599 = vmatmul.bf16.gmra.mxu0 %v2866
        %v5600 = vpop.f32.mrf.mxu0
        %v5601 = vadd.f32 %v5552, %v5600
        %v5602 = vpop.f32.mrf.mxu0
        %v5603 = vadd.f32 %v5554, %v5602
        %5604 = vmatmul.bf16.gmra.mxu0 %v2874
        %v5605 = vpop.f32.mrf.mxu0
        %v5606 = vadd.f32 %v5557, %v5605
        %v5607 = vpop.f32.mrf.mxu0
        %v5608 = vadd.f32 %v5559, %v5607
        %5609 = vmatmul.bf16.gmra.mxu0 %v2882
        %v5610 = vpop.f32.mrf.mxu0
        %v5611 = vadd.f32 %v5562, %v5610
        %v5612 = vpop.f32.mrf.mxu0
        %v5613 = vadd.f32 %v5564, %v5612
        %5614 = vmatmul.bf16.gmra.mxu0 %v2890
        %v5615 = vpop.f32.mrf.mxu0
        %v5616 = vadd.f32 %v5567, %v5615
        %v5617 = vpop.f32.mrf.mxu0
        %v5618 = vadd.f32 %v5569, %v5617
        %5619 = vmatmul.bf16.gmra.mxu0 %v2898
        %v5620 = vpop.f32.mrf.mxu0
        %v5621 = vadd.f32 %v5572, %v5620
        %v5622 = vpop.f32.mrf.mxu0
        %v5623 = vadd.f32 %v5574, %v5622
        %5624 = vmatmul.bf16.gmra.mxu0 %v2906
        %v5625 = vpop.f32.mrf.mxu0
        %v5626 = vadd.f32 %v5577, %v5625
        %v5627 = vpop.f32.mrf.mxu0
        %v5628 = vadd.f32 %v5579, %v5627
        %5629 = vmatmul.bf16.gmra.mxu0 %v2914
        %v5630 = vpop.f32.mrf.mxu0
        %v5631 = vadd.f32 %v5582, %v5630
        %v5632 = vpop.f32.mrf.mxu0
        %v5633 = vadd.f32 %v5584, %v5632
        %5634 = vdwg.mxu0
        %5635 = vmatpush.bf16.msra.mxu0 %v3978
        %5636 = vmatpush.bf16.msra.mxu0 %v3974
        %5637 = vmatpush.bf16.msra.mxu0 %v3970
        %5638 = vmatpush.bf16.msra.mxu0 %v3966
        %5639 = vmatpush.bf16.msra.mxu0 %v3962
        %5640 = vmatpush.bf16.msra.mxu0 %v3958
        %5641 = vmatpush.bf16.msra.mxu0 %v3954
        %5642 = vmatpush.bf16.msra.mxu0 %v3950
        %5643 = vmatmul.bf16.gmra.mxu0 %v2851
        %v5644 = vpop.f32.mrf.mxu0
        %v5645 = vadd.f32 0.0, %v5644
        %v5646 = vpop.f32.mrf.mxu0
        %v5647 = vadd.f32 0.0, %v5646
        %5648 = vmatmul.bf16.gmra.mxu0 %v2859
        %v5649 = vpop.f32.mrf.mxu0
        %v5650 = vadd.f32 0.0, %v5649
        %v5651 = vpop.f32.mrf.mxu0
        %v5652 = vadd.f32 0.0, %v5651
        %5653 = vmatmul.bf16.gmra.mxu0 %v2867
        %v5654 = vpop.f32.mrf.mxu0
        %v5655 = vadd.f32 0.0, %v5654
        %v5656 = vpop.f32.mrf.mxu0
        %v5657 = vadd.f32 0.0, %v5656
        %5658 = vmatmul.bf16.gmra.mxu0 %v2875
        %v5659 = vpop.f32.mrf.mxu0
        %v5660 = vadd.f32 0.0, %v5659
        %v5661 = vpop.f32.mrf.mxu0
        %v5662 = vadd.f32 0.0, %v5661
        %5663 = vmatmul.bf16.gmra.mxu0 %v2883
        %v5664 = vpop.f32.mrf.mxu0
        %v5665 = vadd.f32 0.0, %v5664
        %v5666 = vpop.f32.mrf.mxu0
        %v5667 = vadd.f32 0.0, %v5666
        %5668 = vmatmul.bf16.gmra.mxu0 %v2891
        %v5669 = vpop.f32.mrf.mxu0
        %v5670 = vadd.f32 0.0, %v5669
        %v5671 = vpop.f32.mrf.mxu0
        %v5672 = vadd.f32 0.0, %v5671
        %5673 = vmatmul.bf16.gmra.mxu0 %v2899
        %v5674 = vpop.f32.mrf.mxu0
        %v5675 = vadd.f32 0.0, %v5674
        %v5676 = vpop.f32.mrf.mxu0
        %v5677 = vadd.f32 0.0, %v5676
        %5678 = vmatmul.bf16.gmra.mxu0 %v2907
        %v5679 = vpop.f32.mrf.mxu0
        %v5680 = vadd.f32 0.0, %v5679
        %v5681 = vpop.f32.mrf.mxu0
        %v5682 = vadd.f32 0.0, %v5681
        %5683 = vdwg.mxu0
        %5684 = vmatpush.bf16.msra.mxu0 %v4010
        %5685 = vmatpush.bf16.msra.mxu0 %v4006
        %5686 = vmatpush.bf16.msra.mxu0 %v4002
        %5687 = vmatpush.bf16.msra.mxu0 %v3998
        %5688 = vmatpush.bf16.msra.mxu0 %v3994
        %5689 = vmatpush.bf16.msra.mxu0 %v3990
        %5690 = vmatpush.bf16.msra.mxu0 %v3986
        %5691 = vmatpush.bf16.msra.mxu0 %v3982
        %5692 = vmatmul.bf16.gmra.mxu0 %v2852
        %v5693 = vpop.f32.mrf.mxu0
        %v5694 = vadd.f32 %v5645, %v5693
        %v5695 = vpop.f32.mrf.mxu0
        %v5696 = vadd.f32 %v5647, %v5695
        %5697 = vmatmul.bf16.gmra.mxu0 %v2860
        %v5698 = vpop.f32.mrf.mxu0
        %v5699 = vadd.f32 %v5650, %v5698
        %v5700 = vpop.f32.mrf.mxu0
        %v5701 = vadd.f32 %v5652, %v5700
        %5702 = vmatmul.bf16.gmra.mxu0 %v2868
        %v5703 = vpop.f32.mrf.mxu0
        %v5704 = vadd.f32 %v5655, %v5703
        %v5705 = vpop.f32.mrf.mxu0
        %v5706 = vadd.f32 %v5657, %v5705
        %5707 = vmatmul.bf16.gmra.mxu0 %v2876
        %v5708 = vpop.f32.mrf.mxu0
        %v5709 = vadd.f32 %v5660, %v5708
        %v5710 = vpop.f32.mrf.mxu0
        %v5711 = vadd.f32 %v5662, %v5710
        %5712 = vmatmul.bf16.gmra.mxu0 %v2884
        %v5713 = vpop.f32.mrf.mxu0
        %v5714 = vadd.f32 %v5665, %v5713
        %v5715 = vpop.f32.mrf.mxu0
        %v5716 = vadd.f32 %v5667, %v5715
        %5717 = vmatmul.bf16.gmra.mxu0 %v2892
        %v5718 = vpop.f32.mrf.mxu0
        %v5719 = vadd.f32 %v5670, %v5718
        %v5720 = vpop.f32.mrf.mxu0
        %v5721 = vadd.f32 %v5672, %v5720
        %5722 = vmatmul.bf16.gmra.mxu0 %v2900
        %v5723 = vpop.f32.mrf.mxu0
        %v5724 = vadd.f32 %v5675, %v5723
        %v5725 = vpop.f32.mrf.mxu0
        %v5726 = vadd.f32 %v5677, %v5725
        %5727 = vmatmul.bf16.gmra.mxu0 %v2908
        %v5728 = vpop.f32.mrf.mxu0
        %v5729 = vadd.f32 %v5680, %v5728
        %v5730 = vpop.f32.mrf.mxu0
        %v5731 = vadd.f32 %v5682, %v5730
        %5732 = vdwg.mxu0
        %5733 = vmatpush.bf16.msra.mxu0 %v4042
        %5734 = vmatpush.bf16.msra.mxu0 %v4038
        %5735 = vmatpush.bf16.msra.mxu0 %v4034
        %5736 = vmatpush.bf16.msra.mxu0 %v4030
        %5737 = vmatpush.bf16.msra.mxu0 %v4026
        %5738 = vmatpush.bf16.msra.mxu0 %v4022
        %5739 = vmatpush.bf16.msra.mxu0 %v4018
        %5740 = vmatpush.bf16.msra.mxu0 %v4014
        %5741 = vmatmul.bf16.gmra.mxu0 %v2853
        %v5742 = vpop.f32.mrf.mxu0
        %v5743 = vadd.f32 %v5694, %v5742
        %v5744 = vpop.f32.mrf.mxu0
        %v5745 = vadd.f32 %v5696, %v5744
        %5746 = vmatmul.bf16.gmra.mxu0 %v2861
        %v5747 = vpop.f32.mrf.mxu0
        %v5748 = vadd.f32 %v5699, %v5747
        %v5749 = vpop.f32.mrf.mxu0
        %v5750 = vadd.f32 %v5701, %v5749
        %5751 = vmatmul.bf16.gmra.mxu0 %v2869
        %v5752 = vpop.f32.mrf.mxu0
        %v5753 = vadd.f32 %v5704, %v5752
        %v5754 = vpop.f32.mrf.mxu0
        %v5755 = vadd.f32 %v5706, %v5754
        %5756 = vmatmul.bf16.gmra.mxu0 %v2877
        %v5757 = vpop.f32.mrf.mxu0
        %v5758 = vadd.f32 %v5709, %v5757
        %v5759 = vpop.f32.mrf.mxu0
        %v5760 = vadd.f32 %v5711, %v5759
        %5761 = vmatmul.bf16.gmra.mxu0 %v2885
        %v5762 = vpop.f32.mrf.mxu0
        %v5763 = vadd.f32 %v5714, %v5762
        %v5764 = vpop.f32.mrf.mxu0
        %v5765 = vadd.f32 %v5716, %v5764
        %5766 = vmatmul.bf16.gmra.mxu0 %v2893
        %v5767 = vpop.f32.mrf.mxu0
        %v5768 = vadd.f32 %v5719, %v5767
        %v5769 = vpop.f32.mrf.mxu0
        %v5770 = vadd.f32 %v5721, %v5769
        %5771 = vmatmul.bf16.gmra.mxu0 %v2901
        %v5772 = vpop.f32.mrf.mxu0
        %v5773 = vadd.f32 %v5724, %v5772
        %v5774 = vpop.f32.mrf.mxu0
        %v5775 = vadd.f32 %v5726, %v5774
        %5776 = vmatmul.bf16.gmra.mxu0 %v2909
        %v5777 = vpop.f32.mrf.mxu0
        %v5778 = vadd.f32 %v5729, %v5777
        %v5779 = vpop.f32.mrf.mxu0
        %v5780 = vadd.f32 %v5731, %v5779
        %5781 = vdwg.mxu0
        %5782 = vmatpush.bf16.msra.mxu0 %v4074
        %5783 = vmatpush.bf16.msra.mxu0 %v4070
        %5784 = vmatpush.bf16.msra.mxu0 %v4066
        %5785 = vmatpush.bf16.msra.mxu0 %v4062
        %5786 = vmatpush.bf16.msra.mxu0 %v4058
        %5787 = vmatpush.bf16.msra.mxu0 %v4054
        %5788 = vmatpush.bf16.msra.mxu0 %v4050
        %5789 = vmatpush.bf16.msra.mxu0 %v4046
        %5790 = vmatmul.bf16.gmra.mxu0 %v2854
        %v5791 = vpop.f32.mrf.mxu0
        %v5792 = vadd.f32 %v5743, %v5791
        %v5793 = vpop.f32.mrf.mxu0
        %v5794 = vadd.f32 %v5745, %v5793
        %5795 = vmatmul.bf16.gmra.mxu0 %v2862
        %v5796 = vpop.f32.mrf.mxu0
        %v5797 = vadd.f32 %v5748, %v5796
        %v5798 = vpop.f32.mrf.mxu0
        %v5799 = vadd.f32 %v5750, %v5798
        %5800 = vmatmul.bf16.gmra.mxu0 %v2870
        %v5801 = vpop.f32.mrf.mxu0
        %v5802 = vadd.f32 %v5753, %v5801
        %v5803 = vpop.f32.mrf.mxu0
        %v5804 = vadd.f32 %v5755, %v5803
        %5805 = vmatmul.bf16.gmra.mxu0 %v2878
        %v5806 = vpop.f32.mrf.mxu0
        %v5807 = vadd.f32 %v5758, %v5806
        %v5808 = vpop.f32.mrf.mxu0
        %v5809 = vadd.f32 %v5760, %v5808
        %5810 = vmatmul.bf16.gmra.mxu0 %v2886
        %v5811 = vpop.f32.mrf.mxu0
        %v5812 = vadd.f32 %v5763, %v5811
        %v5813 = vpop.f32.mrf.mxu0
        %v5814 = vadd.f32 %v5765, %v5813
        %5815 = vmatmul.bf16.gmra.mxu0 %v2894
        %v5816 = vpop.f32.mrf.mxu0
        %v5817 = vadd.f32 %v5768, %v5816
        %v5818 = vpop.f32.mrf.mxu0
        %v5819 = vadd.f32 %v5770, %v5818
        %5820 = vmatmul.bf16.gmra.mxu0 %v2902
        %v5821 = vpop.f32.mrf.mxu0
        %v5822 = vadd.f32 %v5773, %v5821
        %v5823 = vpop.f32.mrf.mxu0
        %v5824 = vadd.f32 %v5775, %v5823
        %5825 = vmatmul.bf16.gmra.mxu0 %v2910
        %v5826 = vpop.f32.mrf.mxu0
        %v5827 = vadd.f32 %v5778, %v5826
        %v5828 = vpop.f32.mrf.mxu0
        %v5829 = vadd.f32 %v5780, %v5828
        %5830 = vdwg.mxu0
        %5831 = vmatpush.bf16.msra.mxu0 %v4106
        %5832 = vmatpush.bf16.msra.mxu0 %v4102
        %5833 = vmatpush.bf16.msra.mxu0 %v4098
        %5834 = vmatpush.bf16.msra.mxu0 %v4094
        %5835 = vmatpush.bf16.msra.mxu0 %v4090
        %5836 = vmatpush.bf16.msra.mxu0 %v4086
        %5837 = vmatpush.bf16.msra.mxu0 %v4082
        %5838 = vmatpush.bf16.msra.mxu0 %v4078
        %5839 = vmatmul.bf16.gmra.mxu0 %v2855
        %v5840 = vpop.f32.mrf.mxu0
        %v5841 = vadd.f32 %v5792, %v5840
        %v5842 = vpop.f32.mrf.mxu0
        %v5843 = vadd.f32 %v5794, %v5842
        %5844 = vmatmul.bf16.gmra.mxu0 %v2863
        %v5845 = vpop.f32.mrf.mxu0
        %v5846 = vadd.f32 %v5797, %v5845
        %v5847 = vpop.f32.mrf.mxu0
        %v5848 = vadd.f32 %v5799, %v5847
        %5849 = vmatmul.bf16.gmra.mxu0 %v2871
        %v5850 = vpop.f32.mrf.mxu0
        %v5851 = vadd.f32 %v5802, %v5850
        %v5852 = vpop.f32.mrf.mxu0
        %v5853 = vadd.f32 %v5804, %v5852
        %5854 = vmatmul.bf16.gmra.mxu0 %v2879
        %v5855 = vpop.f32.mrf.mxu0
        %v5856 = vadd.f32 %v5807, %v5855
        %v5857 = vpop.f32.mrf.mxu0
        %v5858 = vadd.f32 %v5809, %v5857
        %5859 = vmatmul.bf16.gmra.mxu0 %v2887
        %v5860 = vpop.f32.mrf.mxu0
        %v5861 = vadd.f32 %v5812, %v5860
        %v5862 = vpop.f32.mrf.mxu0
        %v5863 = vadd.f32 %v5814, %v5862
        %5864 = vmatmul.bf16.gmra.mxu0 %v2895
        %v5865 = vpop.f32.mrf.mxu0
        %v5866 = vadd.f32 %v5817, %v5865
        %v5867 = vpop.f32.mrf.mxu0
        %v5868 = vadd.f32 %v5819, %v5867
        %5869 = vmatmul.bf16.gmra.mxu0 %v2903
        %v5870 = vpop.f32.mrf.mxu0
        %v5871 = vadd.f32 %v5822, %v5870
        %v5872 = vpop.f32.mrf.mxu0
        %v5873 = vadd.f32 %v5824, %v5872
        %5874 = vmatmul.bf16.gmra.mxu0 %v2911
        %v5875 = vpop.f32.mrf.mxu0
        %v5876 = vadd.f32 %v5827, %v5875
        %v5877 = vpop.f32.mrf.mxu0
        %v5878 = vadd.f32 %v5829, %v5877
        %5879 = vdwg.mxu0
        %5880 = vmatpush.bf16.msra.mxu0 %v4138
        %5881 = vmatpush.bf16.msra.mxu0 %v4134
        %5882 = vmatpush.bf16.msra.mxu0 %v4130
        %5883 = vmatpush.bf16.msra.mxu0 %v4126
        %5884 = vmatpush.bf16.msra.mxu0 %v4122
        %5885 = vmatpush.bf16.msra.mxu0 %v4118
        %5886 = vmatpush.bf16.msra.mxu0 %v4114
        %5887 = vmatpush.bf16.msra.mxu0 %v4110
        %5888 = vmatmul.bf16.gmra.mxu0 %v2856
        %v5889 = vpop.f32.mrf.mxu0
        %v5890 = vadd.f32 %v5841, %v5889
        %v5891 = vpop.f32.mrf.mxu0
        %v5892 = vadd.f32 %v5843, %v5891
        %5893 = vmatmul.bf16.gmra.mxu0 %v2864
        %v5894 = vpop.f32.mrf.mxu0
        %v5895 = vadd.f32 %v5846, %v5894
        %v5896 = vpop.f32.mrf.mxu0
        %v5897 = vadd.f32 %v5848, %v5896
        %5898 = vmatmul.bf16.gmra.mxu0 %v2872
        %v5899 = vpop.f32.mrf.mxu0
        %v5900 = vadd.f32 %v5851, %v5899
        %v5901 = vpop.f32.mrf.mxu0
        %v5902 = vadd.f32 %v5853, %v5901
        %5903 = vmatmul.bf16.gmra.mxu0 %v2880
        %v5904 = vpop.f32.mrf.mxu0
        %v5905 = vadd.f32 %v5856, %v5904
        %v5906 = vpop.f32.mrf.mxu0
        %v5907 = vadd.f32 %v5858, %v5906
        %5908 = vmatmul.bf16.gmra.mxu0 %v2888
        %v5909 = vpop.f32.mrf.mxu0
        %v5910 = vadd.f32 %v5861, %v5909
        %v5911 = vpop.f32.mrf.mxu0
        %v5912 = vadd.f32 %v5863, %v5911
        %5913 = vmatmul.bf16.gmra.mxu0 %v2896
        %v5914 = vpop.f32.mrf.mxu0
        %v5915 = vadd.f32 %v5866, %v5914
        %v5916 = vpop.f32.mrf.mxu0
        %v5917 = vadd.f32 %v5868, %v5916
        %5918 = vmatmul.bf16.gmra.mxu0 %v2904
        %v5919 = vpop.f32.mrf.mxu0
        %v5920 = vadd.f32 %v5871, %v5919
        %v5921 = vpop.f32.mrf.mxu0
        %v5922 = vadd.f32 %v5873, %v5921
        %5923 = vmatmul.bf16.gmra.mxu0 %v2912
        %v5924 = vpop.f32.mrf.mxu0
        %v5925 = vadd.f32 %v5876, %v5924
        %v5926 = vpop.f32.mrf.mxu0
        %v5927 = vadd.f32 %v5878, %v5926
        %5928 = vdwg.mxu0
        %5929 = vmatpush.bf16.msra.mxu0 %v4170
        %5930 = vmatpush.bf16.msra.mxu0 %v4166
        %5931 = vmatpush.bf16.msra.mxu0 %v4162
        %5932 = vmatpush.bf16.msra.mxu0 %v4158
        %5933 = vmatpush.bf16.msra.mxu0 %v4154
        %5934 = vmatpush.bf16.msra.mxu0 %v4150
        %5935 = vmatpush.bf16.msra.mxu0 %v4146
        %5936 = vmatpush.bf16.msra.mxu0 %v4142
        %5937 = vmatmul.bf16.gmra.mxu0 %v2857
        %v5938 = vpop.f32.mrf.mxu0
        %v5939 = vadd.f32 %v5890, %v5938
        %v5940 = vpop.f32.mrf.mxu0
        %v5941 = vadd.f32 %v5892, %v5940
        %5942 = vmatmul.bf16.gmra.mxu0 %v2865
        %v5943 = vpop.f32.mrf.mxu0
        %v5944 = vadd.f32 %v5895, %v5943
        %v5945 = vpop.f32.mrf.mxu0
        %v5946 = vadd.f32 %v5897, %v5945
        %5947 = vmatmul.bf16.gmra.mxu0 %v2873
        %v5948 = vpop.f32.mrf.mxu0
        %v5949 = vadd.f32 %v5900, %v5948
        %v5950 = vpop.f32.mrf.mxu0
        %v5951 = vadd.f32 %v5902, %v5950
        %5952 = vmatmul.bf16.gmra.mxu0 %v2881
        %v5953 = vpop.f32.mrf.mxu0
        %v5954 = vadd.f32 %v5905, %v5953
        %v5955 = vpop.f32.mrf.mxu0
        %v5956 = vadd.f32 %v5907, %v5955
        %5957 = vmatmul.bf16.gmra.mxu0 %v2889
        %v5958 = vpop.f32.mrf.mxu0
        %v5959 = vadd.f32 %v5910, %v5958
        %v5960 = vpop.f32.mrf.mxu0
        %v5961 = vadd.f32 %v5912, %v5960
        %5962 = vmatmul.bf16.gmra.mxu0 %v2897
        %v5963 = vpop.f32.mrf.mxu0
        %v5964 = vadd.f32 %v5915, %v5963
        %v5965 = vpop.f32.mrf.mxu0
        %v5966 = vadd.f32 %v5917, %v5965
        %5967 = vmatmul.bf16.gmra.mxu0 %v2905
        %v5968 = vpop.f32.mrf.mxu0
        %v5969 = vadd.f32 %v5920, %v5968
        %v5970 = vpop.f32.mrf.mxu0
        %v5971 = vadd.f32 %v5922, %v5970
        %5972 = vmatmul.bf16.gmra.mxu0 %v2913
        %v5973 = vpop.f32.mrf.mxu0
        %v5974 = vadd.f32 %v5925, %v5973
        %v5975 = vpop.f32.mrf.mxu0
        %v5976 = vadd.f32 %v5927, %v5975
        %5977 = vdwg.mxu0
        %5978 = vmatpush.bf16.msra.mxu0 %v4202
        %5979 = vmatpush.bf16.msra.mxu0 %v4198
        %5980 = vmatpush.bf16.msra.mxu0 %v4194
        %5981 = vmatpush.bf16.msra.mxu0 %v4190
        %5982 = vmatpush.bf16.msra.mxu0 %v4186
        %5983 = vmatpush.bf16.msra.mxu0 %v4182
        %5984 = vmatpush.bf16.msra.mxu0 %v4178
        %5985 = vmatpush.bf16.msra.mxu0 %v4174
        %5986 = vmatmul.bf16.gmra.mxu0 %v2858
        %v5987 = vpop.f32.mrf.mxu0
        %v5988 = vadd.f32 %v5939, %v5987
        %v5989 = vpop.f32.mrf.mxu0
        %v5990 = vadd.f32 %v5941, %v5989
        %5991 = vmatmul.bf16.gmra.mxu0 %v2866
        %v5992 = vpop.f32.mrf.mxu0
        %v5993 = vadd.f32 %v5944, %v5992
        %v5994 = vpop.f32.mrf.mxu0
        %v5995 = vadd.f32 %v5946, %v5994
        %5996 = vmatmul.bf16.gmra.mxu0 %v2874
        %v5997 = vpop.f32.mrf.mxu0
        %v5998 = vadd.f32 %v5949, %v5997
        %v5999 = vpop.f32.mrf.mxu0
        %v6000 = vadd.f32 %v5951, %v5999
        %6001 = vmatmul.bf16.gmra.mxu0 %v2882
        %v6002 = vpop.f32.mrf.mxu0
        %v6003 = vadd.f32 %v5954, %v6002
        %v6004 = vpop.f32.mrf.mxu0
        %v6005 = vadd.f32 %v5956, %v6004
        %6006 = vmatmul.bf16.gmra.mxu0 %v2890
        %v6007 = vpop.f32.mrf.mxu0
        %v6008 = vadd.f32 %v5959, %v6007
        %v6009 = vpop.f32.mrf.mxu0
        %v6010 = vadd.f32 %v5961, %v6009
        %6011 = vmatmul.bf16.gmra.mxu0 %v2898
        %v6012 = vpop.f32.mrf.mxu0
        %v6013 = vadd.f32 %v5964, %v6012
        %v6014 = vpop.f32.mrf.mxu0
        %v6015 = vadd.f32 %v5966, %v6014
        %6016 = vmatmul.bf16.gmra.mxu0 %v2906
        %v6017 = vpop.f32.mrf.mxu0
        %v6018 = vadd.f32 %v5969, %v6017
        %v6019 = vpop.f32.mrf.mxu0
        %v6020 = vadd.f32 %v5971, %v6019
        %6021 = vmatmul.bf16.gmra.mxu0 %v2914
        %v6022 = vpop.f32.mrf.mxu0
        %v6023 = vadd.f32 %v5974, %v6022
        %v6024 = vpop.f32.mrf.mxu0
        %v6025 = vadd.f32 %v5976, %v6024
        %6026 = vdwg.mxu0
        %v6035 = vunpack.c.l.b16 %v2915
        %v6036 = vunpack.c.h.b16 %v2915
        %v6037 = vunpack.c.l.b16 %v2916
        %v6038 = vunpack.c.h.b16 %v2916
        %v6039 = vunpack.c.l.b16 %v2917
        %v6040 = vunpack.c.h.b16 %v2917
        %v6041 = vunpack.c.l.b16 %v2918
        %v6042 = vunpack.c.h.b16 %v2918
        %v6043 = vunpack.c.l.b16 %v2919
        %v6044 = vunpack.c.h.b16 %v2919
        %v6045 = vunpack.c.l.b16 %v2920
        %v6046 = vunpack.c.h.b16 %v2920
        %v6047 = vunpack.c.l.b16 %v2921
        %v6048 = vunpack.c.h.b16 %v2921
        %v6049 = vunpack.c.l.b16 %v2922
        %v6050 = vunpack.c.h.b16 %v2922
        %v6051 = vpack.c.b16 %v6039, %v6035
        %v6052 = vpack.c.b16 %v6040, %v6036
        %v6053 = vpack.c.b16 %v6041, %v6037
        %v6054 = vpack.c.b16 %v6042, %v6038
        %v6055 = vpack.c.b16 %v6047, %v6043
        %v6056 = vpack.c.b16 %v6048, %v6044
        %v6057 = vpack.c.b16 %v6049, %v6045
        %v6058 = vpack.c.b16 %v6050, %v6046
        %6067 = vmatpush.bf16.msra.mxu0 0
        %6068 = vmatpush.bf16.msra.mxu0 0
        %6069 = vmatpush.bf16.msra.mxu0 0
        %6070 = vmatpush.bf16.msra.mxu0 0
        %6071 = vmatpush.bf16.msra.mxu0 0
        %6072 = vmatpush.bf16.msra.mxu0 0
        %6073 = vmatpush.bf16.msra.mxu0 %v6055
        %6074 = vmatpush.bf16.msra.mxu0 %v6051
        %6075 = vmatmul.bf16.gmra.mxu0 %v1906
        %v6076 = vpop.f32.mrf.mxu0
        %v6077 = vadd.f32 %v4812, %v6076
        %v6078 = vpop.f32.mrf.mxu0
        %v6079 = vadd.f32 %v4814, %v6078
        %6080 = vmatmul.bf16.gmra.mxu0 %v1909
        %v6081 = vpop.f32.mrf.mxu0
        %v6082 = vadd.f32 %v4817, %v6081
        %v6083 = vpop.f32.mrf.mxu0
        %v6084 = vadd.f32 %v4819, %v6083
        %6085 = vmatmul.bf16.gmra.mxu0 %v1912
        %v6086 = vpop.f32.mrf.mxu0
        %v6087 = vadd.f32 %v4822, %v6086
        %v6088 = vpop.f32.mrf.mxu0
        %v6089 = vadd.f32 %v4824, %v6088
        %6090 = vmatmul.bf16.gmra.mxu0 %v1915
        %v6091 = vpop.f32.mrf.mxu0
        %v6092 = vadd.f32 %v4827, %v6091
        %v6093 = vpop.f32.mrf.mxu0
        %v6094 = vadd.f32 %v4829, %v6093
        %6095 = vmatmul.bf16.gmra.mxu0 %v1918
        %v6096 = vpop.f32.mrf.mxu0
        %v6097 = vadd.f32 %v4832, %v6096
        %v6098 = vpop.f32.mrf.mxu0
        %v6099 = vadd.f32 %v4834, %v6098
        %6100 = vmatmul.bf16.gmra.mxu0 %v1921
        %v6101 = vpop.f32.mrf.mxu0
        %v6102 = vadd.f32 %v4837, %v6101
        %v6103 = vpop.f32.mrf.mxu0
        %v6104 = vadd.f32 %v4839, %v6103
        %6105 = vmatmul.bf16.gmra.mxu0 %v1924
        %v6106 = vpop.f32.mrf.mxu0
        %v6107 = vadd.f32 %v4842, %v6106
        %v6108 = vpop.f32.mrf.mxu0
        %v6109 = vadd.f32 %v4844, %v6108
        %6110 = vmatmul.bf16.gmra.mxu0 %v1927
        %v6111 = vpop.f32.mrf.mxu0
        %v6112 = vadd.f32 %v4847, %v6111
        %v6113 = vpop.f32.mrf.mxu0
        %v6114 = vadd.f32 %v4849, %v6113
        %6115 = vdwg.mxu0
        %6116 = vmatpush.bf16.msra.mxu0 0
        %6117 = vmatpush.bf16.msra.mxu0 0
        %6118 = vmatpush.bf16.msra.mxu0 0
        %6119 = vmatpush.bf16.msra.mxu0 0
        %6120 = vmatpush.bf16.msra.mxu0 0
        %6121 = vmatpush.bf16.msra.mxu0 0
        %6122 = vmatpush.bf16.msra.mxu0 %v6056
        %6123 = vmatpush.bf16.msra.mxu0 %v6052
        %6124 = vmatmul.bf16.gmra.mxu0 %v1906
        %v6125 = vpop.f32.mrf.mxu0
        %v6126 = vadd.f32 %v5204, %v6125
        %v6127 = vpop.f32.mrf.mxu0
        %v6128 = vadd.f32 %v5206, %v6127
        %6129 = vmatmul.bf16.gmra.mxu0 %v1909
        %v6130 = vpop.f32.mrf.mxu0
        %v6131 = vadd.f32 %v5209, %v6130
        %v6132 = vpop.f32.mrf.mxu0
        %v6133 = vadd.f32 %v5211, %v6132
        %6134 = vmatmul.bf16.gmra.mxu0 %v1912
        %v6135 = vpop.f32.mrf.mxu0
        %v6136 = vadd.f32 %v5214, %v6135
        %v6137 = vpop.f32.mrf.mxu0
        %v6138 = vadd.f32 %v5216, %v6137
        %6139 = vmatmul.bf16.gmra.mxu0 %v1915
        %v6140 = vpop.f32.mrf.mxu0
        %v6141 = vadd.f32 %v5219, %v6140
        %v6142 = vpop.f32.mrf.mxu0
        %v6143 = vadd.f32 %v5221, %v6142
        %6144 = vmatmul.bf16.gmra.mxu0 %v1918
        %v6145 = vpop.f32.mrf.mxu0
        %v6146 = vadd.f32 %v5224, %v6145
        %v6147 = vpop.f32.mrf.mxu0
        %v6148 = vadd.f32 %v5226, %v6147
        %6149 = vmatmul.bf16.gmra.mxu0 %v1921
        %v6150 = vpop.f32.mrf.mxu0
        %v6151 = vadd.f32 %v5229, %v6150
        %v6152 = vpop.f32.mrf.mxu0
        %v6153 = vadd.f32 %v5231, %v6152
        %6154 = vmatmul.bf16.gmra.mxu0 %v1924
        %v6155 = vpop.f32.mrf.mxu0
        %v6156 = vadd.f32 %v5234, %v6155
        %v6157 = vpop.f32.mrf.mxu0
        %v6158 = vadd.f32 %v5236, %v6157
        %6159 = vmatmul.bf16.gmra.mxu0 %v1927
        %v6160 = vpop.f32.mrf.mxu0
        %v6161 = vadd.f32 %v5239, %v6160
        %v6162 = vpop.f32.mrf.mxu0
        %v6163 = vadd.f32 %v5241, %v6162
        %6164 = vdwg.mxu0
        %6165 = vmatpush.bf16.msra.mxu0 0
        %6166 = vmatpush.bf16.msra.mxu0 0
        %6167 = vmatpush.bf16.msra.mxu0 0
        %6168 = vmatpush.bf16.msra.mxu0 0
        %6169 = vmatpush.bf16.msra.mxu0 0
        %6170 = vmatpush.bf16.msra.mxu0 0
        %6171 = vmatpush.bf16.msra.mxu0 %v6057
        %6172 = vmatpush.bf16.msra.mxu0 %v6053
        %6173 = vmatmul.bf16.gmra.mxu0 %v1906
        %v6174 = vpop.f32.mrf.mxu0
        %v6175 = vadd.f32 %v5596, %v6174
        %v6176 = vpop.f32.mrf.mxu0
        %v6177 = vadd.f32 %v5598, %v6176
        %6178 = vmatmul.bf16.gmra.mxu0 %v1909
        %v6179 = vpop.f32.mrf.mxu0
        %v6180 = vadd.f32 %v5601, %v6179
        %v6181 = vpop.f32.mrf.mxu0
        %v6182 = vadd.f32 %v5603, %v6181
        %6183 = vmatmul.bf16.gmra.mxu0 %v1912
        %v6184 = vpop.f32.mrf.mxu0
        %v6185 = vadd.f32 %v5606, %v6184
        %v6186 = vpop.f32.mrf.mxu0
        %v6187 = vadd.f32 %v5608, %v6186
        %6188 = vmatmul.bf16.gmra.mxu0 %v1915
        %v6189 = vpop.f32.mrf.mxu0
        %v6190 = vadd.f32 %v5611, %v6189
        %v6191 = vpop.f32.mrf.mxu0
        %v6192 = vadd.f32 %v5613, %v6191
        %6193 = vmatmul.bf16.gmra.mxu0 %v1918
        %v6194 = vpop.f32.mrf.mxu0
        %v6195 = vadd.f32 %v5616, %v6194
        %v6196 = vpop.f32.mrf.mxu0
        %v6197 = vadd.f32 %v5618, %v6196
        %6198 = vmatmul.bf16.gmra.mxu0 %v1921
        %v6199 = vpop.f32.mrf.mxu0
        %v6200 = vadd.f32 %v5621, %v6199
        %v6201 = vpop.f32.mrf.mxu0
        %v6202 = vadd.f32 %v5623, %v6201
        %6203 = vmatmul.bf16.gmra.mxu0 %v1924
        %v6204 = vpop.f32.mrf.mxu0
        %v6205 = vadd.f32 %v5626, %v6204
        %v6206 = vpop.f32.mrf.mxu0
        %v6207 = vadd.f32 %v5628, %v6206
        %6208 = vmatmul.bf16.gmra.mxu0 %v1927
        %v6209 = vpop.f32.mrf.mxu0
        %v6210 = vadd.f32 %v5631, %v6209
        %v6211 = vpop.f32.mrf.mxu0
        %v6212 = vadd.f32 %v5633, %v6211
        %6213 = vdwg.mxu0
        %6214 = vmatpush.bf16.msra.mxu0 0
        %6215 = vmatpush.bf16.msra.mxu0 0
        %6216 = vmatpush.bf16.msra.mxu0 0
        %6217 = vmatpush.bf16.msra.mxu0 0
        %6218 = vmatpush.bf16.msra.mxu0 0
        %6219 = vmatpush.bf16.msra.mxu0 0
        %6220 = vmatpush.bf16.msra.mxu0 %v6058
        %6221 = vmatpush.bf16.msra.mxu0 %v6054
        %6222 = vmatmul.bf16.gmra.mxu0 %v1906
        %v6223 = vpop.f32.mrf.mxu0
        %v6224 = vadd.f32 %v5988, %v6223
        %v6225 = vpop.f32.mrf.mxu0
        %v6226 = vadd.f32 %v5990, %v6225
        %6227 = vmatmul.bf16.gmra.mxu0 %v1909
        %v6228 = vpop.f32.mrf.mxu0
        %v6229 = vadd.f32 %v5993, %v6228
        %v6230 = vpop.f32.mrf.mxu0
        %v6231 = vadd.f32 %v5995, %v6230
        %6232 = vmatmul.bf16.gmra.mxu0 %v1912
        %v6233 = vpop.f32.mrf.mxu0
        %v6234 = vadd.f32 %v5998, %v6233
        %v6235 = vpop.f32.mrf.mxu0
        %v6236 = vadd.f32 %v6000, %v6235
        %6237 = vmatmul.bf16.gmra.mxu0 %v1915
        %v6238 = vpop.f32.mrf.mxu0
        %v6239 = vadd.f32 %v6003, %v6238
        %v6240 = vpop.f32.mrf.mxu0
        %v6241 = vadd.f32 %v6005, %v6240
        %6242 = vmatmul.bf16.gmra.mxu0 %v1918
        %v6243 = vpop.f32.mrf.mxu0
        %v6244 = vadd.f32 %v6008, %v6243
        %v6245 = vpop.f32.mrf.mxu0
        %v6246 = vadd.f32 %v6010, %v6245
        %6247 = vmatmul.bf16.gmra.mxu0 %v1921
        %v6248 = vpop.f32.mrf.mxu0
        %v6249 = vadd.f32 %v6013, %v6248
        %v6250 = vpop.f32.mrf.mxu0
        %v6251 = vadd.f32 %v6015, %v6250
        %6252 = vmatmul.bf16.gmra.mxu0 %v1924
        %v6253 = vpop.f32.mrf.mxu0
        %v6254 = vadd.f32 %v6018, %v6253
        %v6255 = vpop.f32.mrf.mxu0
        %v6256 = vadd.f32 %v6020, %v6255
        %6257 = vmatmul.bf16.gmra.mxu0 %v1927
        %v6258 = vpop.f32.mrf.mxu0
        %v6259 = vadd.f32 %v6023, %v6258
        %v6260 = vpop.f32.mrf.mxu0
        %v6261 = vadd.f32 %v6025, %v6260
        %6262 = vdwg.mxu0
        %v6263 = vld [vmem:[%s8] sm:$0xf]
        %v6265 = vperm.slane %v6263, 0
        %v6266 = vperm.slane %v6263, 1
        %v6267 = vperm.slane %v6263, 2
        %v6268 = vperm.slane %v6263, 3
        %v6273 = vmul.f32 %v1602, %v6265
        %v6274 = vmul.f32 %v1602, %v6266
        %v6275 = vmul.f32 %v1602, %v6267
        %v6276 = vmul.f32 %v1602, %v6268
        %v6277 = vmul.f32 %v1607, %v6265
        %v6278 = vmul.f32 %v1607, %v6266
        %v6279 = vmul.f32 %v1607, %v6267
        %v6280 = vmul.f32 %v1607, %v6268
        %v6281 = vmul.f32 %v1612, %v6265
        %v6282 = vmul.f32 %v1612, %v6266
        %v6283 = vmul.f32 %v1612, %v6267
        %v6284 = vmul.f32 %v1612, %v6268
        %v6285 = vmul.f32 %v1617, %v6265
        %v6286 = vmul.f32 %v1617, %v6266
        %v6287 = vmul.f32 %v1617, %v6267
        %v6288 = vmul.f32 %v1617, %v6268
        %v6289 = vmul.f32 %v1622, %v6265
        %v6290 = vmul.f32 %v1622, %v6266
        %v6291 = vmul.f32 %v1622, %v6267
        %v6292 = vmul.f32 %v1622, %v6268
        %v6293 = vmul.f32 %v1627, %v6265
        %v6294 = vmul.f32 %v1627, %v6266
        %v6295 = vmul.f32 %v1627, %v6267
        %v6296 = vmul.f32 %v1627, %v6268
        %v6297 = vmul.f32 %v1632, %v6265
        %v6298 = vmul.f32 %v1632, %v6266
        %v6299 = vmul.f32 %v1632, %v6267
        %v6300 = vmul.f32 %v1632, %v6268
        %v6301 = vmul.f32 %v1637, %v6265
        %v6302 = vmul.f32 %v1637, %v6266
        %v6303 = vmul.f32 %v1637, %v6267
        %v6304 = vmul.f32 %v1637, %v6268
        %v6305 = vmul.f32 %v1642, %v6265
        %v6306 = vmul.f32 %v1642, %v6266
        %v6307 = vmul.f32 %v1642, %v6267
        %v6308 = vmul.f32 %v1642, %v6268
        %v6309 = vmul.f32 %v1647, %v6265
        %v6310 = vmul.f32 %v1647, %v6266
        %v6311 = vmul.f32 %v1647, %v6267
        %v6312 = vmul.f32 %v1647, %v6268
        %v6313 = vmul.f32 %v1652, %v6265
        %v6314 = vmul.f32 %v1652, %v6266
        %v6315 = vmul.f32 %v1652, %v6267
        %v6316 = vmul.f32 %v1652, %v6268
        %v6317 = vmul.f32 %v1657, %v6265
        %v6318 = vmul.f32 %v1657, %v6266
        %v6319 = vmul.f32 %v1657, %v6267
        %v6320 = vmul.f32 %v1657, %v6268
        %v6321 = vmul.f32 %v1662, %v6265
        %v6322 = vmul.f32 %v1662, %v6266
        %v6323 = vmul.f32 %v1662, %v6267
        %v6324 = vmul.f32 %v1662, %v6268
        %v6325 = vmul.f32 %v1667, %v6265
        %v6326 = vmul.f32 %v1667, %v6266
        %v6327 = vmul.f32 %v1667, %v6267
        %v6328 = vmul.f32 %v1667, %v6268
        %v6329 = vmul.f32 %v1672, %v6265
        %v6330 = vmul.f32 %v1672, %v6266
        %v6331 = vmul.f32 %v1672, %v6267
        %v6332 = vmul.f32 %v1672, %v6268
        %v6333 = vmul.f32 %v1677, %v6265
        %v6334 = vmul.f32 %v1677, %v6266
        %v6335 = vmul.f32 %v1677, %v6267
        %v6336 = vmul.f32 %v1677, %v6268
        %v6337 = vadd.f32 %v6077, %v6273
        %v6338 = vadd.f32 %v6126, %v6274
        %v6339 = vadd.f32 %v6175, %v6275
        %v6340 = vadd.f32 %v6224, %v6276
        %v6341 = vadd.f32 %v6079, %v6277
        %v6342 = vadd.f32 %v6128, %v6278
        %v6343 = vadd.f32 %v6177, %v6279
        %v6344 = vadd.f32 %v6226, %v6280
        %v6345 = vadd.f32 %v6082, %v6281
        %v6346 = vadd.f32 %v6131, %v6282
        %v6347 = vadd.f32 %v6180, %v6283
        %v6348 = vadd.f32 %v6229, %v6284
        %v6349 = vadd.f32 %v6084, %v6285
        %v6350 = vadd.f32 %v6133, %v6286
        %v6351 = vadd.f32 %v6182, %v6287
        %v6352 = vadd.f32 %v6231, %v6288
        %v6353 = vadd.f32 %v6087, %v6289
        %v6354 = vadd.f32 %v6136, %v6290
        %v6355 = vadd.f32 %v6185, %v6291
        %v6356 = vadd.f32 %v6234, %v6292
        %v6357 = vadd.f32 %v6089, %v6293
        %v6358 = vadd.f32 %v6138, %v6294
        %v6359 = vadd.f32 %v6187, %v6295
        %v6360 = vadd.f32 %v6236, %v6296
        %v6361 = vadd.f32 %v6092, %v6297
        %v6362 = vadd.f32 %v6141, %v6298
        %v6363 = vadd.f32 %v6190, %v6299
        %v6364 = vadd.f32 %v6239, %v6300
        %v6365 = vadd.f32 %v6094, %v6301
        %v6366 = vadd.f32 %v6143, %v6302
        %v6367 = vadd.f32 %v6192, %v6303
        %v6368 = vadd.f32 %v6241, %v6304
        %v6369 = vadd.f32 %v6097, %v6305
        %v6370 = vadd.f32 %v6146, %v6306
        %v6371 = vadd.f32 %v6195, %v6307
        %v6372 = vadd.f32 %v6244, %v6308
        %v6373 = vadd.f32 %v6099, %v6309
        %v6374 = vadd.f32 %v6148, %v6310
        %v6375 = vadd.f32 %v6197, %v6311
        %v6376 = vadd.f32 %v6246, %v6312
        %v6377 = vadd.f32 %v6102, %v6313
        %v6378 = vadd.f32 %v6151, %v6314
        %v6379 = vadd.f32 %v6200, %v6315
        %v6380 = vadd.f32 %v6249, %v6316
        %v6381 = vadd.f32 %v6104, %v6317
        %v6382 = vadd.f32 %v6153, %v6318
        %v6383 = vadd.f32 %v6202, %v6319
        %v6384 = vadd.f32 %v6251, %v6320
        %v6385 = vadd.f32 %v6107, %v6321
        %v6386 = vadd.f32 %v6156, %v6322
        %v6387 = vadd.f32 %v6205, %v6323
        %v6388 = vadd.f32 %v6254, %v6324
        %v6389 = vadd.f32 %v6109, %v6325
        %v6390 = vadd.f32 %v6158, %v6326
        %v6391 = vadd.f32 %v6207, %v6327
        %v6392 = vadd.f32 %v6256, %v6328
        %v6393 = vadd.f32 %v6112, %v6329
        %v6394 = vadd.f32 %v6161, %v6330
        %v6395 = vadd.f32 %v6210, %v6331
        %v6396 = vadd.f32 %v6259, %v6332
        %v6397 = vadd.f32 %v6114, %v6333
        %v6398 = vadd.f32 %v6163, %v6334
        %v6399 = vadd.f32 %v6212, %v6335
        %v6400 = vadd.f32 %v6261, %v6336
        %v6401 = vld [vmem:[%s10] sm:$0xf]
        %v6403 = vperm.slane %v6401, 0
        %v6404 = vperm.slane %v6401, 1
        %v6405 = vperm.slane %v6401, 2
        %v6406 = vperm.slane %v6401, 3
        %v6411 = vadd.f32 %v6337, %v6403
        %v6412 = vadd.f32 %v6338, %v6404
        %v6413 = vadd.f32 %v6339, %v6405
        %v6414 = vadd.f32 %v6340, %v6406
        %v6415 = vadd.f32 %v6341, %v6403
        %v6416 = vadd.f32 %v6342, %v6404
        %v6417 = vadd.f32 %v6343, %v6405
        %v6418 = vadd.f32 %v6344, %v6406
        %v6419 = vadd.f32 %v6345, %v6403
        %v6420 = vadd.f32 %v6346, %v6404
        %v6421 = vadd.f32 %v6347, %v6405
        %v6422 = vadd.f32 %v6348, %v6406
        %v6423 = vadd.f32 %v6349, %v6403
        %v6424 = vadd.f32 %v6350, %v6404
        %v6425 = vadd.f32 %v6351, %v6405
        %v6426 = vadd.f32 %v6352, %v6406
        %v6427 = vadd.f32 %v6353, %v6403
        %v6428 = vadd.f32 %v6354, %v6404
        %v6429 = vadd.f32 %v6355, %v6405
        %v6430 = vadd.f32 %v6356, %v6406
        %v6431 = vadd.f32 %v6357, %v6403
        %v6432 = vadd.f32 %v6358, %v6404
        %v6433 = vadd.f32 %v6359, %v6405
        %v6434 = vadd.f32 %v6360, %v6406
        %v6435 = vadd.f32 %v6361, %v6403
        %v6436 = vadd.f32 %v6362, %v6404
        %v6437 = vadd.f32 %v6363, %v6405
        %v6438 = vadd.f32 %v6364, %v6406
        %v6439 = vadd.f32 %v6365, %v6403
        %v6440 = vadd.f32 %v6366, %v6404
        %v6441 = vadd.f32 %v6367, %v6405
        %v6442 = vadd.f32 %v6368, %v6406
        %v6443 = vadd.f32 %v6369, %v6403
        %v6444 = vadd.f32 %v6370, %v6404
        %v6445 = vadd.f32 %v6371, %v6405
        %v6446 = vadd.f32 %v6372, %v6406
        %v6447 = vadd.f32 %v6373, %v6403
        %v6448 = vadd.f32 %v6374, %v6404
        %v6449 = vadd.f32 %v6375, %v6405
        %v6450 = vadd.f32 %v6376, %v6406
        %v6451 = vadd.f32 %v6377, %v6403
        %v6452 = vadd.f32 %v6378, %v6404
        %v6453 = vadd.f32 %v6379, %v6405
        %v6454 = vadd.f32 %v6380, %v6406
        %v6455 = vadd.f32 %v6381, %v6403
        %v6456 = vadd.f32 %v6382, %v6404
        %v6457 = vadd.f32 %v6383, %v6405
        %v6458 = vadd.f32 %v6384, %v6406
        %v6459 = vadd.f32 %v6385, %v6403
        %v6460 = vadd.f32 %v6386, %v6404
        %v6461 = vadd.f32 %v6387, %v6405
        %v6462 = vadd.f32 %v6388, %v6406
        %v6463 = vadd.f32 %v6389, %v6403
        %v6464 = vadd.f32 %v6390, %v6404
        %v6465 = vadd.f32 %v6391, %v6405
        %v6466 = vadd.f32 %v6392, %v6406
        %v6467 = vadd.f32 %v6393, %v6403
        %v6468 = vadd.f32 %v6394, %v6404
        %v6469 = vadd.f32 %v6395, %v6405
        %v6470 = vadd.f32 %v6396, %v6406
        %v6471 = vadd.f32 %v6397, %v6403
        %v6472 = vadd.f32 %v6398, %v6404
        %v6473 = vadd.f32 %v6399, %v6405
        %v6474 = vadd.f32 %v6400, %v6406
        %vm6475 = vcmp.ge.f32.partialorder %v6411, 0.0
        %vm6476 = vcmp.ge.f32.partialorder %v6412, 0.0
        %vm6477 = vcmp.ge.f32.partialorder %v6413, 0.0
        %vm6478 = vcmp.ge.f32.partialorder %v6414, 0.0
        %vm6479 = vcmp.ge.f32.partialorder %v6415, 0.0
        %vm6480 = vcmp.ge.f32.partialorder %v6416, 0.0
        %vm6481 = vcmp.ge.f32.partialorder %v6417, 0.0
        %vm6482 = vcmp.ge.f32.partialorder %v6418, 0.0
        %vm6483 = vcmp.ge.f32.partialorder %v6419, 0.0
        %vm6484 = vcmp.ge.f32.partialorder %v6420, 0.0
        %vm6485 = vcmp.ge.f32.partialorder %v6421, 0.0
        %vm6486 = vcmp.ge.f32.partialorder %v6422, 0.0
        %vm6487 = vcmp.ge.f32.partialorder %v6423, 0.0
        %vm6488 = vcmp.ge.f32.partialorder %v6424, 0.0
        %vm6489 = vcmp.ge.f32.partialorder %v6425, 0.0
        %vm6490 = vcmp.ge.f32.partialorder %v6426, 0.0
        %vm6491 = vcmp.ge.f32.partialorder %v6427, 0.0
        %vm6492 = vcmp.ge.f32.partialorder %v6428, 0.0
        %vm6493 = vcmp.ge.f32.partialorder %v6429, 0.0
        %vm6494 = vcmp.ge.f32.partialorder %v6430, 0.0
        %vm6495 = vcmp.ge.f32.partialorder %v6431, 0.0
        %vm6496 = vcmp.ge.f32.partialorder %v6432, 0.0
        %vm6497 = vcmp.ge.f32.partialorder %v6433, 0.0
        %vm6498 = vcmp.ge.f32.partialorder %v6434, 0.0
        %vm6499 = vcmp.ge.f32.partialorder %v6435, 0.0
        %vm6500 = vcmp.ge.f32.partialorder %v6436, 0.0
        %vm6501 = vcmp.ge.f32.partialorder %v6437, 0.0
        %vm6502 = vcmp.ge.f32.partialorder %v6438, 0.0
        %vm6503 = vcmp.ge.f32.partialorder %v6439, 0.0
        %vm6504 = vcmp.ge.f32.partialorder %v6440, 0.0
        %vm6505 = vcmp.ge.f32.partialorder %v6441, 0.0
        %vm6506 = vcmp.ge.f32.partialorder %v6442, 0.0
        %vm6507 = vcmp.ge.f32.partialorder %v6443, 0.0
        %vm6508 = vcmp.ge.f32.partialorder %v6444, 0.0
        %vm6509 = vcmp.ge.f32.partialorder %v6445, 0.0
        %vm6510 = vcmp.ge.f32.partialorder %v6446, 0.0
        %vm6511 = vcmp.ge.f32.partialorder %v6447, 0.0
        %vm6512 = vcmp.ge.f32.partialorder %v6448, 0.0
        %vm6513 = vcmp.ge.f32.partialorder %v6449, 0.0
        %vm6514 = vcmp.ge.f32.partialorder %v6450, 0.0
        %vm6515 = vcmp.ge.f32.partialorder %v6451, 0.0
        %vm6516 = vcmp.ge.f32.partialorder %v6452, 0.0
        %vm6517 = vcmp.ge.f32.partialorder %v6453, 0.0
        %vm6518 = vcmp.ge.f32.partialorder %v6454, 0.0
        %vm6519 = vcmp.ge.f32.partialorder %v6455, 0.0
        %vm6520 = vcmp.ge.f32.partialorder %v6456, 0.0
        %vm6521 = vcmp.ge.f32.partialorder %v6457, 0.0
        %vm6522 = vcmp.ge.f32.partialorder %v6458, 0.0
        %vm6523 = vcmp.ge.f32.partialorder %v6459, 0.0
        %vm6524 = vcmp.ge.f32.partialorder %v6460, 0.0
        %vm6525 = vcmp.ge.f32.partialorder %v6461, 0.0
        %vm6526 = vcmp.ge.f32.partialorder %v6462, 0.0
        %vm6527 = vcmp.ge.f32.partialorder %v6463, 0.0
        %vm6528 = vcmp.ge.f32.partialorder %v6464, 0.0
        %vm6529 = vcmp.ge.f32.partialorder %v6465, 0.0
        %vm6530 = vcmp.ge.f32.partialorder %v6466, 0.0
        %vm6531 = vcmp.ge.f32.partialorder %v6467, 0.0
        %vm6532 = vcmp.ge.f32.partialorder %v6468, 0.0
        %vm6533 = vcmp.ge.f32.partialorder %v6469, 0.0
        %vm6534 = vcmp.ge.f32.partialorder %v6470, 0.0
        %vm6535 = vcmp.ge.f32.partialorder %v6471, 0.0
        %vm6536 = vcmp.ge.f32.partialorder %v6472, 0.0
        %vm6537 = vcmp.ge.f32.partialorder %v6473, 0.0
        %vm6538 = vcmp.ge.f32.partialorder %v6474, 0.0
        %v6539 = vmul.f32 %v6411, 0.2
        %v6540 = vmul.f32 %v6412, 0.2
        %v6541 = vmul.f32 %v6413, 0.2
        %v6542 = vmul.f32 %v6414, 0.2
        %v6543 = vmul.f32 %v6415, 0.2
        %v6544 = vmul.f32 %v6416, 0.2
        %v6545 = vmul.f32 %v6417, 0.2
        %v6546 = vmul.f32 %v6418, 0.2
        %v6547 = vmul.f32 %v6419, 0.2
        %v6548 = vmul.f32 %v6420, 0.2
        %v6549 = vmul.f32 %v6421, 0.2
        %v6550 = vmul.f32 %v6422, 0.2
        %v6551 = vmul.f32 %v6423, 0.2
        %v6552 = vmul.f32 %v6424, 0.2
        %v6553 = vmul.f32 %v6425, 0.2
        %v6554 = vmul.f32 %v6426, 0.2
        %v6555 = vmul.f32 %v6427, 0.2
        %v6556 = vmul.f32 %v6428, 0.2
        %v6557 = vmul.f32 %v6429, 0.2
        %v6558 = vmul.f32 %v6430, 0.2
        %v6559 = vmul.f32 %v6431, 0.2
        %v6560 = vmul.f32 %v6432, 0.2
        %v6561 = vmul.f32 %v6433, 0.2
        %v6562 = vmul.f32 %v6434, 0.2
        %v6563 = vmul.f32 %v6435, 0.2
        %v6564 = vmul.f32 %v6436, 0.2
        %v6565 = vmul.f32 %v6437, 0.2
        %v6566 = vmul.f32 %v6438, 0.2
        %v6567 = vmul.f32 %v6439, 0.2
        %v6568 = vmul.f32 %v6440, 0.2
        %v6569 = vmul.f32 %v6441, 0.2
        %v6570 = vmul.f32 %v6442, 0.2
        %v6571 = vmul.f32 %v6443, 0.2
        %v6572 = vmul.f32 %v6444, 0.2
        %v6573 = vmul.f32 %v6445, 0.2
        %v6574 = vmul.f32 %v6446, 0.2
        %v6575 = vmul.f32 %v6447, 0.2
        %v6576 = vmul.f32 %v6448, 0.2
        %v6577 = vmul.f32 %v6449, 0.2
        %v6578 = vmul.f32 %v6450, 0.2
        %v6579 = vmul.f32 %v6451, 0.2
        %v6580 = vmul.f32 %v6452, 0.2
        %v6581 = vmul.f32 %v6453, 0.2
        %v6582 = vmul.f32 %v6454, 0.2
        %v6583 = vmul.f32 %v6455, 0.2
        %v6584 = vmul.f32 %v6456, 0.2
        %v6585 = vmul.f32 %v6457, 0.2
        %v6586 = vmul.f32 %v6458, 0.2
        %v6587 = vmul.f32 %v6459, 0.2
        %v6588 = vmul.f32 %v6460, 0.2
        %v6589 = vmul.f32 %v6461, 0.2
        %v6590 = vmul.f32 %v6462, 0.2
        %v6591 = vmul.f32 %v6463, 0.2
        %v6592 = vmul.f32 %v6464, 0.2
        %v6593 = vmul.f32 %v6465, 0.2
        %v6594 = vmul.f32 %v6466, 0.2
        %v6595 = vmul.f32 %v6467, 0.2
        %v6596 = vmul.f32 %v6468, 0.2
        %v6597 = vmul.f32 %v6469, 0.2
        %v6598 = vmul.f32 %v6470, 0.2
        %v6599 = vmul.f32 %v6471, 0.2
        %v6600 = vmul.f32 %v6472, 0.2
        %v6601 = vmul.f32 %v6473, 0.2
        %v6602 = vmul.f32 %v6474, 0.2
        %v6603 = vsel %vm6475, %v6411, %v6539
        %v6604 = vsel %vm6476, %v6412, %v6540
        %v6605 = vsel %vm6477, %v6413, %v6541
        %v6606 = vsel %vm6478, %v6414, %v6542
        %v6607 = vsel %vm6479, %v6415, %v6543
        %v6608 = vsel %vm6480, %v6416, %v6544
        %v6609 = vsel %vm6481, %v6417, %v6545
        %v6610 = vsel %vm6482, %v6418, %v6546
        %v6611 = vsel %vm6483, %v6419, %v6547
        %v6612 = vsel %vm6484, %v6420, %v6548
        %v6613 = vsel %vm6485, %v6421, %v6549
        %v6614 = vsel %vm6486, %v6422, %v6550
        %v6615 = vsel %vm6487, %v6423, %v6551
        %v6616 = vsel %vm6488, %v6424, %v6552
        %v6617 = vsel %vm6489, %v6425, %v6553
        %v6618 = vsel %vm6490, %v6426, %v6554
        %v6619 = vsel %vm6491, %v6427, %v6555
        %v6620 = vsel %vm6492, %v6428, %v6556
        %v6621 = vsel %vm6493, %v6429, %v6557
        %v6622 = vsel %vm6494, %v6430, %v6558
        %v6623 = vsel %vm6495, %v6431, %v6559
        %v6624 = vsel %vm6496, %v6432, %v6560
        %v6625 = vsel %vm6497, %v6433, %v6561
        %v6626 = vsel %vm6498, %v6434, %v6562
        %v6627 = vsel %vm6499, %v6435, %v6563
        %v6628 = vsel %vm6500, %v6436, %v6564
        %v6629 = vsel %vm6501, %v6437, %v6565
        %v6630 = vsel %vm6502, %v6438, %v6566
        %v6631 = vsel %vm6503, %v6439, %v6567
        %v6632 = vsel %vm6504, %v6440, %v6568
        %v6633 = vsel %vm6505, %v6441, %v6569
        %v6634 = vsel %vm6506, %v6442, %v6570
        %v6635 = vsel %vm6507, %v6443, %v6571
        %v6636 = vsel %vm6508, %v6444, %v6572
        %v6637 = vsel %vm6509, %v6445, %v6573
        %v6638 = vsel %vm6510, %v6446, %v6574
        %v6639 = vsel %vm6511, %v6447, %v6575
        %v6640 = vsel %vm6512, %v6448, %v6576
        %v6641 = vsel %vm6513, %v6449, %v6577
        %v6642 = vsel %vm6514, %v6450, %v6578
        %v6643 = vsel %vm6515, %v6451, %v6579
        %v6644 = vsel %vm6516, %v6452, %v6580
        %v6645 = vsel %vm6517, %v6453, %v6581
        %v6646 = vsel %vm6518, %v6454, %v6582
        %v6647 = vsel %vm6519, %v6455, %v6583
        %v6648 = vsel %vm6520, %v6456, %v6584
        %v6649 = vsel %vm6521, %v6457, %v6585
        %v6650 = vsel %vm6522, %v6458, %v6586
        %v6651 = vsel %vm6523, %v6459, %v6587
        %v6652 = vsel %vm6524, %v6460, %v6588
        %v6653 = vsel %vm6525, %v6461, %v6589
        %v6654 = vsel %vm6526, %v6462, %v6590
        %v6655 = vsel %vm6527, %v6463, %v6591
        %v6656 = vsel %vm6528, %v6464, %v6592
        %v6657 = vsel %vm6529, %v6465, %v6593
        %v6658 = vsel %vm6530, %v6466, %v6594
        %v6659 = vsel %vm6531, %v6467, %v6595
        %v6660 = vsel %vm6532, %v6468, %v6596
        %v6661 = vsel %vm6533, %v6469, %v6597
        %v6662 = vsel %vm6534, %v6470, %v6598
        %v6663 = vsel %vm6535, %v6471, %v6599
        %v6664 = vsel %vm6536, %v6472, %v6600
        %v6665 = vsel %vm6537, %v6473, %v6601
        %v6666 = vsel %vm6538, %v6474, %v6602
        %v6667 = vpack.c.bf16 %v6607, %v6603
        %v6668 = vpack.c.bf16 %v6608, %v6604
        %v6669 = vpack.c.bf16 %v6609, %v6605
        %v6670 = vpack.c.bf16 %v6610, %v6606
        %v6671 = vpack.c.bf16 %v6615, %v6611
        %v6672 = vpack.c.bf16 %v6616, %v6612
        %v6673 = vpack.c.bf16 %v6617, %v6613
        %v6674 = vpack.c.bf16 %v6618, %v6614
        %v6675 = vpack.c.bf16 %v6623, %v6619
        %v6676 = vpack.c.bf16 %v6624, %v6620
        %v6677 = vpack.c.bf16 %v6625, %v6621
        %v6678 = vpack.c.bf16 %v6626, %v6622
        %v6679 = vpack.c.bf16 %v6631, %v6627
        %v6680 = vpack.c.bf16 %v6632, %v6628
        %v6681 = vpack.c.bf16 %v6633, %v6629
        %v6682 = vpack.c.bf16 %v6634, %v6630
        %v6683 = vpack.c.bf16 %v6639, %v6635
        %v6684 = vpack.c.bf16 %v6640, %v6636
        %v6685 = vpack.c.bf16 %v6641, %v6637
        %v6686 = vpack.c.bf16 %v6642, %v6638
        %v6687 = vpack.c.bf16 %v6647, %v6643
        %v6688 = vpack.c.bf16 %v6648, %v6644
        %v6689 = vpack.c.bf16 %v6649, %v6645
        %v6690 = vpack.c.bf16 %v6650, %v6646
        %v6691 = vpack.c.bf16 %v6655, %v6651
        %v6692 = vpack.c.bf16 %v6656, %v6652
        %v6693 = vpack.c.bf16 %v6657, %v6653
        %v6694 = vpack.c.bf16 %v6658, %v6654
        %v6695 = vpack.c.bf16 %v6663, %v6659
        %v6696 = vpack.c.bf16 %v6664, %v6660
        %v6697 = vpack.c.bf16 %v6665, %v6661
        %v6698 = vpack.c.bf16 %v6666, %v6662
        %v6699 = vld [vmem:[%s11] sm:$0xff]
        %v6700 = vld [vmem:[%s11 + $0x8] sm:$0xff]
        %v6701 = vld [vmem:[%s11 + $0x10] sm:$0xff]
        %v6702 = vld [vmem:[%s11 + $0x18] sm:$0xff]
        %v6703 = vld [vmem:[%s13] sm:$0xff]
        %v6704 = vld [vmem:[%s13 + $0x8] sm:$0xff]
        %v6705 = vld [vmem:[%s13 + $0x10] sm:$0xff]
        %v6706 = vld [vmem:[%s13 + $0x18] sm:$0xff]
        %v6707 = vld [vmem:[%s13 + $0x20] sm:$0xff]
        %v6708 = vld [vmem:[%s13 + $0x28] sm:$0xff]
        %v6709 = vld [vmem:[%s13 + $0x30] sm:$0xff]
        %v6710 = vld [vmem:[%s13 + $0x38] sm:$0xff]
        %v6711 = vld [vmem:[%s13 + $0x40] sm:$0xff]
        %v6712 = vld [vmem:[%s13 + $0x48] sm:$0xff]
        %v6713 = vld [vmem:[%s13 + $0x50] sm:$0xff]
        %v6714 = vld [vmem:[%s13 + $0x58] sm:$0xff]
        %v6715 = vld [vmem:[%s13 + $0x60] sm:$0xff]
        %v6716 = vld [vmem:[%s13 + $0x68] sm:$0xff]
        %v6717 = vld [vmem:[%s13 + $0x70] sm:$0xff]
        %v6718 = vld [vmem:[%s13 + $0x78] sm:$0xff]
        %v6719 = vld [vmem:[%s13 + $0x80] sm:$0xff]
        %v6720 = vld [vmem:[%s13 + $0x88] sm:$0xff]
        %v6721 = vld [vmem:[%s13 + $0x90] sm:$0xff]
        %v6722 = vld [vmem:[%s13 + $0x98] sm:$0xff]
        %v6723 = vld [vmem:[%s13 + $0xa0] sm:$0xff]
        %v6724 = vld [vmem:[%s13 + $0xa8] sm:$0xff]
        %v6725 = vld [vmem:[%s13 + $0xb0] sm:$0xff]
        %v6726 = vld [vmem:[%s13 + $0xb8] sm:$0xff]
        %v6727 = vld [vmem:[%s13 + $0xc0] sm:$0xff]
        %v6728 = vld [vmem:[%s13 + $0xc8] sm:$0xff]
        %v6729 = vld [vmem:[%s13 + $0xd0] sm:$0xff]
        %v6730 = vld [vmem:[%s13 + $0xd8] sm:$0xff]
        %v6731 = vld [vmem:[%s13 + $0xe0] sm:$0xff]
        %v6732 = vld [vmem:[%s13 + $0xe8] sm:$0xff]
        %v6733 = vld [vmem:[%s13 + $0xf0] sm:$0xff]
        %v6734 = vld [vmem:[%s13 + $0xf8] sm:$0xff]
        %v6735 = vld [vmem:[%s13 + $0x100] sm:$0xff]
        %v6736 = vld [vmem:[%s13 + $0x108] sm:$0xff]
        %v6737 = vld [vmem:[%s13 + $0x110] sm:$0xff]
        %v6738 = vld [vmem:[%s13 + $0x118] sm:$0xff]
        %v6739 = vld [vmem:[%s13 + $0x120] sm:$0xff]
        %v6740 = vld [vmem:[%s13 + $0x128] sm:$0xff]
        %v6741 = vld [vmem:[%s13 + $0x130] sm:$0xff]
        %v6742 = vld [vmem:[%s13 + $0x138] sm:$0xff]
        %v6743 = vld [vmem:[%s13 + $0x140] sm:$0xff]
        %v6744 = vld [vmem:[%s13 + $0x148] sm:$0xff]
        %v6745 = vld [vmem:[%s13 + $0x150] sm:$0xff]
        %v6746 = vld [vmem:[%s13 + $0x158] sm:$0xff]
        %v6747 = vld [vmem:[%s13 + $0x160] sm:$0xff]
        %v6748 = vld [vmem:[%s13 + $0x168] sm:$0xff]
        %v6749 = vld [vmem:[%s13 + $0x170] sm:$0xff]
        %v6750 = vld [vmem:[%s13 + $0x178] sm:$0xff]
        %v6751 = vld [vmem:[%s13 + $0x180] sm:$0xff]
        %v6752 = vld [vmem:[%s13 + $0x188] sm:$0xff]
        %v6753 = vld [vmem:[%s13 + $0x190] sm:$0xff]
        %v6754 = vld [vmem:[%s13 + $0x198] sm:$0xff]
        %v6755 = vld [vmem:[%s13 + $0x1a0] sm:$0xff]
        %v6756 = vld [vmem:[%s13 + $0x1a8] sm:$0xff]
        %v6757 = vld [vmem:[%s13 + $0x1b0] sm:$0xff]
        %v6758 = vld [vmem:[%s13 + $0x1b8] sm:$0xff]
        %v6759 = vld [vmem:[%s13 + $0x1c0] sm:$0xff]
        %v6760 = vld [vmem:[%s13 + $0x1c8] sm:$0xff]
        %v6761 = vld [vmem:[%s13 + $0x1d0] sm:$0xff]
        %v6762 = vld [vmem:[%s13 + $0x1d8] sm:$0xff]
        %v6763 = vld [vmem:[%s13 + $0x1e0] sm:$0xff]
        %v6764 = vld [vmem:[%s13 + $0x1e8] sm:$0xff]
        %v6765 = vld [vmem:[%s13 + $0x1f0] sm:$0xff]
        %v6766 = vld [vmem:[%s13 + $0x1f8] sm:$0xff]
        %v6831 = vunpack.c.l.b16 %v6703
        %v6832 = vunpack.c.h.b16 %v6703
        %v6833 = vunpack.c.l.b16 %v6704
        %v6834 = vunpack.c.h.b16 %v6704
        %v6835 = vunpack.c.l.b16 %v6705
        %v6836 = vunpack.c.h.b16 %v6705
        %v6837 = vunpack.c.l.b16 %v6706
        %v6838 = vunpack.c.h.b16 %v6706
        %v6839 = vunpack.c.l.b16 %v6707
        %v6840 = vunpack.c.h.b16 %v6707
        %v6841 = vunpack.c.l.b16 %v6708
        %v6842 = vunpack.c.h.b16 %v6708
        %v6843 = vunpack.c.l.b16 %v6709
        %v6844 = vunpack.c.h.b16 %v6709
        %v6845 = vunpack.c.l.b16 %v6710
        %v6846 = vunpack.c.h.b16 %v6710
        %v6847 = vunpack.c.l.b16 %v6711
        %v6848 = vunpack.c.h.b16 %v6711
        %v6849 = vunpack.c.l.b16 %v6712
        %v6850 = vunpack.c.h.b16 %v6712
        %v6851 = vunpack.c.l.b16 %v6713
        %v6852 = vunpack.c.h.b16 %v6713
        %v6853 = vunpack.c.l.b16 %v6714
        %v6854 = vunpack.c.h.b16 %v6714
        %v6855 = vunpack.c.l.b16 %v6715
        %v6856 = vunpack.c.h.b16 %v6715
        %v6857 = vunpack.c.l.b16 %v6716
        %v6858 = vunpack.c.h.b16 %v6716
        %v6859 = vunpack.c.l.b16 %v6717
        %v6860 = vunpack.c.h.b16 %v6717
        %v6861 = vunpack.c.l.b16 %v6718
        %v6862 = vunpack.c.h.b16 %v6718
        %v6863 = vunpack.c.l.b16 %v6719
        %v6864 = vunpack.c.h.b16 %v6719
        %v6865 = vunpack.c.l.b16 %v6720
        %v6866 = vunpack.c.h.b16 %v6720
        %v6867 = vunpack.c.l.b16 %v6721
        %v6868 = vunpack.c.h.b16 %v6721
        %v6869 = vunpack.c.l.b16 %v6722
        %v6870 = vunpack.c.h.b16 %v6722
        %v6871 = vunpack.c.l.b16 %v6723
        %v6872 = vunpack.c.h.b16 %v6723
        %v6873 = vunpack.c.l.b16 %v6724
        %v6874 = vunpack.c.h.b16 %v6724
        %v6875 = vunpack.c.l.b16 %v6725
        %v6876 = vunpack.c.h.b16 %v6725
        %v6877 = vunpack.c.l.b16 %v6726
        %v6878 = vunpack.c.h.b16 %v6726
        %v6879 = vunpack.c.l.b16 %v6727
        %v6880 = vunpack.c.h.b16 %v6727
        %v6881 = vunpack.c.l.b16 %v6728
        %v6882 = vunpack.c.h.b16 %v6728
        %v6883 = vunpack.c.l.b16 %v6729
        %v6884 = vunpack.c.h.b16 %v6729
        %v6885 = vunpack.c.l.b16 %v6730
        %v6886 = vunpack.c.h.b16 %v6730
        %v6887 = vunpack.c.l.b16 %v6731
        %v6888 = vunpack.c.h.b16 %v6731
        %v6889 = vunpack.c.l.b16 %v6732
        %v6890 = vunpack.c.h.b16 %v6732
        %v6891 = vunpack.c.l.b16 %v6733
        %v6892 = vunpack.c.h.b16 %v6733
        %v6893 = vunpack.c.l.b16 %v6734
        %v6894 = vunpack.c.h.b16 %v6734
        %v6895 = vunpack.c.l.b16 %v6735
        %v6896 = vunpack.c.h.b16 %v6735
        %v6897 = vunpack.c.l.b16 %v6736
        %v6898 = vunpack.c.h.b16 %v6736
        %v6899 = vunpack.c.l.b16 %v6737
        %v6900 = vunpack.c.h.b16 %v6737
        %v6901 = vunpack.c.l.b16 %v6738
        %v6902 = vunpack.c.h.b16 %v6738
        %v6903 = vunpack.c.l.b16 %v6739
        %v6904 = vunpack.c.h.b16 %v6739
        %v6905 = vunpack.c.l.b16 %v6740
        %v6906 = vunpack.c.h.b16 %v6740
        %v6907 = vunpack.c.l.b16 %v6741
        %v6908 = vunpack.c.h.b16 %v6741
        %v6909 = vunpack.c.l.b16 %v6742
        %v6910 = vunpack.c.h.b16 %v6742
        %v6911 = vunpack.c.l.b16 %v6743
        %v6912 = vunpack.c.h.b16 %v6743
        %v6913 = vunpack.c.l.b16 %v6744
        %v6914 = vunpack.c.h.b16 %v6744
        %v6915 = vunpack.c.l.b16 %v6745
        %v6916 = vunpack.c.h.b16 %v6745
        %v6917 = vunpack.c.l.b16 %v6746
        %v6918 = vunpack.c.h.b16 %v6746
        %v6919 = vunpack.c.l.b16 %v6747
        %v6920 = vunpack.c.h.b16 %v6747
        %v6921 = vunpack.c.l.b16 %v6748
        %v6922 = vunpack.c.h.b16 %v6748
        %v6923 = vunpack.c.l.b16 %v6749
        %v6924 = vunpack.c.h.b16 %v6749
        %v6925 = vunpack.c.l.b16 %v6750
        %v6926 = vunpack.c.h.b16 %v6750
        %v6927 = vunpack.c.l.b16 %v6751
        %v6928 = vunpack.c.h.b16 %v6751
        %v6929 = vunpack.c.l.b16 %v6752
        %v6930 = vunpack.c.h.b16 %v6752
        %v6931 = vunpack.c.l.b16 %v6753
        %v6932 = vunpack.c.h.b16 %v6753
        %v6933 = vunpack.c.l.b16 %v6754
        %v6934 = vunpack.c.h.b16 %v6754
        %v6935 = vunpack.c.l.b16 %v6755
        %v6936 = vunpack.c.h.b16 %v6755
        %v6937 = vunpack.c.l.b16 %v6756
        %v6938 = vunpack.c.h.b16 %v6756
        %v6939 = vunpack.c.l.b16 %v6757
        %v6940 = vunpack.c.h.b16 %v6757
        %v6941 = vunpack.c.l.b16 %v6758
        %v6942 = vunpack.c.h.b16 %v6758
        %v6943 = vunpack.c.l.b16 %v6759
        %v6944 = vunpack.c.h.b16 %v6759
        %v6945 = vunpack.c.l.b16 %v6760
        %v6946 = vunpack.c.h.b16 %v6760
        %v6947 = vunpack.c.l.b16 %v6761
        %v6948 = vunpack.c.h.b16 %v6761
        %v6949 = vunpack.c.l.b16 %v6762
        %v6950 = vunpack.c.h.b16 %v6762
        %v6951 = vunpack.c.l.b16 %v6763
        %v6952 = vunpack.c.h.b16 %v6763
        %v6953 = vunpack.c.l.b16 %v6764
        %v6954 = vunpack.c.h.b16 %v6764
        %v6955 = vunpack.c.l.b16 %v6765
        %v6956 = vunpack.c.h.b16 %v6765
        %v6957 = vunpack.c.l.b16 %v6766
        %v6958 = vunpack.c.h.b16 %v6766
        %v6959 = vpack.c.b16 %v6833, %v6831
        %v6960 = vpack.c.b16 %v6834, %v6832
        %v6961 = vpack.c.b16 %v6837, %v6835
        %v6962 = vpack.c.b16 %v6838, %v6836
        %v6963 = vpack.c.b16 %v6841, %v6839
        %v6964 = vpack.c.b16 %v6842, %v6840
        %v6965 = vpack.c.b16 %v6845, %v6843
        %v6966 = vpack.c.b16 %v6846, %v6844
        %v6967 = vpack.c.b16 %v6849, %v6847
        %v6968 = vpack.c.b16 %v6850, %v6848
        %v6969 = vpack.c.b16 %v6853, %v6851
        %v6970 = vpack.c.b16 %v6854, %v6852
        %v6971 = vpack.c.b16 %v6857, %v6855
        %v6972 = vpack.c.b16 %v6858, %v6856
        %v6973 = vpack.c.b16 %v6861, %v6859
        %v6974 = vpack.c.b16 %v6862, %v6860
        %v6975 = vpack.c.b16 %v6865, %v6863
        %v6976 = vpack.c.b16 %v6866, %v6864
        %v6977 = vpack.c.b16 %v6869, %v6867
        %v6978 = vpack.c.b16 %v6870, %v6868
        %v6979 = vpack.c.b16 %v6873, %v6871
        %v6980 = vpack.c.b16 %v6874, %v6872
        %v6981 = vpack.c.b16 %v6877, %v6875
        %v6982 = vpack.c.b16 %v6878, %v6876
        %v6983 = vpack.c.b16 %v6881, %v6879
        %v6984 = vpack.c.b16 %v6882, %v6880
        %v6985 = vpack.c.b16 %v6885, %v6883
        %v6986 = vpack.c.b16 %v6886, %v6884
        %v6987 = vpack.c.b16 %v6889, %v6887
        %v6988 = vpack.c.b16 %v6890, %v6888
        %v6989 = vpack.c.b16 %v6893, %v6891
        %v6990 = vpack.c.b16 %v6894, %v6892
        %v6991 = vpack.c.b16 %v6897, %v6895
        %v6992 = vpack.c.b16 %v6898, %v6896
        %v6993 = vpack.c.b16 %v6901, %v6899
        %v6994 = vpack.c.b16 %v6902, %v6900
        %v6995 = vpack.c.b16 %v6905, %v6903
        %v6996 = vpack.c.b16 %v6906, %v6904
        %v6997 = vpack.c.b16 %v6909, %v6907
        %v6998 = vpack.c.b16 %v6910, %v6908
        %v6999 = vpack.c.b16 %v6913, %v6911
        %v7000 = vpack.c.b16 %v6914, %v6912
        %v7001 = vpack.c.b16 %v6917, %v6915
        %v7002 = vpack.c.b16 %v6918, %v6916
        %v7003 = vpack.c.b16 %v6921, %v6919
        %v7004 = vpack.c.b16 %v6922, %v6920
        %v7005 = vpack.c.b16 %v6925, %v6923
        %v7006 = vpack.c.b16 %v6926, %v6924
        %v7007 = vpack.c.b16 %v6929, %v6927
        %v7008 = vpack.c.b16 %v6930, %v6928
        %v7009 = vpack.c.b16 %v6933, %v6931
        %v7010 = vpack.c.b16 %v6934, %v6932
        %v7011 = vpack.c.b16 %v6937, %v6935
        %v7012 = vpack.c.b16 %v6938, %v6936
        %v7013 = vpack.c.b16 %v6941, %v6939
        %v7014 = vpack.c.b16 %v6942, %v6940
        %v7015 = vpack.c.b16 %v6945, %v6943
        %v7016 = vpack.c.b16 %v6946, %v6944
        %v7017 = vpack.c.b16 %v6949, %v6947
        %v7018 = vpack.c.b16 %v6950, %v6948
        %v7019 = vpack.c.b16 %v6953, %v6951
        %v7020 = vpack.c.b16 %v6954, %v6952
        %v7021 = vpack.c.b16 %v6957, %v6955
        %v7022 = vpack.c.b16 %v6958, %v6956
        %7087 = vmatpush.bf16.msra.mxu0 %v6973
        %7088 = vmatpush.bf16.msra.mxu0 %v6971
        %7089 = vmatpush.bf16.msra.mxu0 %v6969
        %7090 = vmatpush.bf16.msra.mxu0 %v6967
        %7091 = vmatpush.bf16.msra.mxu0 %v6965
        %7092 = vmatpush.bf16.msra.mxu0 %v6963
        %7093 = vmatpush.bf16.msra.mxu0 %v6961
        %7094 = vmatpush.bf16.msra.mxu0 %v6959
        %7095 = vmatmul.bf16.gmra.mxu0 %v6667
        %v7096 = vpop.f32.mrf.mxu0
        %v7097 = vadd.f32 0.0, %v7096
        %v7098 = vpop.f32.mrf.mxu0
        %v7099 = vadd.f32 0.0, %v7098
        %7100 = vmatmul.bf16.gmra.mxu0 %v6671
        %v7101 = vpop.f32.mrf.mxu0
        %v7102 = vadd.f32 0.0, %v7101
        %v7103 = vpop.f32.mrf.mxu0
        %v7104 = vadd.f32 0.0, %v7103
        %7105 = vmatmul.bf16.gmra.mxu0 %v6675
        %v7106 = vpop.f32.mrf.mxu0
        %v7107 = vadd.f32 0.0, %v7106
        %v7108 = vpop.f32.mrf.mxu0
        %v7109 = vadd.f32 0.0, %v7108
        %7110 = vmatmul.bf16.gmra.mxu0 %v6679
        %v7111 = vpop.f32.mrf.mxu0
        %v7112 = vadd.f32 0.0, %v7111
        %v7113 = vpop.f32.mrf.mxu0
        %v7114 = vadd.f32 0.0, %v7113
        %7115 = vmatmul.bf16.gmra.mxu0 %v6683
        %v7116 = vpop.f32.mrf.mxu0
        %v7117 = vadd.f32 0.0, %v7116
        %v7118 = vpop.f32.mrf.mxu0
        %v7119 = vadd.f32 0.0, %v7118
        %7120 = vmatmul.bf16.gmra.mxu0 %v6687
        %v7121 = vpop.f32.mrf.mxu0
        %v7122 = vadd.f32 0.0, %v7121
        %v7123 = vpop.f32.mrf.mxu0
        %v7124 = vadd.f32 0.0, %v7123
        %7125 = vmatmul.bf16.gmra.mxu0 %v6691
        %v7126 = vpop.f32.mrf.mxu0
        %v7127 = vadd.f32 0.0, %v7126
        %v7128 = vpop.f32.mrf.mxu0
        %v7129 = vadd.f32 0.0, %v7128
        %7130 = vmatmul.bf16.gmra.mxu0 %v6695
        %v7131 = vpop.f32.mrf.mxu0
        %v7132 = vadd.f32 0.0, %v7131
        %v7133 = vpop.f32.mrf.mxu0
        %v7134 = vadd.f32 0.0, %v7133
        %7135 = vdwg.mxu0
        %7136 = vmatpush.bf16.msra.mxu0 %v6989
        %7137 = vmatpush.bf16.msra.mxu0 %v6987
        %7138 = vmatpush.bf16.msra.mxu0 %v6985
        %7139 = vmatpush.bf16.msra.mxu0 %v6983
        %7140 = vmatpush.bf16.msra.mxu0 %v6981
        %7141 = vmatpush.bf16.msra.mxu0 %v6979
        %7142 = vmatpush.bf16.msra.mxu0 %v6977
        %7143 = vmatpush.bf16.msra.mxu0 %v6975
        %7144 = vmatmul.bf16.gmra.mxu0 %v6668
        %v7145 = vpop.f32.mrf.mxu0
        %v7146 = vadd.f32 %v7097, %v7145
        %v7147 = vpop.f32.mrf.mxu0
        %v7148 = vadd.f32 %v7099, %v7147
        %7149 = vmatmul.bf16.gmra.mxu0 %v6672
        %v7150 = vpop.f32.mrf.mxu0
        %v7151 = vadd.f32 %v7102, %v7150
        %v7152 = vpop.f32.mrf.mxu0
        %v7153 = vadd.f32 %v7104, %v7152
        %7154 = vmatmul.bf16.gmra.mxu0 %v6676
        %v7155 = vpop.f32.mrf.mxu0
        %v7156 = vadd.f32 %v7107, %v7155
        %v7157 = vpop.f32.mrf.mxu0
        %v7158 = vadd.f32 %v7109, %v7157
        %7159 = vmatmul.bf16.gmra.mxu0 %v6680
        %v7160 = vpop.f32.mrf.mxu0
        %v7161 = vadd.f32 %v7112, %v7160
        %v7162 = vpop.f32.mrf.mxu0
        %v7163 = vadd.f32 %v7114, %v7162
        %7164 = vmatmul.bf16.gmra.mxu0 %v6684
        %v7165 = vpop.f32.mrf.mxu0
        %v7166 = vadd.f32 %v7117, %v7165
        %v7167 = vpop.f32.mrf.mxu0
        %v7168 = vadd.f32 %v7119, %v7167
        %7169 = vmatmul.bf16.gmra.mxu0 %v6688
        %v7170 = vpop.f32.mrf.mxu0
        %v7171 = vadd.f32 %v7122, %v7170
        %v7172 = vpop.f32.mrf.mxu0
        %v7173 = vadd.f32 %v7124, %v7172
        %7174 = vmatmul.bf16.gmra.mxu0 %v6692
        %v7175 = vpop.f32.mrf.mxu0
        %v7176 = vadd.f32 %v7127, %v7175
        %v7177 = vpop.f32.mrf.mxu0
        %v7178 = vadd.f32 %v7129, %v7177
        %7179 = vmatmul.bf16.gmra.mxu0 %v6696
        %v7180 = vpop.f32.mrf.mxu0
        %v7181 = vadd.f32 %v7132, %v7180
        %v7182 = vpop.f32.mrf.mxu0
        %v7183 = vadd.f32 %v7134, %v7182
        %7184 = vdwg.mxu0
        %7185 = vmatpush.bf16.msra.mxu0 %v7005
        %7186 = vmatpush.bf16.msra.mxu0 %v7003
        %7187 = vmatpush.bf16.msra.mxu0 %v7001
        %7188 = vmatpush.bf16.msra.mxu0 %v6999
        %7189 = vmatpush.bf16.msra.mxu0 %v6997
        %7190 = vmatpush.bf16.msra.mxu0 %v6995
        %7191 = vmatpush.bf16.msra.mxu0 %v6993
        %7192 = vmatpush.bf16.msra.mxu0 %v6991
        %7193 = vmatmul.bf16.gmra.mxu0 %v6669
        %v7194 = vpop.f32.mrf.mxu0
        %v7195 = vadd.f32 %v7146, %v7194
        %v7196 = vpop.f32.mrf.mxu0
        %v7197 = vadd.f32 %v7148, %v7196
        %7198 = vmatmul.bf16.gmra.mxu0 %v6673
        %v7199 = vpop.f32.mrf.mxu0
        %v7200 = vadd.f32 %v7151, %v7199
        %v7201 = vpop.f32.mrf.mxu0
        %v7202 = vadd.f32 %v7153, %v7201
        %7203 = vmatmul.bf16.gmra.mxu0 %v6677
        %v7204 = vpop.f32.mrf.mxu0
        %v7205 = vadd.f32 %v7156, %v7204
        %v7206 = vpop.f32.mrf.mxu0
        %v7207 = vadd.f32 %v7158, %v7206
        %7208 = vmatmul.bf16.gmra.mxu0 %v6681
        %v7209 = vpop.f32.mrf.mxu0
        %v7210 = vadd.f32 %v7161, %v7209
        %v7211 = vpop.f32.mrf.mxu0
        %v7212 = vadd.f32 %v7163, %v7211
        %7213 = vmatmul.bf16.gmra.mxu0 %v6685
        %v7214 = vpop.f32.mrf.mxu0
        %v7215 = vadd.f32 %v7166, %v7214
        %v7216 = vpop.f32.mrf.mxu0
        %v7217 = vadd.f32 %v7168, %v7216
        %7218 = vmatmul.bf16.gmra.mxu0 %v6689
        %v7219 = vpop.f32.mrf.mxu0
        %v7220 = vadd.f32 %v7171, %v7219
        %v7221 = vpop.f32.mrf.mxu0
        %v7222 = vadd.f32 %v7173, %v7221
        %7223 = vmatmul.bf16.gmra.mxu0 %v6693
        %v7224 = vpop.f32.mrf.mxu0
        %v7225 = vadd.f32 %v7176, %v7224
        %v7226 = vpop.f32.mrf.mxu0
        %v7227 = vadd.f32 %v7178, %v7226
        %7228 = vmatmul.bf16.gmra.mxu0 %v6697
        %v7229 = vpop.f32.mrf.mxu0
        %v7230 = vadd.f32 %v7181, %v7229
        %v7231 = vpop.f32.mrf.mxu0
        %v7232 = vadd.f32 %v7183, %v7231
        %7233 = vdwg.mxu0
        %7234 = vmatpush.bf16.msra.mxu0 %v7021
        %7235 = vmatpush.bf16.msra.mxu0 %v7019
        %7236 = vmatpush.bf16.msra.mxu0 %v7017
        %7237 = vmatpush.bf16.msra.mxu0 %v7015
        %7238 = vmatpush.bf16.msra.mxu0 %v7013
        %7239 = vmatpush.bf16.msra.mxu0 %v7011
        %7240 = vmatpush.bf16.msra.mxu0 %v7009
        %7241 = vmatpush.bf16.msra.mxu0 %v7007
        %7242 = vmatmul.bf16.gmra.mxu0 %v6670
        %v7243 = vpop.f32.mrf.mxu0
        %v7244 = vadd.f32 %v7195, %v7243
        %v7245 = vpop.f32.mrf.mxu0
        %v7246 = vadd.f32 %v7197, %v7245
        %7247 = vmatmul.bf16.gmra.mxu0 %v6674
        %v7248 = vpop.f32.mrf.mxu0
        %v7249 = vadd.f32 %v7200, %v7248
        %v7250 = vpop.f32.mrf.mxu0
        %v7251 = vadd.f32 %v7202, %v7250
        %7252 = vmatmul.bf16.gmra.mxu0 %v6678
        %v7253 = vpop.f32.mrf.mxu0
        %v7254 = vadd.f32 %v7205, %v7253
        %v7255 = vpop.f32.mrf.mxu0
        %v7256 = vadd.f32 %v7207, %v7255
        %7257 = vmatmul.bf16.gmra.mxu0 %v6682
        %v7258 = vpop.f32.mrf.mxu0
        %v7259 = vadd.f32 %v7210, %v7258
        %v7260 = vpop.f32.mrf.mxu0
        %v7261 = vadd.f32 %v7212, %v7260
        %7262 = vmatmul.bf16.gmra.mxu0 %v6686
        %v7263 = vpop.f32.mrf.mxu0
        %v7264 = vadd.f32 %v7215, %v7263
        %v7265 = vpop.f32.mrf.mxu0
        %v7266 = vadd.f32 %v7217, %v7265
        %7267 = vmatmul.bf16.gmra.mxu0 %v6690
        %v7268 = vpop.f32.mrf.mxu0
        %v7269 = vadd.f32 %v7220, %v7268
        %v7270 = vpop.f32.mrf.mxu0
        %v7271 = vadd.f32 %v7222, %v7270
        %7272 = vmatmul.bf16.gmra.mxu0 %v6694
        %v7273 = vpop.f32.mrf.mxu0
        %v7274 = vadd.f32 %v7225, %v7273
        %v7275 = vpop.f32.mrf.mxu0
        %v7276 = vadd.f32 %v7227, %v7275
        %7277 = vmatmul.bf16.gmra.mxu0 %v6698
        %v7278 = vpop.f32.mrf.mxu0
        %v7279 = vadd.f32 %v7230, %v7278
        %v7280 = vpop.f32.mrf.mxu0
        %v7281 = vadd.f32 %v7232, %v7280
        %7282 = vdwg.mxu0
        %7283 = vmatpush.bf16.msra.mxu0 %v6974
        %7284 = vmatpush.bf16.msra.mxu0 %v6972
        %7285 = vmatpush.bf16.msra.mxu0 %v6970
        %7286 = vmatpush.bf16.msra.mxu0 %v6968
        %7287 = vmatpush.bf16.msra.mxu0 %v6966
        %7288 = vmatpush.bf16.msra.mxu0 %v6964
        %7289 = vmatpush.bf16.msra.mxu0 %v6962
        %7290 = vmatpush.bf16.msra.mxu0 %v6960
        %7291 = vmatmul.bf16.gmra.mxu0 %v6667
        %v7292 = vpop.f32.mrf.mxu0
        %v7293 = vadd.f32 0.0, %v7292
        %v7294 = vpop.f32.mrf.mxu0
        %v7295 = vadd.f32 0.0, %v7294
        %7296 = vmatmul.bf16.gmra.mxu0 %v6671
        %v7297 = vpop.f32.mrf.mxu0
        %v7298 = vadd.f32 0.0, %v7297
        %v7299 = vpop.f32.mrf.mxu0
        %v7300 = vadd.f32 0.0, %v7299
        %7301 = vmatmul.bf16.gmra.mxu0 %v6675
        %v7302 = vpop.f32.mrf.mxu0
        %v7303 = vadd.f32 0.0, %v7302
        %v7304 = vpop.f32.mrf.mxu0
        %v7305 = vadd.f32 0.0, %v7304
        %7306 = vmatmul.bf16.gmra.mxu0 %v6679
        %v7307 = vpop.f32.mrf.mxu0
        %v7308 = vadd.f32 0.0, %v7307
        %v7309 = vpop.f32.mrf.mxu0
        %v7310 = vadd.f32 0.0, %v7309
        %7311 = vmatmul.bf16.gmra.mxu0 %v6683
        %v7312 = vpop.f32.mrf.mxu0
        %v7313 = vadd.f32 0.0, %v7312
        %v7314 = vpop.f32.mrf.mxu0
        %v7315 = vadd.f32 0.0, %v7314
        %7316 = vmatmul.bf16.gmra.mxu0 %v6687
        %v7317 = vpop.f32.mrf.mxu0
        %v7318 = vadd.f32 0.0, %v7317
        %v7319 = vpop.f32.mrf.mxu0
        %v7320 = vadd.f32 0.0, %v7319
        %7321 = vmatmul.bf16.gmra.mxu0 %v6691
        %v7322 = vpop.f32.mrf.mxu0
        %v7323 = vadd.f32 0.0, %v7322
        %v7324 = vpop.f32.mrf.mxu0
        %v7325 = vadd.f32 0.0, %v7324
        %7326 = vmatmul.bf16.gmra.mxu0 %v6695
        %v7327 = vpop.f32.mrf.mxu0
        %v7328 = vadd.f32 0.0, %v7327
        %v7329 = vpop.f32.mrf.mxu0
        %v7330 = vadd.f32 0.0, %v7329
        %7331 = vdwg.mxu0
        %7332 = vmatpush.bf16.msra.mxu0 %v6990
        %7333 = vmatpush.bf16.msra.mxu0 %v6988
        %7334 = vmatpush.bf16.msra.mxu0 %v6986
        %7335 = vmatpush.bf16.msra.mxu0 %v6984
        %7336 = vmatpush.bf16.msra.mxu0 %v6982
        %7337 = vmatpush.bf16.msra.mxu0 %v6980
        %7338 = vmatpush.bf16.msra.mxu0 %v6978
        %7339 = vmatpush.bf16.msra.mxu0 %v6976
        %7340 = vmatmul.bf16.gmra.mxu0 %v6668
        %v7341 = vpop.f32.mrf.mxu0
        %v7342 = vadd.f32 %v7293, %v7341
        %v7343 = vpop.f32.mrf.mxu0
        %v7344 = vadd.f32 %v7295, %v7343
        %7345 = vmatmul.bf16.gmra.mxu0 %v6672
        %v7346 = vpop.f32.mrf.mxu0
        %v7347 = vadd.f32 %v7298, %v7346
        %v7348 = vpop.f32.mrf.mxu0
        %v7349 = vadd.f32 %v7300, %v7348
        %7350 = vmatmul.bf16.gmra.mxu0 %v6676
        %v7351 = vpop.f32.mrf.mxu0
        %v7352 = vadd.f32 %v7303, %v7351
        %v7353 = vpop.f32.mrf.mxu0
        %v7354 = vadd.f32 %v7305, %v7353
        %7355 = vmatmul.bf16.gmra.mxu0 %v6680
        %v7356 = vpop.f32.mrf.mxu0
        %v7357 = vadd.f32 %v7308, %v7356
        %v7358 = vpop.f32.mrf.mxu0
        %v7359 = vadd.f32 %v7310, %v7358
        %7360 = vmatmul.bf16.gmra.mxu0 %v6684
        %v7361 = vpop.f32.mrf.mxu0
        %v7362 = vadd.f32 %v7313, %v7361
        %v7363 = vpop.f32.mrf.mxu0
        %v7364 = vadd.f32 %v7315, %v7363
        %7365 = vmatmul.bf16.gmra.mxu0 %v6688
        %v7366 = vpop.f32.mrf.mxu0
        %v7367 = vadd.f32 %v7318, %v7366
        %v7368 = vpop.f32.mrf.mxu0
        %v7369 = vadd.f32 %v7320, %v7368
        %7370 = vmatmul.bf16.gmra.mxu0 %v6692
        %v7371 = vpop.f32.mrf.mxu0
        %v7372 = vadd.f32 %v7323, %v7371
        %v7373 = vpop.f32.mrf.mxu0
        %v7374 = vadd.f32 %v7325, %v7373
        %7375 = vmatmul.bf16.gmra.mxu0 %v6696
        %v7376 = vpop.f32.mrf.mxu0
        %v7377 = vadd.f32 %v7328, %v7376
        %v7378 = vpop.f32.mrf.mxu0
        %v7379 = vadd.f32 %v7330, %v7378
        %7380 = vdwg.mxu0
        %7381 = vmatpush.bf16.msra.mxu0 %v7006
        %7382 = vmatpush.bf16.msra.mxu0 %v7004
        %7383 = vmatpush.bf16.msra.mxu0 %v7002
        %7384 = vmatpush.bf16.msra.mxu0 %v7000
        %7385 = vmatpush.bf16.msra.mxu0 %v6998
        %7386 = vmatpush.bf16.msra.mxu0 %v6996
        %7387 = vmatpush.bf16.msra.mxu0 %v6994
        %7388 = vmatpush.bf16.msra.mxu0 %v6992
        %7389 = vmatmul.bf16.gmra.mxu0 %v6669
        %v7390 = vpop.f32.mrf.mxu0
        %v7391 = vadd.f32 %v7342, %v7390
        %v7392 = vpop.f32.mrf.mxu0
        %v7393 = vadd.f32 %v7344, %v7392
        %7394 = vmatmul.bf16.gmra.mxu0 %v6673
        %v7395 = vpop.f32.mrf.mxu0
        %v7396 = vadd.f32 %v7347, %v7395
        %v7397 = vpop.f32.mrf.mxu0
        %v7398 = vadd.f32 %v7349, %v7397
        %7399 = vmatmul.bf16.gmra.mxu0 %v6677
        %v7400 = vpop.f32.mrf.mxu0
        %v7401 = vadd.f32 %v7352, %v7400
        %v7402 = vpop.f32.mrf.mxu0
        %v7403 = vadd.f32 %v7354, %v7402
        %7404 = vmatmul.bf16.gmra.mxu0 %v6681
        %v7405 = vpop.f32.mrf.mxu0
        %v7406 = vadd.f32 %v7357, %v7405
        %v7407 = vpop.f32.mrf.mxu0
        %v7408 = vadd.f32 %v7359, %v7407
        %7409 = vmatmul.bf16.gmra.mxu0 %v6685
        %v7410 = vpop.f32.mrf.mxu0
        %v7411 = vadd.f32 %v7362, %v7410
        %v7412 = vpop.f32.mrf.mxu0
        %v7413 = vadd.f32 %v7364, %v7412
        %7414 = vmatmul.bf16.gmra.mxu0 %v6689
        %v7415 = vpop.f32.mrf.mxu0
        %v7416 = vadd.f32 %v7367, %v7415
        %v7417 = vpop.f32.mrf.mxu0
        %v7418 = vadd.f32 %v7369, %v7417
        %7419 = vmatmul.bf16.gmra.mxu0 %v6693
        %v7420 = vpop.f32.mrf.mxu0
        %v7421 = vadd.f32 %v7372, %v7420
        %v7422 = vpop.f32.mrf.mxu0
        %v7423 = vadd.f32 %v7374, %v7422
        %7424 = vmatmul.bf16.gmra.mxu0 %v6697
        %v7425 = vpop.f32.mrf.mxu0
        %v7426 = vadd.f32 %v7377, %v7425
        %v7427 = vpop.f32.mrf.mxu0
        %v7428 = vadd.f32 %v7379, %v7427
        %7429 = vdwg.mxu0
        %7430 = vmatpush.bf16.msra.mxu0 %v7022
        %7431 = vmatpush.bf16.msra.mxu0 %v7020
        %7432 = vmatpush.bf16.msra.mxu0 %v7018
        %7433 = vmatpush.bf16.msra.mxu0 %v7016
        %7434 = vmatpush.bf16.msra.mxu0 %v7014
        %7435 = vmatpush.bf16.msra.mxu0 %v7012
        %7436 = vmatpush.bf16.msra.mxu0 %v7010
        %7437 = vmatpush.bf16.msra.mxu0 %v7008
        %7438 = vmatmul.bf16.gmra.mxu0 %v6670
        %v7439 = vpop.f32.mrf.mxu0
        %v7440 = vadd.f32 %v7391, %v7439
        %v7441 = vpop.f32.mrf.mxu0
        %v7442 = vadd.f32 %v7393, %v7441
        %7443 = vmatmul.bf16.gmra.mxu0 %v6674
        %v7444 = vpop.f32.mrf.mxu0
        %v7445 = vadd.f32 %v7396, %v7444
        %v7446 = vpop.f32.mrf.mxu0
        %v7447 = vadd.f32 %v7398, %v7446
        %7448 = vmatmul.bf16.gmra.mxu0 %v6678
        %v7449 = vpop.f32.mrf.mxu0
        %v7450 = vadd.f32 %v7401, %v7449
        %v7451 = vpop.f32.mrf.mxu0
        %v7452 = vadd.f32 %v7403, %v7451
        %7453 = vmatmul.bf16.gmra.mxu0 %v6682
        %v7454 = vpop.f32.mrf.mxu0
        %v7455 = vadd.f32 %v7406, %v7454
        %v7456 = vpop.f32.mrf.mxu0
        %v7457 = vadd.f32 %v7408, %v7456
        %7458 = vmatmul.bf16.gmra.mxu0 %v6686
        %v7459 = vpop.f32.mrf.mxu0
        %v7460 = vadd.f32 %v7411, %v7459
        %v7461 = vpop.f32.mrf.mxu0
        %v7462 = vadd.f32 %v7413, %v7461
        %7463 = vmatmul.bf16.gmra.mxu0 %v6690
        %v7464 = vpop.f32.mrf.mxu0
        %v7465 = vadd.f32 %v7416, %v7464
        %v7466 = vpop.f32.mrf.mxu0
        %v7467 = vadd.f32 %v7418, %v7466
        %7468 = vmatmul.bf16.gmra.mxu0 %v6694
        %v7469 = vpop.f32.mrf.mxu0
        %v7470 = vadd.f32 %v7421, %v7469
        %v7471 = vpop.f32.mrf.mxu0
        %v7472 = vadd.f32 %v7423, %v7471
        %7473 = vmatmul.bf16.gmra.mxu0 %v6698
        %v7474 = vpop.f32.mrf.mxu0
        %v7475 = vadd.f32 %v7426, %v7474
        %v7476 = vpop.f32.mrf.mxu0
        %v7477 = vadd.f32 %v7428, %v7476
        %7478 = vdwg.mxu0
        %v7483 = vunpack.c.l.b16 %v6699
        %v7484 = vunpack.c.h.b16 %v6699
        %v7485 = vunpack.c.l.b16 %v6700
        %v7486 = vunpack.c.h.b16 %v6700
        %v7487 = vunpack.c.l.b16 %v6701
        %v7488 = vunpack.c.h.b16 %v6701
        %v7489 = vunpack.c.l.b16 %v6702
        %v7490 = vunpack.c.h.b16 %v6702
        %v7491 = vpack.c.b16 %v7485, %v7483
        %v7492 = vpack.c.b16 %v7486, %v7484
        %v7493 = vpack.c.b16 %v7489, %v7487
        %v7494 = vpack.c.b16 %v7490, %v7488
        %7499 = vmatpush.bf16.msra.mxu0 0
        %7500 = vmatpush.bf16.msra.mxu0 0
        %7501 = vmatpush.bf16.msra.mxu0 0
        %7502 = vmatpush.bf16.msra.mxu0 0
        %7503 = vmatpush.bf16.msra.mxu0 0
        %7504 = vmatpush.bf16.msra.mxu0 0
        %7505 = vmatpush.bf16.msra.mxu0 %v7493
        %7506 = vmatpush.bf16.msra.mxu0 %v7491
        %7507 = vmatmul.bf16.gmra.mxu0 %v1906
        %v7508 = vpop.f32.mrf.mxu0
        %v7509 = vadd.f32 %v7244, %v7508
        %v7510 = vpop.f32.mrf.mxu0
        %v7511 = vadd.f32 %v7246, %v7510
        %7512 = vmatmul.bf16.gmra.mxu0 %v1909
        %v7513 = vpop.f32.mrf.mxu0
        %v7514 = vadd.f32 %v7249, %v7513
        %v7515 = vpop.f32.mrf.mxu0
        %v7516 = vadd.f32 %v7251, %v7515
        %7517 = vmatmul.bf16.gmra.mxu0 %v1912
        %v7518 = vpop.f32.mrf.mxu0
        %v7519 = vadd.f32 %v7254, %v7518
        %v7520 = vpop.f32.mrf.mxu0
        %v7521 = vadd.f32 %v7256, %v7520
        %7522 = vmatmul.bf16.gmra.mxu0 %v1915
        %v7523 = vpop.f32.mrf.mxu0
        %v7524 = vadd.f32 %v7259, %v7523
        %v7525 = vpop.f32.mrf.mxu0
        %v7526 = vadd.f32 %v7261, %v7525
        %7527 = vmatmul.bf16.gmra.mxu0 %v1918
        %v7528 = vpop.f32.mrf.mxu0
        %v7529 = vadd.f32 %v7264, %v7528
        %v7530 = vpop.f32.mrf.mxu0
        %v7531 = vadd.f32 %v7266, %v7530
        %7532 = vmatmul.bf16.gmra.mxu0 %v1921
        %v7533 = vpop.f32.mrf.mxu0
        %v7534 = vadd.f32 %v7269, %v7533
        %v7535 = vpop.f32.mrf.mxu0
        %v7536 = vadd.f32 %v7271, %v7535
        %7537 = vmatmul.bf16.gmra.mxu0 %v1924
        %v7538 = vpop.f32.mrf.mxu0
        %v7539 = vadd.f32 %v7274, %v7538
        %v7540 = vpop.f32.mrf.mxu0
        %v7541 = vadd.f32 %v7276, %v7540
        %7542 = vmatmul.bf16.gmra.mxu0 %v1927
        %v7543 = vpop.f32.mrf.mxu0
        %v7544 = vadd.f32 %v7279, %v7543
        %v7545 = vpop.f32.mrf.mxu0
        %v7546 = vadd.f32 %v7281, %v7545
        %7547 = vdwg.mxu0
        %7548 = vmatpush.bf16.msra.mxu0 0
        %7549 = vmatpush.bf16.msra.mxu0 0
        %7550 = vmatpush.bf16.msra.mxu0 0
        %7551 = vmatpush.bf16.msra.mxu0 0
        %7552 = vmatpush.bf16.msra.mxu0 0
        %7553 = vmatpush.bf16.msra.mxu0 0
        %7554 = vmatpush.bf16.msra.mxu0 %v7494
        %7555 = vmatpush.bf16.msra.mxu0 %v7492
        %7556 = vmatmul.bf16.gmra.mxu0 %v1906
        %v7557 = vpop.f32.mrf.mxu0
        %v7558 = vadd.f32 %v7440, %v7557
        %v7559 = vpop.f32.mrf.mxu0
        %v7560 = vadd.f32 %v7442, %v7559
        %7561 = vmatmul.bf16.gmra.mxu0 %v1909
        %v7562 = vpop.f32.mrf.mxu0
        %v7563 = vadd.f32 %v7445, %v7562
        %v7564 = vpop.f32.mrf.mxu0
        %v7565 = vadd.f32 %v7447, %v7564
        %7566 = vmatmul.bf16.gmra.mxu0 %v1912
        %v7567 = vpop.f32.mrf.mxu0
        %v7568 = vadd.f32 %v7450, %v7567
        %v7569 = vpop.f32.mrf.mxu0
        %v7570 = vadd.f32 %v7452, %v7569
        %7571 = vmatmul.bf16.gmra.mxu0 %v1915
        %v7572 = vpop.f32.mrf.mxu0
        %v7573 = vadd.f32 %v7455, %v7572
        %v7574 = vpop.f32.mrf.mxu0
        %v7575 = vadd.f32 %v7457, %v7574
        %7576 = vmatmul.bf16.gmra.mxu0 %v1918
        %v7577 = vpop.f32.mrf.mxu0
        %v7578 = vadd.f32 %v7460, %v7577
        %v7579 = vpop.f32.mrf.mxu0
        %v7580 = vadd.f32 %v7462, %v7579
        %7581 = vmatmul.bf16.gmra.mxu0 %v1921
        %v7582 = vpop.f32.mrf.mxu0
        %v7583 = vadd.f32 %v7465, %v7582
        %v7584 = vpop.f32.mrf.mxu0
        %v7585 = vadd.f32 %v7467, %v7584
        %7586 = vmatmul.bf16.gmra.mxu0 %v1924
        %v7587 = vpop.f32.mrf.mxu0
        %v7588 = vadd.f32 %v7470, %v7587
        %v7589 = vpop.f32.mrf.mxu0
        %v7590 = vadd.f32 %v7472, %v7589
        %7591 = vmatmul.bf16.gmra.mxu0 %v1927
        %v7592 = vpop.f32.mrf.mxu0
        %v7593 = vadd.f32 %v7475, %v7592
        %v7594 = vpop.f32.mrf.mxu0
        %v7595 = vadd.f32 %v7477, %v7594
        %7596 = vdwg.mxu0
        %v7597 = vld [vmem:[%s12] sm:$0x3]
        %v7599 = vperm.slane %v7597, 0
        %v7600 = vperm.slane %v7597, 1
        %v7603 = vmul.f32 %v1602, %v7599
        %v7604 = vmul.f32 %v1602, %v7600
        %v7605 = vmul.f32 %v1607, %v7599
        %v7606 = vmul.f32 %v1607, %v7600
        %v7607 = vmul.f32 %v1612, %v7599
        %v7608 = vmul.f32 %v1612, %v7600
        %v7609 = vmul.f32 %v1617, %v7599
        %v7610 = vmul.f32 %v1617, %v7600
        %v7611 = vmul.f32 %v1622, %v7599
        %v7612 = vmul.f32 %v1622, %v7600
        %v7613 = vmul.f32 %v1627, %v7599
        %v7614 = vmul.f32 %v1627, %v7600
        %v7615 = vmul.f32 %v1632, %v7599
        %v7616 = vmul.f32 %v1632, %v7600
        %v7617 = vmul.f32 %v1637, %v7599
        %v7618 = vmul.f32 %v1637, %v7600
        %v7619 = vmul.f32 %v1642, %v7599
        %v7620 = vmul.f32 %v1642, %v7600
        %v7621 = vmul.f32 %v1647, %v7599
        %v7622 = vmul.f32 %v1647, %v7600
        %v7623 = vmul.f32 %v1652, %v7599
        %v7624 = vmul.f32 %v1652, %v7600
        %v7625 = vmul.f32 %v1657, %v7599
        %v7626 = vmul.f32 %v1657, %v7600
        %v7627 = vmul.f32 %v1662, %v7599
        %v7628 = vmul.f32 %v1662, %v7600
        %v7629 = vmul.f32 %v1667, %v7599
        %v7630 = vmul.f32 %v1667, %v7600
        %v7631 = vmul.f32 %v1672, %v7599
        %v7632 = vmul.f32 %v1672, %v7600
        %v7633 = vmul.f32 %v1677, %v7599
        %v7634 = vmul.f32 %v1677, %v7600
        %v7635 = vadd.f32 %v7509, %v7603
        %v7636 = vadd.f32 %v7558, %v7604
        %v7637 = vadd.f32 %v7511, %v7605
        %v7638 = vadd.f32 %v7560, %v7606
        %v7639 = vadd.f32 %v7514, %v7607
        %v7640 = vadd.f32 %v7563, %v7608
        %v7641 = vadd.f32 %v7516, %v7609
        %v7642 = vadd.f32 %v7565, %v7610
        %v7643 = vadd.f32 %v7519, %v7611
        %v7644 = vadd.f32 %v7568, %v7612
        %v7645 = vadd.f32 %v7521, %v7613
        %v7646 = vadd.f32 %v7570, %v7614
        %v7647 = vadd.f32 %v7524, %v7615
        %v7648 = vadd.f32 %v7573, %v7616
        %v7649 = vadd.f32 %v7526, %v7617
        %v7650 = vadd.f32 %v7575, %v7618
        %v7651 = vadd.f32 %v7529, %v7619
        %v7652 = vadd.f32 %v7578, %v7620
        %v7653 = vadd.f32 %v7531, %v7621
        %v7654 = vadd.f32 %v7580, %v7622
        %v7655 = vadd.f32 %v7534, %v7623
        %v7656 = vadd.f32 %v7583, %v7624
        %v7657 = vadd.f32 %v7536, %v7625
        %v7658 = vadd.f32 %v7585, %v7626
        %v7659 = vadd.f32 %v7539, %v7627
        %v7660 = vadd.f32 %v7588, %v7628
        %v7661 = vadd.f32 %v7541, %v7629
        %v7662 = vadd.f32 %v7590, %v7630
        %v7663 = vadd.f32 %v7544, %v7631
        %v7664 = vadd.f32 %v7593, %v7632
        %v7665 = vadd.f32 %v7546, %v7633
        %v7666 = vadd.f32 %v7595, %v7634
        %v7667 = vld [vmem:[%s14] sm:$0x3]
        %v7669 = vperm.slane %v7667, 0
        %v7670 = vperm.slane %v7667, 1
        %v7673 = vadd.f32 %v7635, %v7669
        %v7674 = vadd.f32 %v7636, %v7670
        %v7675 = vadd.f32 %v7637, %v7669
        %v7676 = vadd.f32 %v7638, %v7670
        %v7677 = vadd.f32 %v7639, %v7669
        %v7678 = vadd.f32 %v7640, %v7670
        %v7679 = vadd.f32 %v7641, %v7669
        %v7680 = vadd.f32 %v7642, %v7670
        %v7681 = vadd.f32 %v7643, %v7669
        %v7682 = vadd.f32 %v7644, %v7670
        %v7683 = vadd.f32 %v7645, %v7669
        %v7684 = vadd.f32 %v7646, %v7670
        %v7685 = vadd.f32 %v7647, %v7669
        %v7686 = vadd.f32 %v7648, %v7670
        %v7687 = vadd.f32 %v7649, %v7669
        %v7688 = vadd.f32 %v7650, %v7670
        %v7689 = vadd.f32 %v7651, %v7669
        %v7690 = vadd.f32 %v7652, %v7670
        %v7691 = vadd.f32 %v7653, %v7669
        %v7692 = vadd.f32 %v7654, %v7670
        %v7693 = vadd.f32 %v7655, %v7669
        %v7694 = vadd.f32 %v7656, %v7670
        %v7695 = vadd.f32 %v7657, %v7669
        %v7696 = vadd.f32 %v7658, %v7670
        %v7697 = vadd.f32 %v7659, %v7669
        %v7698 = vadd.f32 %v7660, %v7670
        %v7699 = vadd.f32 %v7661, %v7669
        %v7700 = vadd.f32 %v7662, %v7670
        %v7701 = vadd.f32 %v7663, %v7669
        %v7702 = vadd.f32 %v7664, %v7670
        %v7703 = vadd.f32 %v7665, %v7669
        %v7704 = vadd.f32 %v7666, %v7670
        %vm7705 = vcmp.ge.f32.partialorder %v7673, 0.0
        %vm7706 = vcmp.ge.f32.partialorder %v7674, 0.0
        %vm7707 = vcmp.ge.f32.partialorder %v7675, 0.0
        %vm7708 = vcmp.ge.f32.partialorder %v7676, 0.0
        %vm7709 = vcmp.ge.f32.partialorder %v7677, 0.0
        %vm7710 = vcmp.ge.f32.partialorder %v7678, 0.0
        %vm7711 = vcmp.ge.f32.partialorder %v7679, 0.0
        %vm7712 = vcmp.ge.f32.partialorder %v7680, 0.0
        %vm7713 = vcmp.ge.f32.partialorder %v7681, 0.0
        %vm7714 = vcmp.ge.f32.partialorder %v7682, 0.0
        %vm7715 = vcmp.ge.f32.partialorder %v7683, 0.0
        %vm7716 = vcmp.ge.f32.partialorder %v7684, 0.0
        %vm7717 = vcmp.ge.f32.partialorder %v7685, 0.0
        %vm7718 = vcmp.ge.f32.partialorder %v7686, 0.0
        %vm7719 = vcmp.ge.f32.partialorder %v7687, 0.0
        %vm7720 = vcmp.ge.f32.partialorder %v7688, 0.0
        %vm7721 = vcmp.ge.f32.partialorder %v7689, 0.0
        %vm7722 = vcmp.ge.f32.partialorder %v7690, 0.0
        %vm7723 = vcmp.ge.f32.partialorder %v7691, 0.0
        %vm7724 = vcmp.ge.f32.partialorder %v7692, 0.0
        %vm7725 = vcmp.ge.f32.partialorder %v7693, 0.0
        %vm7726 = vcmp.ge.f32.partialorder %v7694, 0.0
        %vm7727 = vcmp.ge.f32.partialorder %v7695, 0.0
        %vm7728 = vcmp.ge.f32.partialorder %v7696, 0.0
        %vm7729 = vcmp.ge.f32.partialorder %v7697, 0.0
        %vm7730 = vcmp.ge.f32.partialorder %v7698, 0.0
        %vm7731 = vcmp.ge.f32.partialorder %v7699, 0.0
        %vm7732 = vcmp.ge.f32.partialorder %v7700, 0.0
        %vm7733 = vcmp.ge.f32.partialorder %v7701, 0.0
        %vm7734 = vcmp.ge.f32.partialorder %v7702, 0.0
        %vm7735 = vcmp.ge.f32.partialorder %v7703, 0.0
        %vm7736 = vcmp.ge.f32.partialorder %v7704, 0.0
        %v7737 = vmul.f32 %v7673, 0.2
        %v7738 = vmul.f32 %v7674, 0.2
        %v7739 = vmul.f32 %v7675, 0.2
        %v7740 = vmul.f32 %v7676, 0.2
        %v7741 = vmul.f32 %v7677, 0.2
        %v7742 = vmul.f32 %v7678, 0.2
        %v7743 = vmul.f32 %v7679, 0.2
        %v7744 = vmul.f32 %v7680, 0.2
        %v7745 = vmul.f32 %v7681, 0.2
        %v7746 = vmul.f32 %v7682, 0.2
        %v7747 = vmul.f32 %v7683, 0.2
        %v7748 = vmul.f32 %v7684, 0.2
        %v7749 = vmul.f32 %v7685, 0.2
        %v7750 = vmul.f32 %v7686, 0.2
        %v7751 = vmul.f32 %v7687, 0.2
        %v7752 = vmul.f32 %v7688, 0.2
        %v7753 = vmul.f32 %v7689, 0.2
        %v7754 = vmul.f32 %v7690, 0.2
        %v7755 = vmul.f32 %v7691, 0.2
        %v7756 = vmul.f32 %v7692, 0.2
        %v7757 = vmul.f32 %v7693, 0.2
        %v7758 = vmul.f32 %v7694, 0.2
        %v7759 = vmul.f32 %v7695, 0.2
        %v7760 = vmul.f32 %v7696, 0.2
        %v7761 = vmul.f32 %v7697, 0.2
        %v7762 = vmul.f32 %v7698, 0.2
        %v7763 = vmul.f32 %v7699, 0.2
        %v7764 = vmul.f32 %v7700, 0.2
        %v7765 = vmul.f32 %v7701, 0.2
        %v7766 = vmul.f32 %v7702, 0.2
        %v7767 = vmul.f32 %v7703, 0.2
        %v7768 = vmul.f32 %v7704, 0.2
        %v7769 = vsel %vm7705, %v7673, %v7737
        %v7770 = vsel %vm7706, %v7674, %v7738
        %v7771 = vsel %vm7707, %v7675, %v7739
        %v7772 = vsel %vm7708, %v7676, %v7740
        %v7773 = vsel %vm7709, %v7677, %v7741
        %v7774 = vsel %vm7710, %v7678, %v7742
        %v7775 = vsel %vm7711, %v7679, %v7743
        %v7776 = vsel %vm7712, %v7680, %v7744
        %v7777 = vsel %vm7713, %v7681, %v7745
        %v7778 = vsel %vm7714, %v7682, %v7746
        %v7779 = vsel %vm7715, %v7683, %v7747
        %v7780 = vsel %vm7716, %v7684, %v7748
        %v7781 = vsel %vm7717, %v7685, %v7749
        %v7782 = vsel %vm7718, %v7686, %v7750
        %v7783 = vsel %vm7719, %v7687, %v7751
        %v7784 = vsel %vm7720, %v7688, %v7752
        %v7785 = vsel %vm7721, %v7689, %v7753
        %v7786 = vsel %vm7722, %v7690, %v7754
        %v7787 = vsel %vm7723, %v7691, %v7755
        %v7788 = vsel %vm7724, %v7692, %v7756
        %v7789 = vsel %vm7725, %v7693, %v7757
        %v7790 = vsel %vm7726, %v7694, %v7758
        %v7791 = vsel %vm7727, %v7695, %v7759
        %v7792 = vsel %vm7728, %v7696, %v7760
        %v7793 = vsel %vm7729, %v7697, %v7761
        %v7794 = vsel %vm7730, %v7698, %v7762
        %v7795 = vsel %vm7731, %v7699, %v7763
        %v7796 = vsel %vm7732, %v7700, %v7764
        %v7797 = vsel %vm7733, %v7701, %v7765
        %v7798 = vsel %vm7734, %v7702, %v7766
        %v7799 = vsel %vm7735, %v7703, %v7767
        %v7800 = vsel %vm7736, %v7704, %v7768
        %v7801 = vpack.c.bf16 %v7771, %v7769
        %v7802 = vpack.c.bf16 %v7772, %v7770
        %v7803 = vpack.c.bf16 %v7775, %v7773
        %v7804 = vpack.c.bf16 %v7776, %v7774
        %v7805 = vpack.c.bf16 %v7779, %v7777
        %v7806 = vpack.c.bf16 %v7780, %v7778
        %v7807 = vpack.c.bf16 %v7783, %v7781
        %v7808 = vpack.c.bf16 %v7784, %v7782
        %v7809 = vpack.c.bf16 %v7787, %v7785
        %v7810 = vpack.c.bf16 %v7788, %v7786
        %v7811 = vpack.c.bf16 %v7791, %v7789
        %v7812 = vpack.c.bf16 %v7792, %v7790
        %v7813 = vpack.c.bf16 %v7795, %v7793
        %v7814 = vpack.c.bf16 %v7796, %v7794
        %v7815 = vpack.c.bf16 %v7799, %v7797
        %v7816 = vpack.c.bf16 %v7800, %v7798
        %v7817 = vld [vmem:[%s15] sm:$0xf]
        %v7818 = vld [vmem:[%s15 + $0x4] sm:$0xf]
        %v7819 = vld [vmem:[%s15 + $0x8] sm:$0xf]
        %v7820 = vld [vmem:[%s15 + $0xc] sm:$0xf]
        %v7821 = vld [vmem:[%s17] sm:$0xf]
        %v7822 = vld [vmem:[%s17 + $0x4] sm:$0xf]
        %v7823 = vld [vmem:[%s17 + $0x8] sm:$0xf]
        %v7824 = vld [vmem:[%s17 + $0xc] sm:$0xf]
        %v7825 = vld [vmem:[%s17 + $0x10] sm:$0xf]
        %v7826 = vld [vmem:[%s17 + $0x14] sm:$0xf]
        %v7827 = vld [vmem:[%s17 + $0x18] sm:$0xf]
        %v7828 = vld [vmem:[%s17 + $0x1c] sm:$0xf]
        %v7829 = vld [vmem:[%s17 + $0x20] sm:$0xf]
        %v7830 = vld [vmem:[%s17 + $0x24] sm:$0xf]
        %v7831 = vld [vmem:[%s17 + $0x28] sm:$0xf]
        %v7832 = vld [vmem:[%s17 + $0x2c] sm:$0xf]
        %v7833 = vld [vmem:[%s17 + $0x30] sm:$0xf]
        %v7834 = vld [vmem:[%s17 + $0x34] sm:$0xf]
        %v7835 = vld [vmem:[%s17 + $0x38] sm:$0xf]
        %v7836 = vld [vmem:[%s17 + $0x3c] sm:$0xf]
        %v7837 = vld [vmem:[%s17 + $0x40] sm:$0xf]
        %v7838 = vld [vmem:[%s17 + $0x44] sm:$0xf]
        %v7839 = vld [vmem:[%s17 + $0x48] sm:$0xf]
        %v7840 = vld [vmem:[%s17 + $0x4c] sm:$0xf]
        %v7841 = vld [vmem:[%s17 + $0x50] sm:$0xf]
        %v7842 = vld [vmem:[%s17 + $0x54] sm:$0xf]
        %v7843 = vld [vmem:[%s17 + $0x58] sm:$0xf]
        %v7844 = vld [vmem:[%s17 + $0x5c] sm:$0xf]
        %v7845 = vld [vmem:[%s17 + $0x60] sm:$0xf]
        %v7846 = vld [vmem:[%s17 + $0x64] sm:$0xf]
        %v7847 = vld [vmem:[%s17 + $0x68] sm:$0xf]
        %v7848 = vld [vmem:[%s17 + $0x6c] sm:$0xf]
        %v7849 = vld [vmem:[%s17 + $0x70] sm:$0xf]
        %v7850 = vld [vmem:[%s17 + $0x74] sm:$0xf]
        %v7851 = vld [vmem:[%s17 + $0x78] sm:$0xf]
        %v7852 = vld [vmem:[%s17 + $0x7c] sm:$0xf]
        %v7885 = vunpack.c.l.b16 %v7821
        %v7886 = vunpack.c.l.b16 %v7822
        %v7887 = vunpack.c.l.b16 %v7823
        %v7888 = vunpack.c.l.b16 %v7824
        %v7889 = vunpack.c.l.b16 %v7825
        %v7890 = vunpack.c.l.b16 %v7826
        %v7891 = vunpack.c.l.b16 %v7827
        %v7892 = vunpack.c.l.b16 %v7828
        %v7893 = vunpack.c.l.b16 %v7829
        %v7894 = vunpack.c.l.b16 %v7830
        %v7895 = vunpack.c.l.b16 %v7831
        %v7896 = vunpack.c.l.b16 %v7832
        %v7897 = vunpack.c.l.b16 %v7833
        %v7898 = vunpack.c.l.b16 %v7834
        %v7899 = vunpack.c.l.b16 %v7835
        %v7900 = vunpack.c.l.b16 %v7836
        %v7901 = vunpack.c.l.b16 %v7837
        %v7902 = vunpack.c.l.b16 %v7838
        %v7903 = vunpack.c.l.b16 %v7839
        %v7904 = vunpack.c.l.b16 %v7840
        %v7905 = vunpack.c.l.b16 %v7841
        %v7906 = vunpack.c.l.b16 %v7842
        %v7907 = vunpack.c.l.b16 %v7843
        %v7908 = vunpack.c.l.b16 %v7844
        %v7909 = vunpack.c.l.b16 %v7845
        %v7910 = vunpack.c.l.b16 %v7846
        %v7911 = vunpack.c.l.b16 %v7847
        %v7912 = vunpack.c.l.b16 %v7848
        %v7913 = vunpack.c.l.b16 %v7849
        %v7914 = vunpack.c.l.b16 %v7850
        %v7915 = vunpack.c.l.b16 %v7851
        %v7916 = vunpack.c.l.b16 %v7852
        %v7917 = vpack.c.b16 %v7886, %v7885
        %v7918 = vpack.c.b16 %v7888, %v7887
        %v7919 = vpack.c.b16 %v7890, %v7889
        %v7920 = vpack.c.b16 %v7892, %v7891
        %v7921 = vpack.c.b16 %v7894, %v7893
        %v7922 = vpack.c.b16 %v7896, %v7895
        %v7923 = vpack.c.b16 %v7898, %v7897
        %v7924 = vpack.c.b16 %v7900, %v7899
        %v7925 = vpack.c.b16 %v7902, %v7901
        %v7926 = vpack.c.b16 %v7904, %v7903
        %v7927 = vpack.c.b16 %v7906, %v7905
        %v7928 = vpack.c.b16 %v7908, %v7907
        %v7929 = vpack.c.b16 %v7910, %v7909
        %v7930 = vpack.c.b16 %v7912, %v7911
        %v7931 = vpack.c.b16 %v7914, %v7913
        %v7932 = vpack.c.b16 %v7916, %v7915
        %7949 = vmatpush.bf16.msra.mxu0 %v7924
        %7950 = vmatpush.bf16.msra.mxu0 %v7923
        %7951 = vmatpush.bf16.msra.mxu0 %v7922
        %7952 = vmatpush.bf16.msra.mxu0 %v7921
        %7953 = vmatpush.bf16.msra.mxu0 %v7920
        %7954 = vmatpush.bf16.msra.mxu0 %v7919
        %7955 = vmatpush.bf16.msra.mxu0 %v7918
        %7956 = vmatpush.bf16.msra.mxu0 %v7917
        %7957 = vmatmul.bf16.gmra.mxu0 %v7801
        %v7958 = vpop.f32.mrf.mxu0
        %v7959 = vadd.f32 0.0, %v7958
        %v7960 = vpop.f32.mrf.mxu0
        %v7961 = vadd.f32 0.0, %v7960
        %7962 = vmatmul.bf16.gmra.mxu0 %v7803
        %v7963 = vpop.f32.mrf.mxu0
        %v7964 = vadd.f32 0.0, %v7963
        %v7965 = vpop.f32.mrf.mxu0
        %v7966 = vadd.f32 0.0, %v7965
        %7967 = vmatmul.bf16.gmra.mxu0 %v7805
        %v7968 = vpop.f32.mrf.mxu0
        %v7969 = vadd.f32 0.0, %v7968
        %v7970 = vpop.f32.mrf.mxu0
        %v7971 = vadd.f32 0.0, %v7970
        %7972 = vmatmul.bf16.gmra.mxu0 %v7807
        %v7973 = vpop.f32.mrf.mxu0
        %v7974 = vadd.f32 0.0, %v7973
        %v7975 = vpop.f32.mrf.mxu0
        %v7976 = vadd.f32 0.0, %v7975
        %7977 = vmatmul.bf16.gmra.mxu0 %v7809
        %v7978 = vpop.f32.mrf.mxu0
        %v7979 = vadd.f32 0.0, %v7978
        %v7980 = vpop.f32.mrf.mxu0
        %v7981 = vadd.f32 0.0, %v7980
        %7982 = vmatmul.bf16.gmra.mxu0 %v7811
        %v7983 = vpop.f32.mrf.mxu0
        %v7984 = vadd.f32 0.0, %v7983
        %v7985 = vpop.f32.mrf.mxu0
        %v7986 = vadd.f32 0.0, %v7985
        %7987 = vmatmul.bf16.gmra.mxu0 %v7813
        %v7988 = vpop.f32.mrf.mxu0
        %v7989 = vadd.f32 0.0, %v7988
        %v7990 = vpop.f32.mrf.mxu0
        %v7991 = vadd.f32 0.0, %v7990
        %7992 = vmatmul.bf16.gmra.mxu0 %v7815
        %v7993 = vpop.f32.mrf.mxu0
        %v7994 = vadd.f32 0.0, %v7993
        %v7995 = vpop.f32.mrf.mxu0
        %v7996 = vadd.f32 0.0, %v7995
        %7997 = vdwg.mxu0
        %7998 = vmatpush.bf16.msra.mxu0 %v7932
        %7999 = vmatpush.bf16.msra.mxu0 %v7931
        %8000 = vmatpush.bf16.msra.mxu0 %v7930
        %8001 = vmatpush.bf16.msra.mxu0 %v7929
        %8002 = vmatpush.bf16.msra.mxu0 %v7928
        %8003 = vmatpush.bf16.msra.mxu0 %v7927
        %8004 = vmatpush.bf16.msra.mxu0 %v7926
        %8005 = vmatpush.bf16.msra.mxu0 %v7925
        %8006 = vmatmul.bf16.gmra.mxu0 %v7802
        %v8007 = vpop.f32.mrf.mxu0
        %v8008 = vadd.f32 %v7959, %v8007
        %v8009 = vpop.f32.mrf.mxu0
        %v8010 = vadd.f32 %v7961, %v8009
        %8011 = vmatmul.bf16.gmra.mxu0 %v7804
        %v8012 = vpop.f32.mrf.mxu0
        %v8013 = vadd.f32 %v7964, %v8012
        %v8014 = vpop.f32.mrf.mxu0
        %v8015 = vadd.f32 %v7966, %v8014
        %8016 = vmatmul.bf16.gmra.mxu0 %v7806
        %v8017 = vpop.f32.mrf.mxu0
        %v8018 = vadd.f32 %v7969, %v8017
        %v8019 = vpop.f32.mrf.mxu0
        %v8020 = vadd.f32 %v7971, %v8019
        %8021 = vmatmul.bf16.gmra.mxu0 %v7808
        %v8022 = vpop.f32.mrf.mxu0
        %v8023 = vadd.f32 %v7974, %v8022
        %v8024 = vpop.f32.mrf.mxu0
        %v8025 = vadd.f32 %v7976, %v8024
        %8026 = vmatmul.bf16.gmra.mxu0 %v7810
        %v8027 = vpop.f32.mrf.mxu0
        %v8028 = vadd.f32 %v7979, %v8027
        %v8029 = vpop.f32.mrf.mxu0
        %v8030 = vadd.f32 %v7981, %v8029
        %8031 = vmatmul.bf16.gmra.mxu0 %v7812
        %v8032 = vpop.f32.mrf.mxu0
        %v8033 = vadd.f32 %v7984, %v8032
        %v8034 = vpop.f32.mrf.mxu0
        %v8035 = vadd.f32 %v7986, %v8034
        %8036 = vmatmul.bf16.gmra.mxu0 %v7814
        %v8037 = vpop.f32.mrf.mxu0
        %v8038 = vadd.f32 %v7989, %v8037
        %v8039 = vpop.f32.mrf.mxu0
        %v8040 = vadd.f32 %v7991, %v8039
        %8041 = vmatmul.bf16.gmra.mxu0 %v7816
        %v8042 = vpop.f32.mrf.mxu0
        %v8043 = vadd.f32 %v7994, %v8042
        %v8044 = vpop.f32.mrf.mxu0
        %v8045 = vadd.f32 %v7996, %v8044
        %8046 = vdwg.mxu0
        %v8051 = vunpack.c.l.b16 %v7817
        %v8052 = vunpack.c.l.b16 %v7818
        %v8053 = vunpack.c.l.b16 %v7819
        %v8054 = vunpack.c.l.b16 %v7820
        %v8055 = vpack.c.b16 %v8052, %v8051
        %v8056 = vpack.c.b16 %v8054, %v8053
        %8059 = vmatpush.bf16.msra.mxu0 0
        %8060 = vmatpush.bf16.msra.mxu0 0
        %8061 = vmatpush.bf16.msra.mxu0 0
        %8062 = vmatpush.bf16.msra.mxu0 0
        %8063 = vmatpush.bf16.msra.mxu0 0
        %8064 = vmatpush.bf16.msra.mxu0 0
        %8065 = vmatpush.bf16.msra.mxu0 %v8056
        %8066 = vmatpush.bf16.msra.mxu0 %v8055
        %8067 = vmatmul.bf16.gmra.mxu0 %v1906
        %v8068 = vpop.f32.mrf.mxu0
        %v8069 = vadd.f32 %v8008, %v8068
        %v8070 = vpop.f32.mrf.mxu0
        %v8071 = vadd.f32 %v8010, %v8070
        %8072 = vmatmul.bf16.gmra.mxu0 %v1909
        %v8073 = vpop.f32.mrf.mxu0
        %v8074 = vadd.f32 %v8013, %v8073
        %v8075 = vpop.f32.mrf.mxu0
        %v8076 = vadd.f32 %v8015, %v8075
        %8077 = vmatmul.bf16.gmra.mxu0 %v1912
        %v8078 = vpop.f32.mrf.mxu0
        %v8079 = vadd.f32 %v8018, %v8078
        %v8080 = vpop.f32.mrf.mxu0
        %v8081 = vadd.f32 %v8020, %v8080
        %8082 = vmatmul.bf16.gmra.mxu0 %v1915
        %v8083 = vpop.f32.mrf.mxu0
        %v8084 = vadd.f32 %v8023, %v8083
        %v8085 = vpop.f32.mrf.mxu0
        %v8086 = vadd.f32 %v8025, %v8085
        %8087 = vmatmul.bf16.gmra.mxu0 %v1918
        %v8088 = vpop.f32.mrf.mxu0
        %v8089 = vadd.f32 %v8028, %v8088
        %v8090 = vpop.f32.mrf.mxu0
        %v8091 = vadd.f32 %v8030, %v8090
        %8092 = vmatmul.bf16.gmra.mxu0 %v1921
        %v8093 = vpop.f32.mrf.mxu0
        %v8094 = vadd.f32 %v8033, %v8093
        %v8095 = vpop.f32.mrf.mxu0
        %v8096 = vadd.f32 %v8035, %v8095
        %8097 = vmatmul.bf16.gmra.mxu0 %v1924
        %v8098 = vpop.f32.mrf.mxu0
        %v8099 = vadd.f32 %v8038, %v8098
        %v8100 = vpop.f32.mrf.mxu0
        %v8101 = vadd.f32 %v8040, %v8100
        %8102 = vmatmul.bf16.gmra.mxu0 %v1927
        %v8103 = vpop.f32.mrf.mxu0
        %v8104 = vadd.f32 %v8043, %v8103
        %v8105 = vpop.f32.mrf.mxu0
        %v8106 = vadd.f32 %v8045, %v8105
        %8107 = vdwg.mxu0
        %v8108 = vld [vmem:[%s16] sm:$0x1]
        %v8110 = vperm.slane %v8108, 0
        %v8112 = vmul.f32 %v1602, %v8110
        %v8113 = vmul.f32 %v1607, %v8110
        %v8114 = vmul.f32 %v1612, %v8110
        %v8115 = vmul.f32 %v1617, %v8110
        %v8116 = vmul.f32 %v1622, %v8110
        %v8117 = vmul.f32 %v1627, %v8110
        %v8118 = vmul.f32 %v1632, %v8110
        %v8119 = vmul.f32 %v1637, %v8110
        %v8120 = vmul.f32 %v1642, %v8110
        %v8121 = vmul.f32 %v1647, %v8110
        %v8122 = vmul.f32 %v1652, %v8110
        %v8123 = vmul.f32 %v1657, %v8110
        %v8124 = vmul.f32 %v1662, %v8110
        %v8125 = vmul.f32 %v1667, %v8110
        %v8126 = vmul.f32 %v1672, %v8110
        %v8127 = vmul.f32 %v1677, %v8110
        %v8128 = vadd.f32 %v8069, %v8112
        %v8129 = vadd.f32 %v8071, %v8113
        %v8130 = vadd.f32 %v8074, %v8114
        %v8131 = vadd.f32 %v8076, %v8115
        %v8132 = vadd.f32 %v8079, %v8116
        %v8133 = vadd.f32 %v8081, %v8117
        %v8134 = vadd.f32 %v8084, %v8118
        %v8135 = vadd.f32 %v8086, %v8119
        %v8136 = vadd.f32 %v8089, %v8120
        %v8137 = vadd.f32 %v8091, %v8121
        %v8138 = vadd.f32 %v8094, %v8122
        %v8139 = vadd.f32 %v8096, %v8123
        %v8140 = vadd.f32 %v8099, %v8124
        %v8141 = vadd.f32 %v8101, %v8125
        %v8142 = vadd.f32 %v8104, %v8126
        %v8143 = vadd.f32 %v8106, %v8127
        %v8144 = vld [vmem:[%s18] sm:$0x1]
        %v8146 = vperm.slane %v8144, 0
        %v8148 = vadd.f32 %v8128, %v8146
        %v8149 = vadd.f32 %v8129, %v8146
        %v8150 = vadd.f32 %v8130, %v8146
        %v8151 = vadd.f32 %v8131, %v8146
        %v8152 = vadd.f32 %v8132, %v8146
        %v8153 = vadd.f32 %v8133, %v8146
        %v8154 = vadd.f32 %v8134, %v8146
        %v8155 = vadd.f32 %v8135, %v8146
        %v8156 = vadd.f32 %v8136, %v8146
        %v8157 = vadd.f32 %v8137, %v8146
        %v8158 = vadd.f32 %v8138, %v8146
        %v8159 = vadd.f32 %v8139, %v8146
        %v8160 = vadd.f32 %v8140, %v8146
        %v8161 = vadd.f32 %v8141, %v8146
        %v8162 = vadd.f32 %v8142, %v8146
        %v8163 = vadd.f32 %v8143, %v8146
        %vm8164 = vcmp.ge.f32.partialorder %v8148, 0.0
        %vm8165 = vcmp.ge.f32.partialorder %v8149, 0.0
        %vm8166 = vcmp.ge.f32.partialorder %v8150, 0.0
        %vm8167 = vcmp.ge.f32.partialorder %v8151, 0.0
        %vm8168 = vcmp.ge.f32.partialorder %v8152, 0.0
        %vm8169 = vcmp.ge.f32.partialorder %v8153, 0.0
        %vm8170 = vcmp.ge.f32.partialorder %v8154, 0.0
        %vm8171 = vcmp.ge.f32.partialorder %v8155, 0.0
        %vm8172 = vcmp.ge.f32.partialorder %v8156, 0.0
        %vm8173 = vcmp.ge.f32.partialorder %v8157, 0.0
        %vm8174 = vcmp.ge.f32.partialorder %v8158, 0.0
        %vm8175 = vcmp.ge.f32.partialorder %v8159, 0.0
        %vm8176 = vcmp.ge.f32.partialorder %v8160, 0.0
        %vm8177 = vcmp.ge.f32.partialorder %v8161, 0.0
        %vm8178 = vcmp.ge.f32.partialorder %v8162, 0.0
        %vm8179 = vcmp.ge.f32.partialorder %v8163, 0.0
        %v8180 = vmul.f32 %v8148, 0.2
        %v8181 = vmul.f32 %v8149, 0.2
        %v8182 = vmul.f32 %v8150, 0.2
        %v8183 = vmul.f32 %v8151, 0.2
        %v8184 = vmul.f32 %v8152, 0.2
        %v8185 = vmul.f32 %v8153, 0.2
        %v8186 = vmul.f32 %v8154, 0.2
        %v8187 = vmul.f32 %v8155, 0.2
        %v8188 = vmul.f32 %v8156, 0.2
        %v8189 = vmul.f32 %v8157, 0.2
        %v8190 = vmul.f32 %v8158, 0.2
        %v8191 = vmul.f32 %v8159, 0.2
        %v8192 = vmul.f32 %v8160, 0.2
        %v8193 = vmul.f32 %v8161, 0.2
        %v8194 = vmul.f32 %v8162, 0.2
        %v8195 = vmul.f32 %v8163, 0.2
        %v8196 = vsel %vm8164, %v8148, %v8180
        %v8197 = vsel %vm8165, %v8149, %v8181
        %v8198 = vsel %vm8166, %v8150, %v8182
        %v8199 = vsel %vm8167, %v8151, %v8183
        %v8200 = vsel %vm8168, %v8152, %v8184
        %v8201 = vsel %vm8169, %v8153, %v8185
        %v8202 = vsel %vm8170, %v8154, %v8186
        %v8203 = vsel %vm8171, %v8155, %v8187
        %v8204 = vsel %vm8172, %v8156, %v8188
        %v8205 = vsel %vm8173, %v8157, %v8189
        %v8206 = vsel %vm8174, %v8158, %v8190
        %v8207 = vsel %vm8175, %v8159, %v8191
        %v8208 = vsel %vm8176, %v8160, %v8192
        %v8209 = vsel %vm8177, %v8161, %v8193
        %v8210 = vsel %vm8178, %v8162, %v8194
        %v8211 = vsel %vm8179, %v8163, %v8195
        %v8212 = vpack.c.bf16 %v8197, %v8196
        %v8213 = vpack.c.bf16 %v8199, %v8198
        %v8214 = vpack.c.bf16 %v8201, %v8200
        %v8215 = vpack.c.bf16 %v8203, %v8202
        %v8216 = vpack.c.bf16 %v8205, %v8204
        %v8217 = vpack.c.bf16 %v8207, %v8206
        %v8218 = vpack.c.bf16 %v8209, %v8208
        %v8219 = vpack.c.bf16 %v8211, %v8210
        %v8220 = vld [vmem:[%s19] sm:$0x1]
        %v8221 = vld [vmem:[#allocation9] sm:$0x1]
        %8223 = vset.pattern.permute.xlu0 0
        %8224 = vperm.xlu0 %8223, %v8221
        %v8225 = vpop.permute.xlu0 %8224
        %v8227 = vperm.slane %v8225, 0
        %8228 = vmatpush.bf16.xpose.msra.mxu0 %v8219
        %8229 = vmatpush.bf16.xpose.msra.mxu0 %v8218
        %8230 = vmatpush.bf16.xpose.msra.mxu0 %v8217
        %8231 = vmatpush.bf16.xpose.msra.mxu0 %v8216
        %8232 = vmatpush.bf16.xpose.msra.mxu0 %v8215
        %8233 = vmatpush.bf16.xpose.msra.mxu0 %v8214
        %8234 = vmatpush.bf16.xpose.msra.mxu0 %v8213
        %8235 = vmatpush.bf16.xpose.msra.mxu0 %v8212
        %8236 = vmatmul.bf16.gmra.mxu0 %v8220
        %v8237 = vpop.f32.mrf.mxu0
        %v8238 = vadd.f32 %v8227, %v8237
        %v8239 = vpop.f32.mrf.mxu0
        %8240 = vdwg.mxu0
        %v8241 = vxor.u32 %v8238, 2147483648
        %v8242 = vmul.f32 %v8241, 1.442695
        %v8243 = vpow.pop %v8242
        %v8244 = vadd.f32 %v8243, 1.0
        %v8245 = vrcp.pop %v8244
        %v8246 = vmul.f32 %v8244, %v8245
        %v8247 = vsub.f32 1.0, %v8246
        %v8248 = vmul.f32 %v8245, %v8247
        %v8249 = vadd.f32 %v8245, %v8248
        %vm8250 = vweird.f32 %v8244
        %vm8251 = vweird.f32 %v8245
        %vm8252 = vmor %vm8250, %vm8251
        %v8253 = vsel %vm8252, %v8245, %v8249
        %v8254 = vand.u32 2147483647, %v8244
        %vm8255 = vcmp.eq.f32.partialorder %v8254, 8.507059e+37
        %v8256 = vand.u32 %v8244, 2147483648
        %v8257 = vor.u32 1.1754944e-38, %v8256
        %v8258 = vsel %vm8255, %v8257, %v8253
        %v8259 = vmul.f32 1.0, %v8258
        %8260 = vst [vmem:[%s668] sm:$0x1] %v8259
        %s8261 = sand.u32 %s484, 1
        %s8262 = scalar_lea.sflag [#allocation12], %s8261
        %s8263 = sand.u32 %s484, 1
        %s8264 = scalar_lea.vmem [#allocation13], %s8263
        // Predicated region
        $region108: #{tpu_custom_call.1} parent=95 // pred_check
          %p8265 = pneg %p494
        $region109: #{tpu_custom_call.1} parent=95 // pred_check_branch
          %8267 = sbr.rel (%p8265) target = $region111
        $region110: #{tpu_custom_call.1} parent=95 // pred_region
          %8269 = vsyncadd %s8262, 0
          %s8270 = smul.addr %s55, 2
          %s8271 = sadd.s32 %s56, %s8270
          %s8272 = scalar_lea.hbm %s21, %s8271
          %s8274 = sshll.u32 %s8264, 4
          %s8275 = int_to_ptr.vmem [resolvable:$true] %s8274
          %s8276 = sshll.u32 %s8272, 4
          %s8277 = int_to_ptr.hbm [resolvable:$true] %s8276
          %8279 = dma.vmem_to_hbm [thread:$0]  %s8275, 16, %s8277, %s8262
        $region111: #{tpu_custom_call.1} parent=95 // pred_fallthru
          _
      $region96: #{tpu_custom_call.1} parent=5 // pred_fallthru
        _
      %p8280 = scmp.le.s32.totalorder 2, %s46
      // Predicated region
      $region112: #{tpu_custom_call.1} parent=5 // pred_check
        %p8281 = pneg %p8280
      $region113: #{tpu_custom_call.1} parent=5 // pred_check_branch
        %8283 = sbr.rel (%p8281) target = $region115
      $region114: #{tpu_custom_call.1} parent=5 // pred_region
        %s8284 = ssub.s32 %s46, 2
        // Predicated region
        $region116: #{tpu_custom_call.1} parent=114 // pred_check
          %p8285 = pneg %p500
        $region117: #{tpu_custom_call.1} parent=114 // pred_check_branch
          %8287 = sbr.rel (%p8285) target = $region119
        $region118: #{tpu_custom_call.1} parent=114 // pred_region
          %s8288 = sand.u32 %s485, 1
          %s8289 = scalar_lea.sflag [#allocation12], %s8288
          %s8290 = sand.u32 %s485, 1
          %s8291 = scalar_lea.vmem [#allocation13], %s8290
          %8293 = dma.done %s8289, 16
        $region119: #{tpu_custom_call.1} parent=114 // pred_fallthru
          _
      $region115: #{tpu_custom_call.1} parent=5 // pred_fallthru
        _
    $region6: #{tpu_custom_call.1} parent=1 // loop_footer
      %s50 = sadd.s32 1, %s46
    $region7: #{tpu_custom_call.1} parent=1 // loop_footer_branch
      %45 = sbr.rel target = $region3
    $region8: #{tpu_custom_call.1} parent=1 // loop_exit
      _
    %8294 = vsyncpa [#allocation11], 1
    %s8295 = scalar_lea.sflag [#allocation11], 1
    %8296 = vsyncpa %s8295, 1
    %8297 = vsyncpa [#allocation12], 1
    %s8298 = scalar_lea.sflag [#allocation12], 1
    %8299 = vsyncpa %s8298, 1

</llo_original>
